<compile_context>
chip_gen: v7x
topology: tpu7x:2x2x1
jax: 0.10.0
libtpu: 0.0.40
codegen_flags: <defaults>
</compile_context>

<pallas_src>
import jax
import jax.numpy as jnp
from jax.experimental import pallas as pl
from jax.experimental.pallas import tpu as pltpu

NEG_SLOPE = 0.01  # torch.nn.LeakyReLU default negative_slope


def _conv3x3_s2(read_rows, Ho, Wo, cin, cout, w_ref, b_ref):
    """3x3 / stride-2 / pad-1 conv of a zero-padded input, as 9 accumulating MXU dots.

    read_rows(kh) must return padded input rows kh .. kh+2*Ho-1, shape (2*Ho, 2*Wo+2, cin).
    Returns the pre-activation output as an f32 array of shape (Ho*Wo, cout).
    """
    acc = jnp.zeros((Ho * Wo, cout), jnp.float32)
    for kh in range(3):
        rows = read_rows(kh)                                      # (2Ho, 2Wo+2, cin)
        # keep padded rows kh, kh+2, ... (stride-2 along H via leading-dim reshape)
        rows = rows.reshape(Ho, 2, 2 * Wo + 2, cin)[:, 0]         # (Ho, 2Wo+2, cin)
        # split padded columns into (even, odd) pairs once per kh
        cols = rows.reshape(Ho, Wo + 1, 2, cin)
        even = cols[:, :, 0, :]                                   # padded cols 0,2,...,2Wo
        odd = cols[:, :, 1, :]                                    # padded cols 1,3,...,2Wo+1
        taps = (even[:, 0:Wo], odd[:, 0:Wo], even[:, 1:Wo + 1])   # kw = 0, 1, 2
        for kw in range(3):
            lhs = taps[kw].reshape(Ho * Wo, cin).astype(jnp.bfloat16)
            rhs = w_ref[kh * 3 + kw]                              # (cin, cout) bf16, VMEM-resident
            acc = acc + jnp.dot(lhs, rhs, preferred_element_type=jnp.float32)
    return acc + b_ref[...]                                       # f32 bias, (1, cout) broadcast


def _tower_kernel(x_ref, w1_ref, b1_ref, w2_ref, b2_ref, w3_ref, b3_ref,
                  o_ref, s1_ref, s2_ref):
    """Fused 3-layer conv tower for one batch element (grid axis = batch)."""
    # Zero the padded intermediate buffers (their 1-pixel borders must read as zero).
    s1_ref[...] = jnp.zeros(s1_ref.shape, s1_ref.dtype)
    s2_ref[...] = jnp.zeros(s2_ref.shape, s2_ref.dtype)

    _, Hp0, Wp0, c0 = x_ref.shape
    Ho1, Wo1 = (Hp0 - 2) // 2, (Wp0 - 2) // 2
    Ho2, Wo2 = Ho1 // 2, Wo1 // 2
    Ho3, Wo3 = Ho2 // 2, Wo2 // 2
    c1, c2, c3 = w1_ref.shape[-1], w2_ref.shape[-1], w3_ref.shape[-1]

    # ---- layer 1: conv(cin -> c1) + LeakyReLU, stored (bf16) into padded VMEM scratch ----
    y1 = _conv3x3_s2(lambda kh: x_ref[0, kh:kh + 2 * Ho1, :, :],
                     Ho1, Wo1, c0, c1, w1_ref, b1_ref)
    y1 = jnp.where(y1 >= 0, y1, NEG_SLOPE * y1)                   # epilogue in f32
    s1_ref[1:Ho1 + 1, 1:Wo1 + 1, :] = y1.reshape(Ho1, Wo1, c1).astype(s1_ref.dtype)

    # ---- layer 2: conv(c1 -> c2) + LeakyReLU ----
    y2 = _conv3x3_s2(lambda kh: s1_ref[kh:kh + 2 * Ho2, :, :],
                     Ho2, Wo2, c1, c2, w2_ref, b2_ref)
    y2 = jnp.where(y2 >= 0, y2, NEG_SLOPE * y2)
    s2_ref[1:Ho2 + 1, 1:Wo2 + 1, :] = y2.reshape(Ho2, Wo2, c2).astype(s2_ref.dtype)

    # ---- layer 3: conv(c2 -> c3), no activation; lane-dense (c3 = 256) f32 store ----
    y3 = _conv3x3_s2(lambda kh: s2_ref[kh:kh + 2 * Ho3, :, :],
                     Ho3, Wo3, c2, c3, w3_ref, b3_ref)
    o_ref[...] = y3.reshape(1, Ho3 * Wo3, c3).astype(o_ref.dtype)


def conv_tower_forward(x_nchw, params):
    """Pallas ConvTower.forward: (N, Cin, H, W) -> (N, 256, H/8, W/8)."""
    (w1, b1), (w2, b2), (w3, b3) = params
    N, Cin, H, W = x_nchw.shape
    assert H % 8 == 0 and W % 8 == 0, "fused tower kernel requires H, W divisible by 8"
    Ho1, Wo1 = H // 2, W // 2
    Ho2, Wo2 = Ho1 // 2, Wo1 // 2
    Ho3, Wo3 = Ho2 // 2, Wo2 // 2
    C1, C2, C3 = w1.shape[-1], w2.shape[-1], w3.shape[-1]

    # NCHW -> NHWC, zero-pad spatially by 1, cast to bf16 (MXU input dtype; halves DMA bytes).
    xp = jnp.transpose(x_nchw, (0, 2, 3, 1))
    xp = jnp.pad(xp, ((0, 0), (1, 1), (1, 1), (0, 0))).astype(jnp.bfloat16)

    # Weights tap-major (9, Cin, Cout) bf16; biases (1, Cout) f32.
    def prep_w(w):
        return w.reshape(9, w.shape[2], w.shape[3]).astype(jnp.bfloat16)

    def prep_b(b):
        return b.reshape(1, -1).astype(jnp.float32)

    w1p, w2p, w3p = prep_w(w1), prep_w(w2), prep_w(w3)
    b1p, b2p, b3p = prep_b(b1), prep_b(b2), prep_b(b3)

    flops = 2 * N * (Ho1 * Wo1 * 9 * Cin * C1
                     + Ho2 * Wo2 * 9 * C1 * C2
                     + Ho3 * Wo3 * 9 * C2 * C3)
    bytes_accessed = (xp.size * 2
                      + (w1p.size + w2p.size + w3p.size) * 2
                      + (b1p.size + b2p.size + b3p.size) * 4
                      + N * Ho3 * Wo3 * C3 * 4)

    out = pl.pallas_call(
        _tower_kernel,
        grid=(N,),
        in_specs=[
            pl.BlockSpec((1, H + 2, W + 2, Cin), lambda n: (n, 0, 0, 0)),
            # constant index_maps -> weights/biases stay resident in VMEM across the grid
            pl.BlockSpec((9, Cin, C1), lambda n: (0, 0, 0)),
            pl.BlockSpec((1, C1), lambda n: (0, 0)),
            pl.BlockSpec((9, C1, C2), lambda n: (0, 0, 0)),
            pl.BlockSpec((1, C2), lambda n: (0, 0)),
            pl.BlockSpec((9, C2, C3), lambda n: (0, 0, 0)),
            pl.BlockSpec((1, C3), lambda n: (0, 0)),
        ],
        out_specs=pl.BlockSpec((1, Ho3 * Wo3, C3), lambda n: (n, 0, 0)),
        out_shape=jax.ShapeDtypeStruct((N, Ho3 * Wo3, C3), jnp.float32),
        scratch_shapes=[
            pltpu.VMEM((Ho1 + 2, Wo1 + 2, C1), jnp.bfloat16),   # padded layer-2 input
            pltpu.VMEM((Ho2 + 2, Wo2 + 2, C2), jnp.bfloat16),   # padded layer-3 input
        ],
        compiler_params=pltpu.CompilerParams(
            dimension_semantics=("parallel",),           # megacore sharding on v7x
            vmem_limit_bytes=32 * 1024 * 1024,            # explicit, safe on v5e/v6e/v7x
        ),
        cost_estimate=pl.CostEstimate(flops=flops, transcendentals=0,
                                      bytes_accessed=bytes_accessed),
    )(xp, w1p, b1p, w2p, b2p, w3p, b3p)

    out = out.reshape(N, Ho3, Wo3, C3)
    return jnp.transpose(out, (0, 3, 1, 2))  # NHWC -> NCHW


def ref_forward(x_nchw, params, matmul_dtype=jnp.float32):
    """lax.conv reference. matmul_dtype=bf16 mirrors the kernel's bf16-in / f32-accum path."""
    x = x_nchw
    for idx, (w, b) in enumerate(params):
        w_oihw = jnp.transpose(w, (3, 2, 0, 1)).astype(matmul_dtype)
        y = jax.lax.conv_general_dilated(
            x.astype(matmul_dtype), w_oihw, window_strides=(2, 2),
            padding=((1, 1), (1, 1)),
            dimension_numbers=("NCHW", "OIHW", "NCHW"),
            preferred_element_type=jnp.float32)
        y = y + b.reshape(1, -1, 1, 1)
        if idx < len(params) - 1:
            y = jnp.where(y >= 0, y, NEG_SLOPE * y)
            if matmul_dtype == jnp.bfloat16:
                # model the kernel's bf16 inter-layer VMEM storage
                y = y.astype(jnp.bfloat16).astype(jnp.float32)
        x = y
    return x


if __name__ == "__main__":
    key = jax.random.PRNGKey(0)
    kx, k1w, k1b, k2w, k2b, k3w, k3b = jax.random.split(key, 7)

    # Module defaults: in_channels=3, out_channels=256; tower 3 -> 64 -> 128 -> 256.
    x = jax.random.normal(kx, (2, 3, 16, 16), dtype=jnp.float32)

    layer_specs = [(3, 64), (64, 128), (128, 256)]
    keys = [(k1w, k1b), (k2w, k2b), (k3w, k3b)]
    params = []
    for (cin, cout), (kw_, kb_) in zip(layer_specs, keys):
        bound = 1.0 / (cin * 9) ** 0.5  # PyTorch default conv init bound
        w = jax.random.uniform(kw_, (3, 3, cin, cout), jnp.float32, -bound, bound)
        b = jax.random.uniform(kb_, (cout,), jnp.float32, -bound, bound)
        params.append((w, b))

    out = jax.jit(conv_tower_forward)(x, params)
    out = jax.block_until_ready(out)
    assert out.shape == (2, 256, 2, 2), f"unexpected output shape {out.shape}"

    # Primary check: bf16-matched reference (same rounding model, f32 accumulation).
    ref_bf16 = ref_forward(x, params, matmul_dtype=jnp.bfloat16)
    if not jnp.allclose(out, ref_bf16, atol=2e-3, rtol=2e-3):
        raise AssertionError("Pallas ConvTower mismatches bf16-matched lax.conv reference")

    # Sanity check: full-f32 PyTorch-equivalent reference (looser tol for bf16 matmul inputs).
    ref_f32 = ref_forward(x, params, matmul_dtype=jnp.float32)
    if not jnp.allclose(out, ref_f32, atol=3e-2, rtol=3e-2):
        raise AssertionError("Pallas ConvTower deviates too far from f32 lax.conv reference")

    print("KERNEL_OK")
</pallas_src>

<mosaic_0001>
module attributes {stable_mosaic.version = 11 : i64} {
  func.func @_tower_kernel(%arg0: i32, %arg1: memref<1x18x18x3xbf16, #tpu.memory_space<vmem>>, %arg2: memref<9x3x64xbf16, #tpu.memory_space<vmem>>, %arg3: memref<1x64xf32, #tpu.memory_space<vmem>>, %arg4: memref<9x64x128xbf16, #tpu.memory_space<vmem>>, %arg5: memref<1x128xf32, #tpu.memory_space<vmem>>, %arg6: memref<9x128x256xbf16, #tpu.memory_space<vmem>>, %arg7: memref<1x256xf32, #tpu.memory_space<vmem>>, %arg8: memref<1x4x256xf32, #tpu.memory_space<vmem>>, %arg9: memref<10x10x64xbf16, #tpu.memory_space<vmem>>, %arg10: memref<6x6x128xbf16, #tpu.memory_space<vmem>>) attributes {dimension_semantics = [#tpu.dimension_semantics<parallel>], iteration_bounds = array<i64: 2>, scalar_prefetch = 0 : i64, scratch_operands = 2 : i64, tpu.core_type = #tpu.core_type<tc>, window_params = [{transform_indices = @transform_0, window_bounds = array<i64: 1, 18, 18, 3>}, {pipeline_mode = #tpu.pipeline_mode<synchronous>, transform_indices = @transform_1, window_bounds = array<i64: 9, 3, 64>}, {pipeline_mode = #tpu.pipeline_mode<synchronous>, transform_indices = @transform_2, window_bounds = array<i64: 1, 64>}, {pipeline_mode = #tpu.pipeline_mode<synchronous>, transform_indices = @transform_3, window_bounds = array<i64: 9, 64, 128>}, {pipeline_mode = #tpu.pipeline_mode<synchronous>, transform_indices = @transform_4, window_bounds = array<i64: 1, 128>}, {pipeline_mode = #tpu.pipeline_mode<synchronous>, transform_indices = @transform_5, window_bounds = array<i64: 9, 128, 256>}, {pipeline_mode = #tpu.pipeline_mode<synchronous>, transform_indices = @transform_6, window_bounds = array<i64: 1, 256>}, {transform_indices = @transform_7, window_bounds = array<i64: 1, 4, 256>}]} {
    %cst = arith.constant 0.000000e+00 : bf16
    %0 = vector.broadcast %cst : bf16 to vector<10x10x64xbf16>
    %c0 = arith.constant 0 : index
    %c0_0 = arith.constant 0 : index
    %c0_1 = arith.constant 0 : index
    %1 = vector.load %arg9[%c0, %c0_0, %c0_1] : memref<10x10x64xbf16, #tpu.memory_space<vmem>>, vector<10x10x64xbf16>
    tpu.vector_store %arg9[%c0, %c0_0, %c0_1], %0 {strides = array<i32>} : memref<10x10x64xbf16, #tpu.memory_space<vmem>>, vector<10x10x64xbf16>,
    %cst_2 = arith.constant 0.000000e+00 : bf16
    %2 = vector.broadcast %cst_2 : bf16 to vector<6x6x128xbf16>
    %c0_3 = arith.constant 0 : index
    %c0_4 = arith.constant 0 : index
    %c0_5 = arith.constant 0 : index
    %3 = vector.load %arg10[%c0_3, %c0_4, %c0_5] : memref<6x6x128xbf16, #tpu.memory_space<vmem>>, vector<6x6x128xbf16>
    tpu.vector_store %arg10[%c0_3, %c0_4, %c0_5], %2 {strides = array<i32>} : memref<6x6x128xbf16, #tpu.memory_space<vmem>>, vector<6x6x128xbf16>,
    %cst_6 = arith.constant 0.000000e+00 : f32
    %4 = vector.broadcast %cst_6 : f32 to vector<64x64xf32>
    %c0_7 = arith.constant 0 : index
    %c0_8 = arith.constant 0 : index
    %c0_9 = arith.constant 0 : index
    %c0_10 = arith.constant 0 : index
    %5 = vector.load %arg1[%c0_7, %c0_8, %c0_9, %c0_10] : memref<1x18x18x3xbf16, #tpu.memory_space<vmem>>, vector<1x16x18x3xbf16>
    %6 = vector.shape_cast %5 : vector<1x16x18x3xbf16> to vector<16x18x3xbf16>
    %7 = vector.shape_cast %6 : vector<16x18x3xbf16> to vector<8x2x18x3xbf16>
    %8 = vector.extract_strided_slice %7 {offsets = [0, 0, 0, 0], sizes = [8, 1, 18, 3], strides = [1, 1, 1, 1]} : vector<8x2x18x3xbf16> to vector<8x1x18x3xbf16>
    %9 = vector.shape_cast %8 : vector<8x1x18x3xbf16> to vector<8x18x3xbf16>
    %10 = vector.shape_cast %9 : vector<8x18x3xbf16> to vector<8x9x2x3xbf16>
    %11 = vector.extract_strided_slice %10 {offsets = [0, 0, 0, 0], sizes = [8, 9, 1, 3], strides = [1, 1, 1, 1]} : vector<8x9x2x3xbf16> to vector<8x9x1x3xbf16>
    %12 = vector.shape_cast %11 : vector<8x9x1x3xbf16> to vector<8x9x3xbf16>
    %13 = vector.extract_strided_slice %10 {offsets = [0, 0, 1, 0], sizes = [8, 9, 1, 3], strides = [1, 1, 1, 1]} : vector<8x9x2x3xbf16> to vector<8x9x1x3xbf16>
    %14 = vector.shape_cast %13 : vector<8x9x1x3xbf16> to vector<8x9x3xbf16>
    %15 = vector.extract_strided_slice %12 {offsets = [0, 0, 0], sizes = [8, 8, 3], strides = [1, 1, 1]} : vector<8x9x3xbf16> to vector<8x8x3xbf16>
    %16 = vector.extract_strided_slice %14 {offsets = [0, 0, 0], sizes = [8, 8, 3], strides = [1, 1, 1]} : vector<8x9x3xbf16> to vector<8x8x3xbf16>
    %17 = vector.extract_strided_slice %12 {offsets = [0, 1, 0], sizes = [8, 8, 3], strides = [1, 1, 1]} : vector<8x9x3xbf16> to vector<8x8x3xbf16>
    %18 = vector.shape_cast %15 : vector<8x8x3xbf16> to vector<64x3xbf16>
    %c0_11 = arith.constant 0 : index
    %c0_12 = arith.constant 0 : index
    %c0_13 = arith.constant 0 : index
    %19 = vector.load %arg2[%c0_11, %c0_12, %c0_13] : memref<9x3x64xbf16, #tpu.memory_space<vmem>>, vector<1x3x64xbf16>
    %20 = vector.shape_cast %19 : vector<1x3x64xbf16> to vector<3x64xbf16>
    %cst_14 = arith.constant dense<0.000000e+00> : vector<64x64xf32>
    %21 = tpu.matmul %18, %20, %cst_14 {dimension_numbers = #tpu.dot_dimension_numbers<[1], [0], [0], [1], [0, 0, 1, 1], [], []>} : vector<64x3xbf16>, vector<3x64xbf16>, vector<64x64xf32> -> vector<64x64xf32>
    %22 = arith.addf %4, %21 : vector<64x64xf32>
    %23 = vector.shape_cast %16 : vector<8x8x3xbf16> to vector<64x3xbf16>
    %c1 = arith.constant 1 : index
    %c0_15 = arith.constant 0 : index
    %c0_16 = arith.constant 0 : index
    %24 = vector.load %arg2[%c1, %c0_15, %c0_16] : memref<9x3x64xbf16, #tpu.memory_space<vmem>>, vector<1x3x64xbf16>
    %25 = vector.shape_cast %24 : vector<1x3x64xbf16> to vector<3x64xbf16>
    %cst_17 = arith.constant dense<0.000000e+00> : vector<64x64xf32>
    %26 = tpu.matmul %23, %25, %cst_17 {dimension_numbers = #tpu.dot_dimension_numbers<[1], [0], [0], [1], [0, 0, 1, 1], [], []>} : vector<64x3xbf16>, vector<3x64xbf16>, vector<64x64xf32> -> vector<64x64xf32>
    %27 = arith.addf %22, %26 : vector<64x64xf32>
    %28 = vector.shape_cast %17 : vector<8x8x3xbf16> to vector<64x3xbf16>
    %c2 = arith.constant 2 : index
    %c0_18 = arith.constant 0 : index
    %c0_19 = arith.constant 0 : index
    %29 = vector.load %arg2[%c2, %c0_18, %c0_19] : memref<9x3x64xbf16, #tpu.memory_space<vmem>>, vector<1x3x64xbf16>
    %30 = vector.shape_cast %29 : vector<1x3x64xbf16> to vector<3x64xbf16>
    %cst_20 = arith.constant dense<0.000000e+00> : vector<64x64xf32>
    %31 = tpu.matmul %28, %30, %cst_20 {dimension_numbers = #tpu.dot_dimension_numbers<[1], [0], [0], [1], [0, 0, 1, 1], [], []>} : vector<64x3xbf16>, vector<3x64xbf16>, vector<64x64xf32> -> vector<64x64xf32>
    %32 = arith.addf %27, %31 : vector<64x64xf32>
    %c0_21 = arith.constant 0 : index
    %c1_22 = arith.constant 1 : index
    %c0_23 = arith.constant 0 : index
    %c0_24 = arith.constant 0 : index
    %33 = vector.load %arg1[%c0_21, %c1_22, %c0_23, %c0_24] : memref<1x18x18x3xbf16, #tpu.memory_space<vmem>>, vector<1x16x18x3xbf16>
    %34 = vector.shape_cast %33 : vector<1x16x18x3xbf16> to vector<16x18x3xbf16>
    %35 = vector.shape_cast %34 : vector<16x18x3xbf16> to vector<8x2x18x3xbf16>
    %36 = vector.extract_strided_slice %35 {offsets = [0, 0, 0, 0], sizes = [8, 1, 18, 3], strides = [1, 1, 1, 1]} : vector<8x2x18x3xbf16> to vector<8x1x18x3xbf16>
    %37 = vector.shape_cast %36 : vector<8x1x18x3xbf16> to vector<8x18x3xbf16>
    %38 = vector.shape_cast %37 : vector<8x18x3xbf16> to vector<8x9x2x3xbf16>
    %39 = vector.extract_strided_slice %38 {offsets = [0, 0, 0, 0], sizes = [8, 9, 1, 3], strides = [1, 1, 1, 1]} : vector<8x9x2x3xbf16> to vector<8x9x1x3xbf16>
    %40 = vector.shape_cast %39 : vector<8x9x1x3xbf16> to vector<8x9x3xbf16>
    %41 = vector.extract_strided_slice %38 {offsets = [0, 0, 1, 0], sizes = [8, 9, 1, 3], strides = [1, 1, 1, 1]} : vector<8x9x2x3xbf16> to vector<8x9x1x3xbf16>
    %42 = vector.shape_cast %41 : vector<8x9x1x3xbf16> to vector<8x9x3xbf16>
    %43 = vector.extract_strided_slice %40 {offsets = [0, 0, 0], sizes = [8, 8, 3], strides = [1, 1, 1]} : vector<8x9x3xbf16> to vector<8x8x3xbf16>
    %44 = vector.extract_strided_slice %42 {offsets = [0, 0, 0], sizes = [8, 8, 3], strides = [1, 1, 1]} : vector<8x9x3xbf16> to vector<8x8x3xbf16>
    %45 = vector.extract_strided_slice %40 {offsets = [0, 1, 0], sizes = [8, 8, 3], strides = [1, 1, 1]} : vector<8x9x3xbf16> to vector<8x8x3xbf16>
    %46 = vector.shape_cast %43 : vector<8x8x3xbf16> to vector<64x3xbf16>
    %c3 = arith.constant 3 : index
    %c0_25 = arith.constant 0 : index
    %c0_26 = arith.constant 0 : index
    %47 = vector.load %arg2[%c3, %c0_25, %c0_26] : memref<9x3x64xbf16, #tpu.memory_space<vmem>>, vector<1x3x64xbf16>
    %48 = vector.shape_cast %47 : vector<1x3x64xbf16> to vector<3x64xbf16>
    %cst_27 = arith.constant dense<0.000000e+00> : vector<64x64xf32>
    %49 = tpu.matmul %46, %48, %cst_27 {dimension_numbers = #tpu.dot_dimension_numbers<[1], [0], [0], [1], [0, 0, 1, 1], [], []>} : vector<64x3xbf16>, vector<3x64xbf16>, vector<64x64xf32> -> vector<64x64xf32>
    %50 = arith.addf %32, %49 : vector<64x64xf32>
    %51 = vector.shape_cast %44 : vector<8x8x3xbf16> to vector<64x3xbf16>
    %c4 = arith.constant 4 : index
    %c0_28 = arith.constant 0 : index
    %c0_29 = arith.constant 0 : index
    %52 = vector.load %arg2[%c4, %c0_28, %c0_29] : memref<9x3x64xbf16, #tpu.memory_space<vmem>>, vector<1x3x64xbf16>
    %53 = vector.shape_cast %52 : vector<1x3x64xbf16> to vector<3x64xbf16>
    %cst_30 = arith.constant dense<0.000000e+00> : vector<64x64xf32>
    %54 = tpu.matmul %51, %53, %cst_30 {dimension_numbers = #tpu.dot_dimension_numbers<[1], [0], [0], [1], [0, 0, 1, 1], [], []>} : vector<64x3xbf16>, vector<3x64xbf16>, vector<64x64xf32> -> vector<64x64xf32>
    %55 = arith.addf %50, %54 : vector<64x64xf32>
    %56 = vector.shape_cast %45 : vector<8x8x3xbf16> to vector<64x3xbf16>
    %c5 = arith.constant 5 : index
    %c0_31 = arith.constant 0 : index
    %c0_32 = arith.constant 0 : index
    %57 = vector.load %arg2[%c5, %c0_31, %c0_32] : memref<9x3x64xbf16, #tpu.memory_space<vmem>>, vector<1x3x64xbf16>
    %58 = vector.shape_cast %57 : vector<1x3x64xbf16> to vector<3x64xbf16>
    %cst_33 = arith.constant dense<0.000000e+00> : vector<64x64xf32>
    %59 = tpu.matmul %56, %58, %cst_33 {dimension_numbers = #tpu.dot_dimension_numbers<[1], [0], [0], [1], [0, 0, 1, 1], [], []>} : vector<64x3xbf16>, vector<3x64xbf16>, vector<64x64xf32> -> vector<64x64xf32>
    %60 = arith.addf %55, %59 : vector<64x64xf32>
    %c0_34 = arith.constant 0 : index
    %c2_35 = arith.constant 2 : index
    %c0_36 = arith.constant 0 : index
    %c0_37 = arith.constant 0 : index
    %61 = vector.load %arg1[%c0_34, %c2_35, %c0_36, %c0_37] : memref<1x18x18x3xbf16, #tpu.memory_space<vmem>>, vector<1x16x18x3xbf16>
    %62 = vector.shape_cast %61 : vector<1x16x18x3xbf16> to vector<16x18x3xbf16>
    %63 = vector.shape_cast %62 : vector<16x18x3xbf16> to vector<8x2x18x3xbf16>
    %64 = vector.extract_strided_slice %63 {offsets = [0, 0, 0, 0], sizes = [8, 1, 18, 3], strides = [1, 1, 1, 1]} : vector<8x2x18x3xbf16> to vector<8x1x18x3xbf16>
    %65 = vector.shape_cast %64 : vector<8x1x18x3xbf16> to vector<8x18x3xbf16>
    %66 = vector.shape_cast %65 : vector<8x18x3xbf16> to vector<8x9x2x3xbf16>
    %67 = vector.extract_strided_slice %66 {offsets = [0, 0, 0, 0], sizes = [8, 9, 1, 3], strides = [1, 1, 1, 1]} : vector<8x9x2x3xbf16> to vector<8x9x1x3xbf16>
    %68 = vector.shape_cast %67 : vector<8x9x1x3xbf16> to vector<8x9x3xbf16>
    %69 = vector.extract_strided_slice %66 {offsets = [0, 0, 1, 0], sizes = [8, 9, 1, 3], strides = [1, 1, 1, 1]} : vector<8x9x2x3xbf16> to vector<8x9x1x3xbf16>
    %70 = vector.shape_cast %69 : vector<8x9x1x3xbf16> to vector<8x9x3xbf16>
    %71 = vector.extract_strided_slice %68 {offsets = [0, 0, 0], sizes = [8, 8, 3], strides = [1, 1, 1]} : vector<8x9x3xbf16> to vector<8x8x3xbf16>
    %72 = vector.extract_strided_slice %70 {offsets = [0, 0, 0], sizes = [8, 8, 3], strides = [1, 1, 1]} : vector<8x9x3xbf16> to vector<8x8x3xbf16>
    %73 = vector.extract_strided_slice %68 {offsets = [0, 1, 0], sizes = [8, 8, 3], strides = [1, 1, 1]} : vector<8x9x3xbf16> to vector<8x8x3xbf16>
    %74 = vector.shape_cast %71 : vector<8x8x3xbf16> to vector<64x3xbf16>
    %c6 = arith.constant 6 : index
    %c0_38 = arith.constant 0 : index
    %c0_39 = arith.constant 0 : index
    %75 = vector.load %arg2[%c6, %c0_38, %c0_39] : memref<9x3x64xbf16, #tpu.memory_space<vmem>>, vector<1x3x64xbf16>
    %76 = vector.shape_cast %75 : vector<1x3x64xbf16> to vector<3x64xbf16>
    %cst_40 = arith.constant dense<0.000000e+00> : vector<64x64xf32>
    %77 = tpu.matmul %74, %76, %cst_40 {dimension_numbers = #tpu.dot_dimension_numbers<[1], [0], [0], [1], [0, 0, 1, 1], [], []>} : vector<64x3xbf16>, vector<3x64xbf16>, vector<64x64xf32> -> vector<64x64xf32>
    %78 = arith.addf %60, %77 : vector<64x64xf32>
    %79 = vector.shape_cast %72 : vector<8x8x3xbf16> to vector<64x3xbf16>
    %c7 = arith.constant 7 : index
    %c0_41 = arith.constant 0 : index
    %c0_42 = arith.constant 0 : index
    %80 = vector.load %arg2[%c7, %c0_41, %c0_42] : memref<9x3x64xbf16, #tpu.memory_space<vmem>>, vector<1x3x64xbf16>
    %81 = vector.shape_cast %80 : vector<1x3x64xbf16> to vector<3x64xbf16>
    %cst_43 = arith.constant dense<0.000000e+00> : vector<64x64xf32>
    %82 = tpu.matmul %79, %81, %cst_43 {dimension_numbers = #tpu.dot_dimension_numbers<[1], [0], [0], [1], [0, 0, 1, 1], [], []>} : vector<64x3xbf16>, vector<3x64xbf16>, vector<64x64xf32> -> vector<64x64xf32>
    %83 = arith.addf %78, %82 : vector<64x64xf32>
    %84 = vector.shape_cast %73 : vector<8x8x3xbf16> to vector<64x3xbf16>
    %c8 = arith.constant 8 : index
    %c0_44 = arith.constant 0 : index
    %c0_45 = arith.constant 0 : index
    %85 = vector.load %arg2[%c8, %c0_44, %c0_45] : memref<9x3x64xbf16, #tpu.memory_space<vmem>>, vector<1x3x64xbf16>
    %86 = vector.shape_cast %85 : vector<1x3x64xbf16> to vector<3x64xbf16>
    %cst_46 = arith.constant dense<0.000000e+00> : vector<64x64xf32>
    %87 = tpu.matmul %84, %86, %cst_46 {dimension_numbers = #tpu.dot_dimension_numbers<[1], [0], [0], [1], [0, 0, 1, 1], [], []>} : vector<64x3xbf16>, vector<3x64xbf16>, vector<64x64xf32> -> vector<64x64xf32>
    %88 = arith.addf %83, %87 : vector<64x64xf32>
    %c0_47 = arith.constant 0 : index
    %c0_48 = arith.constant 0 : index
    %89 = vector.load %arg3[%c0_47, %c0_48] : memref<1x64xf32, #tpu.memory_space<vmem>>, vector<1x64xf32>
    %90 = vector.broadcast %89 : vector<1x64xf32> to vector<64x64xf32>
    %91 = arith.addf %88, %90 : vector<64x64xf32>
    %cst_49 = arith.constant 0.000000e+00 : f32
    %92 = vector.broadcast %cst_49 : f32 to vector<64x64xf32>
    %93 = arith.cmpf oge, %91, %92 : vector<64x64xf32>
    %cst_50 = arith.constant 0.00999999977 : f32
    %94 = vector.broadcast %cst_50 : f32 to vector<64x64xf32>
    %95 = arith.mulf %94, %91 : vector<64x64xf32>
    %96 = arith.select %93, %91, %95 : vector<64x64xi1>, vector<64x64xf32>
    %97 = vector.shape_cast %96 : vector<64x64xf32> to vector<8x8x64xf32>
    %98 = arith.truncf %97 : vector<8x8x64xf32> to vector<8x8x64xbf16>
    %c1_51 = arith.constant 1 : index
    %c1_52 = arith.constant 1 : index
    %c0_53 = arith.constant 0 : index
    %99 = vector.load %arg9[%c1_51, %c1_52, %c0_53] : memref<10x10x64xbf16, #tpu.memory_space<vmem>>, vector<8x8x64xbf16>
    tpu.vector_store %arg9[%c1_51, %c1_52, %c0_53], %98 {strides = array<i32>} : memref<10x10x64xbf16, #tpu.memory_space<vmem>>, vector<8x8x64xbf16>,
    %cst_54 = arith.constant 0.000000e+00 : f32
    %100 = vector.broadcast %cst_54 : f32 to vector<16x128xf32>
    %c0_55 = arith.constant 0 : index
    %c0_56 = arith.constant 0 : index
    %c0_57 = arith.constant 0 : index
    %101 = vector.load %arg9[%c0_55, %c0_56, %c0_57] : memref<10x10x64xbf16, #tpu.memory_space<vmem>>, vector<8x10x64xbf16>
    %102 = vector.shape_cast %101 : vector<8x10x64xbf16> to vector<4x2x10x64xbf16>
    %103 = vector.extract_strided_slice %102 {offsets = [0, 0, 0, 0], sizes = [4, 1, 10, 64], strides = [1, 1, 1, 1]} : vector<4x2x10x64xbf16> to vector<4x1x10x64xbf16>
    %104 = vector.shape_cast %103 : vector<4x1x10x64xbf16> to vector<4x10x64xbf16>
    %105 = vector.shape_cast %104 : vector<4x10x64xbf16> to vector<4x5x2x64xbf16>
    %106 = vector.extract_strided_slice %105 {offsets = [0, 0, 0, 0], sizes = [4, 5, 1, 64], strides = [1, 1, 1, 1]} : vector<4x5x2x64xbf16> to vector<4x5x1x64xbf16>
    %107 = vector.shape_cast %106 : vector<4x5x1x64xbf16> to vector<4x5x64xbf16>
    %108 = vector.extract_strided_slice %105 {offsets = [0, 0, 1, 0], sizes = [4, 5, 1, 64], strides = [1, 1, 1, 1]} : vector<4x5x2x64xbf16> to vector<4x5x1x64xbf16>
    %109 = vector.shape_cast %108 : vector<4x5x1x64xbf16> to vector<4x5x64xbf16>
    %110 = vector.extract_strided_slice %107 {offsets = [0, 0, 0], sizes = [4, 4, 64], strides = [1, 1, 1]} : vector<4x5x64xbf16> to vector<4x4x64xbf16>
    %111 = vector.extract_strided_slice %109 {offsets = [0, 0, 0], sizes = [4, 4, 64], strides = [1, 1, 1]} : vector<4x5x64xbf16> to vector<4x4x64xbf16>
    %112 = vector.extract_strided_slice %107 {offsets = [0, 1, 0], sizes = [4, 4, 64], strides = [1, 1, 1]} : vector<4x5x64xbf16> to vector<4x4x64xbf16>
    %113 = vector.shape_cast %110 : vector<4x4x64xbf16> to vector<16x64xbf16>
    %c0_58 = arith.constant 0 : index
    %c0_59 = arith.constant 0 : index
    %c0_60 = arith.constant 0 : index
    %114 = vector.load %arg4[%c0_58, %c0_59, %c0_60] : memref<9x64x128xbf16, #tpu.memory_space<vmem>>, vector<1x64x128xbf16>
    %115 = vector.shape_cast %114 : vector<1x64x128xbf16> to vector<64x128xbf16>
    %cst_61 = arith.constant dense<0.000000e+00> : vector<16x128xf32>
    %116 = tpu.matmul %113, %115, %cst_61 {dimension_numbers = #tpu.dot_dimension_numbers<[1], [0], [0], [1], [0, 0, 1, 1], [], []>} : vector<16x64xbf16>, vector<64x128xbf16>, vector<16x128xf32> -> vector<16x128xf32>
    %117 = arith.addf %100, %116 : vector<16x128xf32>
    %118 = vector.shape_cast %111 : vector<4x4x64xbf16> to vector<16x64xbf16>
    %c1_62 = arith.constant 1 : index
    %c0_63 = arith.constant 0 : index
    %c0_64 = arith.constant 0 : index
    %119 = vector.load %arg4[%c1_62, %c0_63, %c0_64] : memref<9x64x128xbf16, #tpu.memory_space<vmem>>, vector<1x64x128xbf16>
    %120 = vector.shape_cast %119 : vector<1x64x128xbf16> to vector<64x128xbf16>
    %cst_65 = arith.constant dense<0.000000e+00> : vector<16x128xf32>
    %121 = tpu.matmul %118, %120, %cst_65 {dimension_numbers = #tpu.dot_dimension_numbers<[1], [0], [0], [1], [0, 0, 1, 1], [], []>} : vector<16x64xbf16>, vector<64x128xbf16>, vector<16x128xf32> -> vector<16x128xf32>
    %122 = arith.addf %117, %121 : vector<16x128xf32>
    %123 = vector.shape_cast %112 : vector<4x4x64xbf16> to vector<16x64xbf16>
    %c2_66 = arith.constant 2 : index
    %c0_67 = arith.constant 0 : index
    %c0_68 = arith.constant 0 : index
    %124 = vector.load %arg4[%c2_66, %c0_67, %c0_68] : memref<9x64x128xbf16, #tpu.memory_space<vmem>>, vector<1x64x128xbf16>
    %125 = vector.shape_cast %124 : vector<1x64x128xbf16> to vector<64x128xbf16>
    %cst_69 = arith.constant dense<0.000000e+00> : vector<16x128xf32>
    %126 = tpu.matmul %123, %125, %cst_69 {dimension_numbers = #tpu.dot_dimension_numbers<[1], [0], [0], [1], [0, 0, 1, 1], [], []>} : vector<16x64xbf16>, vector<64x128xbf16>, vector<16x128xf32> -> vector<16x128xf32>
    %127 = arith.addf %122, %126 : vector<16x128xf32>
    %c1_70 = arith.constant 1 : index
    %c0_71 = arith.constant 0 : index
    %c0_72 = arith.constant 0 : index
    %128 = vector.load %arg9[%c1_70, %c0_71, %c0_72] : memref<10x10x64xbf16, #tpu.memory_space<vmem>>, vector<8x10x64xbf16>
    %129 = vector.shape_cast %128 : vector<8x10x64xbf16> to vector<4x2x10x64xbf16>
    %130 = vector.extract_strided_slice %129 {offsets = [0, 0, 0, 0], sizes = [4, 1, 10, 64], strides = [1, 1, 1, 1]} : vector<4x2x10x64xbf16> to vector<4x1x10x64xbf16>
    %131 = vector.shape_cast %130 : vector<4x1x10x64xbf16> to vector<4x10x64xbf16>
    %132 = vector.shape_cast %131 : vector<4x10x64xbf16> to vector<4x5x2x64xbf16>
    %133 = vector.extract_strided_slice %132 {offsets = [0, 0, 0, 0], sizes = [4, 5, 1, 64], strides = [1, 1, 1, 1]} : vector<4x5x2x64xbf16> to vector<4x5x1x64xbf16>
    %134 = vector.shape_cast %133 : vector<4x5x1x64xbf16> to vector<4x5x64xbf16>
    %135 = vector.extract_strided_slice %132 {offsets = [0, 0, 1, 0], sizes = [4, 5, 1, 64], strides = [1, 1, 1, 1]} : vector<4x5x2x64xbf16> to vector<4x5x1x64xbf16>
    %136 = vector.shape_cast %135 : vector<4x5x1x64xbf16> to vector<4x5x64xbf16>
    %137 = vector.extract_strided_slice %134 {offsets = [0, 0, 0], sizes = [4, 4, 64], strides = [1, 1, 1]} : vector<4x5x64xbf16> to vector<4x4x64xbf16>
    %138 = vector.extract_strided_slice %136 {offsets = [0, 0, 0], sizes = [4, 4, 64], strides = [1, 1, 1]} : vector<4x5x64xbf16> to vector<4x4x64xbf16>
    %139 = vector.extract_strided_slice %134 {offsets = [0, 1, 0], sizes = [4, 4, 64], strides = [1, 1, 1]} : vector<4x5x64xbf16> to vector<4x4x64xbf16>
    %140 = vector.shape_cast %137 : vector<4x4x64xbf16> to vector<16x64xbf16>
    %c3_73 = arith.constant 3 : index
    %c0_74 = arith.constant 0 : index
    %c0_75 = arith.constant 0 : index
    %141 = vector.load %arg4[%c3_73, %c0_74, %c0_75] : memref<9x64x128xbf16, #tpu.memory_space<vmem>>, vector<1x64x128xbf16>
    %142 = vector.shape_cast %141 : vector<1x64x128xbf16> to vector<64x128xbf16>
    %cst_76 = arith.constant dense<0.000000e+00> : vector<16x128xf32>
    %143 = tpu.matmul %140, %142, %cst_76 {dimension_numbers = #tpu.dot_dimension_numbers<[1], [0], [0], [1], [0, 0, 1, 1], [], []>} : vector<16x64xbf16>, vector<64x128xbf16>, vector<16x128xf32> -> vector<16x128xf32>
    %144 = arith.addf %127, %143 : vector<16x128xf32>
    %145 = vector.shape_cast %138 : vector<4x4x64xbf16> to vector<16x64xbf16>
    %c4_77 = arith.constant 4 : index
    %c0_78 = arith.constant 0 : index
    %c0_79 = arith.constant 0 : index
    %146 = vector.load %arg4[%c4_77, %c0_78, %c0_79] : memref<9x64x128xbf16, #tpu.memory_space<vmem>>, vector<1x64x128xbf16>
    %147 = vector.shape_cast %146 : vector<1x64x128xbf16> to vector<64x128xbf16>
    %cst_80 = arith.constant dense<0.000000e+00> : vector<16x128xf32>
    %148 = tpu.matmul %145, %147, %cst_80 {dimension_numbers = #tpu.dot_dimension_numbers<[1], [0], [0], [1], [0, 0, 1, 1], [], []>} : vector<16x64xbf16>, vector<64x128xbf16>, vector<16x128xf32> -> vector<16x128xf32>
    %149 = arith.addf %144, %148 : vector<16x128xf32>
    %150 = vector.shape_cast %139 : vector<4x4x64xbf16> to vector<16x64xbf16>
    %c5_81 = arith.constant 5 : index
    %c0_82 = arith.constant 0 : index
    %c0_83 = arith.constant 0 : index
    %151 = vector.load %arg4[%c5_81, %c0_82, %c0_83] : memref<9x64x128xbf16, #tpu.memory_space<vmem>>, vector<1x64x128xbf16>
    %152 = vector.shape_cast %151 : vector<1x64x128xbf16> to vector<64x128xbf16>
    %cst_84 = arith.constant dense<0.000000e+00> : vector<16x128xf32>
    %153 = tpu.matmul %150, %152, %cst_84 {dimension_numbers = #tpu.dot_dimension_numbers<[1], [0], [0], [1], [0, 0, 1, 1], [], []>} : vector<16x64xbf16>, vector<64x128xbf16>, vector<16x128xf32> -> vector<16x128xf32>
    %154 = arith.addf %149, %153 : vector<16x128xf32>
    %c2_85 = arith.constant 2 : index
    %c0_86 = arith.constant 0 : index
    %c0_87 = arith.constant 0 : index
    %155 = vector.load %arg9[%c2_85, %c0_86, %c0_87] : memref<10x10x64xbf16, #tpu.memory_space<vmem>>, vector<8x10x64xbf16>
    %156 = vector.shape_cast %155 : vector<8x10x64xbf16> to vector<4x2x10x64xbf16>
    %157 = vector.extract_strided_slice %156 {offsets = [0, 0, 0, 0], sizes = [4, 1, 10, 64], strides = [1, 1, 1, 1]} : vector<4x2x10x64xbf16> to vector<4x1x10x64xbf16>
    %158 = vector.shape_cast %157 : vector<4x1x10x64xbf16> to vector<4x10x64xbf16>
    %159 = vector.shape_cast %158 : vector<4x10x64xbf16> to vector<4x5x2x64xbf16>
    %160 = vector.extract_strided_slice %159 {offsets = [0, 0, 0, 0], sizes = [4, 5, 1, 64], strides = [1, 1, 1, 1]} : vector<4x5x2x64xbf16> to vector<4x5x1x64xbf16>
    %161 = vector.shape_cast %160 : vector<4x5x1x64xbf16> to vector<4x5x64xbf16>
    %162 = vector.extract_strided_slice %159 {offsets = [0, 0, 1, 0], sizes = [4, 5, 1, 64], strides = [1, 1, 1, 1]} : vector<4x5x2x64xbf16> to vector<4x5x1x64xbf16>
    %163 = vector.shape_cast %162 : vector<4x5x1x64xbf16> to vector<4x5x64xbf16>
    %164 = vector.extract_strided_slice %161 {offsets = [0, 0, 0], sizes = [4, 4, 64], strides = [1, 1, 1]} : vector<4x5x64xbf16> to vector<4x4x64xbf16>
    %165 = vector.extract_strided_slice %163 {offsets = [0, 0, 0], sizes = [4, 4, 64], strides = [1, 1, 1]} : vector<4x5x64xbf16> to vector<4x4x64xbf16>
    %166 = vector.extract_strided_slice %161 {offsets = [0, 1, 0], sizes = [4, 4, 64], strides = [1, 1, 1]} : vector<4x5x64xbf16> to vector<4x4x64xbf16>
    %167 = vector.shape_cast %164 : vector<4x4x64xbf16> to vector<16x64xbf16>
    %c6_88 = arith.constant 6 : index
    %c0_89 = arith.constant 0 : index
    %c0_90 = arith.constant 0 : index
    %168 = vector.load %arg4[%c6_88, %c0_89, %c0_90] : memref<9x64x128xbf16, #tpu.memory_space<vmem>>, vector<1x64x128xbf16>
    %169 = vector.shape_cast %168 : vector<1x64x128xbf16> to vector<64x128xbf16>
    %cst_91 = arith.constant dense<0.000000e+00> : vector<16x128xf32>
    %170 = tpu.matmul %167, %169, %cst_91 {dimension_numbers = #tpu.dot_dimension_numbers<[1], [0], [0], [1], [0, 0, 1, 1], [], []>} : vector<16x64xbf16>, vector<64x128xbf16>, vector<16x128xf32> -> vector<16x128xf32>
    %171 = arith.addf %154, %170 : vector<16x128xf32>
    %172 = vector.shape_cast %165 : vector<4x4x64xbf16> to vector<16x64xbf16>
    %c7_92 = arith.constant 7 : index
    %c0_93 = arith.constant 0 : index
    %c0_94 = arith.constant 0 : index
    %173 = vector.load %arg4[%c7_92, %c0_93, %c0_94] : memref<9x64x128xbf16, #tpu.memory_space<vmem>>, vector<1x64x128xbf16>
    %174 = vector.shape_cast %173 : vector<1x64x128xbf16> to vector<64x128xbf16>
    %cst_95 = arith.constant dense<0.000000e+00> : vector<16x128xf32>
    %175 = tpu.matmul %172, %174, %cst_95 {dimension_numbers = #tpu.dot_dimension_numbers<[1], [0], [0], [1], [0, 0, 1, 1], [], []>} : vector<16x64xbf16>, vector<64x128xbf16>, vector<16x128xf32> -> vector<16x128xf32>
    %176 = arith.addf %171, %175 : vector<16x128xf32>
    %177 = vector.shape_cast %166 : vector<4x4x64xbf16> to vector<16x64xbf16>
    %c8_96 = arith.constant 8 : index
    %c0_97 = arith.constant 0 : index
    %c0_98 = arith.constant 0 : index
    %178 = vector.load %arg4[%c8_96, %c0_97, %c0_98] : memref<9x64x128xbf16, #tpu.memory_space<vmem>>, vector<1x64x128xbf16>
    %179 = vector.shape_cast %178 : vector<1x64x128xbf16> to vector<64x128xbf16>
    %cst_99 = arith.constant dense<0.000000e+00> : vector<16x128xf32>
    %180 = tpu.matmul %177, %179, %cst_99 {dimension_numbers = #tpu.dot_dimension_numbers<[1], [0], [0], [1], [0, 0, 1, 1], [], []>} : vector<16x64xbf16>, vector<64x128xbf16>, vector<16x128xf32> -> vector<16x128xf32>
    %181 = arith.addf %176, %180 : vector<16x128xf32>
    %c0_100 = arith.constant 0 : index
    %c0_101 = arith.constant 0 : index
    %182 = vector.load %arg5[%c0_100, %c0_101] : memref<1x128xf32, #tpu.memory_space<vmem>>, vector<1x128xf32>
    %183 = vector.broadcast %182 : vector<1x128xf32> to vector<16x128xf32>
    %184 = arith.addf %181, %183 : vector<16x128xf32>
    %cst_102 = arith.constant 0.000000e+00 : f32
    %185 = vector.broadcast %cst_102 : f32 to vector<16x128xf32>
    %186 = arith.cmpf oge, %184, %185 : vector<16x128xf32>
    %cst_103 = arith.constant 0.00999999977 : f32
    %187 = vector.broadcast %cst_103 : f32 to vector<16x128xf32>
    %188 = arith.mulf %187, %184 : vector<16x128xf32>
    %189 = arith.select %186, %184, %188 : vector<16x128xi1>, vector<16x128xf32>
    %190 = vector.shape_cast %189 : vector<16x128xf32> to vector<4x4x128xf32>
    %191 = arith.truncf %190 : vector<4x4x128xf32> to vector<4x4x128xbf16>
    %c1_104 = arith.constant 1 : index
    %c1_105 = arith.constant 1 : index
    %c0_106 = arith.constant 0 : index
    %192 = vector.load %arg10[%c1_104, %c1_105, %c0_106] : memref<6x6x128xbf16, #tpu.memory_space<vmem>>, vector<4x4x128xbf16>
    tpu.vector_store %arg10[%c1_104, %c1_105, %c0_106], %191 {strides = array<i32>} : memref<6x6x128xbf16, #tpu.memory_space<vmem>>, vector<4x4x128xbf16>,
    %cst_107 = arith.constant 0.000000e+00 : f32
    %193 = vector.broadcast %cst_107 : f32 to vector<4x256xf32>
    %c0_108 = arith.constant 0 : index
    %c0_109 = arith.constant 0 : index
    %c0_110 = arith.constant 0 : index
    %194 = vector.load %arg10[%c0_108, %c0_109, %c0_110] : memref<6x6x128xbf16, #tpu.memory_space<vmem>>, vector<4x6x128xbf16>
    %195 = vector.shape_cast %194 : vector<4x6x128xbf16> to vector<2x2x6x128xbf16>
    %196 = vector.extract_strided_slice %195 {offsets = [0, 0, 0, 0], sizes = [2, 1, 6, 128], strides = [1, 1, 1, 1]} : vector<2x2x6x128xbf16> to vector<2x1x6x128xbf16>
    %197 = vector.shape_cast %196 : vector<2x1x6x128xbf16> to vector<2x6x128xbf16>
    %198 = vector.shape_cast %197 : vector<2x6x128xbf16> to vector<2x3x2x128xbf16>
    %199 = vector.extract_strided_slice %198 {offsets = [0, 0, 0, 0], sizes = [2, 3, 1, 128], strides = [1, 1, 1, 1]} : vector<2x3x2x128xbf16> to vector<2x3x1x128xbf16>
    %200 = vector.shape_cast %199 : vector<2x3x1x128xbf16> to vector<2x3x128xbf16>
    %201 = vector.extract_strided_slice %198 {offsets = [0, 0, 1, 0], sizes = [2, 3, 1, 128], strides = [1, 1, 1, 1]} : vector<2x3x2x128xbf16> to vector<2x3x1x128xbf16>
    %202 = vector.shape_cast %201 : vector<2x3x1x128xbf16> to vector<2x3x128xbf16>
    %203 = vector.extract_strided_slice %200 {offsets = [0, 0, 0], sizes = [2, 2, 128], strides = [1, 1, 1]} : vector<2x3x128xbf16> to vector<2x2x128xbf16>
    %204 = vector.extract_strided_slice %202 {offsets = [0, 0, 0], sizes = [2, 2, 128], strides = [1, 1, 1]} : vector<2x3x128xbf16> to vector<2x2x128xbf16>
    %205 = vector.extract_strided_slice %200 {offsets = [0, 1, 0], sizes = [2, 2, 128], strides = [1, 1, 1]} : vector<2x3x128xbf16> to vector<2x2x128xbf16>
    %206 = vector.shape_cast %203 : vector<2x2x128xbf16> to vector<4x128xbf16>
    %c0_111 = arith.constant 0 : index
    %c0_112 = arith.constant 0 : index
    %c0_113 = arith.constant 0 : index
    %207 = vector.load %arg6[%c0_111, %c0_112, %c0_113] : memref<9x128x256xbf16, #tpu.memory_space<vmem>>, vector<1x128x256xbf16>
    %208 = vector.shape_cast %207 : vector<1x128x256xbf16> to vector<128x256xbf16>
    %cst_114 = arith.constant dense<0.000000e+00> : vector<4x256xf32>
    %209 = tpu.matmul %206, %208, %cst_114 {dimension_numbers = #tpu.dot_dimension_numbers<[1], [0], [0], [1], [0, 0, 1, 1], [], []>} : vector<4x128xbf16>, vector<128x256xbf16>, vector<4x256xf32> -> vector<4x256xf32>
    %210 = arith.addf %193, %209 : vector<4x256xf32>
    %211 = vector.shape_cast %204 : vector<2x2x128xbf16> to vector<4x128xbf16>
    %c1_115 = arith.constant 1 : index
    %c0_116 = arith.constant 0 : index
    %c0_117 = arith.constant 0 : index
    %212 = vector.load %arg6[%c1_115, %c0_116, %c0_117] : memref<9x128x256xbf16, #tpu.memory_space<vmem>>, vector<1x128x256xbf16>
    %213 = vector.shape_cast %212 : vector<1x128x256xbf16> to vector<128x256xbf16>
    %cst_118 = arith.constant dense<0.000000e+00> : vector<4x256xf32>
    %214 = tpu.matmul %211, %213, %cst_118 {dimension_numbers = #tpu.dot_dimension_numbers<[1], [0], [0], [1], [0, 0, 1, 1], [], []>} : vector<4x128xbf16>, vector<128x256xbf16>, vector<4x256xf32> -> vector<4x256xf32>
    %215 = arith.addf %210, %214 : vector<4x256xf32>
    %216 = vector.shape_cast %205 : vector<2x2x128xbf16> to vector<4x128xbf16>
    %c2_119 = arith.constant 2 : index
    %c0_120 = arith.constant 0 : index
    %c0_121 = arith.constant 0 : index
    %217 = vector.load %arg6[%c2_119, %c0_120, %c0_121] : memref<9x128x256xbf16, #tpu.memory_space<vmem>>, vector<1x128x256xbf16>
    %218 = vector.shape_cast %217 : vector<1x128x256xbf16> to vector<128x256xbf16>
    %cst_122 = arith.constant dense<0.000000e+00> : vector<4x256xf32>
    %219 = tpu.matmul %216, %218, %cst_122 {dimension_numbers = #tpu.dot_dimension_numbers<[1], [0], [0], [1], [0, 0, 1, 1], [], []>} : vector<4x128xbf16>, vector<128x256xbf16>, vector<4x256xf32> -> vector<4x256xf32>
    %220 = arith.addf %215, %219 : vector<4x256xf32>
    %c1_123 = arith.constant 1 : index
    %c0_124 = arith.constant 0 : index
    %c0_125 = arith.constant 0 : index
    %221 = vector.load %arg10[%c1_123, %c0_124, %c0_125] : memref<6x6x128xbf16, #tpu.memory_space<vmem>>, vector<4x6x128xbf16>
    %222 = vector.shape_cast %221 : vector<4x6x128xbf16> to vector<2x2x6x128xbf16>
    %223 = vector.extract_strided_slice %222 {offsets = [0, 0, 0, 0], sizes = [2, 1, 6, 128], strides = [1, 1, 1, 1]} : vector<2x2x6x128xbf16> to vector<2x1x6x128xbf16>
    %224 = vector.shape_cast %223 : vector<2x1x6x128xbf16> to vector<2x6x128xbf16>
    %225 = vector.shape_cast %224 : vector<2x6x128xbf16> to vector<2x3x2x128xbf16>
    %226 = vector.extract_strided_slice %225 {offsets = [0, 0, 0, 0], sizes = [2, 3, 1, 128], strides = [1, 1, 1, 1]} : vector<2x3x2x128xbf16> to vector<2x3x1x128xbf16>
    %227 = vector.shape_cast %226 : vector<2x3x1x128xbf16> to vector<2x3x128xbf16>
    %228 = vector.extract_strided_slice %225 {offsets = [0, 0, 1, 0], sizes = [2, 3, 1, 128], strides = [1, 1, 1, 1]} : vector<2x3x2x128xbf16> to vector<2x3x1x128xbf16>
    %229 = vector.shape_cast %228 : vector<2x3x1x128xbf16> to vector<2x3x128xbf16>
    %230 = vector.extract_strided_slice %227 {offsets = [0, 0, 0], sizes = [2, 2, 128], strides = [1, 1, 1]} : vector<2x3x128xbf16> to vector<2x2x128xbf16>
    %231 = vector.extract_strided_slice %229 {offsets = [0, 0, 0], sizes = [2, 2, 128], strides = [1, 1, 1]} : vector<2x3x128xbf16> to vector<2x2x128xbf16>
    %232 = vector.extract_strided_slice %227 {offsets = [0, 1, 0], sizes = [2, 2, 128], strides = [1, 1, 1]} : vector<2x3x128xbf16> to vector<2x2x128xbf16>
    %233 = vector.shape_cast %230 : vector<2x2x128xbf16> to vector<4x128xbf16>
    %c3_126 = arith.constant 3 : index
    %c0_127 = arith.constant 0 : index
    %c0_128 = arith.constant 0 : index
    %234 = vector.load %arg6[%c3_126, %c0_127, %c0_128] : memref<9x128x256xbf16, #tpu.memory_space<vmem>>, vector<1x128x256xbf16>
    %235 = vector.shape_cast %234 : vector<1x128x256xbf16> to vector<128x256xbf16>
    %cst_129 = arith.constant dense<0.000000e+00> : vector<4x256xf32>
    %236 = tpu.matmul %233, %235, %cst_129 {dimension_numbers = #tpu.dot_dimension_numbers<[1], [0], [0], [1], [0, 0, 1, 1], [], []>} : vector<4x128xbf16>, vector<128x256xbf16>, vector<4x256xf32> -> vector<4x256xf32>
    %237 = arith.addf %220, %236 : vector<4x256xf32>
    %238 = vector.shape_cast %231 : vector<2x2x128xbf16> to vector<4x128xbf16>
    %c4_130 = arith.constant 4 : index
    %c0_131 = arith.constant 0 : index
    %c0_132 = arith.constant 0 : index
    %239 = vector.load %arg6[%c4_130, %c0_131, %c0_132] : memref<9x128x256xbf16, #tpu.memory_space<vmem>>, vector<1x128x256xbf16>
    %240 = vector.shape_cast %239 : vector<1x128x256xbf16> to vector<128x256xbf16>
    %cst_133 = arith.constant dense<0.000000e+00> : vector<4x256xf32>
    %241 = tpu.matmul %238, %240, %cst_133 {dimension_numbers = #tpu.dot_dimension_numbers<[1], [0], [0], [1], [0, 0, 1, 1], [], []>} : vector<4x128xbf16>, vector<128x256xbf16>, vector<4x256xf32> -> vector<4x256xf32>
    %242 = arith.addf %237, %241 : vector<4x256xf32>
    %243 = vector.shape_cast %232 : vector<2x2x128xbf16> to vector<4x128xbf16>
    %c5_134 = arith.constant 5 : index
    %c0_135 = arith.constant 0 : index
    %c0_136 = arith.constant 0 : index
    %244 = vector.load %arg6[%c5_134, %c0_135, %c0_136] : memref<9x128x256xbf16, #tpu.memory_space<vmem>>, vector<1x128x256xbf16>
    %245 = vector.shape_cast %244 : vector<1x128x256xbf16> to vector<128x256xbf16>
    %cst_137 = arith.constant dense<0.000000e+00> : vector<4x256xf32>
    %246 = tpu.matmul %243, %245, %cst_137 {dimension_numbers = #tpu.dot_dimension_numbers<[1], [0], [0], [1], [0, 0, 1, 1], [], []>} : vector<4x128xbf16>, vector<128x256xbf16>, vector<4x256xf32> -> vector<4x256xf32>
    %247 = arith.addf %242, %246 : vector<4x256xf32>
    %c2_138 = arith.constant 2 : index
    %c0_139 = arith.constant 0 : index
    %c0_140 = arith.constant 0 : index
    %248 = vector.load %arg10[%c2_138, %c0_139, %c0_140] : memref<6x6x128xbf16, #tpu.memory_space<vmem>>, vector<4x6x128xbf16>
    %249 = vector.shape_cast %248 : vector<4x6x128xbf16> to vector<2x2x6x128xbf16>
    %250 = vector.extract_strided_slice %249 {offsets = [0, 0, 0, 0], sizes = [2, 1, 6, 128], strides = [1, 1, 1, 1]} : vector<2x2x6x128xbf16> to vector<2x1x6x128xbf16>
    %251 = vector.shape_cast %250 : vector<2x1x6x128xbf16> to vector<2x6x128xbf16>
    %252 = vector.shape_cast %251 : vector<2x6x128xbf16> to vector<2x3x2x128xbf16>
    %253 = vector.extract_strided_slice %252 {offsets = [0, 0, 0, 0], sizes = [2, 3, 1, 128], strides = [1, 1, 1, 1]} : vector<2x3x2x128xbf16> to vector<2x3x1x128xbf16>
    %254 = vector.shape_cast %253 : vector<2x3x1x128xbf16> to vector<2x3x128xbf16>
    %255 = vector.extract_strided_slice %252 {offsets = [0, 0, 1, 0], sizes = [2, 3, 1, 128], strides = [1, 1, 1, 1]} : vector<2x3x2x128xbf16> to vector<2x3x1x128xbf16>
    %256 = vector.shape_cast %255 : vector<2x3x1x128xbf16> to vector<2x3x128xbf16>
    %257 = vector.extract_strided_slice %254 {offsets = [0, 0, 0], sizes = [2, 2, 128], strides = [1, 1, 1]} : vector<2x3x128xbf16> to vector<2x2x128xbf16>
    %258 = vector.extract_strided_slice %256 {offsets = [0, 0, 0], sizes = [2, 2, 128], strides = [1, 1, 1]} : vector<2x3x128xbf16> to vector<2x2x128xbf16>
    %259 = vector.extract_strided_slice %254 {offsets = [0, 1, 0], sizes = [2, 2, 128], strides = [1, 1, 1]} : vector<2x3x128xbf16> to vector<2x2x128xbf16>
    %260 = vector.shape_cast %257 : vector<2x2x128xbf16> to vector<4x128xbf16>
    %c6_141 = arith.constant 6 : index
    %c0_142 = arith.constant 0 : index
    %c0_143 = arith.constant 0 : index
    %261 = vector.load %arg6[%c6_141, %c0_142, %c0_143] : memref<9x128x256xbf16, #tpu.memory_space<vmem>>, vector<1x128x256xbf16>
    %262 = vector.shape_cast %261 : vector<1x128x256xbf16> to vector<128x256xbf16>
    %cst_144 = arith.constant dense<0.000000e+00> : vector<4x256xf32>
    %263 = tpu.matmul %260, %262, %cst_144 {dimension_numbers = #tpu.dot_dimension_numbers<[1], [0], [0], [1], [0, 0, 1, 1], [], []>} : vector<4x128xbf16>, vector<128x256xbf16>, vector<4x256xf32> -> vector<4x256xf32>
    %264 = arith.addf %247, %263 : vector<4x256xf32>
    %265 = vector.shape_cast %258 : vector<2x2x128xbf16> to vector<4x128xbf16>
    %c7_145 = arith.constant 7 : index
    %c0_146 = arith.constant 0 : index
    %c0_147 = arith.constant 0 : index
    %266 = vector.load %arg6[%c7_145, %c0_146, %c0_147] : memref<9x128x256xbf16, #tpu.memory_space<vmem>>, vector<1x128x256xbf16>
    %267 = vector.shape_cast %266 : vector<1x128x256xbf16> to vector<128x256xbf16>
    %cst_148 = arith.constant dense<0.000000e+00> : vector<4x256xf32>
    %268 = tpu.matmul %265, %267, %cst_148 {dimension_numbers = #tpu.dot_dimension_numbers<[1], [0], [0], [1], [0, 0, 1, 1], [], []>} : vector<4x128xbf16>, vector<128x256xbf16>, vector<4x256xf32> -> vector<4x256xf32>
    %269 = arith.addf %264, %268 : vector<4x256xf32>
    %270 = vector.shape_cast %259 : vector<2x2x128xbf16> to vector<4x128xbf16>
    %c8_149 = arith.constant 8 : index
    %c0_150 = arith.constant 0 : index
    %c0_151 = arith.constant 0 : index
    %271 = vector.load %arg6[%c8_149, %c0_150, %c0_151] : memref<9x128x256xbf16, #tpu.memory_space<vmem>>, vector<1x128x256xbf16>
    %272 = vector.shape_cast %271 : vector<1x128x256xbf16> to vector<128x256xbf16>
    %cst_152 = arith.constant dense<0.000000e+00> : vector<4x256xf32>
    %273 = tpu.matmul %270, %272, %cst_152 {dimension_numbers = #tpu.dot_dimension_numbers<[1], [0], [0], [1], [0, 0, 1, 1], [], []>} : vector<4x128xbf16>, vector<128x256xbf16>, vector<4x256xf32> -> vector<4x256xf32>
    %274 = arith.addf %269, %273 : vector<4x256xf32>
    %c0_153 = arith.constant 0 : index
    %c0_154 = arith.constant 0 : index
    %275 = vector.load %arg7[%c0_153, %c0_154] : memref<1x256xf32, #tpu.memory_space<vmem>>, vector<1x256xf32>
    %276 = vector.broadcast %275 : vector<1x256xf32> to vector<4x256xf32>
    %277 = arith.addf %274, %276 : vector<4x256xf32>
    %278 = vector.shape_cast %277 : vector<4x256xf32> to vector<1x4x256xf32>
    %c0_155 = arith.constant 0 : index
    %c0_156 = arith.constant 0 : index
    %c0_157 = arith.constant 0 : index
    %279 = vector.load %arg8[%c0_155, %c0_156, %c0_157] : memref<1x4x256xf32, #tpu.memory_space<vmem>>, vector<1x4x256xf32>
    tpu.vector_store %arg8[%c0_155, %c0_156, %c0_157], %278 {strides = array<i32>} : memref<1x4x256xf32, #tpu.memory_space<vmem>>, vector<1x4x256xf32>,
    return
  }
  func.func @transform_0(%arg0: i32) -> (i32, i32, i32, i32) {
    %c0_i32 = arith.constant 0 : i32
    %c0_i32_0 = arith.constant 0 : i32
    %c0_i32_1 = arith.constant 0 : i32
    %c0_i32_2 = arith.constant 0 : i32
    return %arg0, %c0_i32, %c0_i32_0, %c0_i32_1 : i32, i32, i32, i32
  }
  func.func @transform_1(%arg0: i32) -> (i32, i32, i32) {
    %c0_i32 = arith.constant 0 : i32
    %c0_i32_0 = arith.constant 0 : i32
    %c0_i32_1 = arith.constant 0 : i32
    %c0_i32_2 = arith.constant 0 : i32
    return %c0_i32, %c0_i32_0, %c0_i32_1 : i32, i32, i32
  }
  func.func @transform_2(%arg0: i32) -> (i32, i32) {
    %c0_i32 = arith.constant 0 : i32
    %c0_i32_0 = arith.constant 0 : i32
    %c0_i32_1 = arith.constant 0 : i32
    return %c0_i32, %c0_i32_0 : i32, i32
  }
  func.func @transform_3(%arg0: i32) -> (i32, i32, i32) {
    %c0_i32 = arith.constant 0 : i32
    %c0_i32_0 = arith.constant 0 : i32
    %c0_i32_1 = arith.constant 0 : i32
    %c0_i32_2 = arith.constant 0 : i32
    return %c0_i32, %c0_i32_0, %c0_i32_1 : i32, i32, i32
  }
  func.func @transform_4(%arg0: i32) -> (i32, i32) {
    %c0_i32 = arith.constant 0 : i32
    %c0_i32_0 = arith.constant 0 : i32
    %c0_i32_1 = arith.constant 0 : i32
    return %c0_i32, %c0_i32_0 : i32, i32
  }
  func.func @transform_5(%arg0: i32) -> (i32, i32, i32) {
    %c0_i32 = arith.constant 0 : i32
    %c0_i32_0 = arith.constant 0 : i32
    %c0_i32_1 = arith.constant 0 : i32
    %c0_i32_2 = arith.constant 0 : i32
    return %c0_i32, %c0_i32_0, %c0_i32_1 : i32, i32, i32
  }
  func.func @transform_6(%arg0: i32) -> (i32, i32) {
    %c0_i32 = arith.constant 0 : i32
    %c0_i32_0 = arith.constant 0 : i32
    %c0_i32_1 = arith.constant 0 : i32
    return %c0_i32, %c0_i32_0 : i32, i32
  }
  func.func @transform_7(%arg0: i32) -> (i32, i32, i32) {
    %c0_i32 = arith.constant 0 : i32
    %c0_i32_0 = arith.constant 0 : i32
    %c0_i32_1 = arith.constant 0 : i32
    return %arg0, %c0_i32, %c0_i32_0 : i32, i32, i32
  }
}

</mosaic_0001>

<llo_original>
// kernel: conv_tower_forward.1
$region0: #{conv_tower_forward.1}
  #allocation0 [shape = 'u32[]', space=smem, size = 0x4, offset = 0x4, fixed_abs, tag = 'smem constant byte address 0x4 - core index']
  #allocation1 [shape = 'u32[144,128]{1,0:T(1,128)}', space=vmem, size = 0x12000, scoped, tag = 'internal scratch']
  #allocation2 [shape = 'bf16[10,10,64]{2,1,0:T(8,128)(2,1)}', space=vmem, size = 0xa000, scoped, tag = 'scratch operand']
  #allocation3 [shape = 'bf16[6,6,128]{2,1,0:T(8,128)(2,1)}', space=vmem, size = 0x3000, scoped, tag = 'scratch operand']
  %s0 = inlined_call_operand.vmem [shape: bf16[2,18,18,3], index: 0, kind: input, shape index: {}]
  %s1 = inlined_call_operand.vmem [shape: bf16[9,3,64], index: 1, kind: input, shape index: {}]
  %s2 = inlined_call_operand.vmem [shape: f32[1,64], index: 2, kind: input, shape index: {}]
  %s3 = inlined_call_operand.vmem [shape: bf16[9,64,128], index: 3, kind: input, shape index: {}]
  %s4 = inlined_call_operand.vmem [shape: f32[1,128], index: 4, kind: input, shape index: {}]
  %s5 = inlined_call_operand.vmem [shape: bf16[9,128,256], index: 5, kind: input, shape index: {}]
  %s6 = inlined_call_operand.vmem [shape: f32[1,256], index: 6, kind: input, shape index: {}]
  %s7 = inlined_call_operand.vmem [shape: f32[2,4,256], index: 7, kind: output, shape index: {}]
  %s8 = sld [smem:[#allocation0]]
  $region61: #{conv_tower_forward.1} parent=0
    _
  %s10 = ssub.s32 1, %s8
  %s11 = scalar_select 0, %s10, %s8
  loop: start=0, step=1, limit=4
  $region2: #{conv_tower_forward.1} parent=0 // loop_pre_header
    _
  $region3: #{conv_tower_forward.1} parent=0 // loop_header
    %s13 = sphi 0, %s17
    %p14 = scmp.ge.s32.totalorder %s13, 4
    %s23 = sphi 0, %s25
    %s26 = sphi 0, %s23
    %s27 = sphi 0, %s26
    %s43 = sphi 0, %s27
    %s47 = sphi 0, %s47
    %s49 = sphi 0, %s47
    %s50 = sphi 0, %s49
    %s64 = sphi 0, %s50
    %s68 = sphi 0, %s68
    %s70 = sphi 0, %s68
    %s71 = sphi 0, %s70
    %s85 = sphi 0, %s71
    %s89 = sphi 0, %s89
    %s91 = sphi 0, %s89
    %s92 = sphi 0, %s91
    %s106 = sphi 0, %s92
    %s110 = sphi 0, %s110
    %s112 = sphi 0, %s110
    %s113 = sphi 0, %s112
    %s127 = sphi 0, %s113
    %s131 = sphi 0, %s131
    %s133 = sphi 0, %s131
    %s134 = sphi 0, %s133
    %s148 = sphi 0, %s134
    %s152 = sphi 0, %s152
    %s154 = sphi 0, %s152
    %s155 = sphi 0, %s154
    %s169 = sphi 0, %s155
    %s175 = sphi 0, %s177
    %s178 = sphi 0, %s175
    %s179 = sphi 0, %s178
    %s195 = sphi 0, %s179
  $region4: #{conv_tower_forward.1} parent=0 // loop_header_branch
    %16 = sbr.rel (%p14) target = $region8
  $region5: #{conv_tower_forward.1} parent=0 // loop_body
    %s18 = ssub.s32 %s13, 1
    %s19 = ssub.s32 %s13, 2
    %s20 = sadd.s32 %s13, 1
    %s21 = ssub.s32 %s13, %s20
    %p22 = scmp.eq.s32.totalorder %s21, 0
    %s24 = sadd.s32 %s23, 1
    %s25 = scalar_select %p22, %s23, %s24
    %p28 = pneg %p22
    %p29 = scmp.eq.s32.totalorder %s13, 1
    %p30 = por %p28, %p29
    %p31 = scmp.ne.s32.totalorder %s23, %s26
    %p32 = scmp.eq.s32.totalorder %s13, 0
    %p33 = por %p31, %p32
    %p34 = scmp.ne.s32.totalorder %s23, %s26
    %p35 = scmp.eq.s32.totalorder %s18, 1
    %p36 = por %p34, %p35
    %p37 = scmp.ne.s32.totalorder %s26, %s27
    %p38 = scmp.eq.s32.totalorder %s18, 0
    %p39 = por %p37, %p38
    %p40 = scmp.ne.s32.totalorder %s26, %s27
    %p41 = scmp.eq.s32.totalorder %s19, 1
    %p42 = por %p40, %p41
    %p44 = scmp.ne.s32.totalorder %s27, %s43
    %p45 = scmp.eq.s32.totalorder %s19, 0
    %p46 = por %p44, %p45
    %s48 = sadd.s32 %s47, 1
    %p51 = scmp.eq.s32.totalorder %s13, 1
    %p52 = scmp.ne.s32.totalorder %s47, %s49
    %p53 = scmp.eq.s32.totalorder %s13, 0
    %p54 = por %p52, %p53
    %p55 = scmp.ne.s32.totalorder %s47, %s49
    %p56 = scmp.eq.s32.totalorder %s18, 1
    %p57 = por %p55, %p56
    %p58 = scmp.ne.s32.totalorder %s49, %s50
    %p59 = scmp.eq.s32.totalorder %s18, 0
    %p60 = por %p58, %p59
    %p61 = scmp.ne.s32.totalorder %s49, %s50
    %p62 = scmp.eq.s32.totalorder %s19, 1
    %p63 = por %p61, %p62
    %p65 = scmp.ne.s32.totalorder %s50, %s64
    %p66 = scmp.eq.s32.totalorder %s19, 0
    %p67 = por %p65, %p66
    %s69 = sadd.s32 %s68, 1
    %p72 = scmp.eq.s32.totalorder %s13, 1
    %p73 = scmp.ne.s32.totalorder %s68, %s70
    %p74 = scmp.eq.s32.totalorder %s13, 0
    %p75 = por %p73, %p74
    %p76 = scmp.ne.s32.totalorder %s68, %s70
    %p77 = scmp.eq.s32.totalorder %s18, 1
    %p78 = por %p76, %p77
    %p79 = scmp.ne.s32.totalorder %s70, %s71
    %p80 = scmp.eq.s32.totalorder %s18, 0
    %p81 = por %p79, %p80
    %p82 = scmp.ne.s32.totalorder %s70, %s71
    %p83 = scmp.eq.s32.totalorder %s19, 1
    %p84 = por %p82, %p83
    %p86 = scmp.ne.s32.totalorder %s71, %s85
    %p87 = scmp.eq.s32.totalorder %s19, 0
    %p88 = por %p86, %p87
    %s90 = sadd.s32 %s89, 1
    %p93 = scmp.eq.s32.totalorder %s13, 1
    %p94 = scmp.ne.s32.totalorder %s89, %s91
    %p95 = scmp.eq.s32.totalorder %s13, 0
    %p96 = por %p94, %p95
    %p97 = scmp.ne.s32.totalorder %s89, %s91
    %p98 = scmp.eq.s32.totalorder %s18, 1
    %p99 = por %p97, %p98
    %p100 = scmp.ne.s32.totalorder %s91, %s92
    %p101 = scmp.eq.s32.totalorder %s18, 0
    %p102 = por %p100, %p101
    %p103 = scmp.ne.s32.totalorder %s91, %s92
    %p104 = scmp.eq.s32.totalorder %s19, 1
    %p105 = por %p103, %p104
    %p107 = scmp.ne.s32.totalorder %s92, %s106
    %p108 = scmp.eq.s32.totalorder %s19, 0
    %p109 = por %p107, %p108
    %s111 = sadd.s32 %s110, 1
    %p114 = scmp.eq.s32.totalorder %s13, 1
    %p115 = scmp.ne.s32.totalorder %s110, %s112
    %p116 = scmp.eq.s32.totalorder %s13, 0
    %p117 = por %p115, %p116
    %p118 = scmp.ne.s32.totalorder %s110, %s112
    %p119 = scmp.eq.s32.totalorder %s18, 1
    %p120 = por %p118, %p119
    %p121 = scmp.ne.s32.totalorder %s112, %s113
    %p122 = scmp.eq.s32.totalorder %s18, 0
    %p123 = por %p121, %p122
    %p124 = scmp.ne.s32.totalorder %s112, %s113
    %p125 = scmp.eq.s32.totalorder %s19, 1
    %p126 = por %p124, %p125
    %p128 = scmp.ne.s32.totalorder %s113, %s127
    %p129 = scmp.eq.s32.totalorder %s19, 0
    %p130 = por %p128, %p129
    %s132 = sadd.s32 %s131, 1
    %p135 = scmp.eq.s32.totalorder %s13, 1
    %p136 = scmp.ne.s32.totalorder %s131, %s133
    %p137 = scmp.eq.s32.totalorder %s13, 0
    %p138 = por %p136, %p137
    %p139 = scmp.ne.s32.totalorder %s131, %s133
    %p140 = scmp.eq.s32.totalorder %s18, 1
    %p141 = por %p139, %p140
    %p142 = scmp.ne.s32.totalorder %s133, %s134
    %p143 = scmp.eq.s32.totalorder %s18, 0
    %p144 = por %p142, %p143
    %p145 = scmp.ne.s32.totalorder %s133, %s134
    %p146 = scmp.eq.s32.totalorder %s19, 1
    %p147 = por %p145, %p146
    %p149 = scmp.ne.s32.totalorder %s134, %s148
    %p150 = scmp.eq.s32.totalorder %s19, 0
    %p151 = por %p149, %p150
    %s153 = sadd.s32 %s152, 1
    %p156 = scmp.eq.s32.totalorder %s13, 1
    %p157 = scmp.ne.s32.totalorder %s152, %s154
    %p158 = scmp.eq.s32.totalorder %s13, 0
    %p159 = por %p157, %p158
    %p160 = scmp.ne.s32.totalorder %s152, %s154
    %p161 = scmp.eq.s32.totalorder %s18, 1
    %p162 = por %p160, %p161
    %p163 = scmp.ne.s32.totalorder %s154, %s155
    %p164 = scmp.eq.s32.totalorder %s18, 0
    %p165 = por %p163, %p164
    %p166 = scmp.ne.s32.totalorder %s154, %s155
    %p167 = scmp.eq.s32.totalorder %s19, 1
    %p168 = por %p166, %p167
    %p170 = scmp.ne.s32.totalorder %s155, %s169
    %p171 = scmp.eq.s32.totalorder %s19, 0
    %p172 = por %p170, %p171
    %s173 = ssub.s32 %s13, %s20
    %p174 = scmp.eq.s32.totalorder %s173, 0
    %s176 = sadd.s32 %s175, 1
    %s177 = scalar_select %p174, %s175, %s176
    %p180 = pneg %p174
    %p181 = scmp.eq.s32.totalorder %s13, 1
    %p182 = por %p180, %p181
    %p183 = scmp.ne.s32.totalorder %s175, %s178
    %p184 = scmp.eq.s32.totalorder %s13, 0
    %p185 = por %p183, %p184
    %p186 = scmp.ne.s32.totalorder %s175, %s178
    %p187 = scmp.eq.s32.totalorder %s18, 1
    %p188 = por %p186, %p187
    %p189 = scmp.ne.s32.totalorder %s178, %s179
    %p190 = scmp.eq.s32.totalorder %s18, 0
    %p191 = por %p189, %p190
    %p192 = scmp.ne.s32.totalorder %s178, %s179
    %p193 = scmp.eq.s32.totalorder %s19, 1
    %p194 = por %p192, %p193
    %p196 = scmp.ne.s32.totalorder %s179, %s195
    %p197 = scmp.eq.s32.totalorder %s19, 0
    %p198 = por %p196, %p197
    %p199 = scmp.le.s32.totalorder 1, %s13
    %p200 = scmp.lt.s32.totalorder %s13, 3
    %p201 = pnand %p199, %p200
    %p202 = pneg %p201
    // Predicated region
    $region9: #{conv_tower_forward.1} parent=5 // pred_check
      _
    $region10: #{conv_tower_forward.1} parent=5 // pred_check_branch
      %204 = sbr.rel (%p201) target = $region12
    $region11: #{conv_tower_forward.1} parent=5 // pred_region
      %s205 = ssub.s32 %s13, 1
      // Predicated region
      $region13: #{conv_tower_forward.1} parent=11 // pred_check
        %p206 = pneg %p60
      $region14: #{conv_tower_forward.1} parent=11 // pred_check_branch
        %208 = sbr.rel (%p206) target = $region16
      $region15: #{conv_tower_forward.1} parent=11 // pred_region
        _
      $region16: #{conv_tower_forward.1} parent=11 // pred_fallthru
        _
      // Predicated region
      $region17: #{conv_tower_forward.1} parent=11 // pred_check
        %p209 = pneg %p81
      $region18: #{conv_tower_forward.1} parent=11 // pred_check_branch
        %211 = sbr.rel (%p209) target = $region20
      $region19: #{conv_tower_forward.1} parent=11 // pred_region
        _
      $region20: #{conv_tower_forward.1} parent=11 // pred_fallthru
        _
      // Predicated region
      $region21: #{conv_tower_forward.1} parent=11 // pred_check
        %p212 = pneg %p102
      $region22: #{conv_tower_forward.1} parent=11 // pred_check_branch
        %214 = sbr.rel (%p212) target = $region24
      $region23: #{conv_tower_forward.1} parent=11 // pred_region
        _
      $region24: #{conv_tower_forward.1} parent=11 // pred_fallthru
        _
      // Predicated region
      $region25: #{conv_tower_forward.1} parent=11 // pred_check
        %p215 = pneg %p123
      $region26: #{conv_tower_forward.1} parent=11 // pred_check_branch
        %217 = sbr.rel (%p215) target = $region28
      $region27: #{conv_tower_forward.1} parent=11 // pred_region
        _
      $region28: #{conv_tower_forward.1} parent=11 // pred_fallthru
        _
      // Predicated region
      $region29: #{conv_tower_forward.1} parent=11 // pred_check
        %p218 = pneg %p144
      $region30: #{conv_tower_forward.1} parent=11 // pred_check_branch
        %220 = sbr.rel (%p218) target = $region32
      $region31: #{conv_tower_forward.1} parent=11 // pred_region
        _
      $region32: #{conv_tower_forward.1} parent=11 // pred_fallthru
        _
      // Predicated region
      $region33: #{conv_tower_forward.1} parent=11 // pred_check
        %p221 = pneg %p165
      $region34: #{conv_tower_forward.1} parent=11 // pred_check_branch
        %223 = sbr.rel (%p221) target = $region36
      $region35: #{conv_tower_forward.1} parent=11 // pred_region
        _
      $region36: #{conv_tower_forward.1} parent=11 // pred_fallthru
        _
    $region12: #{conv_tower_forward.1} parent=5 // pred_fallthru
      _
    %p224 = scmp.lt.s32.totalorder %s13, 2
    // Predicated region
    $region37: #{conv_tower_forward.1} parent=5 // pred_check
      %p225 = pneg %p224
    $region38: #{conv_tower_forward.1} parent=5 // pred_check_branch
      %227 = sbr.rel (%p225) target = $region40
    $region39: #{conv_tower_forward.1} parent=5 // pred_region
      // Predicated region
      $region41: #{conv_tower_forward.1} parent=39 // pred_check
        %p228 = pneg %p33
      $region42: #{conv_tower_forward.1} parent=39 // pred_check_branch
        %230 = sbr.rel (%p228) target = $region44
      $region43: #{conv_tower_forward.1} parent=39 // pred_region
        %p231 = scmp.lt.s32.totalorder %s13, 1
        %s232 = scalar_select %p231, %s13, 1
        %s233 = smul.addr %s232, 54
        %s234 = smul.addr %s233, 4
        %s235 = scalar_lea.vmem %s0, %s234
      $region44: #{conv_tower_forward.1} parent=39 // pred_fallthru
        _
    $region40: #{conv_tower_forward.1} parent=5 // pred_fallthru
      _
    %p236 = scmp.le.s32.totalorder 1, %s13
    %p237 = scmp.lt.s32.totalorder %s13, 3
    %p238 = pnand %p236, %p237
    %p239 = pneg %p238
    // Predicated region
    $region45: #{conv_tower_forward.1} parent=5 // pred_check
      _
    $region46: #{conv_tower_forward.1} parent=5 // pred_check_branch
      %241 = sbr.rel (%p238) target = $region48
    $region47: #{conv_tower_forward.1} parent=5 // pred_region
      %s242 = ssub.s32 %s13, 1
      %p243 = scmp.lt.s32.totalorder %s18, 1
      %s244 = scalar_select %p243, %s18, 1
      %s245 = smul.addr %s244, 54
      %s246 = smul.addr %s245, 4
      %s247 = scalar_lea.vmem %s0, %s246
      %p248 = pneg %p39
      %p249 = pneg %p36
      %p250 = pneg %p60
      %p251 = pneg %p57
      %p252 = pneg %p81
      %p253 = pneg %p78
      %p254 = pneg %p102
      %p255 = pneg %p99
      %p256 = pneg %p123
      %p257 = pneg %p120
      %p258 = pneg %p144
      %p259 = pneg %p141
      %p260 = pneg %p165
      %p261 = pneg %p162
      %p262 = pneg %p191
      %p263 = pneg %p188
      %p264 = scmp.lt.s32.totalorder %s18, 1
      %s265 = scalar_select %p264, %s18, 1
      %s266 = smul.addr %s265, 2
      %s267 = smul.addr %s266, 4
      %s268 = scalar_lea.vmem %s7, %s267
      %p269 = scmp.lt.s32.totalorder %s18, 1
      %s270 = scalar_select %p269, %s18, 1
      %s271 = smul.addr %s270, 54
      %s272 = smul.addr %s271, 4
      %s273 = scalar_lea.vmem %s0, %s272
      %p274 = scmp.lt.s32.totalorder %s18, 1
      %s275 = scalar_select %p274, %s18, 1
      %s276 = smul.addr %s275, 2
      %s277 = smul.addr %s276, 4
      %s278 = scalar_lea.vmem %s7, %s277
      %vm280 = vcmask 519168
      %281 = vst.msk [vmem:[#allocation2] sm:$0xf] %vm280, 0
      %vm282 = vcmask 516096
      %283 = vst.msk [vmem:[#allocation2 + $0x4] sm:$0x1] %vm282, 0
      %284 = vst.msk [vmem:[#allocation2 + $0x8] sm:$0xf] %vm280, 0
      %285 = vst.msk [vmem:[#allocation2 + $0xc] sm:$0x1] %vm282, 0
      %286 = vst.msk [vmem:[#allocation2 + $0x10] sm:$0xf] %vm280, 0
      %287 = vst.msk [vmem:[#allocation2 + $0x14] sm:$0x1] %vm282, 0
      %288 = vst.msk [vmem:[#allocation2 + $0x18] sm:$0xf] %vm280, 0
      %289 = vst.msk [vmem:[#allocation2 + $0x1c] sm:$0x1] %vm282, 0
      %290 = vst.msk [vmem:[#allocation2 + $0x20] sm:$0xf] %vm280, 0
      %291 = vst.msk [vmem:[#allocation2 + $0x24] sm:$0x1] %vm282, 0
      %292 = vst.msk [vmem:[#allocation2 + $0x28] sm:$0xf] %vm280, 0
      %293 = vst.msk [vmem:[#allocation2 + $0x2c] sm:$0x1] %vm282, 0
      %294 = vst.msk [vmem:[#allocation2 + $0x30] sm:$0xf] %vm280, 0
      %295 = vst.msk [vmem:[#allocation2 + $0x34] sm:$0x1] %vm282, 0
      %296 = vst.msk [vmem:[#allocation2 + $0x38] sm:$0xf] %vm280, 0
      %297 = vst.msk [vmem:[#allocation2 + $0x3c] sm:$0x1] %vm282, 0
      %298 = vst.msk [vmem:[#allocation2 + $0x40] sm:$0xf] %vm280, 0
      %299 = vst.msk [vmem:[#allocation2 + $0x44] sm:$0x1] %vm282, 0
      %300 = vst.msk [vmem:[#allocation2 + $0x48] sm:$0xf] %vm280, 0
      %301 = vst.msk [vmem:[#allocation2 + $0x4c] sm:$0x1] %vm282, 0
      %302 = vst [vmem:[#allocation3] sm:$0x7] 0
      %303 = vst [vmem:[#allocation3 + $0x4] sm:$0x7] 0
      %304 = vst [vmem:[#allocation3 + $0x8] sm:$0x7] 0
      %305 = vst [vmem:[#allocation3 + $0xc] sm:$0x7] 0
      %306 = vst [vmem:[#allocation3 + $0x10] sm:$0x7] 0
      %307 = vst [vmem:[#allocation3 + $0x14] sm:$0x7] 0
      %v308 = vld [vmem:[%s273] sm:$0xf]
      %v309 = vld [vmem:[%s273 + $0x4] sm:$0xf]
      %v310 = vld [vmem:[%s273 + $0x8] sm:$0x1]
      %v311 = vld [vmem:[%s273 + $0x18] sm:$0xf]
      %v312 = vld [vmem:[%s273 + $0x1c] sm:$0xf]
      %v313 = vld [vmem:[%s273 + $0x20] sm:$0x1]
      %v314 = vld [vmem:[%s273 + $0x30] sm:$0xf]
      %v315 = vld [vmem:[%s273 + $0x34] sm:$0xf]
      %v316 = vld [vmem:[%s273 + $0x38] sm:$0x1]
      %v317 = vld [vmem:[%s273 + $0x48] sm:$0xf]
      %v318 = vld [vmem:[%s273 + $0x4c] sm:$0xf]
      %v319 = vld [vmem:[%s273 + $0x50] sm:$0x1]
      %v320 = vld [vmem:[%s273 + $0x60] sm:$0xf]
      %v321 = vld [vmem:[%s273 + $0x64] sm:$0xf]
      %v322 = vld [vmem:[%s273 + $0x68] sm:$0x1]
      %v323 = vld [vmem:[%s273 + $0x78] sm:$0xf]
      %v324 = vld [vmem:[%s273 + $0x7c] sm:$0xf]
      %v325 = vld [vmem:[%s273 + $0x80] sm:$0x1]
      %v326 = vld [vmem:[%s273 + $0x90] sm:$0xf]
      %v327 = vld [vmem:[%s273 + $0x94] sm:$0xf]
      %v328 = vld [vmem:[%s273 + $0x98] sm:$0x1]
      %v329 = vld [vmem:[%s273 + $0xa8] sm:$0xf]
      %v330 = vld [vmem:[%s273 + $0xac] sm:$0xf]
      %v331 = vld [vmem:[%s273 + $0xb0] sm:$0x1]
      %v357 = vunpack.c.l.s4 1966171168
      %v358 = vunpack.c.0.s8 %v357
      %v359 = vlaneseq
      %v360 = vshrl.u32 %v359, 7
      %v361 = vsub.s32 %v358, %v360
      %v362 = vrot.slane %v308, %v361
      %v363 = vcombine.high %v362, %v362
      %v365 = vunpack.c.l.s4 1966171168
      %v366 = vunpack.c.0.s8 %v365
      %v367 = vlaneseq
      %v368 = vshrl.u32 %v367, 7
      %v369 = vsub.s32 %v366, %v368
      %v370 = vrot.slane %v362, %v369
      %v372 = vunpack.c.l.s4 1966171168
      %v373 = vunpack.c.0.s8 %v372
      %v374 = vlaneseq
      %v375 = vshrl.u32 %v374, 7
      %v376 = vsub.s32 %v373, %v375
      %v377 = vrot.slane %v363, %v376
      %v378 = vcombine.high %v370, %v370
      %v379 = vcombine.high %v377, %v377
      %v381 = vunpack.c.l.s4 1966171168
      %v382 = vunpack.c.0.s8 %v381
      %v383 = vlaneseq
      %v384 = vshrl.u32 %v383, 7
      %v385 = vsub.s32 %v382, %v384
      %v386 = vrot.slane %v309, %v385
      %v387 = vcombine.high %v386, %v386
      %v389 = vunpack.c.l.s4 1966171168
      %v390 = vunpack.c.0.s8 %v389
      %v391 = vlaneseq
      %v392 = vshrl.u32 %v391, 7
      %v393 = vsub.s32 %v390, %v392
      %v394 = vrot.slane %v386, %v393
      %v396 = vunpack.c.l.s4 1966171168
      %v397 = vunpack.c.0.s8 %v396
      %v398 = vlaneseq
      %v399 = vshrl.u32 %v398, 7
      %v400 = vsub.s32 %v397, %v399
      %v401 = vrot.slane %v387, %v400
      %v402 = vcombine.high %v394, %v394
      %v403 = vcombine.high %v401, %v401
      %v405 = vunpack.c.l.s4 1966171168
      %v406 = vunpack.c.0.s8 %v405
      %v407 = vlaneseq
      %v408 = vshrl.u32 %v407, 7
      %v409 = vsub.s32 %v406, %v408
      %v410 = vrot.slane %v310, %v409
      %v412 = vunpack.c.l.s4 1966171168
      %v413 = vunpack.c.0.s8 %v412
      %v414 = vlaneseq
      %v415 = vshrl.u32 %v414, 7
      %v416 = vsub.s32 %v413, %v415
      %v417 = vrot.slane %v410, %v416
      %v419 = vunpack.c.l.s4 1966171168
      %v420 = vunpack.c.0.s8 %v419
      %v421 = vlaneseq
      %v422 = vshrl.u32 %v421, 7
      %v423 = vsub.s32 %v420, %v422
      %v424 = vrot.slane %v311, %v423
      %v425 = vcombine.high %v424, %v424
      %v427 = vunpack.c.l.s4 1966171168
      %v428 = vunpack.c.0.s8 %v427
      %v429 = vlaneseq
      %v430 = vshrl.u32 %v429, 7
      %v431 = vsub.s32 %v428, %v430
      %v432 = vrot.slane %v424, %v431
      %v434 = vunpack.c.l.s4 1966171168
      %v435 = vunpack.c.0.s8 %v434
      %v436 = vlaneseq
      %v437 = vshrl.u32 %v436, 7
      %v438 = vsub.s32 %v435, %v437
      %v439 = vrot.slane %v425, %v438
      %v440 = vcombine.high %v432, %v432
      %v441 = vcombine.high %v439, %v439
      %v443 = vunpack.c.l.s4 1966171168
      %v444 = vunpack.c.0.s8 %v443
      %v445 = vlaneseq
      %v446 = vshrl.u32 %v445, 7
      %v447 = vsub.s32 %v444, %v446
      %v448 = vrot.slane %v312, %v447
      %v449 = vcombine.high %v448, %v448
      %v451 = vunpack.c.l.s4 1966171168
      %v452 = vunpack.c.0.s8 %v451
      %v453 = vlaneseq
      %v454 = vshrl.u32 %v453, 7
      %v455 = vsub.s32 %v452, %v454
      %v456 = vrot.slane %v448, %v455
      %v458 = vunpack.c.l.s4 1966171168
      %v459 = vunpack.c.0.s8 %v458
      %v460 = vlaneseq
      %v461 = vshrl.u32 %v460, 7
      %v462 = vsub.s32 %v459, %v461
      %v463 = vrot.slane %v449, %v462
      %v464 = vcombine.high %v456, %v456
      %v465 = vcombine.high %v463, %v463
      %v467 = vunpack.c.l.s4 1966171168
      %v468 = vunpack.c.0.s8 %v467
      %v469 = vlaneseq
      %v470 = vshrl.u32 %v469, 7
      %v471 = vsub.s32 %v468, %v470
      %v472 = vrot.slane %v313, %v471
      %v474 = vunpack.c.l.s4 1966171168
      %v475 = vunpack.c.0.s8 %v474
      %v476 = vlaneseq
      %v477 = vshrl.u32 %v476, 7
      %v478 = vsub.s32 %v475, %v477
      %v479 = vrot.slane %v472, %v478
      %v481 = vunpack.c.l.s4 1966171168
      %v482 = vunpack.c.0.s8 %v481
      %v483 = vlaneseq
      %v484 = vshrl.u32 %v483, 7
      %v485 = vsub.s32 %v482, %v484
      %v486 = vrot.slane %v314, %v485
      %v487 = vcombine.high %v486, %v486
      %v489 = vunpack.c.l.s4 1966171168
      %v490 = vunpack.c.0.s8 %v489
      %v491 = vlaneseq
      %v492 = vshrl.u32 %v491, 7
      %v493 = vsub.s32 %v490, %v492
      %v494 = vrot.slane %v486, %v493
      %v496 = vunpack.c.l.s4 1966171168
      %v497 = vunpack.c.0.s8 %v496
      %v498 = vlaneseq
      %v499 = vshrl.u32 %v498, 7
      %v500 = vsub.s32 %v497, %v499
      %v501 = vrot.slane %v487, %v500
      %v502 = vcombine.high %v494, %v494
      %v503 = vcombine.high %v501, %v501
      %v505 = vunpack.c.l.s4 1966171168
      %v506 = vunpack.c.0.s8 %v505
      %v507 = vlaneseq
      %v508 = vshrl.u32 %v507, 7
      %v509 = vsub.s32 %v506, %v508
      %v510 = vrot.slane %v315, %v509
      %v511 = vcombine.high %v510, %v510
      %v513 = vunpack.c.l.s4 1966171168
      %v514 = vunpack.c.0.s8 %v513
      %v515 = vlaneseq
      %v516 = vshrl.u32 %v515, 7
      %v517 = vsub.s32 %v514, %v516
      %v518 = vrot.slane %v510, %v517
      %v520 = vunpack.c.l.s4 1966171168
      %v521 = vunpack.c.0.s8 %v520
      %v522 = vlaneseq
      %v523 = vshrl.u32 %v522, 7
      %v524 = vsub.s32 %v521, %v523
      %v525 = vrot.slane %v511, %v524
      %v526 = vcombine.high %v518, %v518
      %v527 = vcombine.high %v525, %v525
      %v529 = vunpack.c.l.s4 1966171168
      %v530 = vunpack.c.0.s8 %v529
      %v531 = vlaneseq
      %v532 = vshrl.u32 %v531, 7
      %v533 = vsub.s32 %v530, %v532
      %v534 = vrot.slane %v316, %v533
      %v536 = vunpack.c.l.s4 1966171168
      %v537 = vunpack.c.0.s8 %v536
      %v538 = vlaneseq
      %v539 = vshrl.u32 %v538, 7
      %v540 = vsub.s32 %v537, %v539
      %v541 = vrot.slane %v534, %v540
      %v543 = vunpack.c.l.s4 1966171168
      %v544 = vunpack.c.0.s8 %v543
      %v545 = vlaneseq
      %v546 = vshrl.u32 %v545, 7
      %v547 = vsub.s32 %v544, %v546
      %v548 = vrot.slane %v317, %v547
      %v549 = vcombine.high %v548, %v548
      %v551 = vunpack.c.l.s4 1966171168
      %v552 = vunpack.c.0.s8 %v551
      %v553 = vlaneseq
      %v554 = vshrl.u32 %v553, 7
      %v555 = vsub.s32 %v552, %v554
      %v556 = vrot.slane %v548, %v555
      %v558 = vunpack.c.l.s4 1966171168
      %v559 = vunpack.c.0.s8 %v558
      %v560 = vlaneseq
      %v561 = vshrl.u32 %v560, 7
      %v562 = vsub.s32 %v559, %v561
      %v563 = vrot.slane %v549, %v562
      %v564 = vcombine.high %v556, %v556
      %v565 = vcombine.high %v563, %v563
      %v567 = vunpack.c.l.s4 1966171168
      %v568 = vunpack.c.0.s8 %v567
      %v569 = vlaneseq
      %v570 = vshrl.u32 %v569, 7
      %v571 = vsub.s32 %v568, %v570
      %v572 = vrot.slane %v318, %v571
      %v573 = vcombine.high %v572, %v572
      %v575 = vunpack.c.l.s4 1966171168
      %v576 = vunpack.c.0.s8 %v575
      %v577 = vlaneseq
      %v578 = vshrl.u32 %v577, 7
      %v579 = vsub.s32 %v576, %v578
      %v580 = vrot.slane %v572, %v579
      %v582 = vunpack.c.l.s4 1966171168
      %v583 = vunpack.c.0.s8 %v582
      %v584 = vlaneseq
      %v585 = vshrl.u32 %v584, 7
      %v586 = vsub.s32 %v583, %v585
      %v587 = vrot.slane %v573, %v586
      %v588 = vcombine.high %v580, %v580
      %v589 = vcombine.high %v587, %v587
      %v591 = vunpack.c.l.s4 1966171168
      %v592 = vunpack.c.0.s8 %v591
      %v593 = vlaneseq
      %v594 = vshrl.u32 %v593, 7
      %v595 = vsub.s32 %v592, %v594
      %v596 = vrot.slane %v319, %v595
      %v598 = vunpack.c.l.s4 1966171168
      %v599 = vunpack.c.0.s8 %v598
      %v600 = vlaneseq
      %v601 = vshrl.u32 %v600, 7
      %v602 = vsub.s32 %v599, %v601
      %v603 = vrot.slane %v596, %v602
      %v605 = vunpack.c.l.s4 1966171168
      %v606 = vunpack.c.0.s8 %v605
      %v607 = vlaneseq
      %v608 = vshrl.u32 %v607, 7
      %v609 = vsub.s32 %v606, %v608
      %v610 = vrot.slane %v320, %v609
      %v611 = vcombine.high %v610, %v610
      %v613 = vunpack.c.l.s4 1966171168
      %v614 = vunpack.c.0.s8 %v613
      %v615 = vlaneseq
      %v616 = vshrl.u32 %v615, 7
      %v617 = vsub.s32 %v614, %v616
      %v618 = vrot.slane %v610, %v617
      %v620 = vunpack.c.l.s4 1966171168
      %v621 = vunpack.c.0.s8 %v620
      %v622 = vlaneseq
      %v623 = vshrl.u32 %v622, 7
      %v624 = vsub.s32 %v621, %v623
      %v625 = vrot.slane %v611, %v624
      %v626 = vcombine.high %v618, %v618
      %v627 = vcombine.high %v625, %v625
      %v629 = vunpack.c.l.s4 1966171168
      %v630 = vunpack.c.0.s8 %v629
      %v631 = vlaneseq
      %v632 = vshrl.u32 %v631, 7
      %v633 = vsub.s32 %v630, %v632
      %v634 = vrot.slane %v321, %v633
      %v635 = vcombine.high %v634, %v634
      %v637 = vunpack.c.l.s4 1966171168
      %v638 = vunpack.c.0.s8 %v637
      %v639 = vlaneseq
      %v640 = vshrl.u32 %v639, 7
      %v641 = vsub.s32 %v638, %v640
      %v642 = vrot.slane %v634, %v641
      %v644 = vunpack.c.l.s4 1966171168
      %v645 = vunpack.c.0.s8 %v644
      %v646 = vlaneseq
      %v647 = vshrl.u32 %v646, 7
      %v648 = vsub.s32 %v645, %v647
      %v649 = vrot.slane %v635, %v648
      %v650 = vcombine.high %v642, %v642
      %v651 = vcombine.high %v649, %v649
      %v653 = vunpack.c.l.s4 1966171168
      %v654 = vunpack.c.0.s8 %v653
      %v655 = vlaneseq
      %v656 = vshrl.u32 %v655, 7
      %v657 = vsub.s32 %v654, %v656
      %v658 = vrot.slane %v322, %v657
      %v660 = vunpack.c.l.s4 1966171168
      %v661 = vunpack.c.0.s8 %v660
      %v662 = vlaneseq
      %v663 = vshrl.u32 %v662, 7
      %v664 = vsub.s32 %v661, %v663
      %v665 = vrot.slane %v658, %v664
      %v667 = vunpack.c.l.s4 1966171168
      %v668 = vunpack.c.0.s8 %v667
      %v669 = vlaneseq
      %v670 = vshrl.u32 %v669, 7
      %v671 = vsub.s32 %v668, %v670
      %v672 = vrot.slane %v323, %v671
      %v673 = vcombine.high %v672, %v672
      %v675 = vunpack.c.l.s4 1966171168
      %v676 = vunpack.c.0.s8 %v675
      %v677 = vlaneseq
      %v678 = vshrl.u32 %v677, 7
      %v679 = vsub.s32 %v676, %v678
      %v680 = vrot.slane %v672, %v679
      %v682 = vunpack.c.l.s4 1966171168
      %v683 = vunpack.c.0.s8 %v682
      %v684 = vlaneseq
      %v685 = vshrl.u32 %v684, 7
      %v686 = vsub.s32 %v683, %v685
      %v687 = vrot.slane %v673, %v686
      %v688 = vcombine.high %v680, %v680
      %v689 = vcombine.high %v687, %v687
      %v691 = vunpack.c.l.s4 1966171168
      %v692 = vunpack.c.0.s8 %v691
      %v693 = vlaneseq
      %v694 = vshrl.u32 %v693, 7
      %v695 = vsub.s32 %v692, %v694
      %v696 = vrot.slane %v324, %v695
      %v697 = vcombine.high %v696, %v696
      %v699 = vunpack.c.l.s4 1966171168
      %v700 = vunpack.c.0.s8 %v699
      %v701 = vlaneseq
      %v702 = vshrl.u32 %v701, 7
      %v703 = vsub.s32 %v700, %v702
      %v704 = vrot.slane %v696, %v703
      %v706 = vunpack.c.l.s4 1966171168
      %v707 = vunpack.c.0.s8 %v706
      %v708 = vlaneseq
      %v709 = vshrl.u32 %v708, 7
      %v710 = vsub.s32 %v707, %v709
      %v711 = vrot.slane %v697, %v710
      %v712 = vcombine.high %v704, %v704
      %v713 = vcombine.high %v711, %v711
      %v715 = vunpack.c.l.s4 1966171168
      %v716 = vunpack.c.0.s8 %v715
      %v717 = vlaneseq
      %v718 = vshrl.u32 %v717, 7
      %v719 = vsub.s32 %v716, %v718
      %v720 = vrot.slane %v325, %v719
      %v722 = vunpack.c.l.s4 1966171168
      %v723 = vunpack.c.0.s8 %v722
      %v724 = vlaneseq
      %v725 = vshrl.u32 %v724, 7
      %v726 = vsub.s32 %v723, %v725
      %v727 = vrot.slane %v720, %v726
      %v729 = vunpack.c.l.s4 1966171168
      %v730 = vunpack.c.0.s8 %v729
      %v731 = vlaneseq
      %v732 = vshrl.u32 %v731, 7
      %v733 = vsub.s32 %v730, %v732
      %v734 = vrot.slane %v326, %v733
      %v735 = vcombine.high %v734, %v734
      %v737 = vunpack.c.l.s4 1966171168
      %v738 = vunpack.c.0.s8 %v737
      %v739 = vlaneseq
      %v740 = vshrl.u32 %v739, 7
      %v741 = vsub.s32 %v738, %v740
      %v742 = vrot.slane %v734, %v741
      %v744 = vunpack.c.l.s4 1966171168
      %v745 = vunpack.c.0.s8 %v744
      %v746 = vlaneseq
      %v747 = vshrl.u32 %v746, 7
      %v748 = vsub.s32 %v745, %v747
      %v749 = vrot.slane %v735, %v748
      %v750 = vcombine.high %v742, %v742
      %v751 = vcombine.high %v749, %v749
      %v753 = vunpack.c.l.s4 1966171168
      %v754 = vunpack.c.0.s8 %v753
      %v755 = vlaneseq
      %v756 = vshrl.u32 %v755, 7
      %v757 = vsub.s32 %v754, %v756
      %v758 = vrot.slane %v327, %v757
      %v759 = vcombine.high %v758, %v758
      %v761 = vunpack.c.l.s4 1966171168
      %v762 = vunpack.c.0.s8 %v761
      %v763 = vlaneseq
      %v764 = vshrl.u32 %v763, 7
      %v765 = vsub.s32 %v762, %v764
      %v766 = vrot.slane %v758, %v765
      %v768 = vunpack.c.l.s4 1966171168
      %v769 = vunpack.c.0.s8 %v768
      %v770 = vlaneseq
      %v771 = vshrl.u32 %v770, 7
      %v772 = vsub.s32 %v769, %v771
      %v773 = vrot.slane %v759, %v772
      %v774 = vcombine.high %v766, %v766
      %v775 = vcombine.high %v773, %v773
      %v777 = vunpack.c.l.s4 1966171168
      %v778 = vunpack.c.0.s8 %v777
      %v779 = vlaneseq
      %v780 = vshrl.u32 %v779, 7
      %v781 = vsub.s32 %v778, %v780
      %v782 = vrot.slane %v328, %v781
      %v784 = vunpack.c.l.s4 1966171168
      %v785 = vunpack.c.0.s8 %v784
      %v786 = vlaneseq
      %v787 = vshrl.u32 %v786, 7
      %v788 = vsub.s32 %v785, %v787
      %v789 = vrot.slane %v782, %v788
      %v791 = vunpack.c.l.s4 1966171168
      %v792 = vunpack.c.0.s8 %v791
      %v793 = vlaneseq
      %v794 = vshrl.u32 %v793, 7
      %v795 = vsub.s32 %v792, %v794
      %v796 = vrot.slane %v329, %v795
      %v797 = vcombine.high %v796, %v796
      %v799 = vunpack.c.l.s4 1966171168
      %v800 = vunpack.c.0.s8 %v799
      %v801 = vlaneseq
      %v802 = vshrl.u32 %v801, 7
      %v803 = vsub.s32 %v800, %v802
      %v804 = vrot.slane %v796, %v803
      %v806 = vunpack.c.l.s4 1966171168
      %v807 = vunpack.c.0.s8 %v806
      %v808 = vlaneseq
      %v809 = vshrl.u32 %v808, 7
      %v810 = vsub.s32 %v807, %v809
      %v811 = vrot.slane %v797, %v810
      %v812 = vcombine.high %v804, %v804
      %v813 = vcombine.high %v811, %v811
      %v815 = vunpack.c.l.s4 1966171168
      %v816 = vunpack.c.0.s8 %v815
      %v817 = vlaneseq
      %v818 = vshrl.u32 %v817, 7
      %v819 = vsub.s32 %v816, %v818
      %v820 = vrot.slane %v330, %v819
      %v821 = vcombine.high %v820, %v820
      %v823 = vunpack.c.l.s4 1966171168
      %v824 = vunpack.c.0.s8 %v823
      %v825 = vlaneseq
      %v826 = vshrl.u32 %v825, 7
      %v827 = vsub.s32 %v824, %v826
      %v828 = vrot.slane %v820, %v827
      %v830 = vunpack.c.l.s4 1966171168
      %v831 = vunpack.c.0.s8 %v830
      %v832 = vlaneseq
      %v833 = vshrl.u32 %v832, 7
      %v834 = vsub.s32 %v831, %v833
      %v835 = vrot.slane %v821, %v834
      %v836 = vcombine.high %v828, %v828
      %v837 = vcombine.high %v835, %v835
      %v839 = vunpack.c.l.s4 1966171168
      %v840 = vunpack.c.0.s8 %v839
      %v841 = vlaneseq
      %v842 = vshrl.u32 %v841, 7
      %v843 = vsub.s32 %v840, %v842
      %v844 = vrot.slane %v331, %v843
      %v846 = vunpack.c.l.s4 1966171168
      %v847 = vunpack.c.0.s8 %v846
      %v848 = vlaneseq
      %v849 = vshrl.u32 %v848, 7
      %v850 = vsub.s32 %v847, %v849
      %v851 = vrot.slane %v844, %v850
      %v852 = vld [vmem:[%s1] sm:$0x3]
      %s853 = scalar_lea.vmem %s1, 2
      %v854 = vld [vmem:[%s853] sm:$0x3]
      %v856 = vunpack.c.l.s4 1966171168
      %v857 = vunpack.c.0.s8 %v856
      %v858 = vlaneseq
      %v859 = vshrl.u32 %v858, 7
      %v860 = vsub.s32 %v857, %v859
      %v861 = vrot.slane %v370, %v860
      %v863 = vunpack.c.l.s4 1966171168
      %v864 = vunpack.c.0.s8 %v863
      %v865 = vlaneseq
      %v866 = vshrl.u32 %v865, 7
      %v867 = vsub.s32 %v864, %v866
      %v868 = vrot.slane %v861, %v867
      %v870 = vunpack.c.l.s4 1966171168
      %v871 = vunpack.c.0.s8 %v870
      %v872 = vlaneseq
      %v873 = vshrl.u32 %v872, 7
      %v874 = vsub.s32 %v871, %v873
      %v875 = vrot.slane %v377, %v874
      %v877 = vunpack.c.l.s4 1966171168
      %v878 = vunpack.c.0.s8 %v877
      %v879 = vlaneseq
      %v880 = vshrl.u32 %v879, 7
      %v881 = vsub.s32 %v878, %v880
      %v882 = vrot.slane %v875, %v881
      %v884 = vunpack.c.l.s4 1966171168
      %v885 = vunpack.c.0.s8 %v884
      %v886 = vlaneseq
      %v887 = vshrl.u32 %v886, 7
      %v888 = vsub.s32 %v885, %v887
      %v889 = vrot.slane %v378, %v888
      %v891 = vunpack.c.l.s4 1966171168
      %v892 = vunpack.c.0.s8 %v891
      %v893 = vlaneseq
      %v894 = vshrl.u32 %v893, 7
      %v895 = vsub.s32 %v892, %v894
      %v896 = vrot.slane %v889, %v895
      %v898 = vunpack.c.l.s4 1966171168
      %v899 = vunpack.c.0.s8 %v898
      %v900 = vlaneseq
      %v901 = vshrl.u32 %v900, 7
      %v902 = vsub.s32 %v899, %v901
      %v903 = vrot.slane %v379, %v902
      %v905 = vunpack.c.l.s4 1966171168
      %v906 = vunpack.c.0.s8 %v905
      %v907 = vlaneseq
      %v908 = vshrl.u32 %v907, 7
      %v909 = vsub.s32 %v906, %v908
      %v910 = vrot.slane %v903, %v909
      %v912 = vunpack.c.l.s4 1966171168
      %v913 = vunpack.c.0.s8 %v912
      %v914 = vlaneseq
      %v915 = vshrl.u32 %v914, 7
      %v916 = vsub.s32 %v913, %v915
      %v917 = vrot.slane %v394, %v916
      %v919 = vunpack.c.l.s4 1966171168
      %v920 = vunpack.c.0.s8 %v919
      %v921 = vlaneseq
      %v922 = vshrl.u32 %v921, 7
      %v923 = vsub.s32 %v920, %v922
      %v924 = vrot.slane %v917, %v923
      %v926 = vunpack.c.l.s4 1966171168
      %v927 = vunpack.c.0.s8 %v926
      %v928 = vlaneseq
      %v929 = vshrl.u32 %v928, 7
      %v930 = vsub.s32 %v927, %v929
      %v931 = vrot.slane %v401, %v930
      %v933 = vunpack.c.l.s4 1966171168
      %v934 = vunpack.c.0.s8 %v933
      %v935 = vlaneseq
      %v936 = vshrl.u32 %v935, 7
      %v937 = vsub.s32 %v934, %v936
      %v938 = vrot.slane %v931, %v937
      %v940 = vunpack.c.l.s4 1966171168
      %v941 = vunpack.c.0.s8 %v940
      %v942 = vlaneseq
      %v943 = vshrl.u32 %v942, 7
      %v944 = vsub.s32 %v941, %v943
      %v945 = vrot.slane %v402, %v944
      %v947 = vunpack.c.l.s4 1966171168
      %v948 = vunpack.c.0.s8 %v947
      %v949 = vlaneseq
      %v950 = vshrl.u32 %v949, 7
      %v951 = vsub.s32 %v948, %v950
      %v952 = vrot.slane %v945, %v951
      %v954 = vunpack.c.l.s4 1966171168
      %v955 = vunpack.c.0.s8 %v954
      %v956 = vlaneseq
      %v957 = vshrl.u32 %v956, 7
      %v958 = vsub.s32 %v955, %v957
      %v959 = vrot.slane %v403, %v958
      %v961 = vunpack.c.l.s4 1966171168
      %v962 = vunpack.c.0.s8 %v961
      %v963 = vlaneseq
      %v964 = vshrl.u32 %v963, 7
      %v965 = vsub.s32 %v962, %v964
      %v966 = vrot.slane %v959, %v965
      %v968 = vunpack.c.l.s4 1966171168
      %v969 = vunpack.c.0.s8 %v968
      %v970 = vlaneseq
      %v971 = vshrl.u32 %v970, 7
      %v972 = vsub.s32 %v969, %v971
      %v973 = vrot.slane %v432, %v972
      %v975 = vunpack.c.l.s4 1966171168
      %v976 = vunpack.c.0.s8 %v975
      %v977 = vlaneseq
      %v978 = vshrl.u32 %v977, 7
      %v979 = vsub.s32 %v976, %v978
      %v980 = vrot.slane %v973, %v979
      %v982 = vunpack.c.l.s4 1966171168
      %v983 = vunpack.c.0.s8 %v982
      %v984 = vlaneseq
      %v985 = vshrl.u32 %v984, 7
      %v986 = vsub.s32 %v983, %v985
      %v987 = vrot.slane %v439, %v986
      %v989 = vunpack.c.l.s4 1966171168
      %v990 = vunpack.c.0.s8 %v989
      %v991 = vlaneseq
      %v992 = vshrl.u32 %v991, 7
      %v993 = vsub.s32 %v990, %v992
      %v994 = vrot.slane %v987, %v993
      %v996 = vunpack.c.l.s4 1966171168
      %v997 = vunpack.c.0.s8 %v996
      %v998 = vlaneseq
      %v999 = vshrl.u32 %v998, 7
      %v1000 = vsub.s32 %v997, %v999
      %v1001 = vrot.slane %v440, %v1000
      %v1003 = vunpack.c.l.s4 1966171168
      %v1004 = vunpack.c.0.s8 %v1003
      %v1005 = vlaneseq
      %v1006 = vshrl.u32 %v1005, 7
      %v1007 = vsub.s32 %v1004, %v1006
      %v1008 = vrot.slane %v1001, %v1007
      %v1010 = vunpack.c.l.s4 1966171168
      %v1011 = vunpack.c.0.s8 %v1010
      %v1012 = vlaneseq
      %v1013 = vshrl.u32 %v1012, 7
      %v1014 = vsub.s32 %v1011, %v1013
      %v1015 = vrot.slane %v441, %v1014
      %v1017 = vunpack.c.l.s4 1966171168
      %v1018 = vunpack.c.0.s8 %v1017
      %v1019 = vlaneseq
      %v1020 = vshrl.u32 %v1019, 7
      %v1021 = vsub.s32 %v1018, %v1020
      %v1022 = vrot.slane %v1015, %v1021
      %v1024 = vunpack.c.l.s4 1966171168
      %v1025 = vunpack.c.0.s8 %v1024
      %v1026 = vlaneseq
      %v1027 = vshrl.u32 %v1026, 7
      %v1028 = vsub.s32 %v1025, %v1027
      %v1029 = vrot.slane %v456, %v1028
      %v1031 = vunpack.c.l.s4 1966171168
      %v1032 = vunpack.c.0.s8 %v1031
      %v1033 = vlaneseq
      %v1034 = vshrl.u32 %v1033, 7
      %v1035 = vsub.s32 %v1032, %v1034
      %v1036 = vrot.slane %v1029, %v1035
      %v1038 = vunpack.c.l.s4 1966171168
      %v1039 = vunpack.c.0.s8 %v1038
      %v1040 = vlaneseq
      %v1041 = vshrl.u32 %v1040, 7
      %v1042 = vsub.s32 %v1039, %v1041
      %v1043 = vrot.slane %v463, %v1042
      %v1045 = vunpack.c.l.s4 1966171168
      %v1046 = vunpack.c.0.s8 %v1045
      %v1047 = vlaneseq
      %v1048 = vshrl.u32 %v1047, 7
      %v1049 = vsub.s32 %v1046, %v1048
      %v1050 = vrot.slane %v1043, %v1049
      %v1052 = vunpack.c.l.s4 1966171168
      %v1053 = vunpack.c.0.s8 %v1052
      %v1054 = vlaneseq
      %v1055 = vshrl.u32 %v1054, 7
      %v1056 = vsub.s32 %v1053, %v1055
      %v1057 = vrot.slane %v464, %v1056
      %v1059 = vunpack.c.l.s4 1966171168
      %v1060 = vunpack.c.0.s8 %v1059
      %v1061 = vlaneseq
      %v1062 = vshrl.u32 %v1061, 7
      %v1063 = vsub.s32 %v1060, %v1062
      %v1064 = vrot.slane %v1057, %v1063
      %v1066 = vunpack.c.l.s4 1966171168
      %v1067 = vunpack.c.0.s8 %v1066
      %v1068 = vlaneseq
      %v1069 = vshrl.u32 %v1068, 7
      %v1070 = vsub.s32 %v1067, %v1069
      %v1071 = vrot.slane %v465, %v1070
      %v1073 = vunpack.c.l.s4 1966171168
      %v1074 = vunpack.c.0.s8 %v1073
      %v1075 = vlaneseq
      %v1076 = vshrl.u32 %v1075, 7
      %v1077 = vsub.s32 %v1074, %v1076
      %v1078 = vrot.slane %v1071, %v1077
      %v1080 = vunpack.c.l.s4 1966171168
      %v1081 = vunpack.c.0.s8 %v1080
      %v1082 = vlaneseq
      %v1083 = vshrl.u32 %v1082, 7
      %v1084 = vsub.s32 %v1081, %v1083
      %v1085 = vrot.slane %v494, %v1084
      %v1087 = vunpack.c.l.s4 1966171168
      %v1088 = vunpack.c.0.s8 %v1087
      %v1089 = vlaneseq
      %v1090 = vshrl.u32 %v1089, 7
      %v1091 = vsub.s32 %v1088, %v1090
      %v1092 = vrot.slane %v1085, %v1091
      %v1094 = vunpack.c.l.s4 1966171168
      %v1095 = vunpack.c.0.s8 %v1094
      %v1096 = vlaneseq
      %v1097 = vshrl.u32 %v1096, 7
      %v1098 = vsub.s32 %v1095, %v1097
      %v1099 = vrot.slane %v501, %v1098
      %v1101 = vunpack.c.l.s4 1966171168
      %v1102 = vunpack.c.0.s8 %v1101
      %v1103 = vlaneseq
      %v1104 = vshrl.u32 %v1103, 7
      %v1105 = vsub.s32 %v1102, %v1104
      %v1106 = vrot.slane %v1099, %v1105
      %v1108 = vunpack.c.l.s4 1966171168
      %v1109 = vunpack.c.0.s8 %v1108
      %v1110 = vlaneseq
      %v1111 = vshrl.u32 %v1110, 7
      %v1112 = vsub.s32 %v1109, %v1111
      %v1113 = vrot.slane %v502, %v1112
      %v1115 = vunpack.c.l.s4 1966171168
      %v1116 = vunpack.c.0.s8 %v1115
      %v1117 = vlaneseq
      %v1118 = vshrl.u32 %v1117, 7
      %v1119 = vsub.s32 %v1116, %v1118
      %v1120 = vrot.slane %v1113, %v1119
      %v1122 = vunpack.c.l.s4 1966171168
      %v1123 = vunpack.c.0.s8 %v1122
      %v1124 = vlaneseq
      %v1125 = vshrl.u32 %v1124, 7
      %v1126 = vsub.s32 %v1123, %v1125
      %v1127 = vrot.slane %v503, %v1126
      %v1129 = vunpack.c.l.s4 1966171168
      %v1130 = vunpack.c.0.s8 %v1129
      %v1131 = vlaneseq
      %v1132 = vshrl.u32 %v1131, 7
      %v1133 = vsub.s32 %v1130, %v1132
      %v1134 = vrot.slane %v1127, %v1133
      %v1136 = vunpack.c.l.s4 1966171168
      %v1137 = vunpack.c.0.s8 %v1136
      %v1138 = vlaneseq
      %v1139 = vshrl.u32 %v1138, 7
      %v1140 = vsub.s32 %v1137, %v1139
      %v1141 = vrot.slane %v518, %v1140
      %v1143 = vunpack.c.l.s4 1966171168
      %v1144 = vunpack.c.0.s8 %v1143
      %v1145 = vlaneseq
      %v1146 = vshrl.u32 %v1145, 7
      %v1147 = vsub.s32 %v1144, %v1146
      %v1148 = vrot.slane %v1141, %v1147
      %v1150 = vunpack.c.l.s4 1966171168
      %v1151 = vunpack.c.0.s8 %v1150
      %v1152 = vlaneseq
      %v1153 = vshrl.u32 %v1152, 7
      %v1154 = vsub.s32 %v1151, %v1153
      %v1155 = vrot.slane %v525, %v1154
      %v1157 = vunpack.c.l.s4 1966171168
      %v1158 = vunpack.c.0.s8 %v1157
      %v1159 = vlaneseq
      %v1160 = vshrl.u32 %v1159, 7
      %v1161 = vsub.s32 %v1158, %v1160
      %v1162 = vrot.slane %v1155, %v1161
      %v1164 = vunpack.c.l.s4 1966171168
      %v1165 = vunpack.c.0.s8 %v1164
      %v1166 = vlaneseq
      %v1167 = vshrl.u32 %v1166, 7
      %v1168 = vsub.s32 %v1165, %v1167
      %v1169 = vrot.slane %v526, %v1168
      %v1171 = vunpack.c.l.s4 1966171168
      %v1172 = vunpack.c.0.s8 %v1171
      %v1173 = vlaneseq
      %v1174 = vshrl.u32 %v1173, 7
      %v1175 = vsub.s32 %v1172, %v1174
      %v1176 = vrot.slane %v1169, %v1175
      %v1178 = vunpack.c.l.s4 1966171168
      %v1179 = vunpack.c.0.s8 %v1178
      %v1180 = vlaneseq
      %v1181 = vshrl.u32 %v1180, 7
      %v1182 = vsub.s32 %v1179, %v1181
      %v1183 = vrot.slane %v527, %v1182
      %v1185 = vunpack.c.l.s4 1966171168
      %v1186 = vunpack.c.0.s8 %v1185
      %v1187 = vlaneseq
      %v1188 = vshrl.u32 %v1187, 7
      %v1189 = vsub.s32 %v1186, %v1188
      %v1190 = vrot.slane %v1183, %v1189
      %v1192 = vunpack.c.l.s4 1966171168
      %v1193 = vunpack.c.0.s8 %v1192
      %v1194 = vlaneseq
      %v1195 = vshrl.u32 %v1194, 7
      %v1196 = vsub.s32 %v1193, %v1195
      %v1197 = vrot.slane %v556, %v1196
      %v1199 = vunpack.c.l.s4 1966171168
      %v1200 = vunpack.c.0.s8 %v1199
      %v1201 = vlaneseq
      %v1202 = vshrl.u32 %v1201, 7
      %v1203 = vsub.s32 %v1200, %v1202
      %v1204 = vrot.slane %v1197, %v1203
      %v1206 = vunpack.c.l.s4 1966171168
      %v1207 = vunpack.c.0.s8 %v1206
      %v1208 = vlaneseq
      %v1209 = vshrl.u32 %v1208, 7
      %v1210 = vsub.s32 %v1207, %v1209
      %v1211 = vrot.slane %v563, %v1210
      %v1213 = vunpack.c.l.s4 1966171168
      %v1214 = vunpack.c.0.s8 %v1213
      %v1215 = vlaneseq
      %v1216 = vshrl.u32 %v1215, 7
      %v1217 = vsub.s32 %v1214, %v1216
      %v1218 = vrot.slane %v1211, %v1217
      %v1220 = vunpack.c.l.s4 1966171168
      %v1221 = vunpack.c.0.s8 %v1220
      %v1222 = vlaneseq
      %v1223 = vshrl.u32 %v1222, 7
      %v1224 = vsub.s32 %v1221, %v1223
      %v1225 = vrot.slane %v564, %v1224
      %v1227 = vunpack.c.l.s4 1966171168
      %v1228 = vunpack.c.0.s8 %v1227
      %v1229 = vlaneseq
      %v1230 = vshrl.u32 %v1229, 7
      %v1231 = vsub.s32 %v1228, %v1230
      %v1232 = vrot.slane %v1225, %v1231
      %v1234 = vunpack.c.l.s4 1966171168
      %v1235 = vunpack.c.0.s8 %v1234
      %v1236 = vlaneseq
      %v1237 = vshrl.u32 %v1236, 7
      %v1238 = vsub.s32 %v1235, %v1237
      %v1239 = vrot.slane %v565, %v1238
      %v1241 = vunpack.c.l.s4 1966171168
      %v1242 = vunpack.c.0.s8 %v1241
      %v1243 = vlaneseq
      %v1244 = vshrl.u32 %v1243, 7
      %v1245 = vsub.s32 %v1242, %v1244
      %v1246 = vrot.slane %v1239, %v1245
      %v1248 = vunpack.c.l.s4 1966171168
      %v1249 = vunpack.c.0.s8 %v1248
      %v1250 = vlaneseq
      %v1251 = vshrl.u32 %v1250, 7
      %v1252 = vsub.s32 %v1249, %v1251
      %v1253 = vrot.slane %v580, %v1252
      %v1255 = vunpack.c.l.s4 1966171168
      %v1256 = vunpack.c.0.s8 %v1255
      %v1257 = vlaneseq
      %v1258 = vshrl.u32 %v1257, 7
      %v1259 = vsub.s32 %v1256, %v1258
      %v1260 = vrot.slane %v1253, %v1259
      %v1262 = vunpack.c.l.s4 1966171168
      %v1263 = vunpack.c.0.s8 %v1262
      %v1264 = vlaneseq
      %v1265 = vshrl.u32 %v1264, 7
      %v1266 = vsub.s32 %v1263, %v1265
      %v1267 = vrot.slane %v587, %v1266
      %v1269 = vunpack.c.l.s4 1966171168
      %v1270 = vunpack.c.0.s8 %v1269
      %v1271 = vlaneseq
      %v1272 = vshrl.u32 %v1271, 7
      %v1273 = vsub.s32 %v1270, %v1272
      %v1274 = vrot.slane %v1267, %v1273
      %v1276 = vunpack.c.l.s4 1966171168
      %v1277 = vunpack.c.0.s8 %v1276
      %v1278 = vlaneseq
      %v1279 = vshrl.u32 %v1278, 7
      %v1280 = vsub.s32 %v1277, %v1279
      %v1281 = vrot.slane %v588, %v1280
      %v1283 = vunpack.c.l.s4 1966171168
      %v1284 = vunpack.c.0.s8 %v1283
      %v1285 = vlaneseq
      %v1286 = vshrl.u32 %v1285, 7
      %v1287 = vsub.s32 %v1284, %v1286
      %v1288 = vrot.slane %v1281, %v1287
      %v1290 = vunpack.c.l.s4 1966171168
      %v1291 = vunpack.c.0.s8 %v1290
      %v1292 = vlaneseq
      %v1293 = vshrl.u32 %v1292, 7
      %v1294 = vsub.s32 %v1291, %v1293
      %v1295 = vrot.slane %v589, %v1294
      %v1297 = vunpack.c.l.s4 1966171168
      %v1298 = vunpack.c.0.s8 %v1297
      %v1299 = vlaneseq
      %v1300 = vshrl.u32 %v1299, 7
      %v1301 = vsub.s32 %v1298, %v1300
      %v1302 = vrot.slane %v1295, %v1301
      %v1304 = vunpack.c.l.s4 1966171168
      %v1305 = vunpack.c.0.s8 %v1304
      %v1306 = vlaneseq
      %v1307 = vshrl.u32 %v1306, 7
      %v1308 = vsub.s32 %v1305, %v1307
      %v1309 = vrot.slane %v618, %v1308
      %v1311 = vunpack.c.l.s4 1966171168
      %v1312 = vunpack.c.0.s8 %v1311
      %v1313 = vlaneseq
      %v1314 = vshrl.u32 %v1313, 7
      %v1315 = vsub.s32 %v1312, %v1314
      %v1316 = vrot.slane %v1309, %v1315
      %v1318 = vunpack.c.l.s4 1966171168
      %v1319 = vunpack.c.0.s8 %v1318
      %v1320 = vlaneseq
      %v1321 = vshrl.u32 %v1320, 7
      %v1322 = vsub.s32 %v1319, %v1321
      %v1323 = vrot.slane %v625, %v1322
      %v1325 = vunpack.c.l.s4 1966171168
      %v1326 = vunpack.c.0.s8 %v1325
      %v1327 = vlaneseq
      %v1328 = vshrl.u32 %v1327, 7
      %v1329 = vsub.s32 %v1326, %v1328
      %v1330 = vrot.slane %v1323, %v1329
      %v1332 = vunpack.c.l.s4 1966171168
      %v1333 = vunpack.c.0.s8 %v1332
      %v1334 = vlaneseq
      %v1335 = vshrl.u32 %v1334, 7
      %v1336 = vsub.s32 %v1333, %v1335
      %v1337 = vrot.slane %v626, %v1336
      %v1339 = vunpack.c.l.s4 1966171168
      %v1340 = vunpack.c.0.s8 %v1339
      %v1341 = vlaneseq
      %v1342 = vshrl.u32 %v1341, 7
      %v1343 = vsub.s32 %v1340, %v1342
      %v1344 = vrot.slane %v1337, %v1343
      %v1346 = vunpack.c.l.s4 1966171168
      %v1347 = vunpack.c.0.s8 %v1346
      %v1348 = vlaneseq
      %v1349 = vshrl.u32 %v1348, 7
      %v1350 = vsub.s32 %v1347, %v1349
      %v1351 = vrot.slane %v627, %v1350
      %v1353 = vunpack.c.l.s4 1966171168
      %v1354 = vunpack.c.0.s8 %v1353
      %v1355 = vlaneseq
      %v1356 = vshrl.u32 %v1355, 7
      %v1357 = vsub.s32 %v1354, %v1356
      %v1358 = vrot.slane %v1351, %v1357
      %v1360 = vunpack.c.l.s4 1966171168
      %v1361 = vunpack.c.0.s8 %v1360
      %v1362 = vlaneseq
      %v1363 = vshrl.u32 %v1362, 7
      %v1364 = vsub.s32 %v1361, %v1363
      %v1365 = vrot.slane %v642, %v1364
      %v1367 = vunpack.c.l.s4 1966171168
      %v1368 = vunpack.c.0.s8 %v1367
      %v1369 = vlaneseq
      %v1370 = vshrl.u32 %v1369, 7
      %v1371 = vsub.s32 %v1368, %v1370
      %v1372 = vrot.slane %v1365, %v1371
      %v1374 = vunpack.c.l.s4 1966171168
      %v1375 = vunpack.c.0.s8 %v1374
      %v1376 = vlaneseq
      %v1377 = vshrl.u32 %v1376, 7
      %v1378 = vsub.s32 %v1375, %v1377
      %v1379 = vrot.slane %v649, %v1378
      %v1381 = vunpack.c.l.s4 1966171168
      %v1382 = vunpack.c.0.s8 %v1381
      %v1383 = vlaneseq
      %v1384 = vshrl.u32 %v1383, 7
      %v1385 = vsub.s32 %v1382, %v1384
      %v1386 = vrot.slane %v1379, %v1385
      %v1388 = vunpack.c.l.s4 1966171168
      %v1389 = vunpack.c.0.s8 %v1388
      %v1390 = vlaneseq
      %v1391 = vshrl.u32 %v1390, 7
      %v1392 = vsub.s32 %v1389, %v1391
      %v1393 = vrot.slane %v650, %v1392
      %v1395 = vunpack.c.l.s4 1966171168
      %v1396 = vunpack.c.0.s8 %v1395
      %v1397 = vlaneseq
      %v1398 = vshrl.u32 %v1397, 7
      %v1399 = vsub.s32 %v1396, %v1398
      %v1400 = vrot.slane %v1393, %v1399
      %v1402 = vunpack.c.l.s4 1966171168
      %v1403 = vunpack.c.0.s8 %v1402
      %v1404 = vlaneseq
      %v1405 = vshrl.u32 %v1404, 7
      %v1406 = vsub.s32 %v1403, %v1405
      %v1407 = vrot.slane %v651, %v1406
      %v1409 = vunpack.c.l.s4 1966171168
      %v1410 = vunpack.c.0.s8 %v1409
      %v1411 = vlaneseq
      %v1412 = vshrl.u32 %v1411, 7
      %v1413 = vsub.s32 %v1410, %v1412
      %v1414 = vrot.slane %v1407, %v1413
      %v1416 = vunpack.c.l.s4 1966171168
      %v1417 = vunpack.c.0.s8 %v1416
      %v1418 = vlaneseq
      %v1419 = vshrl.u32 %v1418, 7
      %v1420 = vsub.s32 %v1417, %v1419
      %v1421 = vrot.slane %v680, %v1420
      %v1423 = vunpack.c.l.s4 1966171168
      %v1424 = vunpack.c.0.s8 %v1423
      %v1425 = vlaneseq
      %v1426 = vshrl.u32 %v1425, 7
      %v1427 = vsub.s32 %v1424, %v1426
      %v1428 = vrot.slane %v1421, %v1427
      %v1430 = vunpack.c.l.s4 1966171168
      %v1431 = vunpack.c.0.s8 %v1430
      %v1432 = vlaneseq
      %v1433 = vshrl.u32 %v1432, 7
      %v1434 = vsub.s32 %v1431, %v1433
      %v1435 = vrot.slane %v687, %v1434
      %v1437 = vunpack.c.l.s4 1966171168
      %v1438 = vunpack.c.0.s8 %v1437
      %v1439 = vlaneseq
      %v1440 = vshrl.u32 %v1439, 7
      %v1441 = vsub.s32 %v1438, %v1440
      %v1442 = vrot.slane %v1435, %v1441
      %v1444 = vunpack.c.l.s4 1966171168
      %v1445 = vunpack.c.0.s8 %v1444
      %v1446 = vlaneseq
      %v1447 = vshrl.u32 %v1446, 7
      %v1448 = vsub.s32 %v1445, %v1447
      %v1449 = vrot.slane %v688, %v1448
      %v1451 = vunpack.c.l.s4 1966171168
      %v1452 = vunpack.c.0.s8 %v1451
      %v1453 = vlaneseq
      %v1454 = vshrl.u32 %v1453, 7
      %v1455 = vsub.s32 %v1452, %v1454
      %v1456 = vrot.slane %v1449, %v1455
      %v1458 = vunpack.c.l.s4 1966171168
      %v1459 = vunpack.c.0.s8 %v1458
      %v1460 = vlaneseq
      %v1461 = vshrl.u32 %v1460, 7
      %v1462 = vsub.s32 %v1459, %v1461
      %v1463 = vrot.slane %v689, %v1462
      %v1465 = vunpack.c.l.s4 1966171168
      %v1466 = vunpack.c.0.s8 %v1465
      %v1467 = vlaneseq
      %v1468 = vshrl.u32 %v1467, 7
      %v1469 = vsub.s32 %v1466, %v1468
      %v1470 = vrot.slane %v1463, %v1469
      %v1472 = vunpack.c.l.s4 1966171168
      %v1473 = vunpack.c.0.s8 %v1472
      %v1474 = vlaneseq
      %v1475 = vshrl.u32 %v1474, 7
      %v1476 = vsub.s32 %v1473, %v1475
      %v1477 = vrot.slane %v704, %v1476
      %v1479 = vunpack.c.l.s4 1966171168
      %v1480 = vunpack.c.0.s8 %v1479
      %v1481 = vlaneseq
      %v1482 = vshrl.u32 %v1481, 7
      %v1483 = vsub.s32 %v1480, %v1482
      %v1484 = vrot.slane %v1477, %v1483
      %v1486 = vunpack.c.l.s4 1966171168
      %v1487 = vunpack.c.0.s8 %v1486
      %v1488 = vlaneseq
      %v1489 = vshrl.u32 %v1488, 7
      %v1490 = vsub.s32 %v1487, %v1489
      %v1491 = vrot.slane %v711, %v1490
      %v1493 = vunpack.c.l.s4 1966171168
      %v1494 = vunpack.c.0.s8 %v1493
      %v1495 = vlaneseq
      %v1496 = vshrl.u32 %v1495, 7
      %v1497 = vsub.s32 %v1494, %v1496
      %v1498 = vrot.slane %v1491, %v1497
      %v1500 = vunpack.c.l.s4 1966171168
      %v1501 = vunpack.c.0.s8 %v1500
      %v1502 = vlaneseq
      %v1503 = vshrl.u32 %v1502, 7
      %v1504 = vsub.s32 %v1501, %v1503
      %v1505 = vrot.slane %v712, %v1504
      %v1507 = vunpack.c.l.s4 1966171168
      %v1508 = vunpack.c.0.s8 %v1507
      %v1509 = vlaneseq
      %v1510 = vshrl.u32 %v1509, 7
      %v1511 = vsub.s32 %v1508, %v1510
      %v1512 = vrot.slane %v1505, %v1511
      %v1514 = vunpack.c.l.s4 1966171168
      %v1515 = vunpack.c.0.s8 %v1514
      %v1516 = vlaneseq
      %v1517 = vshrl.u32 %v1516, 7
      %v1518 = vsub.s32 %v1515, %v1517
      %v1519 = vrot.slane %v713, %v1518
      %v1521 = vunpack.c.l.s4 1966171168
      %v1522 = vunpack.c.0.s8 %v1521
      %v1523 = vlaneseq
      %v1524 = vshrl.u32 %v1523, 7
      %v1525 = vsub.s32 %v1522, %v1524
      %v1526 = vrot.slane %v1519, %v1525
      %v1528 = vunpack.c.l.s4 1966171168
      %v1529 = vunpack.c.0.s8 %v1528
      %v1530 = vlaneseq
      %v1531 = vshrl.u32 %v1530, 7
      %v1532 = vsub.s32 %v1529, %v1531
      %v1533 = vrot.slane %v742, %v1532
      %v1535 = vunpack.c.l.s4 1966171168
      %v1536 = vunpack.c.0.s8 %v1535
      %v1537 = vlaneseq
      %v1538 = vshrl.u32 %v1537, 7
      %v1539 = vsub.s32 %v1536, %v1538
      %v1540 = vrot.slane %v1533, %v1539
      %v1542 = vunpack.c.l.s4 1966171168
      %v1543 = vunpack.c.0.s8 %v1542
      %v1544 = vlaneseq
      %v1545 = vshrl.u32 %v1544, 7
      %v1546 = vsub.s32 %v1543, %v1545
      %v1547 = vrot.slane %v749, %v1546
      %v1549 = vunpack.c.l.s4 1966171168
      %v1550 = vunpack.c.0.s8 %v1549
      %v1551 = vlaneseq
      %v1552 = vshrl.u32 %v1551, 7
      %v1553 = vsub.s32 %v1550, %v1552
      %v1554 = vrot.slane %v1547, %v1553
      %v1556 = vunpack.c.l.s4 1966171168
      %v1557 = vunpack.c.0.s8 %v1556
      %v1558 = vlaneseq
      %v1559 = vshrl.u32 %v1558, 7
      %v1560 = vsub.s32 %v1557, %v1559
      %v1561 = vrot.slane %v750, %v1560
      %v1563 = vunpack.c.l.s4 1966171168
      %v1564 = vunpack.c.0.s8 %v1563
      %v1565 = vlaneseq
      %v1566 = vshrl.u32 %v1565, 7
      %v1567 = vsub.s32 %v1564, %v1566
      %v1568 = vrot.slane %v1561, %v1567
      %v1570 = vunpack.c.l.s4 1966171168
      %v1571 = vunpack.c.0.s8 %v1570
      %v1572 = vlaneseq
      %v1573 = vshrl.u32 %v1572, 7
      %v1574 = vsub.s32 %v1571, %v1573
      %v1575 = vrot.slane %v751, %v1574
      %v1577 = vunpack.c.l.s4 1966171168
      %v1578 = vunpack.c.0.s8 %v1577
      %v1579 = vlaneseq
      %v1580 = vshrl.u32 %v1579, 7
      %v1581 = vsub.s32 %v1578, %v1580
      %v1582 = vrot.slane %v1575, %v1581
      %v1584 = vunpack.c.l.s4 1966171168
      %v1585 = vunpack.c.0.s8 %v1584
      %v1586 = vlaneseq
      %v1587 = vshrl.u32 %v1586, 7
      %v1588 = vsub.s32 %v1585, %v1587
      %v1589 = vrot.slane %v766, %v1588
      %v1591 = vunpack.c.l.s4 1966171168
      %v1592 = vunpack.c.0.s8 %v1591
      %v1593 = vlaneseq
      %v1594 = vshrl.u32 %v1593, 7
      %v1595 = vsub.s32 %v1592, %v1594
      %v1596 = vrot.slane %v1589, %v1595
      %v1598 = vunpack.c.l.s4 1966171168
      %v1599 = vunpack.c.0.s8 %v1598
      %v1600 = vlaneseq
      %v1601 = vshrl.u32 %v1600, 7
      %v1602 = vsub.s32 %v1599, %v1601
      %v1603 = vrot.slane %v773, %v1602
      %v1605 = vunpack.c.l.s4 1966171168
      %v1606 = vunpack.c.0.s8 %v1605
      %v1607 = vlaneseq
      %v1608 = vshrl.u32 %v1607, 7
      %v1609 = vsub.s32 %v1606, %v1608
      %v1610 = vrot.slane %v1603, %v1609
      %v1612 = vunpack.c.l.s4 1966171168
      %v1613 = vunpack.c.0.s8 %v1612
      %v1614 = vlaneseq
      %v1615 = vshrl.u32 %v1614, 7
      %v1616 = vsub.s32 %v1613, %v1615
      %v1617 = vrot.slane %v774, %v1616
      %v1619 = vunpack.c.l.s4 1966171168
      %v1620 = vunpack.c.0.s8 %v1619
      %v1621 = vlaneseq
      %v1622 = vshrl.u32 %v1621, 7
      %v1623 = vsub.s32 %v1620, %v1622
      %v1624 = vrot.slane %v1617, %v1623
      %v1626 = vunpack.c.l.s4 1966171168
      %v1627 = vunpack.c.0.s8 %v1626
      %v1628 = vlaneseq
      %v1629 = vshrl.u32 %v1628, 7
      %v1630 = vsub.s32 %v1627, %v1629
      %v1631 = vrot.slane %v775, %v1630
      %v1633 = vunpack.c.l.s4 1966171168
      %v1634 = vunpack.c.0.s8 %v1633
      %v1635 = vlaneseq
      %v1636 = vshrl.u32 %v1635, 7
      %v1637 = vsub.s32 %v1634, %v1636
      %v1638 = vrot.slane %v1631, %v1637
      %v1640 = vunpack.c.l.s4 1966171168
      %v1641 = vunpack.c.0.s8 %v1640
      %v1642 = vlaneseq
      %v1643 = vshrl.u32 %v1642, 7
      %v1644 = vsub.s32 %v1641, %v1643
      %v1645 = vrot.slane %v804, %v1644
      %v1647 = vunpack.c.l.s4 1966171168
      %v1648 = vunpack.c.0.s8 %v1647
      %v1649 = vlaneseq
      %v1650 = vshrl.u32 %v1649, 7
      %v1651 = vsub.s32 %v1648, %v1650
      %v1652 = vrot.slane %v1645, %v1651
      %v1654 = vunpack.c.l.s4 1966171168
      %v1655 = vunpack.c.0.s8 %v1654
      %v1656 = vlaneseq
      %v1657 = vshrl.u32 %v1656, 7
      %v1658 = vsub.s32 %v1655, %v1657
      %v1659 = vrot.slane %v811, %v1658
      %v1661 = vunpack.c.l.s4 1966171168
      %v1662 = vunpack.c.0.s8 %v1661
      %v1663 = vlaneseq
      %v1664 = vshrl.u32 %v1663, 7
      %v1665 = vsub.s32 %v1662, %v1664
      %v1666 = vrot.slane %v1659, %v1665
      %v1668 = vunpack.c.l.s4 1966171168
      %v1669 = vunpack.c.0.s8 %v1668
      %v1670 = vlaneseq
      %v1671 = vshrl.u32 %v1670, 7
      %v1672 = vsub.s32 %v1669, %v1671
      %v1673 = vrot.slane %v812, %v1672
      %v1675 = vunpack.c.l.s4 1966171168
      %v1676 = vunpack.c.0.s8 %v1675
      %v1677 = vlaneseq
      %v1678 = vshrl.u32 %v1677, 7
      %v1679 = vsub.s32 %v1676, %v1678
      %v1680 = vrot.slane %v1673, %v1679
      %v1682 = vunpack.c.l.s4 1966171168
      %v1683 = vunpack.c.0.s8 %v1682
      %v1684 = vlaneseq
      %v1685 = vshrl.u32 %v1684, 7
      %v1686 = vsub.s32 %v1683, %v1685
      %v1687 = vrot.slane %v813, %v1686
      %v1689 = vunpack.c.l.s4 1966171168
      %v1690 = vunpack.c.0.s8 %v1689
      %v1691 = vlaneseq
      %v1692 = vshrl.u32 %v1691, 7
      %v1693 = vsub.s32 %v1690, %v1692
      %v1694 = vrot.slane %v1687, %v1693
      %v1696 = vunpack.c.l.s4 1966171168
      %v1697 = vunpack.c.0.s8 %v1696
      %v1698 = vlaneseq
      %v1699 = vshrl.u32 %v1698, 7
      %v1700 = vsub.s32 %v1697, %v1699
      %v1701 = vrot.slane %v828, %v1700
      %v1703 = vunpack.c.l.s4 1966171168
      %v1704 = vunpack.c.0.s8 %v1703
      %v1705 = vlaneseq
      %v1706 = vshrl.u32 %v1705, 7
      %v1707 = vsub.s32 %v1704, %v1706
      %v1708 = vrot.slane %v1701, %v1707
      %v1710 = vunpack.c.l.s4 1966171168
      %v1711 = vunpack.c.0.s8 %v1710
      %v1712 = vlaneseq
      %v1713 = vshrl.u32 %v1712, 7
      %v1714 = vsub.s32 %v1711, %v1713
      %v1715 = vrot.slane %v835, %v1714
      %v1717 = vunpack.c.l.s4 1966171168
      %v1718 = vunpack.c.0.s8 %v1717
      %v1719 = vlaneseq
      %v1720 = vshrl.u32 %v1719, 7
      %v1721 = vsub.s32 %v1718, %v1720
      %v1722 = vrot.slane %v1715, %v1721
      %v1724 = vunpack.c.l.s4 1966171168
      %v1725 = vunpack.c.0.s8 %v1724
      %v1726 = vlaneseq
      %v1727 = vshrl.u32 %v1726, 7
      %v1728 = vsub.s32 %v1725, %v1727
      %v1729 = vrot.slane %v836, %v1728
      %v1731 = vunpack.c.l.s4 1966171168
      %v1732 = vunpack.c.0.s8 %v1731
      %v1733 = vlaneseq
      %v1734 = vshrl.u32 %v1733, 7
      %v1735 = vsub.s32 %v1732, %v1734
      %v1736 = vrot.slane %v1729, %v1735
      %v1738 = vunpack.c.l.s4 1966171168
      %v1739 = vunpack.c.0.s8 %v1738
      %v1740 = vlaneseq
      %v1741 = vshrl.u32 %v1740, 7
      %v1742 = vsub.s32 %v1739, %v1741
      %v1743 = vrot.slane %v837, %v1742
      %v1745 = vunpack.c.l.s4 1966171168
      %v1746 = vunpack.c.0.s8 %v1745
      %v1747 = vlaneseq
      %v1748 = vshrl.u32 %v1747, 7
      %v1749 = vsub.s32 %v1746, %v1748
      %v1750 = vrot.slane %v1743, %v1749
      %v1751 = vunpack.c.l.b16 %v868
      %v1752 = vunpack.c.l.b16 %v882
      %v1753 = vunpack.c.l.b16 %v896
      %v1754 = vunpack.c.l.b16 %v910
      %v1755 = vunpack.c.l.b16 %v924
      %v1756 = vunpack.c.l.b16 %v938
      %v1757 = vunpack.c.l.b16 %v952
      %v1758 = vunpack.c.l.b16 %v966
      %v1759 = vunpack.c.l.b16 %v980
      %v1760 = vunpack.c.l.b16 %v994
      %v1761 = vunpack.c.l.b16 %v1008
      %v1762 = vunpack.c.l.b16 %v1022
      %v1763 = vunpack.c.l.b16 %v1036
      %v1764 = vunpack.c.l.b16 %v1050
      %v1765 = vunpack.c.l.b16 %v1064
      %v1766 = vunpack.c.l.b16 %v1078
      %v1767 = vunpack.c.l.b16 %v1092
      %v1768 = vunpack.c.l.b16 %v1106
      %v1769 = vunpack.c.l.b16 %v1120
      %v1770 = vunpack.c.l.b16 %v1134
      %v1771 = vunpack.c.l.b16 %v1148
      %v1772 = vunpack.c.l.b16 %v1162
      %v1773 = vunpack.c.l.b16 %v1176
      %v1774 = vunpack.c.l.b16 %v1190
      %v1775 = vunpack.c.l.b16 %v1204
      %v1776 = vunpack.c.l.b16 %v1218
      %v1777 = vunpack.c.l.b16 %v1232
      %v1778 = vunpack.c.l.b16 %v1246
      %v1779 = vunpack.c.l.b16 %v1260
      %v1780 = vunpack.c.l.b16 %v1274
      %v1781 = vunpack.c.l.b16 %v1288
      %v1782 = vunpack.c.l.b16 %v1302
      %v1783 = vunpack.c.l.b16 %v1316
      %v1784 = vunpack.c.l.b16 %v1330
      %v1785 = vunpack.c.l.b16 %v1344
      %v1786 = vunpack.c.l.b16 %v1358
      %v1787 = vunpack.c.l.b16 %v1372
      %v1788 = vunpack.c.l.b16 %v1386
      %v1789 = vunpack.c.l.b16 %v1400
      %v1790 = vunpack.c.l.b16 %v1414
      %v1791 = vunpack.c.l.b16 %v1428
      %v1792 = vunpack.c.l.b16 %v1442
      %v1793 = vunpack.c.l.b16 %v1456
      %v1794 = vunpack.c.l.b16 %v1470
      %v1795 = vunpack.c.l.b16 %v1484
      %v1796 = vunpack.c.l.b16 %v1498
      %v1797 = vunpack.c.l.b16 %v1512
      %v1798 = vunpack.c.l.b16 %v1526
      %v1799 = vunpack.c.l.b16 %v1540
      %v1800 = vunpack.c.l.b16 %v1554
      %v1801 = vunpack.c.l.b16 %v1568
      %v1802 = vunpack.c.l.b16 %v1582
      %v1803 = vunpack.c.l.b16 %v1596
      %v1804 = vunpack.c.l.b16 %v1610
      %v1805 = vunpack.c.l.b16 %v1624
      %v1806 = vunpack.c.l.b16 %v1638
      %v1807 = vunpack.c.l.b16 %v1652
      %v1808 = vunpack.c.l.b16 %v1666
      %v1809 = vunpack.c.l.b16 %v1680
      %v1810 = vunpack.c.l.b16 %v1694
      %v1811 = vunpack.c.l.b16 %v1708
      %v1812 = vunpack.c.l.b16 %v1722
      %v1813 = vunpack.c.l.b16 %v1736
      %v1814 = vunpack.c.l.b16 %v1750
      %v1815 = vrot.slane %v1751, 1
      %vm1816 = vcmask 1041409
      %v1817 = vsel %vm1816, %v1752, %v1815
      %v1818 = vrot.slane %v1753, 7
      %vm1819 = vcmask 1042434
      %v1820 = vsel %vm1819, %v1818, %v1817
      %v1821 = vrot.slane %v1754, 6
      %vm1822 = vcmask 1043459
      %v1823 = vsel %vm1822, %v1821, %v1820
      %v1824 = vrot.slane %v1755, 5
      %vm1825 = vcmask 1044484
      %v1826 = vsel %vm1825, %v1824, %v1823
      %v1827 = vrot.slane %v1756, 4
      %vm1828 = vcmask 1045509
      %v1829 = vsel %vm1828, %v1827, %v1826
      %v1830 = vrot.slane %v1757, 3
      %vm1831 = vcmask 1046534
      %v1832 = vsel %vm1831, %v1830, %v1829
      %v1833 = vrot.slane %v1758, 2
      %vm1834 = vcmask 1047559
      %v1835 = vsel %vm1834, %v1833, %v1832
      %v1836 = vrot.slane %v1759, 1
      %v1837 = vsel %vm1816, %v1760, %v1836
      %v1838 = vrot.slane %v1761, 7
      %v1839 = vsel %vm1819, %v1838, %v1837
      %v1840 = vrot.slane %v1762, 6
      %v1841 = vsel %vm1822, %v1840, %v1839
      %v1842 = vrot.slane %v1763, 5
      %v1843 = vsel %vm1825, %v1842, %v1841
      %v1844 = vrot.slane %v1764, 4
      %v1845 = vsel %vm1828, %v1844, %v1843
      %v1846 = vrot.slane %v1765, 3
      %v1847 = vsel %vm1831, %v1846, %v1845
      %v1848 = vrot.slane %v1766, 2
      %v1849 = vsel %vm1834, %v1848, %v1847
      %v1850 = vrot.slane %v1767, 1
      %v1851 = vsel %vm1816, %v1768, %v1850
      %v1852 = vrot.slane %v1769, 7
      %v1853 = vsel %vm1819, %v1852, %v1851
      %v1854 = vrot.slane %v1770, 6
      %v1855 = vsel %vm1822, %v1854, %v1853
      %v1856 = vrot.slane %v1771, 5
      %v1857 = vsel %vm1825, %v1856, %v1855
      %v1858 = vrot.slane %v1772, 4
      %v1859 = vsel %vm1828, %v1858, %v1857
      %v1860 = vrot.slane %v1773, 3
      %v1861 = vsel %vm1831, %v1860, %v1859
      %v1862 = vrot.slane %v1774, 2
      %v1863 = vsel %vm1834, %v1862, %v1861
      %v1864 = vrot.slane %v1775, 1
      %v1865 = vsel %vm1816, %v1776, %v1864
      %v1866 = vrot.slane %v1777, 7
      %v1867 = vsel %vm1819, %v1866, %v1865
      %v1868 = vrot.slane %v1778, 6
      %v1869 = vsel %vm1822, %v1868, %v1867
      %v1870 = vrot.slane %v1779, 5
      %v1871 = vsel %vm1825, %v1870, %v1869
      %v1872 = vrot.slane %v1780, 4
      %v1873 = vsel %vm1828, %v1872, %v1871
      %v1874 = vrot.slane %v1781, 3
      %v1875 = vsel %vm1831, %v1874, %v1873
      %v1876 = vrot.slane %v1782, 2
      %v1877 = vsel %vm1834, %v1876, %v1875
      %v1878 = vrot.slane %v1783, 1
      %v1879 = vsel %vm1816, %v1784, %v1878
      %v1880 = vrot.slane %v1785, 7
      %v1881 = vsel %vm1819, %v1880, %v1879
      %v1882 = vrot.slane %v1786, 6
      %v1883 = vsel %vm1822, %v1882, %v1881
      %v1884 = vrot.slane %v1787, 5
      %v1885 = vsel %vm1825, %v1884, %v1883
      %v1886 = vrot.slane %v1788, 4
      %v1887 = vsel %vm1828, %v1886, %v1885
      %v1888 = vrot.slane %v1789, 3
      %v1889 = vsel %vm1831, %v1888, %v1887
      %v1890 = vrot.slane %v1790, 2
      %v1891 = vsel %vm1834, %v1890, %v1889
      %v1892 = vrot.slane %v1791, 1
      %v1893 = vsel %vm1816, %v1792, %v1892
      %v1894 = vrot.slane %v1793, 7
      %v1895 = vsel %vm1819, %v1894, %v1893
      %v1896 = vrot.slane %v1794, 6
      %v1897 = vsel %vm1822, %v1896, %v1895
      %v1898 = vrot.slane %v1795, 5
      %v1899 = vsel %vm1825, %v1898, %v1897
      %v1900 = vrot.slane %v1796, 4
      %v1901 = vsel %vm1828, %v1900, %v1899
      %v1902 = vrot.slane %v1797, 3
      %v1903 = vsel %vm1831, %v1902, %v1901
      %v1904 = vrot.slane %v1798, 2
      %v1905 = vsel %vm1834, %v1904, %v1903
      %v1906 = vrot.slane %v1799, 1
      %v1907 = vsel %vm1816, %v1800, %v1906
      %v1908 = vrot.slane %v1801, 7
      %v1909 = vsel %vm1819, %v1908, %v1907
      %v1910 = vrot.slane %v1802, 6
      %v1911 = vsel %vm1822, %v1910, %v1909
      %v1912 = vrot.slane %v1803, 5
      %v1913 = vsel %vm1825, %v1912, %v1911
      %v1914 = vrot.slane %v1804, 4
      %v1915 = vsel %vm1828, %v1914, %v1913
      %v1916 = vrot.slane %v1805, 3
      %v1917 = vsel %vm1831, %v1916, %v1915
      %v1918 = vrot.slane %v1806, 2
      %v1919 = vsel %vm1834, %v1918, %v1917
      %v1920 = vrot.slane %v1807, 1
      %v1921 = vsel %vm1816, %v1808, %v1920
      %v1922 = vrot.slane %v1809, 7
      %v1923 = vsel %vm1819, %v1922, %v1921
      %v1924 = vrot.slane %v1810, 6
      %v1925 = vsel %vm1822, %v1924, %v1923
      %v1926 = vrot.slane %v1811, 5
      %v1927 = vsel %vm1825, %v1926, %v1925
      %v1928 = vrot.slane %v1812, 4
      %v1929 = vsel %vm1828, %v1928, %v1927
      %v1930 = vrot.slane %v1813, 3
      %v1931 = vsel %vm1831, %v1930, %v1929
      %v1932 = vrot.slane %v1814, 2
      %v1933 = vsel %vm1834, %v1932, %v1931
      %v1934 = vpack.c.b16 %v1849, %v1835
      %v1935 = vpack.c.b16 %v1877, %v1863
      %v1936 = vpack.c.b16 %v1905, %v1891
      %v1937 = vpack.c.b16 %v1933, %v1919
      %vm1938 = vcmask 23552
      %v1940 = vsel %vm1938, %v1934, 0
      %v1943 = vsel %vm1938, %v1935, 0
      %v1946 = vsel %vm1938, %v1936, 0
      %v1949 = vsel %vm1938, %v1937, 0
      %vm1951 = vcmask 1040384
      %vm1952 = vcmask 1041408
      %v1953 = vsel %vm1951, 4294967295, 65535
      %v1954 = vsel %vm1952, %v1953, 0
      %v1956 = vand.u32 %v854, %v1954
      %1958 = vmatprep.subr.bf16.mxu0 0
      %1959 = vmatpush1.bf16.msra.mxu0 %v1956
      %1960 = vmatprep.subr.bf16.mxu0 0
      %1961 = vmatpush1.bf16.msra.mxu0 0
      %1962 = vmatprep.subr.bf16.mxu0 0
      %1963 = vmatpush1.bf16.msra.mxu0 0
      %1964 = vmatprep.subr.bf16.mxu0 0
      %1965 = vmatpush1.bf16.msra.mxu0 0
      %1966 = vmatprep.subr.bf16.mxu0 0
      %1967 = vmatpush1.bf16.msra.mxu0 0
      %1968 = vmatprep.subr.bf16.mxu0 0
      %1969 = vmatpush1.bf16.msra.mxu0 0
      %1970 = vmatprep.subr.bf16.mxu0 0
      %1971 = vmatpush1.bf16.msra.mxu0 0
      %1972 = vmatprep.subr.bf16.mxu0 0
      %1973 = vmatpush1.bf16.msra.mxu0 0
      %1974 = vmatprep.subr.bf16.mxu0 0
      %1975 = vmatpush1.bf16.msra.mxu0 0
      %1976 = vmatprep.subr.bf16.mxu0 0
      %1977 = vmatpush1.bf16.msra.mxu0 0
      %1978 = vmatprep.subr.bf16.mxu0 0
      %1979 = vmatpush1.bf16.msra.mxu0 0
      %1980 = vmatprep.subr.bf16.mxu0 0
      %1981 = vmatpush1.bf16.msra.mxu0 0
      %1982 = vmatprep.subr.bf16.mxu0 0
      %1983 = vmatpush1.bf16.msra.mxu0 0
      %1984 = vmatprep.subr.bf16.mxu0 0
      %1985 = vmatpush1.bf16.msra.mxu0 0
      %1986 = vmatprep.subr.bf16.mxu0 0
      %1987 = vmatpush1.bf16.msra.mxu0 0
      %1988 = vmatprep.subr.bf16.mxu0 0
      %1989 = vmatpush1.bf16.msra.mxu0 0
      %1990 = vmatprep.mubr.bf16.mxu0 0
      %1991 = vmatmul.mubr.bf16.gmra.mrb[0].mxu0 %v1940
      %v1992 = vpop.f32.mrb[0].mxu0
      %v1993 = vadd.f32 0.0, %v1992
      %v1994 = vpop.f32.mrb[0].mxu0
      %v1995 = vpop.f32.mrb[0].mxu0
      %v1996 = vadd.f32 0.0, %v1995
      %v1997 = vpop.f32.mrb[0].mxu0
      %1998 = vmatprep.mubr.bf16.mxu0 0
      %1999 = vmatmul.mubr.bf16.gmra.mrb[0].mxu0 %v1943
      %v2000 = vpop.f32.mrb[0].mxu0
      %v2001 = vadd.f32 0.0, %v2000
      %v2002 = vpop.f32.mrb[0].mxu0
      %v2003 = vpop.f32.mrb[0].mxu0
      %v2004 = vadd.f32 0.0, %v2003
      %v2005 = vpop.f32.mrb[0].mxu0
      %2006 = vmatprep.mubr.bf16.mxu0 0
      %2007 = vmatmul.mubr.bf16.gmra.mrb[0].mxu0 %v1946
      %v2008 = vpop.f32.mrb[0].mxu0
      %v2009 = vadd.f32 0.0, %v2008
      %v2010 = vpop.f32.mrb[0].mxu0
      %v2011 = vpop.f32.mrb[0].mxu0
      %v2012 = vadd.f32 0.0, %v2011
      %v2013 = vpop.f32.mrb[0].mxu0
      %2014 = vmatprep.mubr.bf16.mxu0 0
      %2015 = vmatmul.mubr.bf16.gmra.mrb[0].mxu0 %v1949
      %v2016 = vpop.f32.mrb[0].mxu0
      %v2017 = vadd.f32 0.0, %v2016
      %v2018 = vpop.f32.mrb[0].mxu0
      %v2019 = vpop.f32.mrb[0].mxu0
      %v2020 = vadd.f32 0.0, %v2019
      %v2021 = vpop.f32.mrb[0].mxu0
      %2022 = vdwg.mxu0
      %v2023 = vrot.slane %v1752, 7
      %v2024 = vsel %vm1816, %v2023, %v1751
      %v2025 = vrot.slane %v1753, 6
      %v2026 = vsel %vm1819, %v2025, %v2024
      %v2027 = vrot.slane %v1754, 5
      %v2028 = vsel %vm1822, %v2027, %v2026
      %v2029 = vrot.slane %v1755, 4
      %v2030 = vsel %vm1825, %v2029, %v2028
      %v2031 = vrot.slane %v1756, 3
      %v2032 = vsel %vm1828, %v2031, %v2030
      %v2033 = vrot.slane %v1757, 2
      %v2034 = vsel %vm1831, %v2033, %v2032
      %v2035 = vrot.slane %v1758, 1
      %v2036 = vsel %vm1834, %v2035, %v2034
      %v2037 = vrot.slane %v1760, 7
      %v2038 = vsel %vm1816, %v2037, %v1759
      %v2039 = vrot.slane %v1761, 6
      %v2040 = vsel %vm1819, %v2039, %v2038
      %v2041 = vrot.slane %v1762, 5
      %v2042 = vsel %vm1822, %v2041, %v2040
      %v2043 = vrot.slane %v1763, 4
      %v2044 = vsel %vm1825, %v2043, %v2042
      %v2045 = vrot.slane %v1764, 3
      %v2046 = vsel %vm1828, %v2045, %v2044
      %v2047 = vrot.slane %v1765, 2
      %v2048 = vsel %vm1831, %v2047, %v2046
      %v2049 = vrot.slane %v1766, 1
      %v2050 = vsel %vm1834, %v2049, %v2048
      %v2051 = vrot.slane %v1768, 7
      %v2052 = vsel %vm1816, %v2051, %v1767
      %v2053 = vrot.slane %v1769, 6
      %v2054 = vsel %vm1819, %v2053, %v2052
      %v2055 = vrot.slane %v1770, 5
      %v2056 = vsel %vm1822, %v2055, %v2054
      %v2057 = vrot.slane %v1771, 4
      %v2058 = vsel %vm1825, %v2057, %v2056
      %v2059 = vrot.slane %v1772, 3
      %v2060 = vsel %vm1828, %v2059, %v2058
      %v2061 = vrot.slane %v1773, 2
      %v2062 = vsel %vm1831, %v2061, %v2060
      %v2063 = vrot.slane %v1774, 1
      %v2064 = vsel %vm1834, %v2063, %v2062
      %v2065 = vrot.slane %v1776, 7
      %v2066 = vsel %vm1816, %v2065, %v1775
      %v2067 = vrot.slane %v1777, 6
      %v2068 = vsel %vm1819, %v2067, %v2066
      %v2069 = vrot.slane %v1778, 5
      %v2070 = vsel %vm1822, %v2069, %v2068
      %v2071 = vrot.slane %v1779, 4
      %v2072 = vsel %vm1825, %v2071, %v2070
      %v2073 = vrot.slane %v1780, 3
      %v2074 = vsel %vm1828, %v2073, %v2072
      %v2075 = vrot.slane %v1781, 2
      %v2076 = vsel %vm1831, %v2075, %v2074
      %v2077 = vrot.slane %v1782, 1
      %v2078 = vsel %vm1834, %v2077, %v2076
      %v2079 = vrot.slane %v1784, 7
      %v2080 = vsel %vm1816, %v2079, %v1783
      %v2081 = vrot.slane %v1785, 6
      %v2082 = vsel %vm1819, %v2081, %v2080
      %v2083 = vrot.slane %v1786, 5
      %v2084 = vsel %vm1822, %v2083, %v2082
      %v2085 = vrot.slane %v1787, 4
      %v2086 = vsel %vm1825, %v2085, %v2084
      %v2087 = vrot.slane %v1788, 3
      %v2088 = vsel %vm1828, %v2087, %v2086
      %v2089 = vrot.slane %v1789, 2
      %v2090 = vsel %vm1831, %v2089, %v2088
      %v2091 = vrot.slane %v1790, 1
      %v2092 = vsel %vm1834, %v2091, %v2090
      %v2093 = vrot.slane %v1792, 7
      %v2094 = vsel %vm1816, %v2093, %v1791
      %v2095 = vrot.slane %v1793, 6
      %v2096 = vsel %vm1819, %v2095, %v2094
      %v2097 = vrot.slane %v1794, 5
      %v2098 = vsel %vm1822, %v2097, %v2096
      %v2099 = vrot.slane %v1795, 4
      %v2100 = vsel %vm1825, %v2099, %v2098
      %v2101 = vrot.slane %v1796, 3
      %v2102 = vsel %vm1828, %v2101, %v2100
      %v2103 = vrot.slane %v1797, 2
      %v2104 = vsel %vm1831, %v2103, %v2102
      %v2105 = vrot.slane %v1798, 1
      %v2106 = vsel %vm1834, %v2105, %v2104
      %v2107 = vrot.slane %v1800, 7
      %v2108 = vsel %vm1816, %v2107, %v1799
      %v2109 = vrot.slane %v1801, 6
      %v2110 = vsel %vm1819, %v2109, %v2108
      %v2111 = vrot.slane %v1802, 5
      %v2112 = vsel %vm1822, %v2111, %v2110
      %v2113 = vrot.slane %v1803, 4
      %v2114 = vsel %vm1825, %v2113, %v2112
      %v2115 = vrot.slane %v1804, 3
      %v2116 = vsel %vm1828, %v2115, %v2114
      %v2117 = vrot.slane %v1805, 2
      %v2118 = vsel %vm1831, %v2117, %v2116
      %v2119 = vrot.slane %v1806, 1
      %v2120 = vsel %vm1834, %v2119, %v2118
      %v2121 = vrot.slane %v1808, 7
      %v2122 = vsel %vm1816, %v2121, %v1807
      %v2123 = vrot.slane %v1809, 6
      %v2124 = vsel %vm1819, %v2123, %v2122
      %v2125 = vrot.slane %v1810, 5
      %v2126 = vsel %vm1822, %v2125, %v2124
      %v2127 = vrot.slane %v1811, 4
      %v2128 = vsel %vm1825, %v2127, %v2126
      %v2129 = vrot.slane %v1812, 3
      %v2130 = vsel %vm1828, %v2129, %v2128
      %v2131 = vrot.slane %v1813, 2
      %v2132 = vsel %vm1831, %v2131, %v2130
      %v2133 = vrot.slane %v1814, 1
      %v2134 = vsel %vm1834, %v2133, %v2132
      %v2135 = vpack.c.b16 %v2050, %v2036
      %v2136 = vpack.c.b16 %v2078, %v2064
      %v2137 = vpack.c.b16 %v2106, %v2092
      %v2138 = vpack.c.b16 %v2134, %v2120
      %v2140 = vsel %vm1938, %v2135, 0
      %v2143 = vsel %vm1938, %v2136, 0
      %v2146 = vsel %vm1938, %v2137, 0
      %v2149 = vsel %vm1938, %v2138, 0
      %v2152 = vand.u32 %v852, %v1954
      %2154 = vmatprep.subr.bf16.mxu0 0
      %2155 = vmatpush1.bf16.msra.mxu0 %v2152
      %2156 = vmatprep.subr.bf16.mxu0 0
      %2157 = vmatpush1.bf16.msra.mxu0 0
      %2158 = vmatprep.subr.bf16.mxu0 0
      %2159 = vmatpush1.bf16.msra.mxu0 0
      %2160 = vmatprep.subr.bf16.mxu0 0
      %2161 = vmatpush1.bf16.msra.mxu0 0
      %2162 = vmatprep.subr.bf16.mxu0 0
      %2163 = vmatpush1.bf16.msra.mxu0 0
      %2164 = vmatprep.subr.bf16.mxu0 0
      %2165 = vmatpush1.bf16.msra.mxu0 0
      %2166 = vmatprep.subr.bf16.mxu0 0
      %2167 = vmatpush1.bf16.msra.mxu0 0
      %2168 = vmatprep.subr.bf16.mxu0 0
      %2169 = vmatpush1.bf16.msra.mxu0 0
      %2170 = vmatprep.subr.bf16.mxu0 0
      %2171 = vmatpush1.bf16.msra.mxu0 0
      %2172 = vmatprep.subr.bf16.mxu0 0
      %2173 = vmatpush1.bf16.msra.mxu0 0
      %2174 = vmatprep.subr.bf16.mxu0 0
      %2175 = vmatpush1.bf16.msra.mxu0 0
      %2176 = vmatprep.subr.bf16.mxu0 0
      %2177 = vmatpush1.bf16.msra.mxu0 0
      %2178 = vmatprep.subr.bf16.mxu0 0
      %2179 = vmatpush1.bf16.msra.mxu0 0
      %2180 = vmatprep.subr.bf16.mxu0 0
      %2181 = vmatpush1.bf16.msra.mxu0 0
      %2182 = vmatprep.subr.bf16.mxu0 0
      %2183 = vmatpush1.bf16.msra.mxu0 0
      %2184 = vmatprep.subr.bf16.mxu0 0
      %2185 = vmatpush1.bf16.msra.mxu0 0
      %2186 = vmatprep.mubr.bf16.mxu0 0
      %2187 = vmatmul.mubr.bf16.gmra.mrb[0].mxu0 %v2140
      %v2188 = vpop.f32.mrb[0].mxu0
      %v2189 = vadd.f32 %v1993, %v2188
      %v2190 = vpop.f32.mrb[0].mxu0
      %v2191 = vpop.f32.mrb[0].mxu0
      %v2192 = vadd.f32 %v1996, %v2191
      %v2193 = vpop.f32.mrb[0].mxu0
      %2194 = vmatprep.mubr.bf16.mxu0 0
      %2195 = vmatmul.mubr.bf16.gmra.mrb[0].mxu0 %v2143
      %v2196 = vpop.f32.mrb[0].mxu0
      %v2197 = vadd.f32 %v2001, %v2196
      %v2198 = vpop.f32.mrb[0].mxu0
      %v2199 = vpop.f32.mrb[0].mxu0
      %v2200 = vadd.f32 %v2004, %v2199
      %v2201 = vpop.f32.mrb[0].mxu0
      %2202 = vmatprep.mubr.bf16.mxu0 0
      %2203 = vmatmul.mubr.bf16.gmra.mrb[0].mxu0 %v2146
      %v2204 = vpop.f32.mrb[0].mxu0
      %v2205 = vadd.f32 %v2009, %v2204
      %v2206 = vpop.f32.mrb[0].mxu0
      %v2207 = vpop.f32.mrb[0].mxu0
      %v2208 = vadd.f32 %v2012, %v2207
      %v2209 = vpop.f32.mrb[0].mxu0
      %2210 = vmatprep.mubr.bf16.mxu0 0
      %2211 = vmatmul.mubr.bf16.gmra.mrb[0].mxu0 %v2149
      %v2212 = vpop.f32.mrb[0].mxu0
      %v2213 = vadd.f32 %v2017, %v2212
      %v2214 = vpop.f32.mrb[0].mxu0
      %v2215 = vpop.f32.mrb[0].mxu0
      %v2216 = vadd.f32 %v2020, %v2215
      %v2217 = vpop.f32.mrb[0].mxu0
      %2218 = vdwg.mxu0
      %s2219 = scalar_lea.vmem %s1, 4
      %v2220 = vld [vmem:[%s2219] sm:$0x3]
      %v2222 = vunpack.c.l.s4 1966171168
      %v2223 = vunpack.c.0.s8 %v2222
      %v2224 = vlaneseq
      %v2225 = vshrl.u32 %v2224, 7
      %v2226 = vsub.s32 %v2223, %v2225
      %v2227 = vrot.slane %v417, %v2226
      %v2229 = vunpack.c.l.s4 1966171168
      %v2230 = vunpack.c.0.s8 %v2229
      %v2231 = vlaneseq
      %v2232 = vshrl.u32 %v2231, 7
      %v2233 = vsub.s32 %v2230, %v2232
      %v2234 = vrot.slane %v2227, %v2233
      %v2236 = vunpack.c.l.s4 1966171168
      %v2237 = vunpack.c.0.s8 %v2236
      %v2238 = vlaneseq
      %v2239 = vshrl.u32 %v2238, 7
      %v2240 = vsub.s32 %v2237, %v2239
      %v2241 = vrot.slane %v479, %v2240
      %v2243 = vunpack.c.l.s4 1966171168
      %v2244 = vunpack.c.0.s8 %v2243
      %v2245 = vlaneseq
      %v2246 = vshrl.u32 %v2245, 7
      %v2247 = vsub.s32 %v2244, %v2246
      %v2248 = vrot.slane %v2241, %v2247
      %v2250 = vunpack.c.l.s4 1966171168
      %v2251 = vunpack.c.0.s8 %v2250
      %v2252 = vlaneseq
      %v2253 = vshrl.u32 %v2252, 7
      %v2254 = vsub.s32 %v2251, %v2253
      %v2255 = vrot.slane %v541, %v2254
      %v2257 = vunpack.c.l.s4 1966171168
      %v2258 = vunpack.c.0.s8 %v2257
      %v2259 = vlaneseq
      %v2260 = vshrl.u32 %v2259, 7
      %v2261 = vsub.s32 %v2258, %v2260
      %v2262 = vrot.slane %v2255, %v2261
      %v2264 = vunpack.c.l.s4 1966171168
      %v2265 = vunpack.c.0.s8 %v2264
      %v2266 = vlaneseq
      %v2267 = vshrl.u32 %v2266, 7
      %v2268 = vsub.s32 %v2265, %v2267
      %v2269 = vrot.slane %v603, %v2268
      %v2271 = vunpack.c.l.s4 1966171168
      %v2272 = vunpack.c.0.s8 %v2271
      %v2273 = vlaneseq
      %v2274 = vshrl.u32 %v2273, 7
      %v2275 = vsub.s32 %v2272, %v2274
      %v2276 = vrot.slane %v2269, %v2275
      %v2278 = vunpack.c.l.s4 1966171168
      %v2279 = vunpack.c.0.s8 %v2278
      %v2280 = vlaneseq
      %v2281 = vshrl.u32 %v2280, 7
      %v2282 = vsub.s32 %v2279, %v2281
      %v2283 = vrot.slane %v665, %v2282
      %v2285 = vunpack.c.l.s4 1966171168
      %v2286 = vunpack.c.0.s8 %v2285
      %v2287 = vlaneseq
      %v2288 = vshrl.u32 %v2287, 7
      %v2289 = vsub.s32 %v2286, %v2288
      %v2290 = vrot.slane %v2283, %v2289
      %v2292 = vunpack.c.l.s4 1966171168
      %v2293 = vunpack.c.0.s8 %v2292
      %v2294 = vlaneseq
      %v2295 = vshrl.u32 %v2294, 7
      %v2296 = vsub.s32 %v2293, %v2295
      %v2297 = vrot.slane %v727, %v2296
      %v2299 = vunpack.c.l.s4 1966171168
      %v2300 = vunpack.c.0.s8 %v2299
      %v2301 = vlaneseq
      %v2302 = vshrl.u32 %v2301, 7
      %v2303 = vsub.s32 %v2300, %v2302
      %v2304 = vrot.slane %v2297, %v2303
      %v2306 = vunpack.c.l.s4 1966171168
      %v2307 = vunpack.c.0.s8 %v2306
      %v2308 = vlaneseq
      %v2309 = vshrl.u32 %v2308, 7
      %v2310 = vsub.s32 %v2307, %v2309
      %v2311 = vrot.slane %v789, %v2310
      %v2313 = vunpack.c.l.s4 1966171168
      %v2314 = vunpack.c.0.s8 %v2313
      %v2315 = vlaneseq
      %v2316 = vshrl.u32 %v2315, 7
      %v2317 = vsub.s32 %v2314, %v2316
      %v2318 = vrot.slane %v2311, %v2317
      %v2320 = vunpack.c.l.s4 1966171168
      %v2321 = vunpack.c.0.s8 %v2320
      %v2322 = vlaneseq
      %v2323 = vshrl.u32 %v2322, 7
      %v2324 = vsub.s32 %v2321, %v2323
      %v2325 = vrot.slane %v851, %v2324
      %v2327 = vunpack.c.l.s4 1966171168
      %v2328 = vunpack.c.0.s8 %v2327
      %v2329 = vlaneseq
      %v2330 = vshrl.u32 %v2329, 7
      %v2331 = vsub.s32 %v2328, %v2330
      %v2332 = vrot.slane %v2325, %v2331
      %v2333 = vunpack.c.l.b16 %v2234
      %v2334 = vunpack.c.l.b16 %v2248
      %v2335 = vunpack.c.l.b16 %v2262
      %v2336 = vunpack.c.l.b16 %v2276
      %v2337 = vunpack.c.l.b16 %v2290
      %v2338 = vunpack.c.l.b16 %v2304
      %v2339 = vunpack.c.l.b16 %v2318
      %v2340 = vunpack.c.l.b16 %v2332
      %v2341 = vsel %vm1816, %v1818, %v1752
      %v2342 = vsel %vm1819, %v1821, %v2341
      %v2343 = vsel %vm1822, %v1824, %v2342
      %v2344 = vsel %vm1825, %v1827, %v2343
      %v2345 = vsel %vm1828, %v1830, %v2344
      %v2346 = vsel %vm1831, %v1833, %v2345
      %v2347 = vrot.slane %v2333, 1
      %v2348 = vsel %vm1834, %v2347, %v2346
      %v2349 = vsel %vm1816, %v1838, %v1760
      %v2350 = vsel %vm1819, %v1840, %v2349
      %v2351 = vsel %vm1822, %v1842, %v2350
      %v2352 = vsel %vm1825, %v1844, %v2351
      %v2353 = vsel %vm1828, %v1846, %v2352
      %v2354 = vsel %vm1831, %v1848, %v2353
      %v2355 = vrot.slane %v2334, 1
      %v2356 = vsel %vm1834, %v2355, %v2354
      %v2357 = vsel %vm1816, %v1852, %v1768
      %v2358 = vsel %vm1819, %v1854, %v2357
      %v2359 = vsel %vm1822, %v1856, %v2358
      %v2360 = vsel %vm1825, %v1858, %v2359
      %v2361 = vsel %vm1828, %v1860, %v2360
      %v2362 = vsel %vm1831, %v1862, %v2361
      %v2363 = vrot.slane %v2335, 1
      %v2364 = vsel %vm1834, %v2363, %v2362
      %v2365 = vsel %vm1816, %v1866, %v1776
      %v2366 = vsel %vm1819, %v1868, %v2365
      %v2367 = vsel %vm1822, %v1870, %v2366
      %v2368 = vsel %vm1825, %v1872, %v2367
      %v2369 = vsel %vm1828, %v1874, %v2368
      %v2370 = vsel %vm1831, %v1876, %v2369
      %v2371 = vrot.slane %v2336, 1
      %v2372 = vsel %vm1834, %v2371, %v2370
      %v2373 = vsel %vm1816, %v1880, %v1784
      %v2374 = vsel %vm1819, %v1882, %v2373
      %v2375 = vsel %vm1822, %v1884, %v2374
      %v2376 = vsel %vm1825, %v1886, %v2375
      %v2377 = vsel %vm1828, %v1888, %v2376
      %v2378 = vsel %vm1831, %v1890, %v2377
      %v2379 = vrot.slane %v2337, 1
      %v2380 = vsel %vm1834, %v2379, %v2378
      %v2381 = vsel %vm1816, %v1894, %v1792
      %v2382 = vsel %vm1819, %v1896, %v2381
      %v2383 = vsel %vm1822, %v1898, %v2382
      %v2384 = vsel %vm1825, %v1900, %v2383
      %v2385 = vsel %vm1828, %v1902, %v2384
      %v2386 = vsel %vm1831, %v1904, %v2385
      %v2387 = vrot.slane %v2338, 1
      %v2388 = vsel %vm1834, %v2387, %v2386
      %v2389 = vsel %vm1816, %v1908, %v1800
      %v2390 = vsel %vm1819, %v1910, %v2389
      %v2391 = vsel %vm1822, %v1912, %v2390
      %v2392 = vsel %vm1825, %v1914, %v2391
      %v2393 = vsel %vm1828, %v1916, %v2392
      %v2394 = vsel %vm1831, %v1918, %v2393
      %v2395 = vrot.slane %v2339, 1
      %v2396 = vsel %vm1834, %v2395, %v2394
      %v2397 = vsel %vm1816, %v1922, %v1808
      %v2398 = vsel %vm1819, %v1924, %v2397
      %v2399 = vsel %vm1822, %v1926, %v2398
      %v2400 = vsel %vm1825, %v1928, %v2399
      %v2401 = vsel %vm1828, %v1930, %v2400
      %v2402 = vsel %vm1831, %v1932, %v2401
      %v2403 = vrot.slane %v2340, 1
      %v2404 = vsel %vm1834, %v2403, %v2402
      %v2405 = vpack.c.b16 %v2356, %v2348
      %v2406 = vpack.c.b16 %v2372, %v2364
      %v2407 = vpack.c.b16 %v2388, %v2380
      %v2408 = vpack.c.b16 %v2404, %v2396
      %v2410 = vsel %vm1938, %v2405, 0
      %v2413 = vsel %vm1938, %v2406, 0
      %v2416 = vsel %vm1938, %v2407, 0
      %v2419 = vsel %vm1938, %v2408, 0
      %v2422 = vand.u32 %v2220, %v1954
      %2424 = vmatprep.subr.bf16.mxu0 0
      %2425 = vmatpush1.bf16.msra.mxu0 %v2422
      %2426 = vmatprep.subr.bf16.mxu0 0
      %2427 = vmatpush1.bf16.msra.mxu0 0
      %2428 = vmatprep.subr.bf16.mxu0 0
      %2429 = vmatpush1.bf16.msra.mxu0 0
      %2430 = vmatprep.subr.bf16.mxu0 0
      %2431 = vmatpush1.bf16.msra.mxu0 0
      %2432 = vmatprep.subr.bf16.mxu0 0
      %2433 = vmatpush1.bf16.msra.mxu0 0
      %2434 = vmatprep.subr.bf16.mxu0 0
      %2435 = vmatpush1.bf16.msra.mxu0 0
      %2436 = vmatprep.subr.bf16.mxu0 0
      %2437 = vmatpush1.bf16.msra.mxu0 0
      %2438 = vmatprep.subr.bf16.mxu0 0
      %2439 = vmatpush1.bf16.msra.mxu0 0
      %2440 = vmatprep.subr.bf16.mxu0 0
      %2441 = vmatpush1.bf16.msra.mxu0 0
      %2442 = vmatprep.subr.bf16.mxu0 0
      %2443 = vmatpush1.bf16.msra.mxu0 0
      %2444 = vmatprep.subr.bf16.mxu0 0
      %2445 = vmatpush1.bf16.msra.mxu0 0
      %2446 = vmatprep.subr.bf16.mxu0 0
      %2447 = vmatpush1.bf16.msra.mxu0 0
      %2448 = vmatprep.subr.bf16.mxu0 0
      %2449 = vmatpush1.bf16.msra.mxu0 0
      %2450 = vmatprep.subr.bf16.mxu0 0
      %2451 = vmatpush1.bf16.msra.mxu0 0
      %2452 = vmatprep.subr.bf16.mxu0 0
      %2453 = vmatpush1.bf16.msra.mxu0 0
      %2454 = vmatprep.subr.bf16.mxu0 0
      %2455 = vmatpush1.bf16.msra.mxu0 0
      %2456 = vmatprep.mubr.bf16.mxu0 0
      %2457 = vmatmul.mubr.bf16.gmra.mrb[0].mxu0 %v2410
      %v2458 = vpop.f32.mrb[0].mxu0
      %v2459 = vadd.f32 0.0, %v2458
      %v2460 = vpop.f32.mrb[0].mxu0
      %v2461 = vpop.f32.mrb[0].mxu0
      %v2462 = vadd.f32 0.0, %v2461
      %v2463 = vpop.f32.mrb[0].mxu0
      %2464 = vmatprep.mubr.bf16.mxu0 0
      %2465 = vmatmul.mubr.bf16.gmra.mrb[0].mxu0 %v2413
      %v2466 = vpop.f32.mrb[0].mxu0
      %v2467 = vadd.f32 0.0, %v2466
      %v2468 = vpop.f32.mrb[0].mxu0
      %v2469 = vpop.f32.mrb[0].mxu0
      %v2470 = vadd.f32 0.0, %v2469
      %v2471 = vpop.f32.mrb[0].mxu0
      %2472 = vmatprep.mubr.bf16.mxu0 0
      %2473 = vmatmul.mubr.bf16.gmra.mrb[0].mxu0 %v2416
      %v2474 = vpop.f32.mrb[0].mxu0
      %v2475 = vadd.f32 0.0, %v2474
      %v2476 = vpop.f32.mrb[0].mxu0
      %v2477 = vpop.f32.mrb[0].mxu0
      %v2478 = vadd.f32 0.0, %v2477
      %v2479 = vpop.f32.mrb[0].mxu0
      %2480 = vmatprep.mubr.bf16.mxu0 0
      %2481 = vmatmul.mubr.bf16.gmra.mrb[0].mxu0 %v2419
      %v2482 = vpop.f32.mrb[0].mxu0
      %v2483 = vadd.f32 0.0, %v2482
      %v2484 = vpop.f32.mrb[0].mxu0
      %v2485 = vpop.f32.mrb[0].mxu0
      %v2486 = vadd.f32 0.0, %v2485
      %v2487 = vpop.f32.mrb[0].mxu0
      %2488 = vdwg.mxu0
      %v2489 = vadd.f32 %v2189, %v2459
      %v2490 = vadd.f32 %v2192, %v2462
      %v2491 = vadd.f32 %v2197, %v2467
      %v2492 = vadd.f32 %v2200, %v2470
      %v2493 = vadd.f32 %v2205, %v2475
      %v2494 = vadd.f32 %v2208, %v2478
      %v2495 = vadd.f32 %v2213, %v2483
      %v2496 = vadd.f32 %v2216, %v2486
      %s2497 = scalar_lea.vmem %s273, 12
      %v2498 = vld [vmem:[%s2497] sm:$0xf]
      %v2499 = vld [vmem:[%s2497 + $0x4] sm:$0xf]
      %v2500 = vld [vmem:[%s2497 + $0x8] sm:$0x1]
      %v2501 = vld [vmem:[%s2497 + $0x18] sm:$0xf]
      %v2502 = vld [vmem:[%s2497 + $0x1c] sm:$0xf]
      %v2503 = vld [vmem:[%s2497 + $0x20] sm:$0x1]
      %v2504 = vld [vmem:[%s2497 + $0x30] sm:$0xf]
      %v2505 = vld [vmem:[%s2497 + $0x34] sm:$0xf]
      %v2506 = vld [vmem:[%s2497 + $0x38] sm:$0x1]
      %v2507 = vld [vmem:[%s2497 + $0x48] sm:$0xf]
      %v2508 = vld [vmem:[%s2497 + $0x4c] sm:$0xf]
      %v2509 = vld [vmem:[%s2497 + $0x50] sm:$0x1]
      %v2510 = vld [vmem:[%s2497 + $0x60] sm:$0xf]
      %v2511 = vld [vmem:[%s2497 + $0x64] sm:$0xf]
      %v2512 = vld [vmem:[%s2497 + $0x68] sm:$0x1]
      %v2513 = vld [vmem:[%s2497 + $0x78] sm:$0xf]
      %v2514 = vld [vmem:[%s2497 + $0x7c] sm:$0xf]
      %v2515 = vld [vmem:[%s2497 + $0x80] sm:$0x1]
      %v2516 = vld [vmem:[%s2497 + $0x90] sm:$0xf]
      %v2517 = vld [vmem:[%s2497 + $0x94] sm:$0xf]
      %v2518 = vld [vmem:[%s2497 + $0x98] sm:$0x1]
      %v2519 = vld [vmem:[%s2497 + $0xa8] sm:$0xf]
      %v2520 = vld [vmem:[%s2497 + $0xac] sm:$0xf]
      %v2521 = vld [vmem:[%s2497 + $0xb0] sm:$0x1]
      %v2547 = vunpack.c.l.s4 1966171168
      %v2548 = vunpack.c.0.s8 %v2547
      %v2549 = vlaneseq
      %v2550 = vshrl.u32 %v2549, 7
      %v2551 = vsub.s32 %v2548, %v2550
      %v2552 = vrot.slane %v2498, %v2551
      %v2553 = vcombine.high %v2552, %v2552
      %v2555 = vunpack.c.l.s4 1966171168
      %v2556 = vunpack.c.0.s8 %v2555
      %v2557 = vlaneseq
      %v2558 = vshrl.u32 %v2557, 7
      %v2559 = vsub.s32 %v2556, %v2558
      %v2560 = vrot.slane %v2552, %v2559
      %v2562 = vunpack.c.l.s4 1966171168
      %v2563 = vunpack.c.0.s8 %v2562
      %v2564 = vlaneseq
      %v2565 = vshrl.u32 %v2564, 7
      %v2566 = vsub.s32 %v2563, %v2565
      %v2567 = vrot.slane %v2553, %v2566
      %v2568 = vcombine.high %v2560, %v2560
      %v2569 = vcombine.high %v2567, %v2567
      %v2571 = vunpack.c.l.s4 1966171168
      %v2572 = vunpack.c.0.s8 %v2571
      %v2573 = vlaneseq
      %v2574 = vshrl.u32 %v2573, 7
      %v2575 = vsub.s32 %v2572, %v2574
      %v2576 = vrot.slane %v2499, %v2575
      %v2577 = vcombine.high %v2576, %v2576
      %v2579 = vunpack.c.l.s4 1966171168
      %v2580 = vunpack.c.0.s8 %v2579
      %v2581 = vlaneseq
      %v2582 = vshrl.u32 %v2581, 7
      %v2583 = vsub.s32 %v2580, %v2582
      %v2584 = vrot.slane %v2576, %v2583
      %v2586 = vunpack.c.l.s4 1966171168
      %v2587 = vunpack.c.0.s8 %v2586
      %v2588 = vlaneseq
      %v2589 = vshrl.u32 %v2588, 7
      %v2590 = vsub.s32 %v2587, %v2589
      %v2591 = vrot.slane %v2577, %v2590
      %v2592 = vcombine.high %v2584, %v2584
      %v2593 = vcombine.high %v2591, %v2591
      %v2595 = vunpack.c.l.s4 1966171168
      %v2596 = vunpack.c.0.s8 %v2595
      %v2597 = vlaneseq
      %v2598 = vshrl.u32 %v2597, 7
      %v2599 = vsub.s32 %v2596, %v2598
      %v2600 = vrot.slane %v2500, %v2599
      %v2602 = vunpack.c.l.s4 1966171168
      %v2603 = vunpack.c.0.s8 %v2602
      %v2604 = vlaneseq
      %v2605 = vshrl.u32 %v2604, 7
      %v2606 = vsub.s32 %v2603, %v2605
      %v2607 = vrot.slane %v2600, %v2606
      %v2609 = vunpack.c.l.s4 1966171168
      %v2610 = vunpack.c.0.s8 %v2609
      %v2611 = vlaneseq
      %v2612 = vshrl.u32 %v2611, 7
      %v2613 = vsub.s32 %v2610, %v2612
      %v2614 = vrot.slane %v2501, %v2613
      %v2615 = vcombine.high %v2614, %v2614
      %v2617 = vunpack.c.l.s4 1966171168
      %v2618 = vunpack.c.0.s8 %v2617
      %v2619 = vlaneseq
      %v2620 = vshrl.u32 %v2619, 7
      %v2621 = vsub.s32 %v2618, %v2620
      %v2622 = vrot.slane %v2614, %v2621
      %v2624 = vunpack.c.l.s4 1966171168
      %v2625 = vunpack.c.0.s8 %v2624
      %v2626 = vlaneseq
      %v2627 = vshrl.u32 %v2626, 7
      %v2628 = vsub.s32 %v2625, %v2627
      %v2629 = vrot.slane %v2615, %v2628
      %v2630 = vcombine.high %v2622, %v2622
      %v2631 = vcombine.high %v2629, %v2629
      %v2633 = vunpack.c.l.s4 1966171168
      %v2634 = vunpack.c.0.s8 %v2633
      %v2635 = vlaneseq
      %v2636 = vshrl.u32 %v2635, 7
      %v2637 = vsub.s32 %v2634, %v2636
      %v2638 = vrot.slane %v2502, %v2637
      %v2639 = vcombine.high %v2638, %v2638
      %v2641 = vunpack.c.l.s4 1966171168
      %v2642 = vunpack.c.0.s8 %v2641
      %v2643 = vlaneseq
      %v2644 = vshrl.u32 %v2643, 7
      %v2645 = vsub.s32 %v2642, %v2644
      %v2646 = vrot.slane %v2638, %v2645
      %v2648 = vunpack.c.l.s4 1966171168
      %v2649 = vunpack.c.0.s8 %v2648
      %v2650 = vlaneseq
      %v2651 = vshrl.u32 %v2650, 7
      %v2652 = vsub.s32 %v2649, %v2651
      %v2653 = vrot.slane %v2639, %v2652
      %v2654 = vcombine.high %v2646, %v2646
      %v2655 = vcombine.high %v2653, %v2653
      %v2657 = vunpack.c.l.s4 1966171168
      %v2658 = vunpack.c.0.s8 %v2657
      %v2659 = vlaneseq
      %v2660 = vshrl.u32 %v2659, 7
      %v2661 = vsub.s32 %v2658, %v2660
      %v2662 = vrot.slane %v2503, %v2661
      %v2664 = vunpack.c.l.s4 1966171168
      %v2665 = vunpack.c.0.s8 %v2664
      %v2666 = vlaneseq
      %v2667 = vshrl.u32 %v2666, 7
      %v2668 = vsub.s32 %v2665, %v2667
      %v2669 = vrot.slane %v2662, %v2668
      %v2671 = vunpack.c.l.s4 1966171168
      %v2672 = vunpack.c.0.s8 %v2671
      %v2673 = vlaneseq
      %v2674 = vshrl.u32 %v2673, 7
      %v2675 = vsub.s32 %v2672, %v2674
      %v2676 = vrot.slane %v2504, %v2675
      %v2677 = vcombine.high %v2676, %v2676
      %v2679 = vunpack.c.l.s4 1966171168
      %v2680 = vunpack.c.0.s8 %v2679
      %v2681 = vlaneseq
      %v2682 = vshrl.u32 %v2681, 7
      %v2683 = vsub.s32 %v2680, %v2682
      %v2684 = vrot.slane %v2676, %v2683
      %v2686 = vunpack.c.l.s4 1966171168
      %v2687 = vunpack.c.0.s8 %v2686
      %v2688 = vlaneseq
      %v2689 = vshrl.u32 %v2688, 7
      %v2690 = vsub.s32 %v2687, %v2689
      %v2691 = vrot.slane %v2677, %v2690
      %v2692 = vcombine.high %v2684, %v2684
      %v2693 = vcombine.high %v2691, %v2691
      %v2695 = vunpack.c.l.s4 1966171168
      %v2696 = vunpack.c.0.s8 %v2695
      %v2697 = vlaneseq
      %v2698 = vshrl.u32 %v2697, 7
      %v2699 = vsub.s32 %v2696, %v2698
      %v2700 = vrot.slane %v2505, %v2699
      %v2701 = vcombine.high %v2700, %v2700
      %v2703 = vunpack.c.l.s4 1966171168
      %v2704 = vunpack.c.0.s8 %v2703
      %v2705 = vlaneseq
      %v2706 = vshrl.u32 %v2705, 7
      %v2707 = vsub.s32 %v2704, %v2706
      %v2708 = vrot.slane %v2700, %v2707
      %v2710 = vunpack.c.l.s4 1966171168
      %v2711 = vunpack.c.0.s8 %v2710
      %v2712 = vlaneseq
      %v2713 = vshrl.u32 %v2712, 7
      %v2714 = vsub.s32 %v2711, %v2713
      %v2715 = vrot.slane %v2701, %v2714
      %v2716 = vcombine.high %v2708, %v2708
      %v2717 = vcombine.high %v2715, %v2715
      %v2719 = vunpack.c.l.s4 1966171168
      %v2720 = vunpack.c.0.s8 %v2719
      %v2721 = vlaneseq
      %v2722 = vshrl.u32 %v2721, 7
      %v2723 = vsub.s32 %v2720, %v2722
      %v2724 = vrot.slane %v2506, %v2723
      %v2726 = vunpack.c.l.s4 1966171168
      %v2727 = vunpack.c.0.s8 %v2726
      %v2728 = vlaneseq
      %v2729 = vshrl.u32 %v2728, 7
      %v2730 = vsub.s32 %v2727, %v2729
      %v2731 = vrot.slane %v2724, %v2730
      %v2733 = vunpack.c.l.s4 1966171168
      %v2734 = vunpack.c.0.s8 %v2733
      %v2735 = vlaneseq
      %v2736 = vshrl.u32 %v2735, 7
      %v2737 = vsub.s32 %v2734, %v2736
      %v2738 = vrot.slane %v2507, %v2737
      %v2739 = vcombine.high %v2738, %v2738
      %v2741 = vunpack.c.l.s4 1966171168
      %v2742 = vunpack.c.0.s8 %v2741
      %v2743 = vlaneseq
      %v2744 = vshrl.u32 %v2743, 7
      %v2745 = vsub.s32 %v2742, %v2744
      %v2746 = vrot.slane %v2738, %v2745
      %v2748 = vunpack.c.l.s4 1966171168
      %v2749 = vunpack.c.0.s8 %v2748
      %v2750 = vlaneseq
      %v2751 = vshrl.u32 %v2750, 7
      %v2752 = vsub.s32 %v2749, %v2751
      %v2753 = vrot.slane %v2739, %v2752
      %v2754 = vcombine.high %v2746, %v2746
      %v2755 = vcombine.high %v2753, %v2753
      %v2757 = vunpack.c.l.s4 1966171168
      %v2758 = vunpack.c.0.s8 %v2757
      %v2759 = vlaneseq
      %v2760 = vshrl.u32 %v2759, 7
      %v2761 = vsub.s32 %v2758, %v2760
      %v2762 = vrot.slane %v2508, %v2761
      %v2763 = vcombine.high %v2762, %v2762
      %v2765 = vunpack.c.l.s4 1966171168
      %v2766 = vunpack.c.0.s8 %v2765
      %v2767 = vlaneseq
      %v2768 = vshrl.u32 %v2767, 7
      %v2769 = vsub.s32 %v2766, %v2768
      %v2770 = vrot.slane %v2762, %v2769
      %v2772 = vunpack.c.l.s4 1966171168
      %v2773 = vunpack.c.0.s8 %v2772
      %v2774 = vlaneseq
      %v2775 = vshrl.u32 %v2774, 7
      %v2776 = vsub.s32 %v2773, %v2775
      %v2777 = vrot.slane %v2763, %v2776
      %v2778 = vcombine.high %v2770, %v2770
      %v2779 = vcombine.high %v2777, %v2777
      %v2781 = vunpack.c.l.s4 1966171168
      %v2782 = vunpack.c.0.s8 %v2781
      %v2783 = vlaneseq
      %v2784 = vshrl.u32 %v2783, 7
      %v2785 = vsub.s32 %v2782, %v2784
      %v2786 = vrot.slane %v2509, %v2785
      %v2788 = vunpack.c.l.s4 1966171168
      %v2789 = vunpack.c.0.s8 %v2788
      %v2790 = vlaneseq
      %v2791 = vshrl.u32 %v2790, 7
      %v2792 = vsub.s32 %v2789, %v2791
      %v2793 = vrot.slane %v2786, %v2792
      %v2795 = vunpack.c.l.s4 1966171168
      %v2796 = vunpack.c.0.s8 %v2795
      %v2797 = vlaneseq
      %v2798 = vshrl.u32 %v2797, 7
      %v2799 = vsub.s32 %v2796, %v2798
      %v2800 = vrot.slane %v2510, %v2799
      %v2801 = vcombine.high %v2800, %v2800
      %v2803 = vunpack.c.l.s4 1966171168
      %v2804 = vunpack.c.0.s8 %v2803
      %v2805 = vlaneseq
      %v2806 = vshrl.u32 %v2805, 7
      %v2807 = vsub.s32 %v2804, %v2806
      %v2808 = vrot.slane %v2800, %v2807
      %v2810 = vunpack.c.l.s4 1966171168
      %v2811 = vunpack.c.0.s8 %v2810
      %v2812 = vlaneseq
      %v2813 = vshrl.u32 %v2812, 7
      %v2814 = vsub.s32 %v2811, %v2813
      %v2815 = vrot.slane %v2801, %v2814
      %v2816 = vcombine.high %v2808, %v2808
      %v2817 = vcombine.high %v2815, %v2815
      %v2819 = vunpack.c.l.s4 1966171168
      %v2820 = vunpack.c.0.s8 %v2819
      %v2821 = vlaneseq
      %v2822 = vshrl.u32 %v2821, 7
      %v2823 = vsub.s32 %v2820, %v2822
      %v2824 = vrot.slane %v2511, %v2823
      %v2825 = vcombine.high %v2824, %v2824
      %v2827 = vunpack.c.l.s4 1966171168
      %v2828 = vunpack.c.0.s8 %v2827
      %v2829 = vlaneseq
      %v2830 = vshrl.u32 %v2829, 7
      %v2831 = vsub.s32 %v2828, %v2830
      %v2832 = vrot.slane %v2824, %v2831
      %v2834 = vunpack.c.l.s4 1966171168
      %v2835 = vunpack.c.0.s8 %v2834
      %v2836 = vlaneseq
      %v2837 = vshrl.u32 %v2836, 7
      %v2838 = vsub.s32 %v2835, %v2837
      %v2839 = vrot.slane %v2825, %v2838
      %v2840 = vcombine.high %v2832, %v2832
      %v2841 = vcombine.high %v2839, %v2839
      %v2843 = vunpack.c.l.s4 1966171168
      %v2844 = vunpack.c.0.s8 %v2843
      %v2845 = vlaneseq
      %v2846 = vshrl.u32 %v2845, 7
      %v2847 = vsub.s32 %v2844, %v2846
      %v2848 = vrot.slane %v2512, %v2847
      %v2850 = vunpack.c.l.s4 1966171168
      %v2851 = vunpack.c.0.s8 %v2850
      %v2852 = vlaneseq
      %v2853 = vshrl.u32 %v2852, 7
      %v2854 = vsub.s32 %v2851, %v2853
      %v2855 = vrot.slane %v2848, %v2854
      %v2857 = vunpack.c.l.s4 1966171168
      %v2858 = vunpack.c.0.s8 %v2857
      %v2859 = vlaneseq
      %v2860 = vshrl.u32 %v2859, 7
      %v2861 = vsub.s32 %v2858, %v2860
      %v2862 = vrot.slane %v2513, %v2861
      %v2863 = vcombine.high %v2862, %v2862
      %v2865 = vunpack.c.l.s4 1966171168
      %v2866 = vunpack.c.0.s8 %v2865
      %v2867 = vlaneseq
      %v2868 = vshrl.u32 %v2867, 7
      %v2869 = vsub.s32 %v2866, %v2868
      %v2870 = vrot.slane %v2862, %v2869
      %v2872 = vunpack.c.l.s4 1966171168
      %v2873 = vunpack.c.0.s8 %v2872
      %v2874 = vlaneseq
      %v2875 = vshrl.u32 %v2874, 7
      %v2876 = vsub.s32 %v2873, %v2875
      %v2877 = vrot.slane %v2863, %v2876
      %v2878 = vcombine.high %v2870, %v2870
      %v2879 = vcombine.high %v2877, %v2877
      %v2881 = vunpack.c.l.s4 1966171168
      %v2882 = vunpack.c.0.s8 %v2881
      %v2883 = vlaneseq
      %v2884 = vshrl.u32 %v2883, 7
      %v2885 = vsub.s32 %v2882, %v2884
      %v2886 = vrot.slane %v2514, %v2885
      %v2887 = vcombine.high %v2886, %v2886
      %v2889 = vunpack.c.l.s4 1966171168
      %v2890 = vunpack.c.0.s8 %v2889
      %v2891 = vlaneseq
      %v2892 = vshrl.u32 %v2891, 7
      %v2893 = vsub.s32 %v2890, %v2892
      %v2894 = vrot.slane %v2886, %v2893
      %v2896 = vunpack.c.l.s4 1966171168
      %v2897 = vunpack.c.0.s8 %v2896
      %v2898 = vlaneseq
      %v2899 = vshrl.u32 %v2898, 7
      %v2900 = vsub.s32 %v2897, %v2899
      %v2901 = vrot.slane %v2887, %v2900
      %v2902 = vcombine.high %v2894, %v2894
      %v2903 = vcombine.high %v2901, %v2901
      %v2905 = vunpack.c.l.s4 1966171168
      %v2906 = vunpack.c.0.s8 %v2905
      %v2907 = vlaneseq
      %v2908 = vshrl.u32 %v2907, 7
      %v2909 = vsub.s32 %v2906, %v2908
      %v2910 = vrot.slane %v2515, %v2909
      %v2912 = vunpack.c.l.s4 1966171168
      %v2913 = vunpack.c.0.s8 %v2912
      %v2914 = vlaneseq
      %v2915 = vshrl.u32 %v2914, 7
      %v2916 = vsub.s32 %v2913, %v2915
      %v2917 = vrot.slane %v2910, %v2916
      %v2919 = vunpack.c.l.s4 1966171168
      %v2920 = vunpack.c.0.s8 %v2919
      %v2921 = vlaneseq
      %v2922 = vshrl.u32 %v2921, 7
      %v2923 = vsub.s32 %v2920, %v2922
      %v2924 = vrot.slane %v2516, %v2923
      %v2925 = vcombine.high %v2924, %v2924
      %v2927 = vunpack.c.l.s4 1966171168
      %v2928 = vunpack.c.0.s8 %v2927
      %v2929 = vlaneseq
      %v2930 = vshrl.u32 %v2929, 7
      %v2931 = vsub.s32 %v2928, %v2930
      %v2932 = vrot.slane %v2924, %v2931
      %v2934 = vunpack.c.l.s4 1966171168
      %v2935 = vunpack.c.0.s8 %v2934
      %v2936 = vlaneseq
      %v2937 = vshrl.u32 %v2936, 7
      %v2938 = vsub.s32 %v2935, %v2937
      %v2939 = vrot.slane %v2925, %v2938
      %v2940 = vcombine.high %v2932, %v2932
      %v2941 = vcombine.high %v2939, %v2939
      %v2943 = vunpack.c.l.s4 1966171168
      %v2944 = vunpack.c.0.s8 %v2943
      %v2945 = vlaneseq
      %v2946 = vshrl.u32 %v2945, 7
      %v2947 = vsub.s32 %v2944, %v2946
      %v2948 = vrot.slane %v2517, %v2947
      %v2949 = vcombine.high %v2948, %v2948
      %v2951 = vunpack.c.l.s4 1966171168
      %v2952 = vunpack.c.0.s8 %v2951
      %v2953 = vlaneseq
      %v2954 = vshrl.u32 %v2953, 7
      %v2955 = vsub.s32 %v2952, %v2954
      %v2956 = vrot.slane %v2948, %v2955
      %v2958 = vunpack.c.l.s4 1966171168
      %v2959 = vunpack.c.0.s8 %v2958
      %v2960 = vlaneseq
      %v2961 = vshrl.u32 %v2960, 7
      %v2962 = vsub.s32 %v2959, %v2961
      %v2963 = vrot.slane %v2949, %v2962
      %v2964 = vcombine.high %v2956, %v2956
      %v2965 = vcombine.high %v2963, %v2963
      %v2967 = vunpack.c.l.s4 1966171168
      %v2968 = vunpack.c.0.s8 %v2967
      %v2969 = vlaneseq
      %v2970 = vshrl.u32 %v2969, 7
      %v2971 = vsub.s32 %v2968, %v2970
      %v2972 = vrot.slane %v2518, %v2971
      %v2974 = vunpack.c.l.s4 1966171168
      %v2975 = vunpack.c.0.s8 %v2974
      %v2976 = vlaneseq
      %v2977 = vshrl.u32 %v2976, 7
      %v2978 = vsub.s32 %v2975, %v2977
      %v2979 = vrot.slane %v2972, %v2978
      %v2981 = vunpack.c.l.s4 1966171168
      %v2982 = vunpack.c.0.s8 %v2981
      %v2983 = vlaneseq
      %v2984 = vshrl.u32 %v2983, 7
      %v2985 = vsub.s32 %v2982, %v2984
      %v2986 = vrot.slane %v2519, %v2985
      %v2987 = vcombine.high %v2986, %v2986
      %v2989 = vunpack.c.l.s4 1966171168
      %v2990 = vunpack.c.0.s8 %v2989
      %v2991 = vlaneseq
      %v2992 = vshrl.u32 %v2991, 7
      %v2993 = vsub.s32 %v2990, %v2992
      %v2994 = vrot.slane %v2986, %v2993
      %v2996 = vunpack.c.l.s4 1966171168
      %v2997 = vunpack.c.0.s8 %v2996
      %v2998 = vlaneseq
      %v2999 = vshrl.u32 %v2998, 7
      %v3000 = vsub.s32 %v2997, %v2999
      %v3001 = vrot.slane %v2987, %v3000
      %v3002 = vcombine.high %v2994, %v2994
      %v3003 = vcombine.high %v3001, %v3001
      %v3005 = vunpack.c.l.s4 1966171168
      %v3006 = vunpack.c.0.s8 %v3005
      %v3007 = vlaneseq
      %v3008 = vshrl.u32 %v3007, 7
      %v3009 = vsub.s32 %v3006, %v3008
      %v3010 = vrot.slane %v2520, %v3009
      %v3011 = vcombine.high %v3010, %v3010
      %v3013 = vunpack.c.l.s4 1966171168
      %v3014 = vunpack.c.0.s8 %v3013
      %v3015 = vlaneseq
      %v3016 = vshrl.u32 %v3015, 7
      %v3017 = vsub.s32 %v3014, %v3016
      %v3018 = vrot.slane %v3010, %v3017
      %v3020 = vunpack.c.l.s4 1966171168
      %v3021 = vunpack.c.0.s8 %v3020
      %v3022 = vlaneseq
      %v3023 = vshrl.u32 %v3022, 7
      %v3024 = vsub.s32 %v3021, %v3023
      %v3025 = vrot.slane %v3011, %v3024
      %v3026 = vcombine.high %v3018, %v3018
      %v3027 = vcombine.high %v3025, %v3025
      %v3029 = vunpack.c.l.s4 1966171168
      %v3030 = vunpack.c.0.s8 %v3029
      %v3031 = vlaneseq
      %v3032 = vshrl.u32 %v3031, 7
      %v3033 = vsub.s32 %v3030, %v3032
      %v3034 = vrot.slane %v2521, %v3033
      %v3036 = vunpack.c.l.s4 1966171168
      %v3037 = vunpack.c.0.s8 %v3036
      %v3038 = vlaneseq
      %v3039 = vshrl.u32 %v3038, 7
      %v3040 = vsub.s32 %v3037, %v3039
      %v3041 = vrot.slane %v3034, %v3040
      %s3042 = scalar_lea.vmem %s1, 6
      %v3043 = vld [vmem:[%s3042] sm:$0x3]
      %v3045 = vunpack.c.l.s4 1966171168
      %v3046 = vunpack.c.0.s8 %v3045
      %v3047 = vlaneseq
      %v3048 = vshrl.u32 %v3047, 7
      %v3049 = vsub.s32 %v3046, %v3048
      %v3050 = vrot.slane %v2560, %v3049
      %v3052 = vunpack.c.l.s4 1966171168
      %v3053 = vunpack.c.0.s8 %v3052
      %v3054 = vlaneseq
      %v3055 = vshrl.u32 %v3054, 7
      %v3056 = vsub.s32 %v3053, %v3055
      %v3057 = vrot.slane %v3050, %v3056
      %v3059 = vunpack.c.l.s4 1966171168
      %v3060 = vunpack.c.0.s8 %v3059
      %v3061 = vlaneseq
      %v3062 = vshrl.u32 %v3061, 7
      %v3063 = vsub.s32 %v3060, %v3062
      %v3064 = vrot.slane %v2567, %v3063
      %v3066 = vunpack.c.l.s4 1966171168
      %v3067 = vunpack.c.0.s8 %v3066
      %v3068 = vlaneseq
      %v3069 = vshrl.u32 %v3068, 7
      %v3070 = vsub.s32 %v3067, %v3069
      %v3071 = vrot.slane %v3064, %v3070
      %v3073 = vunpack.c.l.s4 1966171168
      %v3074 = vunpack.c.0.s8 %v3073
      %v3075 = vlaneseq
      %v3076 = vshrl.u32 %v3075, 7
      %v3077 = vsub.s32 %v3074, %v3076
      %v3078 = vrot.slane %v2568, %v3077
      %v3080 = vunpack.c.l.s4 1966171168
      %v3081 = vunpack.c.0.s8 %v3080
      %v3082 = vlaneseq
      %v3083 = vshrl.u32 %v3082, 7
      %v3084 = vsub.s32 %v3081, %v3083
      %v3085 = vrot.slane %v3078, %v3084
      %v3087 = vunpack.c.l.s4 1966171168
      %v3088 = vunpack.c.0.s8 %v3087
      %v3089 = vlaneseq
      %v3090 = vshrl.u32 %v3089, 7
      %v3091 = vsub.s32 %v3088, %v3090
      %v3092 = vrot.slane %v2569, %v3091
      %v3094 = vunpack.c.l.s4 1966171168
      %v3095 = vunpack.c.0.s8 %v3094
      %v3096 = vlaneseq
      %v3097 = vshrl.u32 %v3096, 7
      %v3098 = vsub.s32 %v3095, %v3097
      %v3099 = vrot.slane %v3092, %v3098
      %v3101 = vunpack.c.l.s4 1966171168
      %v3102 = vunpack.c.0.s8 %v3101
      %v3103 = vlaneseq
      %v3104 = vshrl.u32 %v3103, 7
      %v3105 = vsub.s32 %v3102, %v3104
      %v3106 = vrot.slane %v2584, %v3105
      %v3108 = vunpack.c.l.s4 1966171168
      %v3109 = vunpack.c.0.s8 %v3108
      %v3110 = vlaneseq
      %v3111 = vshrl.u32 %v3110, 7
      %v3112 = vsub.s32 %v3109, %v3111
      %v3113 = vrot.slane %v3106, %v3112
      %v3115 = vunpack.c.l.s4 1966171168
      %v3116 = vunpack.c.0.s8 %v3115
      %v3117 = vlaneseq
      %v3118 = vshrl.u32 %v3117, 7
      %v3119 = vsub.s32 %v3116, %v3118
      %v3120 = vrot.slane %v2591, %v3119
      %v3122 = vunpack.c.l.s4 1966171168
      %v3123 = vunpack.c.0.s8 %v3122
      %v3124 = vlaneseq
      %v3125 = vshrl.u32 %v3124, 7
      %v3126 = vsub.s32 %v3123, %v3125
      %v3127 = vrot.slane %v3120, %v3126
      %v3129 = vunpack.c.l.s4 1966171168
      %v3130 = vunpack.c.0.s8 %v3129
      %v3131 = vlaneseq
      %v3132 = vshrl.u32 %v3131, 7
      %v3133 = vsub.s32 %v3130, %v3132
      %v3134 = vrot.slane %v2592, %v3133
      %v3136 = vunpack.c.l.s4 1966171168
      %v3137 = vunpack.c.0.s8 %v3136
      %v3138 = vlaneseq
      %v3139 = vshrl.u32 %v3138, 7
      %v3140 = vsub.s32 %v3137, %v3139
      %v3141 = vrot.slane %v3134, %v3140
      %v3143 = vunpack.c.l.s4 1966171168
      %v3144 = vunpack.c.0.s8 %v3143
      %v3145 = vlaneseq
      %v3146 = vshrl.u32 %v3145, 7
      %v3147 = vsub.s32 %v3144, %v3146
      %v3148 = vrot.slane %v2593, %v3147
      %v3150 = vunpack.c.l.s4 1966171168
      %v3151 = vunpack.c.0.s8 %v3150
      %v3152 = vlaneseq
      %v3153 = vshrl.u32 %v3152, 7
      %v3154 = vsub.s32 %v3151, %v3153
      %v3155 = vrot.slane %v3148, %v3154
      %v3157 = vunpack.c.l.s4 1966171168
      %v3158 = vunpack.c.0.s8 %v3157
      %v3159 = vlaneseq
      %v3160 = vshrl.u32 %v3159, 7
      %v3161 = vsub.s32 %v3158, %v3160
      %v3162 = vrot.slane %v2622, %v3161
      %v3164 = vunpack.c.l.s4 1966171168
      %v3165 = vunpack.c.0.s8 %v3164
      %v3166 = vlaneseq
      %v3167 = vshrl.u32 %v3166, 7
      %v3168 = vsub.s32 %v3165, %v3167
      %v3169 = vrot.slane %v3162, %v3168
      %v3171 = vunpack.c.l.s4 1966171168
      %v3172 = vunpack.c.0.s8 %v3171
      %v3173 = vlaneseq
      %v3174 = vshrl.u32 %v3173, 7
      %v3175 = vsub.s32 %v3172, %v3174
      %v3176 = vrot.slane %v2629, %v3175
      %v3178 = vunpack.c.l.s4 1966171168
      %v3179 = vunpack.c.0.s8 %v3178
      %v3180 = vlaneseq
      %v3181 = vshrl.u32 %v3180, 7
      %v3182 = vsub.s32 %v3179, %v3181
      %v3183 = vrot.slane %v3176, %v3182
      %v3185 = vunpack.c.l.s4 1966171168
      %v3186 = vunpack.c.0.s8 %v3185
      %v3187 = vlaneseq
      %v3188 = vshrl.u32 %v3187, 7
      %v3189 = vsub.s32 %v3186, %v3188
      %v3190 = vrot.slane %v2630, %v3189
      %v3192 = vunpack.c.l.s4 1966171168
      %v3193 = vunpack.c.0.s8 %v3192
      %v3194 = vlaneseq
      %v3195 = vshrl.u32 %v3194, 7
      %v3196 = vsub.s32 %v3193, %v3195
      %v3197 = vrot.slane %v3190, %v3196
      %v3199 = vunpack.c.l.s4 1966171168
      %v3200 = vunpack.c.0.s8 %v3199
      %v3201 = vlaneseq
      %v3202 = vshrl.u32 %v3201, 7
      %v3203 = vsub.s32 %v3200, %v3202
      %v3204 = vrot.slane %v2631, %v3203
      %v3206 = vunpack.c.l.s4 1966171168
      %v3207 = vunpack.c.0.s8 %v3206
      %v3208 = vlaneseq
      %v3209 = vshrl.u32 %v3208, 7
      %v3210 = vsub.s32 %v3207, %v3209
      %v3211 = vrot.slane %v3204, %v3210
      %v3213 = vunpack.c.l.s4 1966171168
      %v3214 = vunpack.c.0.s8 %v3213
      %v3215 = vlaneseq
      %v3216 = vshrl.u32 %v3215, 7
      %v3217 = vsub.s32 %v3214, %v3216
      %v3218 = vrot.slane %v2646, %v3217
      %v3220 = vunpack.c.l.s4 1966171168
      %v3221 = vunpack.c.0.s8 %v3220
      %v3222 = vlaneseq
      %v3223 = vshrl.u32 %v3222, 7
      %v3224 = vsub.s32 %v3221, %v3223
      %v3225 = vrot.slane %v3218, %v3224
      %v3227 = vunpack.c.l.s4 1966171168
      %v3228 = vunpack.c.0.s8 %v3227
      %v3229 = vlaneseq
      %v3230 = vshrl.u32 %v3229, 7
      %v3231 = vsub.s32 %v3228, %v3230
      %v3232 = vrot.slane %v2653, %v3231
      %v3234 = vunpack.c.l.s4 1966171168
      %v3235 = vunpack.c.0.s8 %v3234
      %v3236 = vlaneseq
      %v3237 = vshrl.u32 %v3236, 7
      %v3238 = vsub.s32 %v3235, %v3237
      %v3239 = vrot.slane %v3232, %v3238
      %v3241 = vunpack.c.l.s4 1966171168
      %v3242 = vunpack.c.0.s8 %v3241
      %v3243 = vlaneseq
      %v3244 = vshrl.u32 %v3243, 7
      %v3245 = vsub.s32 %v3242, %v3244
      %v3246 = vrot.slane %v2654, %v3245
      %v3248 = vunpack.c.l.s4 1966171168
      %v3249 = vunpack.c.0.s8 %v3248
      %v3250 = vlaneseq
      %v3251 = vshrl.u32 %v3250, 7
      %v3252 = vsub.s32 %v3249, %v3251
      %v3253 = vrot.slane %v3246, %v3252
      %v3255 = vunpack.c.l.s4 1966171168
      %v3256 = vunpack.c.0.s8 %v3255
      %v3257 = vlaneseq
      %v3258 = vshrl.u32 %v3257, 7
      %v3259 = vsub.s32 %v3256, %v3258
      %v3260 = vrot.slane %v2655, %v3259
      %v3262 = vunpack.c.l.s4 1966171168
      %v3263 = vunpack.c.0.s8 %v3262
      %v3264 = vlaneseq
      %v3265 = vshrl.u32 %v3264, 7
      %v3266 = vsub.s32 %v3263, %v3265
      %v3267 = vrot.slane %v3260, %v3266
      %v3269 = vunpack.c.l.s4 1966171168
      %v3270 = vunpack.c.0.s8 %v3269
      %v3271 = vlaneseq
      %v3272 = vshrl.u32 %v3271, 7
      %v3273 = vsub.s32 %v3270, %v3272
      %v3274 = vrot.slane %v2684, %v3273
      %v3276 = vunpack.c.l.s4 1966171168
      %v3277 = vunpack.c.0.s8 %v3276
      %v3278 = vlaneseq
      %v3279 = vshrl.u32 %v3278, 7
      %v3280 = vsub.s32 %v3277, %v3279
      %v3281 = vrot.slane %v3274, %v3280
      %v3283 = vunpack.c.l.s4 1966171168
      %v3284 = vunpack.c.0.s8 %v3283
      %v3285 = vlaneseq
      %v3286 = vshrl.u32 %v3285, 7
      %v3287 = vsub.s32 %v3284, %v3286
      %v3288 = vrot.slane %v2691, %v3287
      %v3290 = vunpack.c.l.s4 1966171168
      %v3291 = vunpack.c.0.s8 %v3290
      %v3292 = vlaneseq
      %v3293 = vshrl.u32 %v3292, 7
      %v3294 = vsub.s32 %v3291, %v3293
      %v3295 = vrot.slane %v3288, %v3294
      %v3297 = vunpack.c.l.s4 1966171168
      %v3298 = vunpack.c.0.s8 %v3297
      %v3299 = vlaneseq
      %v3300 = vshrl.u32 %v3299, 7
      %v3301 = vsub.s32 %v3298, %v3300
      %v3302 = vrot.slane %v2692, %v3301
      %v3304 = vunpack.c.l.s4 1966171168
      %v3305 = vunpack.c.0.s8 %v3304
      %v3306 = vlaneseq
      %v3307 = vshrl.u32 %v3306, 7
      %v3308 = vsub.s32 %v3305, %v3307
      %v3309 = vrot.slane %v3302, %v3308
      %v3311 = vunpack.c.l.s4 1966171168
      %v3312 = vunpack.c.0.s8 %v3311
      %v3313 = vlaneseq
      %v3314 = vshrl.u32 %v3313, 7
      %v3315 = vsub.s32 %v3312, %v3314
      %v3316 = vrot.slane %v2693, %v3315
      %v3318 = vunpack.c.l.s4 1966171168
      %v3319 = vunpack.c.0.s8 %v3318
      %v3320 = vlaneseq
      %v3321 = vshrl.u32 %v3320, 7
      %v3322 = vsub.s32 %v3319, %v3321
      %v3323 = vrot.slane %v3316, %v3322
      %v3325 = vunpack.c.l.s4 1966171168
      %v3326 = vunpack.c.0.s8 %v3325
      %v3327 = vlaneseq
      %v3328 = vshrl.u32 %v3327, 7
      %v3329 = vsub.s32 %v3326, %v3328
      %v3330 = vrot.slane %v2708, %v3329
      %v3332 = vunpack.c.l.s4 1966171168
      %v3333 = vunpack.c.0.s8 %v3332
      %v3334 = vlaneseq
      %v3335 = vshrl.u32 %v3334, 7
      %v3336 = vsub.s32 %v3333, %v3335
      %v3337 = vrot.slane %v3330, %v3336
      %v3339 = vunpack.c.l.s4 1966171168
      %v3340 = vunpack.c.0.s8 %v3339
      %v3341 = vlaneseq
      %v3342 = vshrl.u32 %v3341, 7
      %v3343 = vsub.s32 %v3340, %v3342
      %v3344 = vrot.slane %v2715, %v3343
      %v3346 = vunpack.c.l.s4 1966171168
      %v3347 = vunpack.c.0.s8 %v3346
      %v3348 = vlaneseq
      %v3349 = vshrl.u32 %v3348, 7
      %v3350 = vsub.s32 %v3347, %v3349
      %v3351 = vrot.slane %v3344, %v3350
      %v3353 = vunpack.c.l.s4 1966171168
      %v3354 = vunpack.c.0.s8 %v3353
      %v3355 = vlaneseq
      %v3356 = vshrl.u32 %v3355, 7
      %v3357 = vsub.s32 %v3354, %v3356
      %v3358 = vrot.slane %v2716, %v3357
      %v3360 = vunpack.c.l.s4 1966171168
      %v3361 = vunpack.c.0.s8 %v3360
      %v3362 = vlaneseq
      %v3363 = vshrl.u32 %v3362, 7
      %v3364 = vsub.s32 %v3361, %v3363
      %v3365 = vrot.slane %v3358, %v3364
      %v3367 = vunpack.c.l.s4 1966171168
      %v3368 = vunpack.c.0.s8 %v3367
      %v3369 = vlaneseq
      %v3370 = vshrl.u32 %v3369, 7
      %v3371 = vsub.s32 %v3368, %v3370
      %v3372 = vrot.slane %v2717, %v3371
      %v3374 = vunpack.c.l.s4 1966171168
      %v3375 = vunpack.c.0.s8 %v3374
      %v3376 = vlaneseq
      %v3377 = vshrl.u32 %v3376, 7
      %v3378 = vsub.s32 %v3375, %v3377
      %v3379 = vrot.slane %v3372, %v3378
      %v3381 = vunpack.c.l.s4 1966171168
      %v3382 = vunpack.c.0.s8 %v3381
      %v3383 = vlaneseq
      %v3384 = vshrl.u32 %v3383, 7
      %v3385 = vsub.s32 %v3382, %v3384
      %v3386 = vrot.slane %v2746, %v3385
      %v3388 = vunpack.c.l.s4 1966171168
      %v3389 = vunpack.c.0.s8 %v3388
      %v3390 = vlaneseq
      %v3391 = vshrl.u32 %v3390, 7
      %v3392 = vsub.s32 %v3389, %v3391
      %v3393 = vrot.slane %v3386, %v3392
      %v3395 = vunpack.c.l.s4 1966171168
      %v3396 = vunpack.c.0.s8 %v3395
      %v3397 = vlaneseq
      %v3398 = vshrl.u32 %v3397, 7
      %v3399 = vsub.s32 %v3396, %v3398
      %v3400 = vrot.slane %v2753, %v3399
      %v3402 = vunpack.c.l.s4 1966171168
      %v3403 = vunpack.c.0.s8 %v3402
      %v3404 = vlaneseq
      %v3405 = vshrl.u32 %v3404, 7
      %v3406 = vsub.s32 %v3403, %v3405
      %v3407 = vrot.slane %v3400, %v3406
      %v3409 = vunpack.c.l.s4 1966171168
      %v3410 = vunpack.c.0.s8 %v3409
      %v3411 = vlaneseq
      %v3412 = vshrl.u32 %v3411, 7
      %v3413 = vsub.s32 %v3410, %v3412
      %v3414 = vrot.slane %v2754, %v3413
      %v3416 = vunpack.c.l.s4 1966171168
      %v3417 = vunpack.c.0.s8 %v3416
      %v3418 = vlaneseq
      %v3419 = vshrl.u32 %v3418, 7
      %v3420 = vsub.s32 %v3417, %v3419
      %v3421 = vrot.slane %v3414, %v3420
      %v3423 = vunpack.c.l.s4 1966171168
      %v3424 = vunpack.c.0.s8 %v3423
      %v3425 = vlaneseq
      %v3426 = vshrl.u32 %v3425, 7
      %v3427 = vsub.s32 %v3424, %v3426
      %v3428 = vrot.slane %v2755, %v3427
      %v3430 = vunpack.c.l.s4 1966171168
      %v3431 = vunpack.c.0.s8 %v3430
      %v3432 = vlaneseq
      %v3433 = vshrl.u32 %v3432, 7
      %v3434 = vsub.s32 %v3431, %v3433
      %v3435 = vrot.slane %v3428, %v3434
      %v3437 = vunpack.c.l.s4 1966171168
      %v3438 = vunpack.c.0.s8 %v3437
      %v3439 = vlaneseq
      %v3440 = vshrl.u32 %v3439, 7
      %v3441 = vsub.s32 %v3438, %v3440
      %v3442 = vrot.slane %v2770, %v3441
      %v3444 = vunpack.c.l.s4 1966171168
      %v3445 = vunpack.c.0.s8 %v3444
      %v3446 = vlaneseq
      %v3447 = vshrl.u32 %v3446, 7
      %v3448 = vsub.s32 %v3445, %v3447
      %v3449 = vrot.slane %v3442, %v3448
      %v3451 = vunpack.c.l.s4 1966171168
      %v3452 = vunpack.c.0.s8 %v3451
      %v3453 = vlaneseq
      %v3454 = vshrl.u32 %v3453, 7
      %v3455 = vsub.s32 %v3452, %v3454
      %v3456 = vrot.slane %v2777, %v3455
      %v3458 = vunpack.c.l.s4 1966171168
      %v3459 = vunpack.c.0.s8 %v3458
      %v3460 = vlaneseq
      %v3461 = vshrl.u32 %v3460, 7
      %v3462 = vsub.s32 %v3459, %v3461
      %v3463 = vrot.slane %v3456, %v3462
      %v3465 = vunpack.c.l.s4 1966171168
      %v3466 = vunpack.c.0.s8 %v3465
      %v3467 = vlaneseq
      %v3468 = vshrl.u32 %v3467, 7
      %v3469 = vsub.s32 %v3466, %v3468
      %v3470 = vrot.slane %v2778, %v3469
      %v3472 = vunpack.c.l.s4 1966171168
      %v3473 = vunpack.c.0.s8 %v3472
      %v3474 = vlaneseq
      %v3475 = vshrl.u32 %v3474, 7
      %v3476 = vsub.s32 %v3473, %v3475
      %v3477 = vrot.slane %v3470, %v3476
      %v3479 = vunpack.c.l.s4 1966171168
      %v3480 = vunpack.c.0.s8 %v3479
      %v3481 = vlaneseq
      %v3482 = vshrl.u32 %v3481, 7
      %v3483 = vsub.s32 %v3480, %v3482
      %v3484 = vrot.slane %v2779, %v3483
      %v3486 = vunpack.c.l.s4 1966171168
      %v3487 = vunpack.c.0.s8 %v3486
      %v3488 = vlaneseq
      %v3489 = vshrl.u32 %v3488, 7
      %v3490 = vsub.s32 %v3487, %v3489
      %v3491 = vrot.slane %v3484, %v3490
      %v3493 = vunpack.c.l.s4 1966171168
      %v3494 = vunpack.c.0.s8 %v3493
      %v3495 = vlaneseq
      %v3496 = vshrl.u32 %v3495, 7
      %v3497 = vsub.s32 %v3494, %v3496
      %v3498 = vrot.slane %v2808, %v3497
      %v3500 = vunpack.c.l.s4 1966171168
      %v3501 = vunpack.c.0.s8 %v3500
      %v3502 = vlaneseq
      %v3503 = vshrl.u32 %v3502, 7
      %v3504 = vsub.s32 %v3501, %v3503
      %v3505 = vrot.slane %v3498, %v3504
      %v3507 = vunpack.c.l.s4 1966171168
      %v3508 = vunpack.c.0.s8 %v3507
      %v3509 = vlaneseq
      %v3510 = vshrl.u32 %v3509, 7
      %v3511 = vsub.s32 %v3508, %v3510
      %v3512 = vrot.slane %v2815, %v3511
      %v3514 = vunpack.c.l.s4 1966171168
      %v3515 = vunpack.c.0.s8 %v3514
      %v3516 = vlaneseq
      %v3517 = vshrl.u32 %v3516, 7
      %v3518 = vsub.s32 %v3515, %v3517
      %v3519 = vrot.slane %v3512, %v3518
      %v3521 = vunpack.c.l.s4 1966171168
      %v3522 = vunpack.c.0.s8 %v3521
      %v3523 = vlaneseq
      %v3524 = vshrl.u32 %v3523, 7
      %v3525 = vsub.s32 %v3522, %v3524
      %v3526 = vrot.slane %v2816, %v3525
      %v3528 = vunpack.c.l.s4 1966171168
      %v3529 = vunpack.c.0.s8 %v3528
      %v3530 = vlaneseq
      %v3531 = vshrl.u32 %v3530, 7
      %v3532 = vsub.s32 %v3529, %v3531
      %v3533 = vrot.slane %v3526, %v3532
      %v3535 = vunpack.c.l.s4 1966171168
      %v3536 = vunpack.c.0.s8 %v3535
      %v3537 = vlaneseq
      %v3538 = vshrl.u32 %v3537, 7
      %v3539 = vsub.s32 %v3536, %v3538
      %v3540 = vrot.slane %v2817, %v3539
      %v3542 = vunpack.c.l.s4 1966171168
      %v3543 = vunpack.c.0.s8 %v3542
      %v3544 = vlaneseq
      %v3545 = vshrl.u32 %v3544, 7
      %v3546 = vsub.s32 %v3543, %v3545
      %v3547 = vrot.slane %v3540, %v3546
      %v3549 = vunpack.c.l.s4 1966171168
      %v3550 = vunpack.c.0.s8 %v3549
      %v3551 = vlaneseq
      %v3552 = vshrl.u32 %v3551, 7
      %v3553 = vsub.s32 %v3550, %v3552
      %v3554 = vrot.slane %v2832, %v3553
      %v3556 = vunpack.c.l.s4 1966171168
      %v3557 = vunpack.c.0.s8 %v3556
      %v3558 = vlaneseq
      %v3559 = vshrl.u32 %v3558, 7
      %v3560 = vsub.s32 %v3557, %v3559
      %v3561 = vrot.slane %v3554, %v3560
      %v3563 = vunpack.c.l.s4 1966171168
      %v3564 = vunpack.c.0.s8 %v3563
      %v3565 = vlaneseq
      %v3566 = vshrl.u32 %v3565, 7
      %v3567 = vsub.s32 %v3564, %v3566
      %v3568 = vrot.slane %v2839, %v3567
      %v3570 = vunpack.c.l.s4 1966171168
      %v3571 = vunpack.c.0.s8 %v3570
      %v3572 = vlaneseq
      %v3573 = vshrl.u32 %v3572, 7
      %v3574 = vsub.s32 %v3571, %v3573
      %v3575 = vrot.slane %v3568, %v3574
      %v3577 = vunpack.c.l.s4 1966171168
      %v3578 = vunpack.c.0.s8 %v3577
      %v3579 = vlaneseq
      %v3580 = vshrl.u32 %v3579, 7
      %v3581 = vsub.s32 %v3578, %v3580
      %v3582 = vrot.slane %v2840, %v3581
      %v3584 = vunpack.c.l.s4 1966171168
      %v3585 = vunpack.c.0.s8 %v3584
      %v3586 = vlaneseq
      %v3587 = vshrl.u32 %v3586, 7
      %v3588 = vsub.s32 %v3585, %v3587
      %v3589 = vrot.slane %v3582, %v3588
      %v3591 = vunpack.c.l.s4 1966171168
      %v3592 = vunpack.c.0.s8 %v3591
      %v3593 = vlaneseq
      %v3594 = vshrl.u32 %v3593, 7
      %v3595 = vsub.s32 %v3592, %v3594
      %v3596 = vrot.slane %v2841, %v3595
      %v3598 = vunpack.c.l.s4 1966171168
      %v3599 = vunpack.c.0.s8 %v3598
      %v3600 = vlaneseq
      %v3601 = vshrl.u32 %v3600, 7
      %v3602 = vsub.s32 %v3599, %v3601
      %v3603 = vrot.slane %v3596, %v3602
      %v3605 = vunpack.c.l.s4 1966171168
      %v3606 = vunpack.c.0.s8 %v3605
      %v3607 = vlaneseq
      %v3608 = vshrl.u32 %v3607, 7
      %v3609 = vsub.s32 %v3606, %v3608
      %v3610 = vrot.slane %v2870, %v3609
      %v3612 = vunpack.c.l.s4 1966171168
      %v3613 = vunpack.c.0.s8 %v3612
      %v3614 = vlaneseq
      %v3615 = vshrl.u32 %v3614, 7
      %v3616 = vsub.s32 %v3613, %v3615
      %v3617 = vrot.slane %v3610, %v3616
      %v3619 = vunpack.c.l.s4 1966171168
      %v3620 = vunpack.c.0.s8 %v3619
      %v3621 = vlaneseq
      %v3622 = vshrl.u32 %v3621, 7
      %v3623 = vsub.s32 %v3620, %v3622
      %v3624 = vrot.slane %v2877, %v3623
      %v3626 = vunpack.c.l.s4 1966171168
      %v3627 = vunpack.c.0.s8 %v3626
      %v3628 = vlaneseq
      %v3629 = vshrl.u32 %v3628, 7
      %v3630 = vsub.s32 %v3627, %v3629
      %v3631 = vrot.slane %v3624, %v3630
      %v3633 = vunpack.c.l.s4 1966171168
      %v3634 = vunpack.c.0.s8 %v3633
      %v3635 = vlaneseq
      %v3636 = vshrl.u32 %v3635, 7
      %v3637 = vsub.s32 %v3634, %v3636
      %v3638 = vrot.slane %v2878, %v3637
      %v3640 = vunpack.c.l.s4 1966171168
      %v3641 = vunpack.c.0.s8 %v3640
      %v3642 = vlaneseq
      %v3643 = vshrl.u32 %v3642, 7
      %v3644 = vsub.s32 %v3641, %v3643
      %v3645 = vrot.slane %v3638, %v3644
      %v3647 = vunpack.c.l.s4 1966171168
      %v3648 = vunpack.c.0.s8 %v3647
      %v3649 = vlaneseq
      %v3650 = vshrl.u32 %v3649, 7
      %v3651 = vsub.s32 %v3648, %v3650
      %v3652 = vrot.slane %v2879, %v3651
      %v3654 = vunpack.c.l.s4 1966171168
      %v3655 = vunpack.c.0.s8 %v3654
      %v3656 = vlaneseq
      %v3657 = vshrl.u32 %v3656, 7
      %v3658 = vsub.s32 %v3655, %v3657
      %v3659 = vrot.slane %v3652, %v3658
      %v3661 = vunpack.c.l.s4 1966171168
      %v3662 = vunpack.c.0.s8 %v3661
      %v3663 = vlaneseq
      %v3664 = vshrl.u32 %v3663, 7
      %v3665 = vsub.s32 %v3662, %v3664
      %v3666 = vrot.slane %v2894, %v3665
      %v3668 = vunpack.c.l.s4 1966171168
      %v3669 = vunpack.c.0.s8 %v3668
      %v3670 = vlaneseq
      %v3671 = vshrl.u32 %v3670, 7
      %v3672 = vsub.s32 %v3669, %v3671
      %v3673 = vrot.slane %v3666, %v3672
      %v3675 = vunpack.c.l.s4 1966171168
      %v3676 = vunpack.c.0.s8 %v3675
      %v3677 = vlaneseq
      %v3678 = vshrl.u32 %v3677, 7
      %v3679 = vsub.s32 %v3676, %v3678
      %v3680 = vrot.slane %v2901, %v3679
      %v3682 = vunpack.c.l.s4 1966171168
      %v3683 = vunpack.c.0.s8 %v3682
      %v3684 = vlaneseq
      %v3685 = vshrl.u32 %v3684, 7
      %v3686 = vsub.s32 %v3683, %v3685
      %v3687 = vrot.slane %v3680, %v3686
      %v3689 = vunpack.c.l.s4 1966171168
      %v3690 = vunpack.c.0.s8 %v3689
      %v3691 = vlaneseq
      %v3692 = vshrl.u32 %v3691, 7
      %v3693 = vsub.s32 %v3690, %v3692
      %v3694 = vrot.slane %v2902, %v3693
      %v3696 = vunpack.c.l.s4 1966171168
      %v3697 = vunpack.c.0.s8 %v3696
      %v3698 = vlaneseq
      %v3699 = vshrl.u32 %v3698, 7
      %v3700 = vsub.s32 %v3697, %v3699
      %v3701 = vrot.slane %v3694, %v3700
      %v3703 = vunpack.c.l.s4 1966171168
      %v3704 = vunpack.c.0.s8 %v3703
      %v3705 = vlaneseq
      %v3706 = vshrl.u32 %v3705, 7
      %v3707 = vsub.s32 %v3704, %v3706
      %v3708 = vrot.slane %v2903, %v3707
      %v3710 = vunpack.c.l.s4 1966171168
      %v3711 = vunpack.c.0.s8 %v3710
      %v3712 = vlaneseq
      %v3713 = vshrl.u32 %v3712, 7
      %v3714 = vsub.s32 %v3711, %v3713
      %v3715 = vrot.slane %v3708, %v3714
      %v3717 = vunpack.c.l.s4 1966171168
      %v3718 = vunpack.c.0.s8 %v3717
      %v3719 = vlaneseq
      %v3720 = vshrl.u32 %v3719, 7
      %v3721 = vsub.s32 %v3718, %v3720
      %v3722 = vrot.slane %v2932, %v3721
      %v3724 = vunpack.c.l.s4 1966171168
      %v3725 = vunpack.c.0.s8 %v3724
      %v3726 = vlaneseq
      %v3727 = vshrl.u32 %v3726, 7
      %v3728 = vsub.s32 %v3725, %v3727
      %v3729 = vrot.slane %v3722, %v3728
      %v3731 = vunpack.c.l.s4 1966171168
      %v3732 = vunpack.c.0.s8 %v3731
      %v3733 = vlaneseq
      %v3734 = vshrl.u32 %v3733, 7
      %v3735 = vsub.s32 %v3732, %v3734
      %v3736 = vrot.slane %v2939, %v3735
      %v3738 = vunpack.c.l.s4 1966171168
      %v3739 = vunpack.c.0.s8 %v3738
      %v3740 = vlaneseq
      %v3741 = vshrl.u32 %v3740, 7
      %v3742 = vsub.s32 %v3739, %v3741
      %v3743 = vrot.slane %v3736, %v3742
      %v3745 = vunpack.c.l.s4 1966171168
      %v3746 = vunpack.c.0.s8 %v3745
      %v3747 = vlaneseq
      %v3748 = vshrl.u32 %v3747, 7
      %v3749 = vsub.s32 %v3746, %v3748
      %v3750 = vrot.slane %v2940, %v3749
      %v3752 = vunpack.c.l.s4 1966171168
      %v3753 = vunpack.c.0.s8 %v3752
      %v3754 = vlaneseq
      %v3755 = vshrl.u32 %v3754, 7
      %v3756 = vsub.s32 %v3753, %v3755
      %v3757 = vrot.slane %v3750, %v3756
      %v3759 = vunpack.c.l.s4 1966171168
      %v3760 = vunpack.c.0.s8 %v3759
      %v3761 = vlaneseq
      %v3762 = vshrl.u32 %v3761, 7
      %v3763 = vsub.s32 %v3760, %v3762
      %v3764 = vrot.slane %v2941, %v3763
      %v3766 = vunpack.c.l.s4 1966171168
      %v3767 = vunpack.c.0.s8 %v3766
      %v3768 = vlaneseq
      %v3769 = vshrl.u32 %v3768, 7
      %v3770 = vsub.s32 %v3767, %v3769
      %v3771 = vrot.slane %v3764, %v3770
      %v3773 = vunpack.c.l.s4 1966171168
      %v3774 = vunpack.c.0.s8 %v3773
      %v3775 = vlaneseq
      %v3776 = vshrl.u32 %v3775, 7
      %v3777 = vsub.s32 %v3774, %v3776
      %v3778 = vrot.slane %v2956, %v3777
      %v3780 = vunpack.c.l.s4 1966171168
      %v3781 = vunpack.c.0.s8 %v3780
      %v3782 = vlaneseq
      %v3783 = vshrl.u32 %v3782, 7
      %v3784 = vsub.s32 %v3781, %v3783
      %v3785 = vrot.slane %v3778, %v3784
      %v3787 = vunpack.c.l.s4 1966171168
      %v3788 = vunpack.c.0.s8 %v3787
      %v3789 = vlaneseq
      %v3790 = vshrl.u32 %v3789, 7
      %v3791 = vsub.s32 %v3788, %v3790
      %v3792 = vrot.slane %v2963, %v3791
      %v3794 = vunpack.c.l.s4 1966171168
      %v3795 = vunpack.c.0.s8 %v3794
      %v3796 = vlaneseq
      %v3797 = vshrl.u32 %v3796, 7
      %v3798 = vsub.s32 %v3795, %v3797
      %v3799 = vrot.slane %v3792, %v3798
      %v3801 = vunpack.c.l.s4 1966171168
      %v3802 = vunpack.c.0.s8 %v3801
      %v3803 = vlaneseq
      %v3804 = vshrl.u32 %v3803, 7
      %v3805 = vsub.s32 %v3802, %v3804
      %v3806 = vrot.slane %v2964, %v3805
      %v3808 = vunpack.c.l.s4 1966171168
      %v3809 = vunpack.c.0.s8 %v3808
      %v3810 = vlaneseq
      %v3811 = vshrl.u32 %v3810, 7
      %v3812 = vsub.s32 %v3809, %v3811
      %v3813 = vrot.slane %v3806, %v3812
      %v3815 = vunpack.c.l.s4 1966171168
      %v3816 = vunpack.c.0.s8 %v3815
      %v3817 = vlaneseq
      %v3818 = vshrl.u32 %v3817, 7
      %v3819 = vsub.s32 %v3816, %v3818
      %v3820 = vrot.slane %v2965, %v3819
      %v3822 = vunpack.c.l.s4 1966171168
      %v3823 = vunpack.c.0.s8 %v3822
      %v3824 = vlaneseq
      %v3825 = vshrl.u32 %v3824, 7
      %v3826 = vsub.s32 %v3823, %v3825
      %v3827 = vrot.slane %v3820, %v3826
      %v3829 = vunpack.c.l.s4 1966171168
      %v3830 = vunpack.c.0.s8 %v3829
      %v3831 = vlaneseq
      %v3832 = vshrl.u32 %v3831, 7
      %v3833 = vsub.s32 %v3830, %v3832
      %v3834 = vrot.slane %v2994, %v3833
      %v3836 = vunpack.c.l.s4 1966171168
      %v3837 = vunpack.c.0.s8 %v3836
      %v3838 = vlaneseq
      %v3839 = vshrl.u32 %v3838, 7
      %v3840 = vsub.s32 %v3837, %v3839
      %v3841 = vrot.slane %v3834, %v3840
      %v3843 = vunpack.c.l.s4 1966171168
      %v3844 = vunpack.c.0.s8 %v3843
      %v3845 = vlaneseq
      %v3846 = vshrl.u32 %v3845, 7
      %v3847 = vsub.s32 %v3844, %v3846
      %v3848 = vrot.slane %v3001, %v3847
      %v3850 = vunpack.c.l.s4 1966171168
      %v3851 = vunpack.c.0.s8 %v3850
      %v3852 = vlaneseq
      %v3853 = vshrl.u32 %v3852, 7
      %v3854 = vsub.s32 %v3851, %v3853
      %v3855 = vrot.slane %v3848, %v3854
      %v3857 = vunpack.c.l.s4 1966171168
      %v3858 = vunpack.c.0.s8 %v3857
      %v3859 = vlaneseq
      %v3860 = vshrl.u32 %v3859, 7
      %v3861 = vsub.s32 %v3858, %v3860
      %v3862 = vrot.slane %v3002, %v3861
      %v3864 = vunpack.c.l.s4 1966171168
      %v3865 = vunpack.c.0.s8 %v3864
      %v3866 = vlaneseq
      %v3867 = vshrl.u32 %v3866, 7
      %v3868 = vsub.s32 %v3865, %v3867
      %v3869 = vrot.slane %v3862, %v3868
      %v3871 = vunpack.c.l.s4 1966171168
      %v3872 = vunpack.c.0.s8 %v3871
      %v3873 = vlaneseq
      %v3874 = vshrl.u32 %v3873, 7
      %v3875 = vsub.s32 %v3872, %v3874
      %v3876 = vrot.slane %v3003, %v3875
      %v3878 = vunpack.c.l.s4 1966171168
      %v3879 = vunpack.c.0.s8 %v3878
      %v3880 = vlaneseq
      %v3881 = vshrl.u32 %v3880, 7
      %v3882 = vsub.s32 %v3879, %v3881
      %v3883 = vrot.slane %v3876, %v3882
      %v3885 = vunpack.c.l.s4 1966171168
      %v3886 = vunpack.c.0.s8 %v3885
      %v3887 = vlaneseq
      %v3888 = vshrl.u32 %v3887, 7
      %v3889 = vsub.s32 %v3886, %v3888
      %v3890 = vrot.slane %v3018, %v3889
      %v3892 = vunpack.c.l.s4 1966171168
      %v3893 = vunpack.c.0.s8 %v3892
      %v3894 = vlaneseq
      %v3895 = vshrl.u32 %v3894, 7
      %v3896 = vsub.s32 %v3893, %v3895
      %v3897 = vrot.slane %v3890, %v3896
      %v3899 = vunpack.c.l.s4 1966171168
      %v3900 = vunpack.c.0.s8 %v3899
      %v3901 = vlaneseq
      %v3902 = vshrl.u32 %v3901, 7
      %v3903 = vsub.s32 %v3900, %v3902
      %v3904 = vrot.slane %v3025, %v3903
      %v3906 = vunpack.c.l.s4 1966171168
      %v3907 = vunpack.c.0.s8 %v3906
      %v3908 = vlaneseq
      %v3909 = vshrl.u32 %v3908, 7
      %v3910 = vsub.s32 %v3907, %v3909
      %v3911 = vrot.slane %v3904, %v3910
      %v3913 = vunpack.c.l.s4 1966171168
      %v3914 = vunpack.c.0.s8 %v3913
      %v3915 = vlaneseq
      %v3916 = vshrl.u32 %v3915, 7
      %v3917 = vsub.s32 %v3914, %v3916
      %v3918 = vrot.slane %v3026, %v3917
      %v3920 = vunpack.c.l.s4 1966171168
      %v3921 = vunpack.c.0.s8 %v3920
      %v3922 = vlaneseq
      %v3923 = vshrl.u32 %v3922, 7
      %v3924 = vsub.s32 %v3921, %v3923
      %v3925 = vrot.slane %v3918, %v3924
      %v3927 = vunpack.c.l.s4 1966171168
      %v3928 = vunpack.c.0.s8 %v3927
      %v3929 = vlaneseq
      %v3930 = vshrl.u32 %v3929, 7
      %v3931 = vsub.s32 %v3928, %v3930
      %v3932 = vrot.slane %v3027, %v3931
      %v3934 = vunpack.c.l.s4 1966171168
      %v3935 = vunpack.c.0.s8 %v3934
      %v3936 = vlaneseq
      %v3937 = vshrl.u32 %v3936, 7
      %v3938 = vsub.s32 %v3935, %v3937
      %v3939 = vrot.slane %v3932, %v3938
      %v3940 = vunpack.c.l.b16 %v3057
      %v3941 = vunpack.c.l.b16 %v3071
      %v3942 = vunpack.c.l.b16 %v3085
      %v3943 = vunpack.c.l.b16 %v3099
      %v3944 = vunpack.c.l.b16 %v3113
      %v3945 = vunpack.c.l.b16 %v3127
      %v3946 = vunpack.c.l.b16 %v3141
      %v3947 = vunpack.c.l.b16 %v3155
      %v3948 = vunpack.c.l.b16 %v3169
      %v3949 = vunpack.c.l.b16 %v3183
      %v3950 = vunpack.c.l.b16 %v3197
      %v3951 = vunpack.c.l.b16 %v3211
      %v3952 = vunpack.c.l.b16 %v3225
      %v3953 = vunpack.c.l.b16 %v3239
      %v3954 = vunpack.c.l.b16 %v3253
      %v3955 = vunpack.c.l.b16 %v3267
      %v3956 = vunpack.c.l.b16 %v3281
      %v3957 = vunpack.c.l.b16 %v3295
      %v3958 = vunpack.c.l.b16 %v3309
      %v3959 = vunpack.c.l.b16 %v3323
      %v3960 = vunpack.c.l.b16 %v3337
      %v3961 = vunpack.c.l.b16 %v3351
      %v3962 = vunpack.c.l.b16 %v3365
      %v3963 = vunpack.c.l.b16 %v3379
      %v3964 = vunpack.c.l.b16 %v3393
      %v3965 = vunpack.c.l.b16 %v3407
      %v3966 = vunpack.c.l.b16 %v3421
      %v3967 = vunpack.c.l.b16 %v3435
      %v3968 = vunpack.c.l.b16 %v3449
      %v3969 = vunpack.c.l.b16 %v3463
      %v3970 = vunpack.c.l.b16 %v3477
      %v3971 = vunpack.c.l.b16 %v3491
      %v3972 = vunpack.c.l.b16 %v3505
      %v3973 = vunpack.c.l.b16 %v3519
      %v3974 = vunpack.c.l.b16 %v3533
      %v3975 = vunpack.c.l.b16 %v3547
      %v3976 = vunpack.c.l.b16 %v3561
      %v3977 = vunpack.c.l.b16 %v3575
      %v3978 = vunpack.c.l.b16 %v3589
      %v3979 = vunpack.c.l.b16 %v3603
      %v3980 = vunpack.c.l.b16 %v3617
      %v3981 = vunpack.c.l.b16 %v3631
      %v3982 = vunpack.c.l.b16 %v3645
      %v3983 = vunpack.c.l.b16 %v3659
      %v3984 = vunpack.c.l.b16 %v3673
      %v3985 = vunpack.c.l.b16 %v3687
      %v3986 = vunpack.c.l.b16 %v3701
      %v3987 = vunpack.c.l.b16 %v3715
      %v3988 = vunpack.c.l.b16 %v3729
      %v3989 = vunpack.c.l.b16 %v3743
      %v3990 = vunpack.c.l.b16 %v3757
      %v3991 = vunpack.c.l.b16 %v3771
      %v3992 = vunpack.c.l.b16 %v3785
      %v3993 = vunpack.c.l.b16 %v3799
      %v3994 = vunpack.c.l.b16 %v3813
      %v3995 = vunpack.c.l.b16 %v3827
      %v3996 = vunpack.c.l.b16 %v3841
      %v3997 = vunpack.c.l.b16 %v3855
      %v3998 = vunpack.c.l.b16 %v3869
      %v3999 = vunpack.c.l.b16 %v3883
      %v4000 = vunpack.c.l.b16 %v3897
      %v4001 = vunpack.c.l.b16 %v3911
      %v4002 = vunpack.c.l.b16 %v3925
      %v4003 = vunpack.c.l.b16 %v3939
      %v4004 = vrot.slane %v3941, 7
      %v4005 = vsel %vm1816, %v4004, %v3940
      %v4006 = vrot.slane %v3942, 6
      %v4007 = vsel %vm1819, %v4006, %v4005
      %v4008 = vrot.slane %v3943, 5
      %v4009 = vsel %vm1822, %v4008, %v4007
      %v4010 = vrot.slane %v3944, 4
      %v4011 = vsel %vm1825, %v4010, %v4009
      %v4012 = vrot.slane %v3945, 3
      %v4013 = vsel %vm1828, %v4012, %v4011
      %v4014 = vrot.slane %v3946, 2
      %v4015 = vsel %vm1831, %v4014, %v4013
      %v4016 = vrot.slane %v3947, 1
      %v4017 = vsel %vm1834, %v4016, %v4015
      %v4018 = vrot.slane %v3949, 7
      %v4019 = vsel %vm1816, %v4018, %v3948
      %v4020 = vrot.slane %v3950, 6
      %v4021 = vsel %vm1819, %v4020, %v4019
      %v4022 = vrot.slane %v3951, 5
      %v4023 = vsel %vm1822, %v4022, %v4021
      %v4024 = vrot.slane %v3952, 4
      %v4025 = vsel %vm1825, %v4024, %v4023
      %v4026 = vrot.slane %v3953, 3
      %v4027 = vsel %vm1828, %v4026, %v4025
      %v4028 = vrot.slane %v3954, 2
      %v4029 = vsel %vm1831, %v4028, %v4027
      %v4030 = vrot.slane %v3955, 1
      %v4031 = vsel %vm1834, %v4030, %v4029
      %v4032 = vrot.slane %v3957, 7
      %v4033 = vsel %vm1816, %v4032, %v3956
      %v4034 = vrot.slane %v3958, 6
      %v4035 = vsel %vm1819, %v4034, %v4033
      %v4036 = vrot.slane %v3959, 5
      %v4037 = vsel %vm1822, %v4036, %v4035
      %v4038 = vrot.slane %v3960, 4
      %v4039 = vsel %vm1825, %v4038, %v4037
      %v4040 = vrot.slane %v3961, 3
      %v4041 = vsel %vm1828, %v4040, %v4039
      %v4042 = vrot.slane %v3962, 2
      %v4043 = vsel %vm1831, %v4042, %v4041
      %v4044 = vrot.slane %v3963, 1
      %v4045 = vsel %vm1834, %v4044, %v4043
      %v4046 = vrot.slane %v3965, 7
      %v4047 = vsel %vm1816, %v4046, %v3964
      %v4048 = vrot.slane %v3966, 6
      %v4049 = vsel %vm1819, %v4048, %v4047
      %v4050 = vrot.slane %v3967, 5
      %v4051 = vsel %vm1822, %v4050, %v4049
      %v4052 = vrot.slane %v3968, 4
      %v4053 = vsel %vm1825, %v4052, %v4051
      %v4054 = vrot.slane %v3969, 3
      %v4055 = vsel %vm1828, %v4054, %v4053
      %v4056 = vrot.slane %v3970, 2
      %v4057 = vsel %vm1831, %v4056, %v4055
      %v4058 = vrot.slane %v3971, 1
      %v4059 = vsel %vm1834, %v4058, %v4057
      %v4060 = vrot.slane %v3973, 7
      %v4061 = vsel %vm1816, %v4060, %v3972
      %v4062 = vrot.slane %v3974, 6
      %v4063 = vsel %vm1819, %v4062, %v4061
      %v4064 = vrot.slane %v3975, 5
      %v4065 = vsel %vm1822, %v4064, %v4063
      %v4066 = vrot.slane %v3976, 4
      %v4067 = vsel %vm1825, %v4066, %v4065
      %v4068 = vrot.slane %v3977, 3
      %v4069 = vsel %vm1828, %v4068, %v4067
      %v4070 = vrot.slane %v3978, 2
      %v4071 = vsel %vm1831, %v4070, %v4069
      %v4072 = vrot.slane %v3979, 1
      %v4073 = vsel %vm1834, %v4072, %v4071
      %v4074 = vrot.slane %v3981, 7
      %v4075 = vsel %vm1816, %v4074, %v3980
      %v4076 = vrot.slane %v3982, 6
      %v4077 = vsel %vm1819, %v4076, %v4075
      %v4078 = vrot.slane %v3983, 5
      %v4079 = vsel %vm1822, %v4078, %v4077
      %v4080 = vrot.slane %v3984, 4
      %v4081 = vsel %vm1825, %v4080, %v4079
      %v4082 = vrot.slane %v3985, 3
      %v4083 = vsel %vm1828, %v4082, %v4081
      %v4084 = vrot.slane %v3986, 2
      %v4085 = vsel %vm1831, %v4084, %v4083
      %v4086 = vrot.slane %v3987, 1
      %v4087 = vsel %vm1834, %v4086, %v4085
      %v4088 = vrot.slane %v3989, 7
      %v4089 = vsel %vm1816, %v4088, %v3988
      %v4090 = vrot.slane %v3990, 6
      %v4091 = vsel %vm1819, %v4090, %v4089
      %v4092 = vrot.slane %v3991, 5
      %v4093 = vsel %vm1822, %v4092, %v4091
      %v4094 = vrot.slane %v3992, 4
      %v4095 = vsel %vm1825, %v4094, %v4093
      %v4096 = vrot.slane %v3993, 3
      %v4097 = vsel %vm1828, %v4096, %v4095
      %v4098 = vrot.slane %v3994, 2
      %v4099 = vsel %vm1831, %v4098, %v4097
      %v4100 = vrot.slane %v3995, 1
      %v4101 = vsel %vm1834, %v4100, %v4099
      %v4102 = vrot.slane %v3997, 7
      %v4103 = vsel %vm1816, %v4102, %v3996
      %v4104 = vrot.slane %v3998, 6
      %v4105 = vsel %vm1819, %v4104, %v4103
      %v4106 = vrot.slane %v3999, 5
      %v4107 = vsel %vm1822, %v4106, %v4105
      %v4108 = vrot.slane %v4000, 4
      %v4109 = vsel %vm1825, %v4108, %v4107
      %v4110 = vrot.slane %v4001, 3
      %v4111 = vsel %vm1828, %v4110, %v4109
      %v4112 = vrot.slane %v4002, 2
      %v4113 = vsel %vm1831, %v4112, %v4111
      %v4114 = vrot.slane %v4003, 1
      %v4115 = vsel %vm1834, %v4114, %v4113
      %v4116 = vpack.c.b16 %v4031, %v4017
      %v4117 = vpack.c.b16 %v4059, %v4045
      %v4118 = vpack.c.b16 %v4087, %v4073
      %v4119 = vpack.c.b16 %v4115, %v4101
      %v4121 = vsel %vm1938, %v4116, 0
      %v4124 = vsel %vm1938, %v4117, 0
      %v4127 = vsel %vm1938, %v4118, 0
      %v4130 = vsel %vm1938, %v4119, 0
      %v4133 = vand.u32 %v3043, %v1954
      %4135 = vmatprep.subr.bf16.mxu0 0
      %4136 = vmatpush1.bf16.msra.mxu0 %v4133
      %4137 = vmatprep.subr.bf16.mxu0 0
      %4138 = vmatpush1.bf16.msra.mxu0 0
      %4139 = vmatprep.subr.bf16.mxu0 0
      %4140 = vmatpush1.bf16.msra.mxu0 0
      %4141 = vmatprep.subr.bf16.mxu0 0
      %4142 = vmatpush1.bf16.msra.mxu0 0
      %4143 = vmatprep.subr.bf16.mxu0 0
      %4144 = vmatpush1.bf16.msra.mxu0 0
      %4145 = vmatprep.subr.bf16.mxu0 0
      %4146 = vmatpush1.bf16.msra.mxu0 0
      %4147 = vmatprep.subr.bf16.mxu0 0
      %4148 = vmatpush1.bf16.msra.mxu0 0
      %4149 = vmatprep.subr.bf16.mxu0 0
      %4150 = vmatpush1.bf16.msra.mxu0 0
      %4151 = vmatprep.subr.bf16.mxu0 0
      %4152 = vmatpush1.bf16.msra.mxu0 0
      %4153 = vmatprep.subr.bf16.mxu0 0
      %4154 = vmatpush1.bf16.msra.mxu0 0
      %4155 = vmatprep.subr.bf16.mxu0 0
      %4156 = vmatpush1.bf16.msra.mxu0 0
      %4157 = vmatprep.subr.bf16.mxu0 0
      %4158 = vmatpush1.bf16.msra.mxu0 0
      %4159 = vmatprep.subr.bf16.mxu0 0
      %4160 = vmatpush1.bf16.msra.mxu0 0
      %4161 = vmatprep.subr.bf16.mxu0 0
      %4162 = vmatpush1.bf16.msra.mxu0 0
      %4163 = vmatprep.subr.bf16.mxu0 0
      %4164 = vmatpush1.bf16.msra.mxu0 0
      %4165 = vmatprep.subr.bf16.mxu0 0
      %4166 = vmatpush1.bf16.msra.mxu0 0
      %4167 = vmatprep.mubr.bf16.mxu0 0
      %4168 = vmatmul.mubr.bf16.gmra.mrb[0].mxu0 %v4121
      %v4169 = vpop.f32.mrb[0].mxu0
      %v4170 = vadd.f32 0.0, %v4169
      %v4171 = vpop.f32.mrb[0].mxu0
      %v4172 = vpop.f32.mrb[0].mxu0
      %v4173 = vadd.f32 0.0, %v4172
      %v4174 = vpop.f32.mrb[0].mxu0
      %4175 = vmatprep.mubr.bf16.mxu0 0
      %4176 = vmatmul.mubr.bf16.gmra.mrb[0].mxu0 %v4124
      %v4177 = vpop.f32.mrb[0].mxu0
      %v4178 = vadd.f32 0.0, %v4177
      %v4179 = vpop.f32.mrb[0].mxu0
      %v4180 = vpop.f32.mrb[0].mxu0
      %v4181 = vadd.f32 0.0, %v4180
      %v4182 = vpop.f32.mrb[0].mxu0
      %4183 = vmatprep.mubr.bf16.mxu0 0
      %4184 = vmatmul.mubr.bf16.gmra.mrb[0].mxu0 %v4127
      %v4185 = vpop.f32.mrb[0].mxu0
      %v4186 = vadd.f32 0.0, %v4185
      %v4187 = vpop.f32.mrb[0].mxu0
      %v4188 = vpop.f32.mrb[0].mxu0
      %v4189 = vadd.f32 0.0, %v4188
      %v4190 = vpop.f32.mrb[0].mxu0
      %4191 = vmatprep.mubr.bf16.mxu0 0
      %4192 = vmatmul.mubr.bf16.gmra.mrb[0].mxu0 %v4130
      %v4193 = vpop.f32.mrb[0].mxu0
      %v4194 = vadd.f32 0.0, %v4193
      %v4195 = vpop.f32.mrb[0].mxu0
      %v4196 = vpop.f32.mrb[0].mxu0
      %v4197 = vadd.f32 0.0, %v4196
      %v4198 = vpop.f32.mrb[0].mxu0
      %4199 = vdwg.mxu0
      %v4200 = vadd.f32 %v2489, %v4170
      %v4201 = vadd.f32 %v2490, %v4173
      %v4202 = vadd.f32 %v2491, %v4178
      %v4203 = vadd.f32 %v2492, %v4181
      %v4204 = vadd.f32 %v2493, %v4186
      %v4205 = vadd.f32 %v2494, %v4189
      %v4206 = vadd.f32 %v2495, %v4194
      %v4207 = vadd.f32 %v2496, %v4197
      %s4208 = scalar_lea.vmem %s1, 8
      %v4209 = vld [vmem:[%s4208] sm:$0x3]
      %v4210 = vrot.slane %v3940, 1
      %v4211 = vsel %vm1816, %v3941, %v4210
      %v4212 = vrot.slane %v3942, 7
      %v4213 = vsel %vm1819, %v4212, %v4211
      %v4214 = vrot.slane %v3943, 6
      %v4215 = vsel %vm1822, %v4214, %v4213
      %v4216 = vrot.slane %v3944, 5
      %v4217 = vsel %vm1825, %v4216, %v4215
      %v4218 = vrot.slane %v3945, 4
      %v4219 = vsel %vm1828, %v4218, %v4217
      %v4220 = vrot.slane %v3946, 3
      %v4221 = vsel %vm1831, %v4220, %v4219
      %v4222 = vrot.slane %v3947, 2
      %v4223 = vsel %vm1834, %v4222, %v4221
      %v4224 = vrot.slane %v3948, 1
      %v4225 = vsel %vm1816, %v3949, %v4224
      %v4226 = vrot.slane %v3950, 7
      %v4227 = vsel %vm1819, %v4226, %v4225
      %v4228 = vrot.slane %v3951, 6
      %v4229 = vsel %vm1822, %v4228, %v4227
      %v4230 = vrot.slane %v3952, 5
      %v4231 = vsel %vm1825, %v4230, %v4229
      %v4232 = vrot.slane %v3953, 4
      %v4233 = vsel %vm1828, %v4232, %v4231
      %v4234 = vrot.slane %v3954, 3
      %v4235 = vsel %vm1831, %v4234, %v4233
      %v4236 = vrot.slane %v3955, 2
      %v4237 = vsel %vm1834, %v4236, %v4235
      %v4238 = vrot.slane %v3956, 1
      %v4239 = vsel %vm1816, %v3957, %v4238
      %v4240 = vrot.slane %v3958, 7
      %v4241 = vsel %vm1819, %v4240, %v4239
      %v4242 = vrot.slane %v3959, 6
      %v4243 = vsel %vm1822, %v4242, %v4241
      %v4244 = vrot.slane %v3960, 5
      %v4245 = vsel %vm1825, %v4244, %v4243
      %v4246 = vrot.slane %v3961, 4
      %v4247 = vsel %vm1828, %v4246, %v4245
      %v4248 = vrot.slane %v3962, 3
      %v4249 = vsel %vm1831, %v4248, %v4247
      %v4250 = vrot.slane %v3963, 2
      %v4251 = vsel %vm1834, %v4250, %v4249
      %v4252 = vrot.slane %v3964, 1
      %v4253 = vsel %vm1816, %v3965, %v4252
      %v4254 = vrot.slane %v3966, 7
      %v4255 = vsel %vm1819, %v4254, %v4253
      %v4256 = vrot.slane %v3967, 6
      %v4257 = vsel %vm1822, %v4256, %v4255
      %v4258 = vrot.slane %v3968, 5
      %v4259 = vsel %vm1825, %v4258, %v4257
      %v4260 = vrot.slane %v3969, 4
      %v4261 = vsel %vm1828, %v4260, %v4259
      %v4262 = vrot.slane %v3970, 3
      %v4263 = vsel %vm1831, %v4262, %v4261
      %v4264 = vrot.slane %v3971, 2
      %v4265 = vsel %vm1834, %v4264, %v4263
      %v4266 = vrot.slane %v3972, 1
      %v4267 = vsel %vm1816, %v3973, %v4266
      %v4268 = vrot.slane %v3974, 7
      %v4269 = vsel %vm1819, %v4268, %v4267
      %v4270 = vrot.slane %v3975, 6
      %v4271 = vsel %vm1822, %v4270, %v4269
      %v4272 = vrot.slane %v3976, 5
      %v4273 = vsel %vm1825, %v4272, %v4271
      %v4274 = vrot.slane %v3977, 4
      %v4275 = vsel %vm1828, %v4274, %v4273
      %v4276 = vrot.slane %v3978, 3
      %v4277 = vsel %vm1831, %v4276, %v4275
      %v4278 = vrot.slane %v3979, 2
      %v4279 = vsel %vm1834, %v4278, %v4277
      %v4280 = vrot.slane %v3980, 1
      %v4281 = vsel %vm1816, %v3981, %v4280
      %v4282 = vrot.slane %v3982, 7
      %v4283 = vsel %vm1819, %v4282, %v4281
      %v4284 = vrot.slane %v3983, 6
      %v4285 = vsel %vm1822, %v4284, %v4283
      %v4286 = vrot.slane %v3984, 5
      %v4287 = vsel %vm1825, %v4286, %v4285
      %v4288 = vrot.slane %v3985, 4
      %v4289 = vsel %vm1828, %v4288, %v4287
      %v4290 = vrot.slane %v3986, 3
      %v4291 = vsel %vm1831, %v4290, %v4289
      %v4292 = vrot.slane %v3987, 2
      %v4293 = vsel %vm1834, %v4292, %v4291
      %v4294 = vrot.slane %v3988, 1
      %v4295 = vsel %vm1816, %v3989, %v4294
      %v4296 = vrot.slane %v3990, 7
      %v4297 = vsel %vm1819, %v4296, %v4295
      %v4298 = vrot.slane %v3991, 6
      %v4299 = vsel %vm1822, %v4298, %v4297
      %v4300 = vrot.slane %v3992, 5
      %v4301 = vsel %vm1825, %v4300, %v4299
      %v4302 = vrot.slane %v3993, 4
      %v4303 = vsel %vm1828, %v4302, %v4301
      %v4304 = vrot.slane %v3994, 3
      %v4305 = vsel %vm1831, %v4304, %v4303
      %v4306 = vrot.slane %v3995, 2
      %v4307 = vsel %vm1834, %v4306, %v4305
      %v4308 = vrot.slane %v3996, 1
      %v4309 = vsel %vm1816, %v3997, %v4308
      %v4310 = vrot.slane %v3998, 7
      %v4311 = vsel %vm1819, %v4310, %v4309
      %v4312 = vrot.slane %v3999, 6
      %v4313 = vsel %vm1822, %v4312, %v4311
      %v4314 = vrot.slane %v4000, 5
      %v4315 = vsel %vm1825, %v4314, %v4313
      %v4316 = vrot.slane %v4001, 4
      %v4317 = vsel %vm1828, %v4316, %v4315
      %v4318 = vrot.slane %v4002, 3
      %v4319 = vsel %vm1831, %v4318, %v4317
      %v4320 = vrot.slane %v4003, 2
      %v4321 = vsel %vm1834, %v4320, %v4319
      %v4322 = vpack.c.b16 %v4237, %v4223
      %v4323 = vpack.c.b16 %v4265, %v4251
      %v4324 = vpack.c.b16 %v4293, %v4279
      %v4325 = vpack.c.b16 %v4321, %v4307
      %v4327 = vsel %vm1938, %v4322, 0
      %v4330 = vsel %vm1938, %v4323, 0
      %v4333 = vsel %vm1938, %v4324, 0
      %v4336 = vsel %vm1938, %v4325, 0
      %v4339 = vand.u32 %v4209, %v1954
      %4341 = vmatprep.subr.bf16.mxu0 0
      %4342 = vmatpush1.bf16.msra.mxu0 %v4339
      %4343 = vmatprep.subr.bf16.mxu0 0
      %4344 = vmatpush1.bf16.msra.mxu0 0
      %4345 = vmatprep.subr.bf16.mxu0 0
      %4346 = vmatpush1.bf16.msra.mxu0 0
      %4347 = vmatprep.subr.bf16.mxu0 0
      %4348 = vmatpush1.bf16.msra.mxu0 0
      %4349 = vmatprep.subr.bf16.mxu0 0
      %4350 = vmatpush1.bf16.msra.mxu0 0
      %4351 = vmatprep.subr.bf16.mxu0 0
      %4352 = vmatpush1.bf16.msra.mxu0 0
      %4353 = vmatprep.subr.bf16.mxu0 0
      %4354 = vmatpush1.bf16.msra.mxu0 0
      %4355 = vmatprep.subr.bf16.mxu0 0
      %4356 = vmatpush1.bf16.msra.mxu0 0
      %4357 = vmatprep.subr.bf16.mxu0 0
      %4358 = vmatpush1.bf16.msra.mxu0 0
      %4359 = vmatprep.subr.bf16.mxu0 0
      %4360 = vmatpush1.bf16.msra.mxu0 0
      %4361 = vmatprep.subr.bf16.mxu0 0
      %4362 = vmatpush1.bf16.msra.mxu0 0
      %4363 = vmatprep.subr.bf16.mxu0 0
      %4364 = vmatpush1.bf16.msra.mxu0 0
      %4365 = vmatprep.subr.bf16.mxu0 0
      %4366 = vmatpush1.bf16.msra.mxu0 0
      %4367 = vmatprep.subr.bf16.mxu0 0
      %4368 = vmatpush1.bf16.msra.mxu0 0
      %4369 = vmatprep.subr.bf16.mxu0 0
      %4370 = vmatpush1.bf16.msra.mxu0 0
      %4371 = vmatprep.subr.bf16.mxu0 0
      %4372 = vmatpush1.bf16.msra.mxu0 0
      %4373 = vmatprep.mubr.bf16.mxu0 0
      %4374 = vmatmul.mubr.bf16.gmra.mrb[0].mxu0 %v4327
      %v4375 = vpop.f32.mrb[0].mxu0
      %v4376 = vadd.f32 0.0, %v4375
      %v4377 = vpop.f32.mrb[0].mxu0
      %v4378 = vpop.f32.mrb[0].mxu0
      %v4379 = vadd.f32 0.0, %v4378
      %v4380 = vpop.f32.mrb[0].mxu0
      %4381 = vmatprep.mubr.bf16.mxu0 0
      %4382 = vmatmul.mubr.bf16.gmra.mrb[0].mxu0 %v4330
      %v4383 = vpop.f32.mrb[0].mxu0
      %v4384 = vadd.f32 0.0, %v4383
      %v4385 = vpop.f32.mrb[0].mxu0
      %v4386 = vpop.f32.mrb[0].mxu0
      %v4387 = vadd.f32 0.0, %v4386
      %v4388 = vpop.f32.mrb[0].mxu0
      %4389 = vmatprep.mubr.bf16.mxu0 0
      %4390 = vmatmul.mubr.bf16.gmra.mrb[0].mxu0 %v4333
      %v4391 = vpop.f32.mrb[0].mxu0
      %v4392 = vadd.f32 0.0, %v4391
      %v4393 = vpop.f32.mrb[0].mxu0
      %v4394 = vpop.f32.mrb[0].mxu0
      %v4395 = vadd.f32 0.0, %v4394
      %v4396 = vpop.f32.mrb[0].mxu0
      %4397 = vmatprep.mubr.bf16.mxu0 0
      %4398 = vmatmul.mubr.bf16.gmra.mrb[0].mxu0 %v4336
      %v4399 = vpop.f32.mrb[0].mxu0
      %v4400 = vadd.f32 0.0, %v4399
      %v4401 = vpop.f32.mrb[0].mxu0
      %v4402 = vpop.f32.mrb[0].mxu0
      %v4403 = vadd.f32 0.0, %v4402
      %v4404 = vpop.f32.mrb[0].mxu0
      %4405 = vdwg.mxu0
      %v4406 = vadd.f32 %v4200, %v4376
      %v4407 = vadd.f32 %v4201, %v4379
      %v4408 = vadd.f32 %v4202, %v4384
      %v4409 = vadd.f32 %v4203, %v4387
      %v4410 = vadd.f32 %v4204, %v4392
      %v4411 = vadd.f32 %v4205, %v4395
      %v4412 = vadd.f32 %v4206, %v4400
      %v4413 = vadd.f32 %v4207, %v4403
      %s4414 = scalar_lea.vmem %s1, 10
      %v4415 = vld [vmem:[%s4414] sm:$0x3]
      %v4417 = vunpack.c.l.s4 1966171168
      %v4418 = vunpack.c.0.s8 %v4417
      %v4419 = vlaneseq
      %v4420 = vshrl.u32 %v4419, 7
      %v4421 = vsub.s32 %v4418, %v4420
      %v4422 = vrot.slane %v2607, %v4421
      %v4424 = vunpack.c.l.s4 1966171168
      %v4425 = vunpack.c.0.s8 %v4424
      %v4426 = vlaneseq
      %v4427 = vshrl.u32 %v4426, 7
      %v4428 = vsub.s32 %v4425, %v4427
      %v4429 = vrot.slane %v4422, %v4428
      %v4431 = vunpack.c.l.s4 1966171168
      %v4432 = vunpack.c.0.s8 %v4431
      %v4433 = vlaneseq
      %v4434 = vshrl.u32 %v4433, 7
      %v4435 = vsub.s32 %v4432, %v4434
      %v4436 = vrot.slane %v2669, %v4435
      %v4438 = vunpack.c.l.s4 1966171168
      %v4439 = vunpack.c.0.s8 %v4438
      %v4440 = vlaneseq
      %v4441 = vshrl.u32 %v4440, 7
      %v4442 = vsub.s32 %v4439, %v4441
      %v4443 = vrot.slane %v4436, %v4442
      %v4445 = vunpack.c.l.s4 1966171168
      %v4446 = vunpack.c.0.s8 %v4445
      %v4447 = vlaneseq
      %v4448 = vshrl.u32 %v4447, 7
      %v4449 = vsub.s32 %v4446, %v4448
      %v4450 = vrot.slane %v2731, %v4449
      %v4452 = vunpack.c.l.s4 1966171168
      %v4453 = vunpack.c.0.s8 %v4452
      %v4454 = vlaneseq
      %v4455 = vshrl.u32 %v4454, 7
      %v4456 = vsub.s32 %v4453, %v4455
      %v4457 = vrot.slane %v4450, %v4456
      %v4459 = vunpack.c.l.s4 1966171168
      %v4460 = vunpack.c.0.s8 %v4459
      %v4461 = vlaneseq
      %v4462 = vshrl.u32 %v4461, 7
      %v4463 = vsub.s32 %v4460, %v4462
      %v4464 = vrot.slane %v2793, %v4463
      %v4466 = vunpack.c.l.s4 1966171168
      %v4467 = vunpack.c.0.s8 %v4466
      %v4468 = vlaneseq
      %v4469 = vshrl.u32 %v4468, 7
      %v4470 = vsub.s32 %v4467, %v4469
      %v4471 = vrot.slane %v4464, %v4470
      %v4473 = vunpack.c.l.s4 1966171168
      %v4474 = vunpack.c.0.s8 %v4473
      %v4475 = vlaneseq
      %v4476 = vshrl.u32 %v4475, 7
      %v4477 = vsub.s32 %v4474, %v4476
      %v4478 = vrot.slane %v2855, %v4477
      %v4480 = vunpack.c.l.s4 1966171168
      %v4481 = vunpack.c.0.s8 %v4480
      %v4482 = vlaneseq
      %v4483 = vshrl.u32 %v4482, 7
      %v4484 = vsub.s32 %v4481, %v4483
      %v4485 = vrot.slane %v4478, %v4484
      %v4487 = vunpack.c.l.s4 1966171168
      %v4488 = vunpack.c.0.s8 %v4487
      %v4489 = vlaneseq
      %v4490 = vshrl.u32 %v4489, 7
      %v4491 = vsub.s32 %v4488, %v4490
      %v4492 = vrot.slane %v2917, %v4491
      %v4494 = vunpack.c.l.s4 1966171168
      %v4495 = vunpack.c.0.s8 %v4494
      %v4496 = vlaneseq
      %v4497 = vshrl.u32 %v4496, 7
      %v4498 = vsub.s32 %v4495, %v4497
      %v4499 = vrot.slane %v4492, %v4498
      %v4501 = vunpack.c.l.s4 1966171168
      %v4502 = vunpack.c.0.s8 %v4501
      %v4503 = vlaneseq
      %v4504 = vshrl.u32 %v4503, 7
      %v4505 = vsub.s32 %v4502, %v4504
      %v4506 = vrot.slane %v2979, %v4505
      %v4508 = vunpack.c.l.s4 1966171168
      %v4509 = vunpack.c.0.s8 %v4508
      %v4510 = vlaneseq
      %v4511 = vshrl.u32 %v4510, 7
      %v4512 = vsub.s32 %v4509, %v4511
      %v4513 = vrot.slane %v4506, %v4512
      %v4515 = vunpack.c.l.s4 1966171168
      %v4516 = vunpack.c.0.s8 %v4515
      %v4517 = vlaneseq
      %v4518 = vshrl.u32 %v4517, 7
      %v4519 = vsub.s32 %v4516, %v4518
      %v4520 = vrot.slane %v3041, %v4519
      %v4522 = vunpack.c.l.s4 1966171168
      %v4523 = vunpack.c.0.s8 %v4522
      %v4524 = vlaneseq
      %v4525 = vshrl.u32 %v4524, 7
      %v4526 = vsub.s32 %v4523, %v4525
      %v4527 = vrot.slane %v4520, %v4526
      %v4528 = vunpack.c.l.b16 %v4429
      %v4529 = vunpack.c.l.b16 %v4443
      %v4530 = vunpack.c.l.b16 %v4457
      %v4531 = vunpack.c.l.b16 %v4471
      %v4532 = vunpack.c.l.b16 %v4485
      %v4533 = vunpack.c.l.b16 %v4499
      %v4534 = vunpack.c.l.b16 %v4513
      %v4535 = vunpack.c.l.b16 %v4527
      %v4536 = vsel %vm1816, %v4212, %v3941
      %v4537 = vsel %vm1819, %v4214, %v4536
      %v4538 = vsel %vm1822, %v4216, %v4537
      %v4539 = vsel %vm1825, %v4218, %v4538
      %v4540 = vsel %vm1828, %v4220, %v4539
      %v4541 = vsel %vm1831, %v4222, %v4540
      %v4542 = vrot.slane %v4528, 1
      %v4543 = vsel %vm1834, %v4542, %v4541
      %v4544 = vsel %vm1816, %v4226, %v3949
      %v4545 = vsel %vm1819, %v4228, %v4544
      %v4546 = vsel %vm1822, %v4230, %v4545
      %v4547 = vsel %vm1825, %v4232, %v4546
      %v4548 = vsel %vm1828, %v4234, %v4547
      %v4549 = vsel %vm1831, %v4236, %v4548
      %v4550 = vrot.slane %v4529, 1
      %v4551 = vsel %vm1834, %v4550, %v4549
      %v4552 = vsel %vm1816, %v4240, %v3957
      %v4553 = vsel %vm1819, %v4242, %v4552
      %v4554 = vsel %vm1822, %v4244, %v4553
      %v4555 = vsel %vm1825, %v4246, %v4554
      %v4556 = vsel %vm1828, %v4248, %v4555
      %v4557 = vsel %vm1831, %v4250, %v4556
      %v4558 = vrot.slane %v4530, 1
      %v4559 = vsel %vm1834, %v4558, %v4557
      %v4560 = vsel %vm1816, %v4254, %v3965
      %v4561 = vsel %vm1819, %v4256, %v4560
      %v4562 = vsel %vm1822, %v4258, %v4561
      %v4563 = vsel %vm1825, %v4260, %v4562
      %v4564 = vsel %vm1828, %v4262, %v4563
      %v4565 = vsel %vm1831, %v4264, %v4564
      %v4566 = vrot.slane %v4531, 1
      %v4567 = vsel %vm1834, %v4566, %v4565
      %v4568 = vsel %vm1816, %v4268, %v3973
      %v4569 = vsel %vm1819, %v4270, %v4568
      %v4570 = vsel %vm1822, %v4272, %v4569
      %v4571 = vsel %vm1825, %v4274, %v4570
      %v4572 = vsel %vm1828, %v4276, %v4571
      %v4573 = vsel %vm1831, %v4278, %v4572
      %v4574 = vrot.slane %v4532, 1
      %v4575 = vsel %vm1834, %v4574, %v4573
      %v4576 = vsel %vm1816, %v4282, %v3981
      %v4577 = vsel %vm1819, %v4284, %v4576
      %v4578 = vsel %vm1822, %v4286, %v4577
      %v4579 = vsel %vm1825, %v4288, %v4578
      %v4580 = vsel %vm1828, %v4290, %v4579
      %v4581 = vsel %vm1831, %v4292, %v4580
      %v4582 = vrot.slane %v4533, 1
      %v4583 = vsel %vm1834, %v4582, %v4581
      %v4584 = vsel %vm1816, %v4296, %v3989
      %v4585 = vsel %vm1819, %v4298, %v4584
      %v4586 = vsel %vm1822, %v4300, %v4585
      %v4587 = vsel %vm1825, %v4302, %v4586
      %v4588 = vsel %vm1828, %v4304, %v4587
      %v4589 = vsel %vm1831, %v4306, %v4588
      %v4590 = vrot.slane %v4534, 1
      %v4591 = vsel %vm1834, %v4590, %v4589
      %v4592 = vsel %vm1816, %v4310, %v3997
      %v4593 = vsel %vm1819, %v4312, %v4592
      %v4594 = vsel %vm1822, %v4314, %v4593
      %v4595 = vsel %vm1825, %v4316, %v4594
      %v4596 = vsel %vm1828, %v4318, %v4595
      %v4597 = vsel %vm1831, %v4320, %v4596
      %v4598 = vrot.slane %v4535, 1
      %v4599 = vsel %vm1834, %v4598, %v4597
      %v4600 = vpack.c.b16 %v4551, %v4543
      %v4601 = vpack.c.b16 %v4567, %v4559
      %v4602 = vpack.c.b16 %v4583, %v4575
      %v4603 = vpack.c.b16 %v4599, %v4591
      %v4605 = vsel %vm1938, %v4600, 0
      %v4608 = vsel %vm1938, %v4601, 0
      %v4611 = vsel %vm1938, %v4602, 0
      %v4614 = vsel %vm1938, %v4603, 0
      %v4617 = vand.u32 %v4415, %v1954
      %4619 = vmatprep.subr.bf16.mxu0 0
      %4620 = vmatpush1.bf16.msra.mxu0 %v4617
      %4621 = vmatprep.subr.bf16.mxu0 0
      %4622 = vmatpush1.bf16.msra.mxu0 0
      %4623 = vmatprep.subr.bf16.mxu0 0
      %4624 = vmatpush1.bf16.msra.mxu0 0
      %4625 = vmatprep.subr.bf16.mxu0 0
      %4626 = vmatpush1.bf16.msra.mxu0 0
      %4627 = vmatprep.subr.bf16.mxu0 0
      %4628 = vmatpush1.bf16.msra.mxu0 0
      %4629 = vmatprep.subr.bf16.mxu0 0
      %4630 = vmatpush1.bf16.msra.mxu0 0
      %4631 = vmatprep.subr.bf16.mxu0 0
      %4632 = vmatpush1.bf16.msra.mxu0 0
      %4633 = vmatprep.subr.bf16.mxu0 0
      %4634 = vmatpush1.bf16.msra.mxu0 0
      %4635 = vmatprep.subr.bf16.mxu0 0
      %4636 = vmatpush1.bf16.msra.mxu0 0
      %4637 = vmatprep.subr.bf16.mxu0 0
      %4638 = vmatpush1.bf16.msra.mxu0 0
      %4639 = vmatprep.subr.bf16.mxu0 0
      %4640 = vmatpush1.bf16.msra.mxu0 0
      %4641 = vmatprep.subr.bf16.mxu0 0
      %4642 = vmatpush1.bf16.msra.mxu0 0
      %4643 = vmatprep.subr.bf16.mxu0 0
      %4644 = vmatpush1.bf16.msra.mxu0 0
      %4645 = vmatprep.subr.bf16.mxu0 0
      %4646 = vmatpush1.bf16.msra.mxu0 0
      %4647 = vmatprep.subr.bf16.mxu0 0
      %4648 = vmatpush1.bf16.msra.mxu0 0
      %4649 = vmatprep.subr.bf16.mxu0 0
      %4650 = vmatpush1.bf16.msra.mxu0 0
      %4651 = vmatprep.mubr.bf16.mxu0 0
      %4652 = vmatmul.mubr.bf16.gmra.mrb[0].mxu0 %v4605
      %v4653 = vpop.f32.mrb[0].mxu0
      %v4654 = vadd.f32 0.0, %v4653
      %v4655 = vpop.f32.mrb[0].mxu0
      %v4656 = vpop.f32.mrb[0].mxu0
      %v4657 = vadd.f32 0.0, %v4656
      %v4658 = vpop.f32.mrb[0].mxu0
      %4659 = vmatprep.mubr.bf16.mxu0 0
      %4660 = vmatmul.mubr.bf16.gmra.mrb[0].mxu0 %v4608
      %v4661 = vpop.f32.mrb[0].mxu0
      %v4662 = vadd.f32 0.0, %v4661
      %v4663 = vpop.f32.mrb[0].mxu0
      %v4664 = vpop.f32.mrb[0].mxu0
      %v4665 = vadd.f32 0.0, %v4664
      %v4666 = vpop.f32.mrb[0].mxu0
      %4667 = vmatprep.mubr.bf16.mxu0 0
      %4668 = vmatmul.mubr.bf16.gmra.mrb[0].mxu0 %v4611
      %v4669 = vpop.f32.mrb[0].mxu0
      %v4670 = vadd.f32 0.0, %v4669
      %v4671 = vpop.f32.mrb[0].mxu0
      %v4672 = vpop.f32.mrb[0].mxu0
      %v4673 = vadd.f32 0.0, %v4672
      %v4674 = vpop.f32.mrb[0].mxu0
      %4675 = vmatprep.mubr.bf16.mxu0 0
      %4676 = vmatmul.mubr.bf16.gmra.mrb[0].mxu0 %v4614
      %v4677 = vpop.f32.mrb[0].mxu0
      %v4678 = vadd.f32 0.0, %v4677
      %v4679 = vpop.f32.mrb[0].mxu0
      %v4680 = vpop.f32.mrb[0].mxu0
      %v4681 = vadd.f32 0.0, %v4680
      %v4682 = vpop.f32.mrb[0].mxu0
      %4683 = vdwg.mxu0
      %v4684 = vadd.f32 %v4406, %v4654
      %v4685 = vadd.f32 %v4407, %v4657
      %v4686 = vadd.f32 %v4408, %v4662
      %v4687 = vadd.f32 %v4409, %v4665
      %v4688 = vadd.f32 %v4410, %v4670
      %v4689 = vadd.f32 %v4411, %v4673
      %v4690 = vadd.f32 %v4412, %v4678
      %v4691 = vadd.f32 %v4413, %v4681
      %s4692 = scalar_lea.vmem %s273, 24
      %v4693 = vld [vmem:[%s4692] sm:$0xf]
      %v4694 = vld [vmem:[%s4692 + $0x4] sm:$0xf]
      %v4695 = vld [vmem:[%s4692 + $0x8] sm:$0x1]
      %v4696 = vld [vmem:[%s4692 + $0x18] sm:$0xf]
      %v4697 = vld [vmem:[%s4692 + $0x1c] sm:$0xf]
      %v4698 = vld [vmem:[%s4692 + $0x20] sm:$0x1]
      %v4699 = vld [vmem:[%s4692 + $0x30] sm:$0xf]
      %v4700 = vld [vmem:[%s4692 + $0x34] sm:$0xf]
      %v4701 = vld [vmem:[%s4692 + $0x38] sm:$0x1]
      %v4702 = vld [vmem:[%s4692 + $0x48] sm:$0xf]
      %v4703 = vld [vmem:[%s4692 + $0x4c] sm:$0xf]
      %v4704 = vld [vmem:[%s4692 + $0x50] sm:$0x1]
      %v4705 = vld [vmem:[%s4692 + $0x60] sm:$0xf]
      %v4706 = vld [vmem:[%s4692 + $0x64] sm:$0xf]
      %v4707 = vld [vmem:[%s4692 + $0x68] sm:$0x1]
      %v4708 = vld [vmem:[%s4692 + $0x78] sm:$0xf]
      %v4709 = vld [vmem:[%s4692 + $0x7c] sm:$0xf]
      %v4710 = vld [vmem:[%s4692 + $0x80] sm:$0x1]
      %v4711 = vld [vmem:[%s4692 + $0x90] sm:$0xf]
      %v4712 = vld [vmem:[%s4692 + $0x94] sm:$0xf]
      %v4713 = vld [vmem:[%s4692 + $0x98] sm:$0x1]
      %v4714 = vld [vmem:[%s4692 + $0xa8] sm:$0xf]
      %v4715 = vld [vmem:[%s4692 + $0xac] sm:$0xf]
      %v4716 = vld [vmem:[%s4692 + $0xb0] sm:$0x1]
      %v4742 = vunpack.c.l.s4 1966171168
      %v4743 = vunpack.c.0.s8 %v4742
      %v4744 = vlaneseq
      %v4745 = vshrl.u32 %v4744, 7
      %v4746 = vsub.s32 %v4743, %v4745
      %v4747 = vrot.slane %v4693, %v4746
      %v4748 = vcombine.high %v4747, %v4747
      %v4750 = vunpack.c.l.s4 1966171168
      %v4751 = vunpack.c.0.s8 %v4750
      %v4752 = vlaneseq
      %v4753 = vshrl.u32 %v4752, 7
      %v4754 = vsub.s32 %v4751, %v4753
      %v4755 = vrot.slane %v4747, %v4754
      %v4757 = vunpack.c.l.s4 1966171168
      %v4758 = vunpack.c.0.s8 %v4757
      %v4759 = vlaneseq
      %v4760 = vshrl.u32 %v4759, 7
      %v4761 = vsub.s32 %v4758, %v4760
      %v4762 = vrot.slane %v4748, %v4761
      %v4763 = vcombine.high %v4755, %v4755
      %v4764 = vcombine.high %v4762, %v4762
      %v4766 = vunpack.c.l.s4 1966171168
      %v4767 = vunpack.c.0.s8 %v4766
      %v4768 = vlaneseq
      %v4769 = vshrl.u32 %v4768, 7
      %v4770 = vsub.s32 %v4767, %v4769
      %v4771 = vrot.slane %v4694, %v4770
      %v4772 = vcombine.high %v4771, %v4771
      %v4774 = vunpack.c.l.s4 1966171168
      %v4775 = vunpack.c.0.s8 %v4774
      %v4776 = vlaneseq
      %v4777 = vshrl.u32 %v4776, 7
      %v4778 = vsub.s32 %v4775, %v4777
      %v4779 = vrot.slane %v4771, %v4778
      %v4781 = vunpack.c.l.s4 1966171168
      %v4782 = vunpack.c.0.s8 %v4781
      %v4783 = vlaneseq
      %v4784 = vshrl.u32 %v4783, 7
      %v4785 = vsub.s32 %v4782, %v4784
      %v4786 = vrot.slane %v4772, %v4785
      %v4787 = vcombine.high %v4779, %v4779
      %v4788 = vcombine.high %v4786, %v4786
      %v4790 = vunpack.c.l.s4 1966171168
      %v4791 = vunpack.c.0.s8 %v4790
      %v4792 = vlaneseq
      %v4793 = vshrl.u32 %v4792, 7
      %v4794 = vsub.s32 %v4791, %v4793
      %v4795 = vrot.slane %v4695, %v4794
      %v4797 = vunpack.c.l.s4 1966171168
      %v4798 = vunpack.c.0.s8 %v4797
      %v4799 = vlaneseq
      %v4800 = vshrl.u32 %v4799, 7
      %v4801 = vsub.s32 %v4798, %v4800
      %v4802 = vrot.slane %v4795, %v4801
      %v4804 = vunpack.c.l.s4 1966171168
      %v4805 = vunpack.c.0.s8 %v4804
      %v4806 = vlaneseq
      %v4807 = vshrl.u32 %v4806, 7
      %v4808 = vsub.s32 %v4805, %v4807
      %v4809 = vrot.slane %v4696, %v4808
      %v4810 = vcombine.high %v4809, %v4809
      %v4812 = vunpack.c.l.s4 1966171168
      %v4813 = vunpack.c.0.s8 %v4812
      %v4814 = vlaneseq
      %v4815 = vshrl.u32 %v4814, 7
      %v4816 = vsub.s32 %v4813, %v4815
      %v4817 = vrot.slane %v4809, %v4816
      %v4819 = vunpack.c.l.s4 1966171168
      %v4820 = vunpack.c.0.s8 %v4819
      %v4821 = vlaneseq
      %v4822 = vshrl.u32 %v4821, 7
      %v4823 = vsub.s32 %v4820, %v4822
      %v4824 = vrot.slane %v4810, %v4823
      %v4825 = vcombine.high %v4817, %v4817
      %v4826 = vcombine.high %v4824, %v4824
      %v4828 = vunpack.c.l.s4 1966171168
      %v4829 = vunpack.c.0.s8 %v4828
      %v4830 = vlaneseq
      %v4831 = vshrl.u32 %v4830, 7
      %v4832 = vsub.s32 %v4829, %v4831
      %v4833 = vrot.slane %v4697, %v4832
      %v4834 = vcombine.high %v4833, %v4833
      %v4836 = vunpack.c.l.s4 1966171168
      %v4837 = vunpack.c.0.s8 %v4836
      %v4838 = vlaneseq
      %v4839 = vshrl.u32 %v4838, 7
      %v4840 = vsub.s32 %v4837, %v4839
      %v4841 = vrot.slane %v4833, %v4840
      %v4843 = vunpack.c.l.s4 1966171168
      %v4844 = vunpack.c.0.s8 %v4843
      %v4845 = vlaneseq
      %v4846 = vshrl.u32 %v4845, 7
      %v4847 = vsub.s32 %v4844, %v4846
      %v4848 = vrot.slane %v4834, %v4847
      %v4849 = vcombine.high %v4841, %v4841
      %v4850 = vcombine.high %v4848, %v4848
      %v4852 = vunpack.c.l.s4 1966171168
      %v4853 = vunpack.c.0.s8 %v4852
      %v4854 = vlaneseq
      %v4855 = vshrl.u32 %v4854, 7
      %v4856 = vsub.s32 %v4853, %v4855
      %v4857 = vrot.slane %v4698, %v4856
      %v4859 = vunpack.c.l.s4 1966171168
      %v4860 = vunpack.c.0.s8 %v4859
      %v4861 = vlaneseq
      %v4862 = vshrl.u32 %v4861, 7
      %v4863 = vsub.s32 %v4860, %v4862
      %v4864 = vrot.slane %v4857, %v4863
      %v4866 = vunpack.c.l.s4 1966171168
      %v4867 = vunpack.c.0.s8 %v4866
      %v4868 = vlaneseq
      %v4869 = vshrl.u32 %v4868, 7
      %v4870 = vsub.s32 %v4867, %v4869
      %v4871 = vrot.slane %v4699, %v4870
      %v4872 = vcombine.high %v4871, %v4871
      %v4874 = vunpack.c.l.s4 1966171168
      %v4875 = vunpack.c.0.s8 %v4874
      %v4876 = vlaneseq
      %v4877 = vshrl.u32 %v4876, 7
      %v4878 = vsub.s32 %v4875, %v4877
      %v4879 = vrot.slane %v4871, %v4878
      %v4881 = vunpack.c.l.s4 1966171168
      %v4882 = vunpack.c.0.s8 %v4881
      %v4883 = vlaneseq
      %v4884 = vshrl.u32 %v4883, 7
      %v4885 = vsub.s32 %v4882, %v4884
      %v4886 = vrot.slane %v4872, %v4885
      %v4887 = vcombine.high %v4879, %v4879
      %v4888 = vcombine.high %v4886, %v4886
      %v4890 = vunpack.c.l.s4 1966171168
      %v4891 = vunpack.c.0.s8 %v4890
      %v4892 = vlaneseq
      %v4893 = vshrl.u32 %v4892, 7
      %v4894 = vsub.s32 %v4891, %v4893
      %v4895 = vrot.slane %v4700, %v4894
      %v4896 = vcombine.high %v4895, %v4895
      %v4898 = vunpack.c.l.s4 1966171168
      %v4899 = vunpack.c.0.s8 %v4898
      %v4900 = vlaneseq
      %v4901 = vshrl.u32 %v4900, 7
      %v4902 = vsub.s32 %v4899, %v4901
      %v4903 = vrot.slane %v4895, %v4902
      %v4905 = vunpack.c.l.s4 1966171168
      %v4906 = vunpack.c.0.s8 %v4905
      %v4907 = vlaneseq
      %v4908 = vshrl.u32 %v4907, 7
      %v4909 = vsub.s32 %v4906, %v4908
      %v4910 = vrot.slane %v4896, %v4909
      %v4911 = vcombine.high %v4903, %v4903
      %v4912 = vcombine.high %v4910, %v4910
      %v4914 = vunpack.c.l.s4 1966171168
      %v4915 = vunpack.c.0.s8 %v4914
      %v4916 = vlaneseq
      %v4917 = vshrl.u32 %v4916, 7
      %v4918 = vsub.s32 %v4915, %v4917
      %v4919 = vrot.slane %v4701, %v4918
      %v4921 = vunpack.c.l.s4 1966171168
      %v4922 = vunpack.c.0.s8 %v4921
      %v4923 = vlaneseq
      %v4924 = vshrl.u32 %v4923, 7
      %v4925 = vsub.s32 %v4922, %v4924
      %v4926 = vrot.slane %v4919, %v4925
      %v4928 = vunpack.c.l.s4 1966171168
      %v4929 = vunpack.c.0.s8 %v4928
      %v4930 = vlaneseq
      %v4931 = vshrl.u32 %v4930, 7
      %v4932 = vsub.s32 %v4929, %v4931
      %v4933 = vrot.slane %v4702, %v4932
      %v4934 = vcombine.high %v4933, %v4933
      %v4936 = vunpack.c.l.s4 1966171168
      %v4937 = vunpack.c.0.s8 %v4936
      %v4938 = vlaneseq
      %v4939 = vshrl.u32 %v4938, 7
      %v4940 = vsub.s32 %v4937, %v4939
      %v4941 = vrot.slane %v4933, %v4940
      %v4943 = vunpack.c.l.s4 1966171168
      %v4944 = vunpack.c.0.s8 %v4943
      %v4945 = vlaneseq
      %v4946 = vshrl.u32 %v4945, 7
      %v4947 = vsub.s32 %v4944, %v4946
      %v4948 = vrot.slane %v4934, %v4947
      %v4949 = vcombine.high %v4941, %v4941
      %v4950 = vcombine.high %v4948, %v4948
      %v4952 = vunpack.c.l.s4 1966171168
      %v4953 = vunpack.c.0.s8 %v4952
      %v4954 = vlaneseq
      %v4955 = vshrl.u32 %v4954, 7
      %v4956 = vsub.s32 %v4953, %v4955
      %v4957 = vrot.slane %v4703, %v4956
      %v4958 = vcombine.high %v4957, %v4957
      %v4960 = vunpack.c.l.s4 1966171168
      %v4961 = vunpack.c.0.s8 %v4960
      %v4962 = vlaneseq
      %v4963 = vshrl.u32 %v4962, 7
      %v4964 = vsub.s32 %v4961, %v4963
      %v4965 = vrot.slane %v4957, %v4964
      %v4967 = vunpack.c.l.s4 1966171168
      %v4968 = vunpack.c.0.s8 %v4967
      %v4969 = vlaneseq
      %v4970 = vshrl.u32 %v4969, 7
      %v4971 = vsub.s32 %v4968, %v4970
      %v4972 = vrot.slane %v4958, %v4971
      %v4973 = vcombine.high %v4965, %v4965
      %v4974 = vcombine.high %v4972, %v4972
      %v4976 = vunpack.c.l.s4 1966171168
      %v4977 = vunpack.c.0.s8 %v4976
      %v4978 = vlaneseq
      %v4979 = vshrl.u32 %v4978, 7
      %v4980 = vsub.s32 %v4977, %v4979
      %v4981 = vrot.slane %v4704, %v4980
      %v4983 = vunpack.c.l.s4 1966171168
      %v4984 = vunpack.c.0.s8 %v4983
      %v4985 = vlaneseq
      %v4986 = vshrl.u32 %v4985, 7
      %v4987 = vsub.s32 %v4984, %v4986
      %v4988 = vrot.slane %v4981, %v4987
      %v4990 = vunpack.c.l.s4 1966171168
      %v4991 = vunpack.c.0.s8 %v4990
      %v4992 = vlaneseq
      %v4993 = vshrl.u32 %v4992, 7
      %v4994 = vsub.s32 %v4991, %v4993
      %v4995 = vrot.slane %v4705, %v4994
      %v4996 = vcombine.high %v4995, %v4995
      %v4998 = vunpack.c.l.s4 1966171168
      %v4999 = vunpack.c.0.s8 %v4998
      %v5000 = vlaneseq
      %v5001 = vshrl.u32 %v5000, 7
      %v5002 = vsub.s32 %v4999, %v5001
      %v5003 = vrot.slane %v4995, %v5002
      %v5005 = vunpack.c.l.s4 1966171168
      %v5006 = vunpack.c.0.s8 %v5005
      %v5007 = vlaneseq
      %v5008 = vshrl.u32 %v5007, 7
      %v5009 = vsub.s32 %v5006, %v5008
      %v5010 = vrot.slane %v4996, %v5009
      %v5011 = vcombine.high %v5003, %v5003
      %v5012 = vcombine.high %v5010, %v5010
      %v5014 = vunpack.c.l.s4 1966171168
      %v5015 = vunpack.c.0.s8 %v5014
      %v5016 = vlaneseq
      %v5017 = vshrl.u32 %v5016, 7
      %v5018 = vsub.s32 %v5015, %v5017
      %v5019 = vrot.slane %v4706, %v5018
      %v5020 = vcombine.high %v5019, %v5019
      %v5022 = vunpack.c.l.s4 1966171168
      %v5023 = vunpack.c.0.s8 %v5022
      %v5024 = vlaneseq
      %v5025 = vshrl.u32 %v5024, 7
      %v5026 = vsub.s32 %v5023, %v5025
      %v5027 = vrot.slane %v5019, %v5026
      %v5029 = vunpack.c.l.s4 1966171168
      %v5030 = vunpack.c.0.s8 %v5029
      %v5031 = vlaneseq
      %v5032 = vshrl.u32 %v5031, 7
      %v5033 = vsub.s32 %v5030, %v5032
      %v5034 = vrot.slane %v5020, %v5033
      %v5035 = vcombine.high %v5027, %v5027
      %v5036 = vcombine.high %v5034, %v5034
      %v5038 = vunpack.c.l.s4 1966171168
      %v5039 = vunpack.c.0.s8 %v5038
      %v5040 = vlaneseq
      %v5041 = vshrl.u32 %v5040, 7
      %v5042 = vsub.s32 %v5039, %v5041
      %v5043 = vrot.slane %v4707, %v5042
      %v5045 = vunpack.c.l.s4 1966171168
      %v5046 = vunpack.c.0.s8 %v5045
      %v5047 = vlaneseq
      %v5048 = vshrl.u32 %v5047, 7
      %v5049 = vsub.s32 %v5046, %v5048
      %v5050 = vrot.slane %v5043, %v5049
      %v5052 = vunpack.c.l.s4 1966171168
      %v5053 = vunpack.c.0.s8 %v5052
      %v5054 = vlaneseq
      %v5055 = vshrl.u32 %v5054, 7
      %v5056 = vsub.s32 %v5053, %v5055
      %v5057 = vrot.slane %v4708, %v5056
      %v5058 = vcombine.high %v5057, %v5057
      %v5060 = vunpack.c.l.s4 1966171168
      %v5061 = vunpack.c.0.s8 %v5060
      %v5062 = vlaneseq
      %v5063 = vshrl.u32 %v5062, 7
      %v5064 = vsub.s32 %v5061, %v5063
      %v5065 = vrot.slane %v5057, %v5064
      %v5067 = vunpack.c.l.s4 1966171168
      %v5068 = vunpack.c.0.s8 %v5067
      %v5069 = vlaneseq
      %v5070 = vshrl.u32 %v5069, 7
      %v5071 = vsub.s32 %v5068, %v5070
      %v5072 = vrot.slane %v5058, %v5071
      %v5073 = vcombine.high %v5065, %v5065
      %v5074 = vcombine.high %v5072, %v5072
      %v5076 = vunpack.c.l.s4 1966171168
      %v5077 = vunpack.c.0.s8 %v5076
      %v5078 = vlaneseq
      %v5079 = vshrl.u32 %v5078, 7
      %v5080 = vsub.s32 %v5077, %v5079
      %v5081 = vrot.slane %v4709, %v5080
      %v5082 = vcombine.high %v5081, %v5081
      %v5084 = vunpack.c.l.s4 1966171168
      %v5085 = vunpack.c.0.s8 %v5084
      %v5086 = vlaneseq
      %v5087 = vshrl.u32 %v5086, 7
      %v5088 = vsub.s32 %v5085, %v5087
      %v5089 = vrot.slane %v5081, %v5088
      %v5091 = vunpack.c.l.s4 1966171168
      %v5092 = vunpack.c.0.s8 %v5091
      %v5093 = vlaneseq
      %v5094 = vshrl.u32 %v5093, 7
      %v5095 = vsub.s32 %v5092, %v5094
      %v5096 = vrot.slane %v5082, %v5095
      %v5097 = vcombine.high %v5089, %v5089
      %v5098 = vcombine.high %v5096, %v5096
      %v5100 = vunpack.c.l.s4 1966171168
      %v5101 = vunpack.c.0.s8 %v5100
      %v5102 = vlaneseq
      %v5103 = vshrl.u32 %v5102, 7
      %v5104 = vsub.s32 %v5101, %v5103
      %v5105 = vrot.slane %v4710, %v5104
      %v5107 = vunpack.c.l.s4 1966171168
      %v5108 = vunpack.c.0.s8 %v5107
      %v5109 = vlaneseq
      %v5110 = vshrl.u32 %v5109, 7
      %v5111 = vsub.s32 %v5108, %v5110
      %v5112 = vrot.slane %v5105, %v5111
      %v5114 = vunpack.c.l.s4 1966171168
      %v5115 = vunpack.c.0.s8 %v5114
      %v5116 = vlaneseq
      %v5117 = vshrl.u32 %v5116, 7
      %v5118 = vsub.s32 %v5115, %v5117
      %v5119 = vrot.slane %v4711, %v5118
      %v5120 = vcombine.high %v5119, %v5119
      %v5122 = vunpack.c.l.s4 1966171168
      %v5123 = vunpack.c.0.s8 %v5122
      %v5124 = vlaneseq
      %v5125 = vshrl.u32 %v5124, 7
      %v5126 = vsub.s32 %v5123, %v5125
      %v5127 = vrot.slane %v5119, %v5126
      %v5129 = vunpack.c.l.s4 1966171168
      %v5130 = vunpack.c.0.s8 %v5129
      %v5131 = vlaneseq
      %v5132 = vshrl.u32 %v5131, 7
      %v5133 = vsub.s32 %v5130, %v5132
      %v5134 = vrot.slane %v5120, %v5133
      %v5135 = vcombine.high %v5127, %v5127
      %v5136 = vcombine.high %v5134, %v5134
      %v5138 = vunpack.c.l.s4 1966171168
      %v5139 = vunpack.c.0.s8 %v5138
      %v5140 = vlaneseq
      %v5141 = vshrl.u32 %v5140, 7
      %v5142 = vsub.s32 %v5139, %v5141
      %v5143 = vrot.slane %v4712, %v5142
      %v5144 = vcombine.high %v5143, %v5143
      %v5146 = vunpack.c.l.s4 1966171168
      %v5147 = vunpack.c.0.s8 %v5146
      %v5148 = vlaneseq
      %v5149 = vshrl.u32 %v5148, 7
      %v5150 = vsub.s32 %v5147, %v5149
      %v5151 = vrot.slane %v5143, %v5150
      %v5153 = vunpack.c.l.s4 1966171168
      %v5154 = vunpack.c.0.s8 %v5153
      %v5155 = vlaneseq
      %v5156 = vshrl.u32 %v5155, 7
      %v5157 = vsub.s32 %v5154, %v5156
      %v5158 = vrot.slane %v5144, %v5157
      %v5159 = vcombine.high %v5151, %v5151
      %v5160 = vcombine.high %v5158, %v5158
      %v5162 = vunpack.c.l.s4 1966171168
      %v5163 = vunpack.c.0.s8 %v5162
      %v5164 = vlaneseq
      %v5165 = vshrl.u32 %v5164, 7
      %v5166 = vsub.s32 %v5163, %v5165
      %v5167 = vrot.slane %v4713, %v5166
      %v5169 = vunpack.c.l.s4 1966171168
      %v5170 = vunpack.c.0.s8 %v5169
      %v5171 = vlaneseq
      %v5172 = vshrl.u32 %v5171, 7
      %v5173 = vsub.s32 %v5170, %v5172
      %v5174 = vrot.slane %v5167, %v5173
      %v5176 = vunpack.c.l.s4 1966171168
      %v5177 = vunpack.c.0.s8 %v5176
      %v5178 = vlaneseq
      %v5179 = vshrl.u32 %v5178, 7
      %v5180 = vsub.s32 %v5177, %v5179
      %v5181 = vrot.slane %v4714, %v5180
      %v5182 = vcombine.high %v5181, %v5181
      %v5184 = vunpack.c.l.s4 1966171168
      %v5185 = vunpack.c.0.s8 %v5184
      %v5186 = vlaneseq
      %v5187 = vshrl.u32 %v5186, 7
      %v5188 = vsub.s32 %v5185, %v5187
      %v5189 = vrot.slane %v5181, %v5188
      %v5191 = vunpack.c.l.s4 1966171168
      %v5192 = vunpack.c.0.s8 %v5191
      %v5193 = vlaneseq
      %v5194 = vshrl.u32 %v5193, 7
      %v5195 = vsub.s32 %v5192, %v5194
      %v5196 = vrot.slane %v5182, %v5195
      %v5197 = vcombine.high %v5189, %v5189
      %v5198 = vcombine.high %v5196, %v5196
      %v5200 = vunpack.c.l.s4 1966171168
      %v5201 = vunpack.c.0.s8 %v5200
      %v5202 = vlaneseq
      %v5203 = vshrl.u32 %v5202, 7
      %v5204 = vsub.s32 %v5201, %v5203
      %v5205 = vrot.slane %v4715, %v5204
      %v5206 = vcombine.high %v5205, %v5205
      %v5208 = vunpack.c.l.s4 1966171168
      %v5209 = vunpack.c.0.s8 %v5208
      %v5210 = vlaneseq
      %v5211 = vshrl.u32 %v5210, 7
      %v5212 = vsub.s32 %v5209, %v5211
      %v5213 = vrot.slane %v5205, %v5212
      %v5215 = vunpack.c.l.s4 1966171168
      %v5216 = vunpack.c.0.s8 %v5215
      %v5217 = vlaneseq
      %v5218 = vshrl.u32 %v5217, 7
      %v5219 = vsub.s32 %v5216, %v5218
      %v5220 = vrot.slane %v5206, %v5219
      %v5221 = vcombine.high %v5213, %v5213
      %v5222 = vcombine.high %v5220, %v5220
      %v5224 = vunpack.c.l.s4 1966171168
      %v5225 = vunpack.c.0.s8 %v5224
      %v5226 = vlaneseq
      %v5227 = vshrl.u32 %v5226, 7
      %v5228 = vsub.s32 %v5225, %v5227
      %v5229 = vrot.slane %v4716, %v5228
      %v5231 = vunpack.c.l.s4 1966171168
      %v5232 = vunpack.c.0.s8 %v5231
      %v5233 = vlaneseq
      %v5234 = vshrl.u32 %v5233, 7
      %v5235 = vsub.s32 %v5232, %v5234
      %v5236 = vrot.slane %v5229, %v5235
      %s5237 = scalar_lea.vmem %s1, 12
      %v5238 = vld [vmem:[%s5237] sm:$0x3]
      %v5240 = vunpack.c.l.s4 1966171168
      %v5241 = vunpack.c.0.s8 %v5240
      %v5242 = vlaneseq
      %v5243 = vshrl.u32 %v5242, 7
      %v5244 = vsub.s32 %v5241, %v5243
      %v5245 = vrot.slane %v4755, %v5244
      %v5247 = vunpack.c.l.s4 1966171168
      %v5248 = vunpack.c.0.s8 %v5247
      %v5249 = vlaneseq
      %v5250 = vshrl.u32 %v5249, 7
      %v5251 = vsub.s32 %v5248, %v5250
      %v5252 = vrot.slane %v5245, %v5251
      %v5254 = vunpack.c.l.s4 1966171168
      %v5255 = vunpack.c.0.s8 %v5254
      %v5256 = vlaneseq
      %v5257 = vshrl.u32 %v5256, 7
      %v5258 = vsub.s32 %v5255, %v5257
      %v5259 = vrot.slane %v4762, %v5258
      %v5261 = vunpack.c.l.s4 1966171168
      %v5262 = vunpack.c.0.s8 %v5261
      %v5263 = vlaneseq
      %v5264 = vshrl.u32 %v5263, 7
      %v5265 = vsub.s32 %v5262, %v5264
      %v5266 = vrot.slane %v5259, %v5265
      %v5268 = vunpack.c.l.s4 1966171168
      %v5269 = vunpack.c.0.s8 %v5268
      %v5270 = vlaneseq
      %v5271 = vshrl.u32 %v5270, 7
      %v5272 = vsub.s32 %v5269, %v5271
      %v5273 = vrot.slane %v4763, %v5272
      %v5275 = vunpack.c.l.s4 1966171168
      %v5276 = vunpack.c.0.s8 %v5275
      %v5277 = vlaneseq
      %v5278 = vshrl.u32 %v5277, 7
      %v5279 = vsub.s32 %v5276, %v5278
      %v5280 = vrot.slane %v5273, %v5279
      %v5282 = vunpack.c.l.s4 1966171168
      %v5283 = vunpack.c.0.s8 %v5282
      %v5284 = vlaneseq
      %v5285 = vshrl.u32 %v5284, 7
      %v5286 = vsub.s32 %v5283, %v5285
      %v5287 = vrot.slane %v4764, %v5286
      %v5289 = vunpack.c.l.s4 1966171168
      %v5290 = vunpack.c.0.s8 %v5289
      %v5291 = vlaneseq
      %v5292 = vshrl.u32 %v5291, 7
      %v5293 = vsub.s32 %v5290, %v5292
      %v5294 = vrot.slane %v5287, %v5293
      %v5296 = vunpack.c.l.s4 1966171168
      %v5297 = vunpack.c.0.s8 %v5296
      %v5298 = vlaneseq
      %v5299 = vshrl.u32 %v5298, 7
      %v5300 = vsub.s32 %v5297, %v5299
      %v5301 = vrot.slane %v4779, %v5300
      %v5303 = vunpack.c.l.s4 1966171168
      %v5304 = vunpack.c.0.s8 %v5303
      %v5305 = vlaneseq
      %v5306 = vshrl.u32 %v5305, 7
      %v5307 = vsub.s32 %v5304, %v5306
      %v5308 = vrot.slane %v5301, %v5307
      %v5310 = vunpack.c.l.s4 1966171168
      %v5311 = vunpack.c.0.s8 %v5310
      %v5312 = vlaneseq
      %v5313 = vshrl.u32 %v5312, 7
      %v5314 = vsub.s32 %v5311, %v5313
      %v5315 = vrot.slane %v4786, %v5314
      %v5317 = vunpack.c.l.s4 1966171168
      %v5318 = vunpack.c.0.s8 %v5317
      %v5319 = vlaneseq
      %v5320 = vshrl.u32 %v5319, 7
      %v5321 = vsub.s32 %v5318, %v5320
      %v5322 = vrot.slane %v5315, %v5321
      %v5324 = vunpack.c.l.s4 1966171168
      %v5325 = vunpack.c.0.s8 %v5324
      %v5326 = vlaneseq
      %v5327 = vshrl.u32 %v5326, 7
      %v5328 = vsub.s32 %v5325, %v5327
      %v5329 = vrot.slane %v4787, %v5328
      %v5331 = vunpack.c.l.s4 1966171168
      %v5332 = vunpack.c.0.s8 %v5331
      %v5333 = vlaneseq
      %v5334 = vshrl.u32 %v5333, 7
      %v5335 = vsub.s32 %v5332, %v5334
      %v5336 = vrot.slane %v5329, %v5335
      %v5338 = vunpack.c.l.s4 1966171168
      %v5339 = vunpack.c.0.s8 %v5338
      %v5340 = vlaneseq
      %v5341 = vshrl.u32 %v5340, 7
      %v5342 = vsub.s32 %v5339, %v5341
      %v5343 = vrot.slane %v4788, %v5342
      %v5345 = vunpack.c.l.s4 1966171168
      %v5346 = vunpack.c.0.s8 %v5345
      %v5347 = vlaneseq
      %v5348 = vshrl.u32 %v5347, 7
      %v5349 = vsub.s32 %v5346, %v5348
      %v5350 = vrot.slane %v5343, %v5349
      %v5352 = vunpack.c.l.s4 1966171168
      %v5353 = vunpack.c.0.s8 %v5352
      %v5354 = vlaneseq
      %v5355 = vshrl.u32 %v5354, 7
      %v5356 = vsub.s32 %v5353, %v5355
      %v5357 = vrot.slane %v4817, %v5356
      %v5359 = vunpack.c.l.s4 1966171168
      %v5360 = vunpack.c.0.s8 %v5359
      %v5361 = vlaneseq
      %v5362 = vshrl.u32 %v5361, 7
      %v5363 = vsub.s32 %v5360, %v5362
      %v5364 = vrot.slane %v5357, %v5363
      %v5366 = vunpack.c.l.s4 1966171168
      %v5367 = vunpack.c.0.s8 %v5366
      %v5368 = vlaneseq
      %v5369 = vshrl.u32 %v5368, 7
      %v5370 = vsub.s32 %v5367, %v5369
      %v5371 = vrot.slane %v4824, %v5370
      %v5373 = vunpack.c.l.s4 1966171168
      %v5374 = vunpack.c.0.s8 %v5373
      %v5375 = vlaneseq
      %v5376 = vshrl.u32 %v5375, 7
      %v5377 = vsub.s32 %v5374, %v5376
      %v5378 = vrot.slane %v5371, %v5377
      %v5380 = vunpack.c.l.s4 1966171168
      %v5381 = vunpack.c.0.s8 %v5380
      %v5382 = vlaneseq
      %v5383 = vshrl.u32 %v5382, 7
      %v5384 = vsub.s32 %v5381, %v5383
      %v5385 = vrot.slane %v4825, %v5384
      %v5387 = vunpack.c.l.s4 1966171168
      %v5388 = vunpack.c.0.s8 %v5387
      %v5389 = vlaneseq
      %v5390 = vshrl.u32 %v5389, 7
      %v5391 = vsub.s32 %v5388, %v5390
      %v5392 = vrot.slane %v5385, %v5391
      %v5394 = vunpack.c.l.s4 1966171168
      %v5395 = vunpack.c.0.s8 %v5394
      %v5396 = vlaneseq
      %v5397 = vshrl.u32 %v5396, 7
      %v5398 = vsub.s32 %v5395, %v5397
      %v5399 = vrot.slane %v4826, %v5398
      %v5401 = vunpack.c.l.s4 1966171168
      %v5402 = vunpack.c.0.s8 %v5401
      %v5403 = vlaneseq
      %v5404 = vshrl.u32 %v5403, 7
      %v5405 = vsub.s32 %v5402, %v5404
      %v5406 = vrot.slane %v5399, %v5405
      %v5408 = vunpack.c.l.s4 1966171168
      %v5409 = vunpack.c.0.s8 %v5408
      %v5410 = vlaneseq
      %v5411 = vshrl.u32 %v5410, 7
      %v5412 = vsub.s32 %v5409, %v5411
      %v5413 = vrot.slane %v4841, %v5412
      %v5415 = vunpack.c.l.s4 1966171168
      %v5416 = vunpack.c.0.s8 %v5415
      %v5417 = vlaneseq
      %v5418 = vshrl.u32 %v5417, 7
      %v5419 = vsub.s32 %v5416, %v5418
      %v5420 = vrot.slane %v5413, %v5419
      %v5422 = vunpack.c.l.s4 1966171168
      %v5423 = vunpack.c.0.s8 %v5422
      %v5424 = vlaneseq
      %v5425 = vshrl.u32 %v5424, 7
      %v5426 = vsub.s32 %v5423, %v5425
      %v5427 = vrot.slane %v4848, %v5426
      %v5429 = vunpack.c.l.s4 1966171168
      %v5430 = vunpack.c.0.s8 %v5429
      %v5431 = vlaneseq
      %v5432 = vshrl.u32 %v5431, 7
      %v5433 = vsub.s32 %v5430, %v5432
      %v5434 = vrot.slane %v5427, %v5433
      %v5436 = vunpack.c.l.s4 1966171168
      %v5437 = vunpack.c.0.s8 %v5436
      %v5438 = vlaneseq
      %v5439 = vshrl.u32 %v5438, 7
      %v5440 = vsub.s32 %v5437, %v5439
      %v5441 = vrot.slane %v4849, %v5440
      %v5443 = vunpack.c.l.s4 1966171168
      %v5444 = vunpack.c.0.s8 %v5443
      %v5445 = vlaneseq
      %v5446 = vshrl.u32 %v5445, 7
      %v5447 = vsub.s32 %v5444, %v5446
      %v5448 = vrot.slane %v5441, %v5447
      %v5450 = vunpack.c.l.s4 1966171168
      %v5451 = vunpack.c.0.s8 %v5450
      %v5452 = vlaneseq
      %v5453 = vshrl.u32 %v5452, 7
      %v5454 = vsub.s32 %v5451, %v5453
      %v5455 = vrot.slane %v4850, %v5454
      %v5457 = vunpack.c.l.s4 1966171168
      %v5458 = vunpack.c.0.s8 %v5457
      %v5459 = vlaneseq
      %v5460 = vshrl.u32 %v5459, 7
      %v5461 = vsub.s32 %v5458, %v5460
      %v5462 = vrot.slane %v5455, %v5461
      %v5464 = vunpack.c.l.s4 1966171168
      %v5465 = vunpack.c.0.s8 %v5464
      %v5466 = vlaneseq
      %v5467 = vshrl.u32 %v5466, 7
      %v5468 = vsub.s32 %v5465, %v5467
      %v5469 = vrot.slane %v4879, %v5468
      %v5471 = vunpack.c.l.s4 1966171168
      %v5472 = vunpack.c.0.s8 %v5471
      %v5473 = vlaneseq
      %v5474 = vshrl.u32 %v5473, 7
      %v5475 = vsub.s32 %v5472, %v5474
      %v5476 = vrot.slane %v5469, %v5475
      %v5478 = vunpack.c.l.s4 1966171168
      %v5479 = vunpack.c.0.s8 %v5478
      %v5480 = vlaneseq
      %v5481 = vshrl.u32 %v5480, 7
      %v5482 = vsub.s32 %v5479, %v5481
      %v5483 = vrot.slane %v4886, %v5482
      %v5485 = vunpack.c.l.s4 1966171168
      %v5486 = vunpack.c.0.s8 %v5485
      %v5487 = vlaneseq
      %v5488 = vshrl.u32 %v5487, 7
      %v5489 = vsub.s32 %v5486, %v5488
      %v5490 = vrot.slane %v5483, %v5489
      %v5492 = vunpack.c.l.s4 1966171168
      %v5493 = vunpack.c.0.s8 %v5492
      %v5494 = vlaneseq
      %v5495 = vshrl.u32 %v5494, 7
      %v5496 = vsub.s32 %v5493, %v5495
      %v5497 = vrot.slane %v4887, %v5496
      %v5499 = vunpack.c.l.s4 1966171168
      %v5500 = vunpack.c.0.s8 %v5499
      %v5501 = vlaneseq
      %v5502 = vshrl.u32 %v5501, 7
      %v5503 = vsub.s32 %v5500, %v5502
      %v5504 = vrot.slane %v5497, %v5503
      %v5506 = vunpack.c.l.s4 1966171168
      %v5507 = vunpack.c.0.s8 %v5506
      %v5508 = vlaneseq
      %v5509 = vshrl.u32 %v5508, 7
      %v5510 = vsub.s32 %v5507, %v5509
      %v5511 = vrot.slane %v4888, %v5510
      %v5513 = vunpack.c.l.s4 1966171168
      %v5514 = vunpack.c.0.s8 %v5513
      %v5515 = vlaneseq
      %v5516 = vshrl.u32 %v5515, 7
      %v5517 = vsub.s32 %v5514, %v5516
      %v5518 = vrot.slane %v5511, %v5517
      %v5520 = vunpack.c.l.s4 1966171168
      %v5521 = vunpack.c.0.s8 %v5520
      %v5522 = vlaneseq
      %v5523 = vshrl.u32 %v5522, 7
      %v5524 = vsub.s32 %v5521, %v5523
      %v5525 = vrot.slane %v4903, %v5524
      %v5527 = vunpack.c.l.s4 1966171168
      %v5528 = vunpack.c.0.s8 %v5527
      %v5529 = vlaneseq
      %v5530 = vshrl.u32 %v5529, 7
      %v5531 = vsub.s32 %v5528, %v5530
      %v5532 = vrot.slane %v5525, %v5531
      %v5534 = vunpack.c.l.s4 1966171168
      %v5535 = vunpack.c.0.s8 %v5534
      %v5536 = vlaneseq
      %v5537 = vshrl.u32 %v5536, 7
      %v5538 = vsub.s32 %v5535, %v5537
      %v5539 = vrot.slane %v4910, %v5538
      %v5541 = vunpack.c.l.s4 1966171168
      %v5542 = vunpack.c.0.s8 %v5541
      %v5543 = vlaneseq
      %v5544 = vshrl.u32 %v5543, 7
      %v5545 = vsub.s32 %v5542, %v5544
      %v5546 = vrot.slane %v5539, %v5545
      %v5548 = vunpack.c.l.s4 1966171168
      %v5549 = vunpack.c.0.s8 %v5548
      %v5550 = vlaneseq
      %v5551 = vshrl.u32 %v5550, 7
      %v5552 = vsub.s32 %v5549, %v5551
      %v5553 = vrot.slane %v4911, %v5552
      %v5555 = vunpack.c.l.s4 1966171168
      %v5556 = vunpack.c.0.s8 %v5555
      %v5557 = vlaneseq
      %v5558 = vshrl.u32 %v5557, 7
      %v5559 = vsub.s32 %v5556, %v5558
      %v5560 = vrot.slane %v5553, %v5559
      %v5562 = vunpack.c.l.s4 1966171168
      %v5563 = vunpack.c.0.s8 %v5562
      %v5564 = vlaneseq
      %v5565 = vshrl.u32 %v5564, 7
      %v5566 = vsub.s32 %v5563, %v5565
      %v5567 = vrot.slane %v4912, %v5566
      %v5569 = vunpack.c.l.s4 1966171168
      %v5570 = vunpack.c.0.s8 %v5569
      %v5571 = vlaneseq
      %v5572 = vshrl.u32 %v5571, 7
      %v5573 = vsub.s32 %v5570, %v5572
      %v5574 = vrot.slane %v5567, %v5573
      %v5576 = vunpack.c.l.s4 1966171168
      %v5577 = vunpack.c.0.s8 %v5576
      %v5578 = vlaneseq
      %v5579 = vshrl.u32 %v5578, 7
      %v5580 = vsub.s32 %v5577, %v5579
      %v5581 = vrot.slane %v4941, %v5580
      %v5583 = vunpack.c.l.s4 1966171168
      %v5584 = vunpack.c.0.s8 %v5583
      %v5585 = vlaneseq
      %v5586 = vshrl.u32 %v5585, 7
      %v5587 = vsub.s32 %v5584, %v5586
      %v5588 = vrot.slane %v5581, %v5587
      %v5590 = vunpack.c.l.s4 1966171168
      %v5591 = vunpack.c.0.s8 %v5590
      %v5592 = vlaneseq
      %v5593 = vshrl.u32 %v5592, 7
      %v5594 = vsub.s32 %v5591, %v5593
      %v5595 = vrot.slane %v4948, %v5594
      %v5597 = vunpack.c.l.s4 1966171168
      %v5598 = vunpack.c.0.s8 %v5597
      %v5599 = vlaneseq
      %v5600 = vshrl.u32 %v5599, 7
      %v5601 = vsub.s32 %v5598, %v5600
      %v5602 = vrot.slane %v5595, %v5601
      %v5604 = vunpack.c.l.s4 1966171168
      %v5605 = vunpack.c.0.s8 %v5604
      %v5606 = vlaneseq
      %v5607 = vshrl.u32 %v5606, 7
      %v5608 = vsub.s32 %v5605, %v5607
      %v5609 = vrot.slane %v4949, %v5608
      %v5611 = vunpack.c.l.s4 1966171168
      %v5612 = vunpack.c.0.s8 %v5611
      %v5613 = vlaneseq
      %v5614 = vshrl.u32 %v5613, 7
      %v5615 = vsub.s32 %v5612, %v5614
      %v5616 = vrot.slane %v5609, %v5615
      %v5618 = vunpack.c.l.s4 1966171168
      %v5619 = vunpack.c.0.s8 %v5618
      %v5620 = vlaneseq
      %v5621 = vshrl.u32 %v5620, 7
      %v5622 = vsub.s32 %v5619, %v5621
      %v5623 = vrot.slane %v4950, %v5622
      %v5625 = vunpack.c.l.s4 1966171168
      %v5626 = vunpack.c.0.s8 %v5625
      %v5627 = vlaneseq
      %v5628 = vshrl.u32 %v5627, 7
      %v5629 = vsub.s32 %v5626, %v5628
      %v5630 = vrot.slane %v5623, %v5629
      %v5632 = vunpack.c.l.s4 1966171168
      %v5633 = vunpack.c.0.s8 %v5632
      %v5634 = vlaneseq
      %v5635 = vshrl.u32 %v5634, 7
      %v5636 = vsub.s32 %v5633, %v5635
      %v5637 = vrot.slane %v4965, %v5636
      %v5639 = vunpack.c.l.s4 1966171168
      %v5640 = vunpack.c.0.s8 %v5639
      %v5641 = vlaneseq
      %v5642 = vshrl.u32 %v5641, 7
      %v5643 = vsub.s32 %v5640, %v5642
      %v5644 = vrot.slane %v5637, %v5643
      %v5646 = vunpack.c.l.s4 1966171168
      %v5647 = vunpack.c.0.s8 %v5646
      %v5648 = vlaneseq
      %v5649 = vshrl.u32 %v5648, 7
      %v5650 = vsub.s32 %v5647, %v5649
      %v5651 = vrot.slane %v4972, %v5650
      %v5653 = vunpack.c.l.s4 1966171168
      %v5654 = vunpack.c.0.s8 %v5653
      %v5655 = vlaneseq
      %v5656 = vshrl.u32 %v5655, 7
      %v5657 = vsub.s32 %v5654, %v5656
      %v5658 = vrot.slane %v5651, %v5657
      %v5660 = vunpack.c.l.s4 1966171168
      %v5661 = vunpack.c.0.s8 %v5660
      %v5662 = vlaneseq
      %v5663 = vshrl.u32 %v5662, 7
      %v5664 = vsub.s32 %v5661, %v5663
      %v5665 = vrot.slane %v4973, %v5664
      %v5667 = vunpack.c.l.s4 1966171168
      %v5668 = vunpack.c.0.s8 %v5667
      %v5669 = vlaneseq
      %v5670 = vshrl.u32 %v5669, 7
      %v5671 = vsub.s32 %v5668, %v5670
      %v5672 = vrot.slane %v5665, %v5671
      %v5674 = vunpack.c.l.s4 1966171168
      %v5675 = vunpack.c.0.s8 %v5674
      %v5676 = vlaneseq
      %v5677 = vshrl.u32 %v5676, 7
      %v5678 = vsub.s32 %v5675, %v5677
      %v5679 = vrot.slane %v4974, %v5678
      %v5681 = vunpack.c.l.s4 1966171168
      %v5682 = vunpack.c.0.s8 %v5681
      %v5683 = vlaneseq
      %v5684 = vshrl.u32 %v5683, 7
      %v5685 = vsub.s32 %v5682, %v5684
      %v5686 = vrot.slane %v5679, %v5685
      %v5688 = vunpack.c.l.s4 1966171168
      %v5689 = vunpack.c.0.s8 %v5688
      %v5690 = vlaneseq
      %v5691 = vshrl.u32 %v5690, 7
      %v5692 = vsub.s32 %v5689, %v5691
      %v5693 = vrot.slane %v5003, %v5692
      %v5695 = vunpack.c.l.s4 1966171168
      %v5696 = vunpack.c.0.s8 %v5695
      %v5697 = vlaneseq
      %v5698 = vshrl.u32 %v5697, 7
      %v5699 = vsub.s32 %v5696, %v5698
      %v5700 = vrot.slane %v5693, %v5699
      %v5702 = vunpack.c.l.s4 1966171168
      %v5703 = vunpack.c.0.s8 %v5702
      %v5704 = vlaneseq
      %v5705 = vshrl.u32 %v5704, 7
      %v5706 = vsub.s32 %v5703, %v5705
      %v5707 = vrot.slane %v5010, %v5706
      %v5709 = vunpack.c.l.s4 1966171168
      %v5710 = vunpack.c.0.s8 %v5709
      %v5711 = vlaneseq
      %v5712 = vshrl.u32 %v5711, 7
      %v5713 = vsub.s32 %v5710, %v5712
      %v5714 = vrot.slane %v5707, %v5713
      %v5716 = vunpack.c.l.s4 1966171168
      %v5717 = vunpack.c.0.s8 %v5716
      %v5718 = vlaneseq
      %v5719 = vshrl.u32 %v5718, 7
      %v5720 = vsub.s32 %v5717, %v5719
      %v5721 = vrot.slane %v5011, %v5720
      %v5723 = vunpack.c.l.s4 1966171168
      %v5724 = vunpack.c.0.s8 %v5723
      %v5725 = vlaneseq
      %v5726 = vshrl.u32 %v5725, 7
      %v5727 = vsub.s32 %v5724, %v5726
      %v5728 = vrot.slane %v5721, %v5727
      %v5730 = vunpack.c.l.s4 1966171168
      %v5731 = vunpack.c.0.s8 %v5730
      %v5732 = vlaneseq
      %v5733 = vshrl.u32 %v5732, 7
      %v5734 = vsub.s32 %v5731, %v5733
      %v5735 = vrot.slane %v5012, %v5734
      %v5737 = vunpack.c.l.s4 1966171168
      %v5738 = vunpack.c.0.s8 %v5737
      %v5739 = vlaneseq
      %v5740 = vshrl.u32 %v5739, 7
      %v5741 = vsub.s32 %v5738, %v5740
      %v5742 = vrot.slane %v5735, %v5741
      %v5744 = vunpack.c.l.s4 1966171168
      %v5745 = vunpack.c.0.s8 %v5744
      %v5746 = vlaneseq
      %v5747 = vshrl.u32 %v5746, 7
      %v5748 = vsub.s32 %v5745, %v5747
      %v5749 = vrot.slane %v5027, %v5748
      %v5751 = vunpack.c.l.s4 1966171168
      %v5752 = vunpack.c.0.s8 %v5751
      %v5753 = vlaneseq
      %v5754 = vshrl.u32 %v5753, 7
      %v5755 = vsub.s32 %v5752, %v5754
      %v5756 = vrot.slane %v5749, %v5755
      %v5758 = vunpack.c.l.s4 1966171168
      %v5759 = vunpack.c.0.s8 %v5758
      %v5760 = vlaneseq
      %v5761 = vshrl.u32 %v5760, 7
      %v5762 = vsub.s32 %v5759, %v5761
      %v5763 = vrot.slane %v5034, %v5762
      %v5765 = vunpack.c.l.s4 1966171168
      %v5766 = vunpack.c.0.s8 %v5765
      %v5767 = vlaneseq
      %v5768 = vshrl.u32 %v5767, 7
      %v5769 = vsub.s32 %v5766, %v5768
      %v5770 = vrot.slane %v5763, %v5769
      %v5772 = vunpack.c.l.s4 1966171168
      %v5773 = vunpack.c.0.s8 %v5772
      %v5774 = vlaneseq
      %v5775 = vshrl.u32 %v5774, 7
      %v5776 = vsub.s32 %v5773, %v5775
      %v5777 = vrot.slane %v5035, %v5776
      %v5779 = vunpack.c.l.s4 1966171168
      %v5780 = vunpack.c.0.s8 %v5779
      %v5781 = vlaneseq
      %v5782 = vshrl.u32 %v5781, 7
      %v5783 = vsub.s32 %v5780, %v5782
      %v5784 = vrot.slane %v5777, %v5783
      %v5786 = vunpack.c.l.s4 1966171168
      %v5787 = vunpack.c.0.s8 %v5786
      %v5788 = vlaneseq
      %v5789 = vshrl.u32 %v5788, 7
      %v5790 = vsub.s32 %v5787, %v5789
      %v5791 = vrot.slane %v5036, %v5790
      %v5793 = vunpack.c.l.s4 1966171168
      %v5794 = vunpack.c.0.s8 %v5793
      %v5795 = vlaneseq
      %v5796 = vshrl.u32 %v5795, 7
      %v5797 = vsub.s32 %v5794, %v5796
      %v5798 = vrot.slane %v5791, %v5797
      %v5800 = vunpack.c.l.s4 1966171168
      %v5801 = vunpack.c.0.s8 %v5800
      %v5802 = vlaneseq
      %v5803 = vshrl.u32 %v5802, 7
      %v5804 = vsub.s32 %v5801, %v5803
      %v5805 = vrot.slane %v5065, %v5804
      %v5807 = vunpack.c.l.s4 1966171168
      %v5808 = vunpack.c.0.s8 %v5807
      %v5809 = vlaneseq
      %v5810 = vshrl.u32 %v5809, 7
      %v5811 = vsub.s32 %v5808, %v5810
      %v5812 = vrot.slane %v5805, %v5811
      %v5814 = vunpack.c.l.s4 1966171168
      %v5815 = vunpack.c.0.s8 %v5814
      %v5816 = vlaneseq
      %v5817 = vshrl.u32 %v5816, 7
      %v5818 = vsub.s32 %v5815, %v5817
      %v5819 = vrot.slane %v5072, %v5818
      %v5821 = vunpack.c.l.s4 1966171168
      %v5822 = vunpack.c.0.s8 %v5821
      %v5823 = vlaneseq
      %v5824 = vshrl.u32 %v5823, 7
      %v5825 = vsub.s32 %v5822, %v5824
      %v5826 = vrot.slane %v5819, %v5825
      %v5828 = vunpack.c.l.s4 1966171168
      %v5829 = vunpack.c.0.s8 %v5828
      %v5830 = vlaneseq
      %v5831 = vshrl.u32 %v5830, 7
      %v5832 = vsub.s32 %v5829, %v5831
      %v5833 = vrot.slane %v5073, %v5832
      %v5835 = vunpack.c.l.s4 1966171168
      %v5836 = vunpack.c.0.s8 %v5835
      %v5837 = vlaneseq
      %v5838 = vshrl.u32 %v5837, 7
      %v5839 = vsub.s32 %v5836, %v5838
      %v5840 = vrot.slane %v5833, %v5839
      %v5842 = vunpack.c.l.s4 1966171168
      %v5843 = vunpack.c.0.s8 %v5842
      %v5844 = vlaneseq
      %v5845 = vshrl.u32 %v5844, 7
      %v5846 = vsub.s32 %v5843, %v5845
      %v5847 = vrot.slane %v5074, %v5846
      %v5849 = vunpack.c.l.s4 1966171168
      %v5850 = vunpack.c.0.s8 %v5849
      %v5851 = vlaneseq
      %v5852 = vshrl.u32 %v5851, 7
      %v5853 = vsub.s32 %v5850, %v5852
      %v5854 = vrot.slane %v5847, %v5853
      %v5856 = vunpack.c.l.s4 1966171168
      %v5857 = vunpack.c.0.s8 %v5856
      %v5858 = vlaneseq
      %v5859 = vshrl.u32 %v5858, 7
      %v5860 = vsub.s32 %v5857, %v5859
      %v5861 = vrot.slane %v5089, %v5860
      %v5863 = vunpack.c.l.s4 1966171168
      %v5864 = vunpack.c.0.s8 %v5863
      %v5865 = vlaneseq
      %v5866 = vshrl.u32 %v5865, 7
      %v5867 = vsub.s32 %v5864, %v5866
      %v5868 = vrot.slane %v5861, %v5867
      %v5870 = vunpack.c.l.s4 1966171168
      %v5871 = vunpack.c.0.s8 %v5870
      %v5872 = vlaneseq
      %v5873 = vshrl.u32 %v5872, 7
      %v5874 = vsub.s32 %v5871, %v5873
      %v5875 = vrot.slane %v5096, %v5874
      %v5877 = vunpack.c.l.s4 1966171168
      %v5878 = vunpack.c.0.s8 %v5877
      %v5879 = vlaneseq
      %v5880 = vshrl.u32 %v5879, 7
      %v5881 = vsub.s32 %v5878, %v5880
      %v5882 = vrot.slane %v5875, %v5881
      %v5884 = vunpack.c.l.s4 1966171168
      %v5885 = vunpack.c.0.s8 %v5884
      %v5886 = vlaneseq
      %v5887 = vshrl.u32 %v5886, 7
      %v5888 = vsub.s32 %v5885, %v5887
      %v5889 = vrot.slane %v5097, %v5888
      %v5891 = vunpack.c.l.s4 1966171168
      %v5892 = vunpack.c.0.s8 %v5891
      %v5893 = vlaneseq
      %v5894 = vshrl.u32 %v5893, 7
      %v5895 = vsub.s32 %v5892, %v5894
      %v5896 = vrot.slane %v5889, %v5895
      %v5898 = vunpack.c.l.s4 1966171168
      %v5899 = vunpack.c.0.s8 %v5898
      %v5900 = vlaneseq
      %v5901 = vshrl.u32 %v5900, 7
      %v5902 = vsub.s32 %v5899, %v5901
      %v5903 = vrot.slane %v5098, %v5902
      %v5905 = vunpack.c.l.s4 1966171168
      %v5906 = vunpack.c.0.s8 %v5905
      %v5907 = vlaneseq
      %v5908 = vshrl.u32 %v5907, 7
      %v5909 = vsub.s32 %v5906, %v5908
      %v5910 = vrot.slane %v5903, %v5909
      %v5912 = vunpack.c.l.s4 1966171168
      %v5913 = vunpack.c.0.s8 %v5912
      %v5914 = vlaneseq
      %v5915 = vshrl.u32 %v5914, 7
      %v5916 = vsub.s32 %v5913, %v5915
      %v5917 = vrot.slane %v5127, %v5916
      %v5919 = vunpack.c.l.s4 1966171168
      %v5920 = vunpack.c.0.s8 %v5919
      %v5921 = vlaneseq
      %v5922 = vshrl.u32 %v5921, 7
      %v5923 = vsub.s32 %v5920, %v5922
      %v5924 = vrot.slane %v5917, %v5923
      %v5926 = vunpack.c.l.s4 1966171168
      %v5927 = vunpack.c.0.s8 %v5926
      %v5928 = vlaneseq
      %v5929 = vshrl.u32 %v5928, 7
      %v5930 = vsub.s32 %v5927, %v5929
      %v5931 = vrot.slane %v5134, %v5930
      %v5933 = vunpack.c.l.s4 1966171168
      %v5934 = vunpack.c.0.s8 %v5933
      %v5935 = vlaneseq
      %v5936 = vshrl.u32 %v5935, 7
      %v5937 = vsub.s32 %v5934, %v5936
      %v5938 = vrot.slane %v5931, %v5937
      %v5940 = vunpack.c.l.s4 1966171168
      %v5941 = vunpack.c.0.s8 %v5940
      %v5942 = vlaneseq
      %v5943 = vshrl.u32 %v5942, 7
      %v5944 = vsub.s32 %v5941, %v5943
      %v5945 = vrot.slane %v5135, %v5944
      %v5947 = vunpack.c.l.s4 1966171168
      %v5948 = vunpack.c.0.s8 %v5947
      %v5949 = vlaneseq
      %v5950 = vshrl.u32 %v5949, 7
      %v5951 = vsub.s32 %v5948, %v5950
      %v5952 = vrot.slane %v5945, %v5951
      %v5954 = vunpack.c.l.s4 1966171168
      %v5955 = vunpack.c.0.s8 %v5954
      %v5956 = vlaneseq
      %v5957 = vshrl.u32 %v5956, 7
      %v5958 = vsub.s32 %v5955, %v5957
      %v5959 = vrot.slane %v5136, %v5958
      %v5961 = vunpack.c.l.s4 1966171168
      %v5962 = vunpack.c.0.s8 %v5961
      %v5963 = vlaneseq
      %v5964 = vshrl.u32 %v5963, 7
      %v5965 = vsub.s32 %v5962, %v5964
      %v5966 = vrot.slane %v5959, %v5965
      %v5968 = vunpack.c.l.s4 1966171168
      %v5969 = vunpack.c.0.s8 %v5968
      %v5970 = vlaneseq
      %v5971 = vshrl.u32 %v5970, 7
      %v5972 = vsub.s32 %v5969, %v5971
      %v5973 = vrot.slane %v5151, %v5972
      %v5975 = vunpack.c.l.s4 1966171168
      %v5976 = vunpack.c.0.s8 %v5975
      %v5977 = vlaneseq
      %v5978 = vshrl.u32 %v5977, 7
      %v5979 = vsub.s32 %v5976, %v5978
      %v5980 = vrot.slane %v5973, %v5979
      %v5982 = vunpack.c.l.s4 1966171168
      %v5983 = vunpack.c.0.s8 %v5982
      %v5984 = vlaneseq
      %v5985 = vshrl.u32 %v5984, 7
      %v5986 = vsub.s32 %v5983, %v5985
      %v5987 = vrot.slane %v5158, %v5986
      %v5989 = vunpack.c.l.s4 1966171168
      %v5990 = vunpack.c.0.s8 %v5989
      %v5991 = vlaneseq
      %v5992 = vshrl.u32 %v5991, 7
      %v5993 = vsub.s32 %v5990, %v5992
      %v5994 = vrot.slane %v5987, %v5993
      %v5996 = vunpack.c.l.s4 1966171168
      %v5997 = vunpack.c.0.s8 %v5996
      %v5998 = vlaneseq
      %v5999 = vshrl.u32 %v5998, 7
      %v6000 = vsub.s32 %v5997, %v5999
      %v6001 = vrot.slane %v5159, %v6000
      %v6003 = vunpack.c.l.s4 1966171168
      %v6004 = vunpack.c.0.s8 %v6003
      %v6005 = vlaneseq
      %v6006 = vshrl.u32 %v6005, 7
      %v6007 = vsub.s32 %v6004, %v6006
      %v6008 = vrot.slane %v6001, %v6007
      %v6010 = vunpack.c.l.s4 1966171168
      %v6011 = vunpack.c.0.s8 %v6010
      %v6012 = vlaneseq
      %v6013 = vshrl.u32 %v6012, 7
      %v6014 = vsub.s32 %v6011, %v6013
      %v6015 = vrot.slane %v5160, %v6014
      %v6017 = vunpack.c.l.s4 1966171168
      %v6018 = vunpack.c.0.s8 %v6017
      %v6019 = vlaneseq
      %v6020 = vshrl.u32 %v6019, 7
      %v6021 = vsub.s32 %v6018, %v6020
      %v6022 = vrot.slane %v6015, %v6021
      %v6024 = vunpack.c.l.s4 1966171168
      %v6025 = vunpack.c.0.s8 %v6024
      %v6026 = vlaneseq
      %v6027 = vshrl.u32 %v6026, 7
      %v6028 = vsub.s32 %v6025, %v6027
      %v6029 = vrot.slane %v5189, %v6028
      %v6031 = vunpack.c.l.s4 1966171168
      %v6032 = vunpack.c.0.s8 %v6031
      %v6033 = vlaneseq
      %v6034 = vshrl.u32 %v6033, 7
      %v6035 = vsub.s32 %v6032, %v6034
      %v6036 = vrot.slane %v6029, %v6035
      %v6038 = vunpack.c.l.s4 1966171168
      %v6039 = vunpack.c.0.s8 %v6038
      %v6040 = vlaneseq
      %v6041 = vshrl.u32 %v6040, 7
      %v6042 = vsub.s32 %v6039, %v6041
      %v6043 = vrot.slane %v5196, %v6042
      %v6045 = vunpack.c.l.s4 1966171168
      %v6046 = vunpack.c.0.s8 %v6045
      %v6047 = vlaneseq
      %v6048 = vshrl.u32 %v6047, 7
      %v6049 = vsub.s32 %v6046, %v6048
      %v6050 = vrot.slane %v6043, %v6049
      %v6052 = vunpack.c.l.s4 1966171168
      %v6053 = vunpack.c.0.s8 %v6052
      %v6054 = vlaneseq
      %v6055 = vshrl.u32 %v6054, 7
      %v6056 = vsub.s32 %v6053, %v6055
      %v6057 = vrot.slane %v5197, %v6056
      %v6059 = vunpack.c.l.s4 1966171168
      %v6060 = vunpack.c.0.s8 %v6059
      %v6061 = vlaneseq
      %v6062 = vshrl.u32 %v6061, 7
      %v6063 = vsub.s32 %v6060, %v6062
      %v6064 = vrot.slane %v6057, %v6063
      %v6066 = vunpack.c.l.s4 1966171168
      %v6067 = vunpack.c.0.s8 %v6066
      %v6068 = vlaneseq
      %v6069 = vshrl.u32 %v6068, 7
      %v6070 = vsub.s32 %v6067, %v6069
      %v6071 = vrot.slane %v5198, %v6070
      %v6073 = vunpack.c.l.s4 1966171168
      %v6074 = vunpack.c.0.s8 %v6073
      %v6075 = vlaneseq
      %v6076 = vshrl.u32 %v6075, 7
      %v6077 = vsub.s32 %v6074, %v6076
      %v6078 = vrot.slane %v6071, %v6077
      %v6080 = vunpack.c.l.s4 1966171168
      %v6081 = vunpack.c.0.s8 %v6080
      %v6082 = vlaneseq
      %v6083 = vshrl.u32 %v6082, 7
      %v6084 = vsub.s32 %v6081, %v6083
      %v6085 = vrot.slane %v5213, %v6084
      %v6087 = vunpack.c.l.s4 1966171168
      %v6088 = vunpack.c.0.s8 %v6087
      %v6089 = vlaneseq
      %v6090 = vshrl.u32 %v6089, 7
      %v6091 = vsub.s32 %v6088, %v6090
      %v6092 = vrot.slane %v6085, %v6091
      %v6094 = vunpack.c.l.s4 1966171168
      %v6095 = vunpack.c.0.s8 %v6094
      %v6096 = vlaneseq
      %v6097 = vshrl.u32 %v6096, 7
      %v6098 = vsub.s32 %v6095, %v6097
      %v6099 = vrot.slane %v5220, %v6098
      %v6101 = vunpack.c.l.s4 1966171168
      %v6102 = vunpack.c.0.s8 %v6101
      %v6103 = vlaneseq
      %v6104 = vshrl.u32 %v6103, 7
      %v6105 = vsub.s32 %v6102, %v6104
      %v6106 = vrot.slane %v6099, %v6105
      %v6108 = vunpack.c.l.s4 1966171168
      %v6109 = vunpack.c.0.s8 %v6108
      %v6110 = vlaneseq
      %v6111 = vshrl.u32 %v6110, 7
      %v6112 = vsub.s32 %v6109, %v6111
      %v6113 = vrot.slane %v5221, %v6112
      %v6115 = vunpack.c.l.s4 1966171168
      %v6116 = vunpack.c.0.s8 %v6115
      %v6117 = vlaneseq
      %v6118 = vshrl.u32 %v6117, 7
      %v6119 = vsub.s32 %v6116, %v6118
      %v6120 = vrot.slane %v6113, %v6119
      %v6122 = vunpack.c.l.s4 1966171168
      %v6123 = vunpack.c.0.s8 %v6122
      %v6124 = vlaneseq
      %v6125 = vshrl.u32 %v6124, 7
      %v6126 = vsub.s32 %v6123, %v6125
      %v6127 = vrot.slane %v5222, %v6126
      %v6129 = vunpack.c.l.s4 1966171168
      %v6130 = vunpack.c.0.s8 %v6129
      %v6131 = vlaneseq
      %v6132 = vshrl.u32 %v6131, 7
      %v6133 = vsub.s32 %v6130, %v6132
      %v6134 = vrot.slane %v6127, %v6133
      %v6135 = vunpack.c.l.b16 %v5252
      %v6136 = vunpack.c.l.b16 %v5266
      %v6137 = vunpack.c.l.b16 %v5280
      %v6138 = vunpack.c.l.b16 %v5294
      %v6139 = vunpack.c.l.b16 %v5308
      %v6140 = vunpack.c.l.b16 %v5322
      %v6141 = vunpack.c.l.b16 %v5336
      %v6142 = vunpack.c.l.b16 %v5350
      %v6143 = vunpack.c.l.b16 %v5364
      %v6144 = vunpack.c.l.b16 %v5378
      %v6145 = vunpack.c.l.b16 %v5392
      %v6146 = vunpack.c.l.b16 %v5406
      %v6147 = vunpack.c.l.b16 %v5420
      %v6148 = vunpack.c.l.b16 %v5434
      %v6149 = vunpack.c.l.b16 %v5448
      %v6150 = vunpack.c.l.b16 %v5462
      %v6151 = vunpack.c.l.b16 %v5476
      %v6152 = vunpack.c.l.b16 %v5490
      %v6153 = vunpack.c.l.b16 %v5504
      %v6154 = vunpack.c.l.b16 %v5518
      %v6155 = vunpack.c.l.b16 %v5532
      %v6156 = vunpack.c.l.b16 %v5546
      %v6157 = vunpack.c.l.b16 %v5560
      %v6158 = vunpack.c.l.b16 %v5574
      %v6159 = vunpack.c.l.b16 %v5588
      %v6160 = vunpack.c.l.b16 %v5602
      %v6161 = vunpack.c.l.b16 %v5616
      %v6162 = vunpack.c.l.b16 %v5630
      %v6163 = vunpack.c.l.b16 %v5644
      %v6164 = vunpack.c.l.b16 %v5658
      %v6165 = vunpack.c.l.b16 %v5672
      %v6166 = vunpack.c.l.b16 %v5686
      %v6167 = vunpack.c.l.b16 %v5700
      %v6168 = vunpack.c.l.b16 %v5714
      %v6169 = vunpack.c.l.b16 %v5728
      %v6170 = vunpack.c.l.b16 %v5742
      %v6171 = vunpack.c.l.b16 %v5756
      %v6172 = vunpack.c.l.b16 %v5770
      %v6173 = vunpack.c.l.b16 %v5784
      %v6174 = vunpack.c.l.b16 %v5798
      %v6175 = vunpack.c.l.b16 %v5812
      %v6176 = vunpack.c.l.b16 %v5826
      %v6177 = vunpack.c.l.b16 %v5840
      %v6178 = vunpack.c.l.b16 %v5854
      %v6179 = vunpack.c.l.b16 %v5868
      %v6180 = vunpack.c.l.b16 %v5882
      %v6181 = vunpack.c.l.b16 %v5896
      %v6182 = vunpack.c.l.b16 %v5910
      %v6183 = vunpack.c.l.b16 %v5924
      %v6184 = vunpack.c.l.b16 %v5938
      %v6185 = vunpack.c.l.b16 %v5952
      %v6186 = vunpack.c.l.b16 %v5966
      %v6187 = vunpack.c.l.b16 %v5980
      %v6188 = vunpack.c.l.b16 %v5994
      %v6189 = vunpack.c.l.b16 %v6008
      %v6190 = vunpack.c.l.b16 %v6022
      %v6191 = vunpack.c.l.b16 %v6036
      %v6192 = vunpack.c.l.b16 %v6050
      %v6193 = vunpack.c.l.b16 %v6064
      %v6194 = vunpack.c.l.b16 %v6078
      %v6195 = vunpack.c.l.b16 %v6092
      %v6196 = vunpack.c.l.b16 %v6106
      %v6197 = vunpack.c.l.b16 %v6120
      %v6198 = vunpack.c.l.b16 %v6134
      %v6199 = vrot.slane %v6136, 7
      %v6200 = vsel %vm1816, %v6199, %v6135
      %v6201 = vrot.slane %v6137, 6
      %v6202 = vsel %vm1819, %v6201, %v6200
      %v6203 = vrot.slane %v6138, 5
      %v6204 = vsel %vm1822, %v6203, %v6202
      %v6205 = vrot.slane %v6139, 4
      %v6206 = vsel %vm1825, %v6205, %v6204
      %v6207 = vrot.slane %v6140, 3
      %v6208 = vsel %vm1828, %v6207, %v6206
      %v6209 = vrot.slane %v6141, 2
      %v6210 = vsel %vm1831, %v6209, %v6208
      %v6211 = vrot.slane %v6142, 1
      %v6212 = vsel %vm1834, %v6211, %v6210
      %v6213 = vrot.slane %v6144, 7
      %v6214 = vsel %vm1816, %v6213, %v6143
      %v6215 = vrot.slane %v6145, 6
      %v6216 = vsel %vm1819, %v6215, %v6214
      %v6217 = vrot.slane %v6146, 5
      %v6218 = vsel %vm1822, %v6217, %v6216
      %v6219 = vrot.slane %v6147, 4
      %v6220 = vsel %vm1825, %v6219, %v6218
      %v6221 = vrot.slane %v6148, 3
      %v6222 = vsel %vm1828, %v6221, %v6220
      %v6223 = vrot.slane %v6149, 2
      %v6224 = vsel %vm1831, %v6223, %v6222
      %v6225 = vrot.slane %v6150, 1
      %v6226 = vsel %vm1834, %v6225, %v6224
      %v6227 = vrot.slane %v6152, 7
      %v6228 = vsel %vm1816, %v6227, %v6151
      %v6229 = vrot.slane %v6153, 6
      %v6230 = vsel %vm1819, %v6229, %v6228
      %v6231 = vrot.slane %v6154, 5
      %v6232 = vsel %vm1822, %v6231, %v6230
      %v6233 = vrot.slane %v6155, 4
      %v6234 = vsel %vm1825, %v6233, %v6232
      %v6235 = vrot.slane %v6156, 3
      %v6236 = vsel %vm1828, %v6235, %v6234
      %v6237 = vrot.slane %v6157, 2
      %v6238 = vsel %vm1831, %v6237, %v6236
      %v6239 = vrot.slane %v6158, 1
      %v6240 = vsel %vm1834, %v6239, %v6238
      %v6241 = vrot.slane %v6160, 7
      %v6242 = vsel %vm1816, %v6241, %v6159
      %v6243 = vrot.slane %v6161, 6
      %v6244 = vsel %vm1819, %v6243, %v6242
      %v6245 = vrot.slane %v6162, 5
      %v6246 = vsel %vm1822, %v6245, %v6244
      %v6247 = vrot.slane %v6163, 4
      %v6248 = vsel %vm1825, %v6247, %v6246
      %v6249 = vrot.slane %v6164, 3
      %v6250 = vsel %vm1828, %v6249, %v6248
      %v6251 = vrot.slane %v6165, 2
      %v6252 = vsel %vm1831, %v6251, %v6250
      %v6253 = vrot.slane %v6166, 1
      %v6254 = vsel %vm1834, %v6253, %v6252
      %v6255 = vrot.slane %v6168, 7
      %v6256 = vsel %vm1816, %v6255, %v6167
      %v6257 = vrot.slane %v6169, 6
      %v6258 = vsel %vm1819, %v6257, %v6256
      %v6259 = vrot.slane %v6170, 5
      %v6260 = vsel %vm1822, %v6259, %v6258
      %v6261 = vrot.slane %v6171, 4
      %v6262 = vsel %vm1825, %v6261, %v6260
      %v6263 = vrot.slane %v6172, 3
      %v6264 = vsel %vm1828, %v6263, %v6262
      %v6265 = vrot.slane %v6173, 2
      %v6266 = vsel %vm1831, %v6265, %v6264
      %v6267 = vrot.slane %v6174, 1
      %v6268 = vsel %vm1834, %v6267, %v6266
      %v6269 = vrot.slane %v6176, 7
      %v6270 = vsel %vm1816, %v6269, %v6175
      %v6271 = vrot.slane %v6177, 6
      %v6272 = vsel %vm1819, %v6271, %v6270
      %v6273 = vrot.slane %v6178, 5
      %v6274 = vsel %vm1822, %v6273, %v6272
      %v6275 = vrot.slane %v6179, 4
      %v6276 = vsel %vm1825, %v6275, %v6274
      %v6277 = vrot.slane %v6180, 3
      %v6278 = vsel %vm1828, %v6277, %v6276
      %v6279 = vrot.slane %v6181, 2
      %v6280 = vsel %vm1831, %v6279, %v6278
      %v6281 = vrot.slane %v6182, 1
      %v6282 = vsel %vm1834, %v6281, %v6280
      %v6283 = vrot.slane %v6184, 7
      %v6284 = vsel %vm1816, %v6283, %v6183
      %v6285 = vrot.slane %v6185, 6
      %v6286 = vsel %vm1819, %v6285, %v6284
      %v6287 = vrot.slane %v6186, 5
      %v6288 = vsel %vm1822, %v6287, %v6286
      %v6289 = vrot.slane %v6187, 4
      %v6290 = vsel %vm1825, %v6289, %v6288
      %v6291 = vrot.slane %v6188, 3
      %v6292 = vsel %vm1828, %v6291, %v6290
      %v6293 = vrot.slane %v6189, 2
      %v6294 = vsel %vm1831, %v6293, %v6292
      %v6295 = vrot.slane %v6190, 1
      %v6296 = vsel %vm1834, %v6295, %v6294
      %v6297 = vrot.slane %v6192, 7
      %v6298 = vsel %vm1816, %v6297, %v6191
      %v6299 = vrot.slane %v6193, 6
      %v6300 = vsel %vm1819, %v6299, %v6298
      %v6301 = vrot.slane %v6194, 5
      %v6302 = vsel %vm1822, %v6301, %v6300
      %v6303 = vrot.slane %v6195, 4
      %v6304 = vsel %vm1825, %v6303, %v6302
      %v6305 = vrot.slane %v6196, 3
      %v6306 = vsel %vm1828, %v6305, %v6304
      %v6307 = vrot.slane %v6197, 2
      %v6308 = vsel %vm1831, %v6307, %v6306
      %v6309 = vrot.slane %v6198, 1
      %v6310 = vsel %vm1834, %v6309, %v6308
      %v6311 = vpack.c.b16 %v6226, %v6212
      %v6312 = vpack.c.b16 %v6254, %v6240
      %v6313 = vpack.c.b16 %v6282, %v6268
      %v6314 = vpack.c.b16 %v6310, %v6296
      %v6316 = vsel %vm1938, %v6311, 0
      %v6319 = vsel %vm1938, %v6312, 0
      %v6322 = vsel %vm1938, %v6313, 0
      %v6325 = vsel %vm1938, %v6314, 0
      %v6328 = vand.u32 %v5238, %v1954
      %6330 = vmatprep.subr.bf16.mxu0 0
      %6331 = vmatpush1.bf16.msra.mxu0 %v6328
      %6332 = vmatprep.subr.bf16.mxu0 0
      %6333 = vmatpush1.bf16.msra.mxu0 0
      %6334 = vmatprep.subr.bf16.mxu0 0
      %6335 = vmatpush1.bf16.msra.mxu0 0
      %6336 = vmatprep.subr.bf16.mxu0 0
      %6337 = vmatpush1.bf16.msra.mxu0 0
      %6338 = vmatprep.subr.bf16.mxu0 0
      %6339 = vmatpush1.bf16.msra.mxu0 0
      %6340 = vmatprep.subr.bf16.mxu0 0
      %6341 = vmatpush1.bf16.msra.mxu0 0
      %6342 = vmatprep.subr.bf16.mxu0 0
      %6343 = vmatpush1.bf16.msra.mxu0 0
      %6344 = vmatprep.subr.bf16.mxu0 0
      %6345 = vmatpush1.bf16.msra.mxu0 0
      %6346 = vmatprep.subr.bf16.mxu0 0
      %6347 = vmatpush1.bf16.msra.mxu0 0
      %6348 = vmatprep.subr.bf16.mxu0 0
      %6349 = vmatpush1.bf16.msra.mxu0 0
      %6350 = vmatprep.subr.bf16.mxu0 0
      %6351 = vmatpush1.bf16.msra.mxu0 0
      %6352 = vmatprep.subr.bf16.mxu0 0
      %6353 = vmatpush1.bf16.msra.mxu0 0
      %6354 = vmatprep.subr.bf16.mxu0 0
      %6355 = vmatpush1.bf16.msra.mxu0 0
      %6356 = vmatprep.subr.bf16.mxu0 0
      %6357 = vmatpush1.bf16.msra.mxu0 0
      %6358 = vmatprep.subr.bf16.mxu0 0
      %6359 = vmatpush1.bf16.msra.mxu0 0
      %6360 = vmatprep.subr.bf16.mxu0 0
      %6361 = vmatpush1.bf16.msra.mxu0 0
      %6362 = vmatprep.mubr.bf16.mxu0 0
      %6363 = vmatmul.mubr.bf16.gmra.mrb[0].mxu0 %v6316
      %v6364 = vpop.f32.mrb[0].mxu0
      %v6365 = vadd.f32 0.0, %v6364
      %v6366 = vpop.f32.mrb[0].mxu0
      %v6367 = vpop.f32.mrb[0].mxu0
      %v6368 = vadd.f32 0.0, %v6367
      %v6369 = vpop.f32.mrb[0].mxu0
      %6370 = vmatprep.mubr.bf16.mxu0 0
      %6371 = vmatmul.mubr.bf16.gmra.mrb[0].mxu0 %v6319
      %v6372 = vpop.f32.mrb[0].mxu0
      %v6373 = vadd.f32 0.0, %v6372
      %v6374 = vpop.f32.mrb[0].mxu0
      %v6375 = vpop.f32.mrb[0].mxu0
      %v6376 = vadd.f32 0.0, %v6375
      %v6377 = vpop.f32.mrb[0].mxu0
      %6378 = vmatprep.mubr.bf16.mxu0 0
      %6379 = vmatmul.mubr.bf16.gmra.mrb[0].mxu0 %v6322
      %v6380 = vpop.f32.mrb[0].mxu0
      %v6381 = vadd.f32 0.0, %v6380
      %v6382 = vpop.f32.mrb[0].mxu0
      %v6383 = vpop.f32.mrb[0].mxu0
      %v6384 = vadd.f32 0.0, %v6383
      %v6385 = vpop.f32.mrb[0].mxu0
      %6386 = vmatprep.mubr.bf16.mxu0 0
      %6387 = vmatmul.mubr.bf16.gmra.mrb[0].mxu0 %v6325
      %v6388 = vpop.f32.mrb[0].mxu0
      %v6389 = vadd.f32 0.0, %v6388
      %v6390 = vpop.f32.mrb[0].mxu0
      %v6391 = vpop.f32.mrb[0].mxu0
      %v6392 = vadd.f32 0.0, %v6391
      %v6393 = vpop.f32.mrb[0].mxu0
      %6394 = vdwg.mxu0
      %v6395 = vadd.f32 %v4684, %v6365
      %v6396 = vadd.f32 %v4685, %v6368
      %v6397 = vadd.f32 %v4686, %v6373
      %v6398 = vadd.f32 %v4687, %v6376
      %v6399 = vadd.f32 %v4688, %v6381
      %v6400 = vadd.f32 %v4689, %v6384
      %v6401 = vadd.f32 %v4690, %v6389
      %v6402 = vadd.f32 %v4691, %v6392
      %s6403 = scalar_lea.vmem %s1, 14
      %v6404 = vld [vmem:[%s6403] sm:$0x3]
      %v6405 = vrot.slane %v6135, 1
      %v6406 = vsel %vm1816, %v6136, %v6405
      %v6407 = vrot.slane %v6137, 7
      %v6408 = vsel %vm1819, %v6407, %v6406
      %v6409 = vrot.slane %v6138, 6
      %v6410 = vsel %vm1822, %v6409, %v6408
      %v6411 = vrot.slane %v6139, 5
      %v6412 = vsel %vm1825, %v6411, %v6410
      %v6413 = vrot.slane %v6140, 4
      %v6414 = vsel %vm1828, %v6413, %v6412
      %v6415 = vrot.slane %v6141, 3
      %v6416 = vsel %vm1831, %v6415, %v6414
      %v6417 = vrot.slane %v6142, 2
      %v6418 = vsel %vm1834, %v6417, %v6416
      %v6419 = vrot.slane %v6143, 1
      %v6420 = vsel %vm1816, %v6144, %v6419
      %v6421 = vrot.slane %v6145, 7
      %v6422 = vsel %vm1819, %v6421, %v6420
      %v6423 = vrot.slane %v6146, 6
      %v6424 = vsel %vm1822, %v6423, %v6422
      %v6425 = vrot.slane %v6147, 5
      %v6426 = vsel %vm1825, %v6425, %v6424
      %v6427 = vrot.slane %v6148, 4
      %v6428 = vsel %vm1828, %v6427, %v6426
      %v6429 = vrot.slane %v6149, 3
      %v6430 = vsel %vm1831, %v6429, %v6428
      %v6431 = vrot.slane %v6150, 2
      %v6432 = vsel %vm1834, %v6431, %v6430
      %v6433 = vrot.slane %v6151, 1
      %v6434 = vsel %vm1816, %v6152, %v6433
      %v6435 = vrot.slane %v6153, 7
      %v6436 = vsel %vm1819, %v6435, %v6434
      %v6437 = vrot.slane %v6154, 6
      %v6438 = vsel %vm1822, %v6437, %v6436
      %v6439 = vrot.slane %v6155, 5
      %v6440 = vsel %vm1825, %v6439, %v6438
      %v6441 = vrot.slane %v6156, 4
      %v6442 = vsel %vm1828, %v6441, %v6440
      %v6443 = vrot.slane %v6157, 3
      %v6444 = vsel %vm1831, %v6443, %v6442
      %v6445 = vrot.slane %v6158, 2
      %v6446 = vsel %vm1834, %v6445, %v6444
      %v6447 = vrot.slane %v6159, 1
      %v6448 = vsel %vm1816, %v6160, %v6447
      %v6449 = vrot.slane %v6161, 7
      %v6450 = vsel %vm1819, %v6449, %v6448
      %v6451 = vrot.slane %v6162, 6
      %v6452 = vsel %vm1822, %v6451, %v6450
      %v6453 = vrot.slane %v6163, 5
      %v6454 = vsel %vm1825, %v6453, %v6452
      %v6455 = vrot.slane %v6164, 4
      %v6456 = vsel %vm1828, %v6455, %v6454
      %v6457 = vrot.slane %v6165, 3
      %v6458 = vsel %vm1831, %v6457, %v6456
      %v6459 = vrot.slane %v6166, 2
      %v6460 = vsel %vm1834, %v6459, %v6458
      %v6461 = vrot.slane %v6167, 1
      %v6462 = vsel %vm1816, %v6168, %v6461
      %v6463 = vrot.slane %v6169, 7
      %v6464 = vsel %vm1819, %v6463, %v6462
      %v6465 = vrot.slane %v6170, 6
      %v6466 = vsel %vm1822, %v6465, %v6464
      %v6467 = vrot.slane %v6171, 5
      %v6468 = vsel %vm1825, %v6467, %v6466
      %v6469 = vrot.slane %v6172, 4
      %v6470 = vsel %vm1828, %v6469, %v6468
      %v6471 = vrot.slane %v6173, 3
      %v6472 = vsel %vm1831, %v6471, %v6470
      %v6473 = vrot.slane %v6174, 2
      %v6474 = vsel %vm1834, %v6473, %v6472
      %v6475 = vrot.slane %v6175, 1
      %v6476 = vsel %vm1816, %v6176, %v6475
      %v6477 = vrot.slane %v6177, 7
      %v6478 = vsel %vm1819, %v6477, %v6476
      %v6479 = vrot.slane %v6178, 6
      %v6480 = vsel %vm1822, %v6479, %v6478
      %v6481 = vrot.slane %v6179, 5
      %v6482 = vsel %vm1825, %v6481, %v6480
      %v6483 = vrot.slane %v6180, 4
      %v6484 = vsel %vm1828, %v6483, %v6482
      %v6485 = vrot.slane %v6181, 3
      %v6486 = vsel %vm1831, %v6485, %v6484
      %v6487 = vrot.slane %v6182, 2
      %v6488 = vsel %vm1834, %v6487, %v6486
      %v6489 = vrot.slane %v6183, 1
      %v6490 = vsel %vm1816, %v6184, %v6489
      %v6491 = vrot.slane %v6185, 7
      %v6492 = vsel %vm1819, %v6491, %v6490
      %v6493 = vrot.slane %v6186, 6
      %v6494 = vsel %vm1822, %v6493, %v6492
      %v6495 = vrot.slane %v6187, 5
      %v6496 = vsel %vm1825, %v6495, %v6494
      %v6497 = vrot.slane %v6188, 4
      %v6498 = vsel %vm1828, %v6497, %v6496
      %v6499 = vrot.slane %v6189, 3
      %v6500 = vsel %vm1831, %v6499, %v6498
      %v6501 = vrot.slane %v6190, 2
      %v6502 = vsel %vm1834, %v6501, %v6500
      %v6503 = vrot.slane %v6191, 1
      %v6504 = vsel %vm1816, %v6192, %v6503
      %v6505 = vrot.slane %v6193, 7
      %v6506 = vsel %vm1819, %v6505, %v6504
      %v6507 = vrot.slane %v6194, 6
      %v6508 = vsel %vm1822, %v6507, %v6506
      %v6509 = vrot.slane %v6195, 5
      %v6510 = vsel %vm1825, %v6509, %v6508
      %v6511 = vrot.slane %v6196, 4
      %v6512 = vsel %vm1828, %v6511, %v6510
      %v6513 = vrot.slane %v6197, 3
      %v6514 = vsel %vm1831, %v6513, %v6512
      %v6515 = vrot.slane %v6198, 2
      %v6516 = vsel %vm1834, %v6515, %v6514
      %v6517 = vpack.c.b16 %v6432, %v6418
      %v6518 = vpack.c.b16 %v6460, %v6446
      %v6519 = vpack.c.b16 %v6488, %v6474
      %v6520 = vpack.c.b16 %v6516, %v6502
      %v6522 = vsel %vm1938, %v6517, 0
      %v6525 = vsel %vm1938, %v6518, 0
      %v6528 = vsel %vm1938, %v6519, 0
      %v6531 = vsel %vm1938, %v6520, 0
      %v6534 = vand.u32 %v6404, %v1954
      %6536 = vmatprep.subr.bf16.mxu0 0
      %6537 = vmatpush1.bf16.msra.mxu0 %v6534
      %6538 = vmatprep.subr.bf16.mxu0 0
      %6539 = vmatpush1.bf16.msra.mxu0 0
      %6540 = vmatprep.subr.bf16.mxu0 0
      %6541 = vmatpush1.bf16.msra.mxu0 0
      %6542 = vmatprep.subr.bf16.mxu0 0
      %6543 = vmatpush1.bf16.msra.mxu0 0
      %6544 = vmatprep.subr.bf16.mxu0 0
      %6545 = vmatpush1.bf16.msra.mxu0 0
      %6546 = vmatprep.subr.bf16.mxu0 0
      %6547 = vmatpush1.bf16.msra.mxu0 0
      %6548 = vmatprep.subr.bf16.mxu0 0
      %6549 = vmatpush1.bf16.msra.mxu0 0
      %6550 = vmatprep.subr.bf16.mxu0 0
      %6551 = vmatpush1.bf16.msra.mxu0 0
      %6552 = vmatprep.subr.bf16.mxu0 0
      %6553 = vmatpush1.bf16.msra.mxu0 0
      %6554 = vmatprep.subr.bf16.mxu0 0
      %6555 = vmatpush1.bf16.msra.mxu0 0
      %6556 = vmatprep.subr.bf16.mxu0 0
      %6557 = vmatpush1.bf16.msra.mxu0 0
      %6558 = vmatprep.subr.bf16.mxu0 0
      %6559 = vmatpush1.bf16.msra.mxu0 0
      %6560 = vmatprep.subr.bf16.mxu0 0
      %6561 = vmatpush1.bf16.msra.mxu0 0
      %6562 = vmatprep.subr.bf16.mxu0 0
      %6563 = vmatpush1.bf16.msra.mxu0 0
      %6564 = vmatprep.subr.bf16.mxu0 0
      %6565 = vmatpush1.bf16.msra.mxu0 0
      %6566 = vmatprep.subr.bf16.mxu0 0
      %6567 = vmatpush1.bf16.msra.mxu0 0
      %6568 = vmatprep.mubr.bf16.mxu0 0
      %6569 = vmatmul.mubr.bf16.gmra.mrb[0].mxu0 %v6522
      %v6570 = vpop.f32.mrb[0].mxu0
      %v6571 = vadd.f32 0.0, %v6570
      %v6572 = vpop.f32.mrb[0].mxu0
      %v6573 = vpop.f32.mrb[0].mxu0
      %v6574 = vadd.f32 0.0, %v6573
      %v6575 = vpop.f32.mrb[0].mxu0
      %6576 = vmatprep.mubr.bf16.mxu0 0
      %6577 = vmatmul.mubr.bf16.gmra.mrb[0].mxu0 %v6525
      %v6578 = vpop.f32.mrb[0].mxu0
      %v6579 = vadd.f32 0.0, %v6578
      %v6580 = vpop.f32.mrb[0].mxu0
      %v6581 = vpop.f32.mrb[0].mxu0
      %v6582 = vadd.f32 0.0, %v6581
      %v6583 = vpop.f32.mrb[0].mxu0
      %6584 = vmatprep.mubr.bf16.mxu0 0
      %6585 = vmatmul.mubr.bf16.gmra.mrb[0].mxu0 %v6528
      %v6586 = vpop.f32.mrb[0].mxu0
      %v6587 = vadd.f32 0.0, %v6586
      %v6588 = vpop.f32.mrb[0].mxu0
      %v6589 = vpop.f32.mrb[0].mxu0
      %v6590 = vadd.f32 0.0, %v6589
      %v6591 = vpop.f32.mrb[0].mxu0
      %6592 = vmatprep.mubr.bf16.mxu0 0
      %6593 = vmatmul.mubr.bf16.gmra.mrb[0].mxu0 %v6531
      %v6594 = vpop.f32.mrb[0].mxu0
      %v6595 = vadd.f32 0.0, %v6594
      %v6596 = vpop.f32.mrb[0].mxu0
      %v6597 = vpop.f32.mrb[0].mxu0
      %v6598 = vadd.f32 0.0, %v6597
      %v6599 = vpop.f32.mrb[0].mxu0
      %6600 = vdwg.mxu0
      %v6601 = vadd.f32 %v6395, %v6571
      %v6602 = vadd.f32 %v6396, %v6574
      %v6603 = vadd.f32 %v6397, %v6579
      %v6604 = vadd.f32 %v6398, %v6582
      %v6605 = vadd.f32 %v6399, %v6587
      %v6606 = vadd.f32 %v6400, %v6590
      %v6607 = vadd.f32 %v6401, %v6595
      %v6608 = vadd.f32 %v6402, %v6598
      %s6609 = scalar_lea.vmem %s1, 16
      %v6610 = vld [vmem:[%s6609] sm:$0x3]
      %v6612 = vunpack.c.l.s4 1966171168
      %v6613 = vunpack.c.0.s8 %v6612
      %v6614 = vlaneseq
      %v6615 = vshrl.u32 %v6614, 7
      %v6616 = vsub.s32 %v6613, %v6615
      %v6617 = vrot.slane %v4802, %v6616
      %v6619 = vunpack.c.l.s4 1966171168
      %v6620 = vunpack.c.0.s8 %v6619
      %v6621 = vlaneseq
      %v6622 = vshrl.u32 %v6621, 7
      %v6623 = vsub.s32 %v6620, %v6622
      %v6624 = vrot.slane %v6617, %v6623
      %v6626 = vunpack.c.l.s4 1966171168
      %v6627 = vunpack.c.0.s8 %v6626
      %v6628 = vlaneseq
      %v6629 = vshrl.u32 %v6628, 7
      %v6630 = vsub.s32 %v6627, %v6629
      %v6631 = vrot.slane %v4864, %v6630
      %v6633 = vunpack.c.l.s4 1966171168
      %v6634 = vunpack.c.0.s8 %v6633
      %v6635 = vlaneseq
      %v6636 = vshrl.u32 %v6635, 7
      %v6637 = vsub.s32 %v6634, %v6636
      %v6638 = vrot.slane %v6631, %v6637
      %v6640 = vunpack.c.l.s4 1966171168
      %v6641 = vunpack.c.0.s8 %v6640
      %v6642 = vlaneseq
      %v6643 = vshrl.u32 %v6642, 7
      %v6644 = vsub.s32 %v6641, %v6643
      %v6645 = vrot.slane %v4926, %v6644
      %v6647 = vunpack.c.l.s4 1966171168
      %v6648 = vunpack.c.0.s8 %v6647
      %v6649 = vlaneseq
      %v6650 = vshrl.u32 %v6649, 7
      %v6651 = vsub.s32 %v6648, %v6650
      %v6652 = vrot.slane %v6645, %v6651
      %v6654 = vunpack.c.l.s4 1966171168
      %v6655 = vunpack.c.0.s8 %v6654
      %v6656 = vlaneseq
      %v6657 = vshrl.u32 %v6656, 7
      %v6658 = vsub.s32 %v6655, %v6657
      %v6659 = vrot.slane %v4988, %v6658
      %v6661 = vunpack.c.l.s4 1966171168
      %v6662 = vunpack.c.0.s8 %v6661
      %v6663 = vlaneseq
      %v6664 = vshrl.u32 %v6663, 7
      %v6665 = vsub.s32 %v6662, %v6664
      %v6666 = vrot.slane %v6659, %v6665
      %v6668 = vunpack.c.l.s4 1966171168
      %v6669 = vunpack.c.0.s8 %v6668
      %v6670 = vlaneseq
      %v6671 = vshrl.u32 %v6670, 7
      %v6672 = vsub.s32 %v6669, %v6671
      %v6673 = vrot.slane %v5050, %v6672
      %v6675 = vunpack.c.l.s4 1966171168
      %v6676 = vunpack.c.0.s8 %v6675
      %v6677 = vlaneseq
      %v6678 = vshrl.u32 %v6677, 7
      %v6679 = vsub.s32 %v6676, %v6678
      %v6680 = vrot.slane %v6673, %v6679
      %v6682 = vunpack.c.l.s4 1966171168
      %v6683 = vunpack.c.0.s8 %v6682
      %v6684 = vlaneseq
      %v6685 = vshrl.u32 %v6684, 7
      %v6686 = vsub.s32 %v6683, %v6685
      %v6687 = vrot.slane %v5112, %v6686
      %v6689 = vunpack.c.l.s4 1966171168
      %v6690 = vunpack.c.0.s8 %v6689
      %v6691 = vlaneseq
      %v6692 = vshrl.u32 %v6691, 7
      %v6693 = vsub.s32 %v6690, %v6692
      %v6694 = vrot.slane %v6687, %v6693
      %v6696 = vunpack.c.l.s4 1966171168
      %v6697 = vunpack.c.0.s8 %v6696
      %v6698 = vlaneseq
      %v6699 = vshrl.u32 %v6698, 7
      %v6700 = vsub.s32 %v6697, %v6699
      %v6701 = vrot.slane %v5174, %v6700
      %v6703 = vunpack.c.l.s4 1966171168
      %v6704 = vunpack.c.0.s8 %v6703
      %v6705 = vlaneseq
      %v6706 = vshrl.u32 %v6705, 7
      %v6707 = vsub.s32 %v6704, %v6706
      %v6708 = vrot.slane %v6701, %v6707
      %v6710 = vunpack.c.l.s4 1966171168
      %v6711 = vunpack.c.0.s8 %v6710
      %v6712 = vlaneseq
      %v6713 = vshrl.u32 %v6712, 7
      %v6714 = vsub.s32 %v6711, %v6713
      %v6715 = vrot.slane %v5236, %v6714
      %v6717 = vunpack.c.l.s4 1966171168
      %v6718 = vunpack.c.0.s8 %v6717
      %v6719 = vlaneseq
      %v6720 = vshrl.u32 %v6719, 7
      %v6721 = vsub.s32 %v6718, %v6720
      %v6722 = vrot.slane %v6715, %v6721
      %v6723 = vunpack.c.l.b16 %v6624
      %v6724 = vunpack.c.l.b16 %v6638
      %v6725 = vunpack.c.l.b16 %v6652
      %v6726 = vunpack.c.l.b16 %v6666
      %v6727 = vunpack.c.l.b16 %v6680
      %v6728 = vunpack.c.l.b16 %v6694
      %v6729 = vunpack.c.l.b16 %v6708
      %v6730 = vunpack.c.l.b16 %v6722
      %v6731 = vsel %vm1816, %v6407, %v6136
      %v6732 = vsel %vm1819, %v6409, %v6731
      %v6733 = vsel %vm1822, %v6411, %v6732
      %v6734 = vsel %vm1825, %v6413, %v6733
      %v6735 = vsel %vm1828, %v6415, %v6734
      %v6736 = vsel %vm1831, %v6417, %v6735
      %v6737 = vrot.slane %v6723, 1
      %v6738 = vsel %vm1834, %v6737, %v6736
      %v6739 = vsel %vm1816, %v6421, %v6144
      %v6740 = vsel %vm1819, %v6423, %v6739
      %v6741 = vsel %vm1822, %v6425, %v6740
      %v6742 = vsel %vm1825, %v6427, %v6741
      %v6743 = vsel %vm1828, %v6429, %v6742
      %v6744 = vsel %vm1831, %v6431, %v6743
      %v6745 = vrot.slane %v6724, 1
      %v6746 = vsel %vm1834, %v6745, %v6744
      %v6747 = vsel %vm1816, %v6435, %v6152
      %v6748 = vsel %vm1819, %v6437, %v6747
      %v6749 = vsel %vm1822, %v6439, %v6748
      %v6750 = vsel %vm1825, %v6441, %v6749
      %v6751 = vsel %vm1828, %v6443, %v6750
      %v6752 = vsel %vm1831, %v6445, %v6751
      %v6753 = vrot.slane %v6725, 1
      %v6754 = vsel %vm1834, %v6753, %v6752
      %v6755 = vsel %vm1816, %v6449, %v6160
      %v6756 = vsel %vm1819, %v6451, %v6755
      %v6757 = vsel %vm1822, %v6453, %v6756
      %v6758 = vsel %vm1825, %v6455, %v6757
      %v6759 = vsel %vm1828, %v6457, %v6758
      %v6760 = vsel %vm1831, %v6459, %v6759
      %v6761 = vrot.slane %v6726, 1
      %v6762 = vsel %vm1834, %v6761, %v6760
      %v6763 = vsel %vm1816, %v6463, %v6168
      %v6764 = vsel %vm1819, %v6465, %v6763
      %v6765 = vsel %vm1822, %v6467, %v6764
      %v6766 = vsel %vm1825, %v6469, %v6765
      %v6767 = vsel %vm1828, %v6471, %v6766
      %v6768 = vsel %vm1831, %v6473, %v6767
      %v6769 = vrot.slane %v6727, 1
      %v6770 = vsel %vm1834, %v6769, %v6768
      %v6771 = vsel %vm1816, %v6477, %v6176
      %v6772 = vsel %vm1819, %v6479, %v6771
      %v6773 = vsel %vm1822, %v6481, %v6772
      %v6774 = vsel %vm1825, %v6483, %v6773
      %v6775 = vsel %vm1828, %v6485, %v6774
      %v6776 = vsel %vm1831, %v6487, %v6775
      %v6777 = vrot.slane %v6728, 1
      %v6778 = vsel %vm1834, %v6777, %v6776
      %v6779 = vsel %vm1816, %v6491, %v6184
      %v6780 = vsel %vm1819, %v6493, %v6779
      %v6781 = vsel %vm1822, %v6495, %v6780
      %v6782 = vsel %vm1825, %v6497, %v6781
      %v6783 = vsel %vm1828, %v6499, %v6782
      %v6784 = vsel %vm1831, %v6501, %v6783
      %v6785 = vrot.slane %v6729, 1
      %v6786 = vsel %vm1834, %v6785, %v6784
      %v6787 = vsel %vm1816, %v6505, %v6192
      %v6788 = vsel %vm1819, %v6507, %v6787
      %v6789 = vsel %vm1822, %v6509, %v6788
      %v6790 = vsel %vm1825, %v6511, %v6789
      %v6791 = vsel %vm1828, %v6513, %v6790
      %v6792 = vsel %vm1831, %v6515, %v6791
      %v6793 = vrot.slane %v6730, 1
      %v6794 = vsel %vm1834, %v6793, %v6792
      %v6795 = vpack.c.b16 %v6746, %v6738
      %v6796 = vpack.c.b16 %v6762, %v6754
      %v6797 = vpack.c.b16 %v6778, %v6770
      %v6798 = vpack.c.b16 %v6794, %v6786
      %v6800 = vsel %vm1938, %v6795, 0
      %v6803 = vsel %vm1938, %v6796, 0
      %v6806 = vsel %vm1938, %v6797, 0
      %v6809 = vsel %vm1938, %v6798, 0
      %v6812 = vand.u32 %v6610, %v1954
      %6814 = vmatprep.subr.bf16.mxu0 0
      %6815 = vmatpush1.bf16.msra.mxu0 %v6812
      %6816 = vmatprep.subr.bf16.mxu0 0
      %6817 = vmatpush1.bf16.msra.mxu0 0
      %6818 = vmatprep.subr.bf16.mxu0 0
      %6819 = vmatpush1.bf16.msra.mxu0 0
      %6820 = vmatprep.subr.bf16.mxu0 0
      %6821 = vmatpush1.bf16.msra.mxu0 0
      %6822 = vmatprep.subr.bf16.mxu0 0
      %6823 = vmatpush1.bf16.msra.mxu0 0
      %6824 = vmatprep.subr.bf16.mxu0 0
      %6825 = vmatpush1.bf16.msra.mxu0 0
      %6826 = vmatprep.subr.bf16.mxu0 0
      %6827 = vmatpush1.bf16.msra.mxu0 0
      %6828 = vmatprep.subr.bf16.mxu0 0
      %6829 = vmatpush1.bf16.msra.mxu0 0
      %6830 = vmatprep.subr.bf16.mxu0 0
      %6831 = vmatpush1.bf16.msra.mxu0 0
      %6832 = vmatprep.subr.bf16.mxu0 0
      %6833 = vmatpush1.bf16.msra.mxu0 0
      %6834 = vmatprep.subr.bf16.mxu0 0
      %6835 = vmatpush1.bf16.msra.mxu0 0
      %6836 = vmatprep.subr.bf16.mxu0 0
      %6837 = vmatpush1.bf16.msra.mxu0 0
      %6838 = vmatprep.subr.bf16.mxu0 0
      %6839 = vmatpush1.bf16.msra.mxu0 0
      %6840 = vmatprep.subr.bf16.mxu0 0
      %6841 = vmatpush1.bf16.msra.mxu0 0
      %6842 = vmatprep.subr.bf16.mxu0 0
      %6843 = vmatpush1.bf16.msra.mxu0 0
      %6844 = vmatprep.subr.bf16.mxu0 0
      %6845 = vmatpush1.bf16.msra.mxu0 0
      %6846 = vmatprep.mubr.bf16.mxu0 0
      %6847 = vmatmul.mubr.bf16.gmra.mrb[0].mxu0 %v6800
      %v6848 = vpop.f32.mrb[0].mxu0
      %v6849 = vadd.f32 0.0, %v6848
      %v6850 = vpop.f32.mrb[0].mxu0
      %v6851 = vpop.f32.mrb[0].mxu0
      %v6852 = vadd.f32 0.0, %v6851
      %v6853 = vpop.f32.mrb[0].mxu0
      %6854 = vmatprep.mubr.bf16.mxu0 0
      %6855 = vmatmul.mubr.bf16.gmra.mrb[0].mxu0 %v6803
      %v6856 = vpop.f32.mrb[0].mxu0
      %v6857 = vadd.f32 0.0, %v6856
      %v6858 = vpop.f32.mrb[0].mxu0
      %v6859 = vpop.f32.mrb[0].mxu0
      %v6860 = vadd.f32 0.0, %v6859
      %v6861 = vpop.f32.mrb[0].mxu0
      %6862 = vmatprep.mubr.bf16.mxu0 0
      %6863 = vmatmul.mubr.bf16.gmra.mrb[0].mxu0 %v6806
      %v6864 = vpop.f32.mrb[0].mxu0
      %v6865 = vadd.f32 0.0, %v6864
      %v6866 = vpop.f32.mrb[0].mxu0
      %v6867 = vpop.f32.mrb[0].mxu0
      %v6868 = vadd.f32 0.0, %v6867
      %v6869 = vpop.f32.mrb[0].mxu0
      %6870 = vmatprep.mubr.bf16.mxu0 0
      %6871 = vmatmul.mubr.bf16.gmra.mrb[0].mxu0 %v6809
      %v6872 = vpop.f32.mrb[0].mxu0
      %v6873 = vadd.f32 0.0, %v6872
      %v6874 = vpop.f32.mrb[0].mxu0
      %v6875 = vpop.f32.mrb[0].mxu0
      %v6876 = vadd.f32 0.0, %v6875
      %v6877 = vpop.f32.mrb[0].mxu0
      %6878 = vdwg.mxu0
      %v6879 = vadd.f32 %v6601, %v6849
      %v6880 = vadd.f32 %v6602, %v6852
      %v6881 = vadd.f32 %v6603, %v6857
      %v6882 = vadd.f32 %v6604, %v6860
      %v6883 = vadd.f32 %v6605, %v6865
      %v6884 = vadd.f32 %v6606, %v6868
      %v6885 = vadd.f32 %v6607, %v6873
      %v6886 = vadd.f32 %v6608, %v6876
      %v6887 = vld [vmem:[%s2] sm:$0x1]
      %v6889 = vlaneseq
      %v6890 = vshrl.u32 %v6889, 7
      %v6891 = vsub.s32 0, %v6890
      %v6892 = vrot.slane %v6887, %v6891
      %v6894 = vadd.f32 %v6879, %v6892
      %v6895 = vadd.f32 %v6880, %v6892
      %v6896 = vadd.f32 %v6881, %v6892
      %v6897 = vadd.f32 %v6882, %v6892
      %v6898 = vadd.f32 %v6883, %v6892
      %v6899 = vadd.f32 %v6884, %v6892
      %v6900 = vadd.f32 %v6885, %v6892
      %v6901 = vadd.f32 %v6886, %v6892
      %vm6902 = vcmp.ge.f32.partialorder %v6894, 0.0
      %vm6903 = vcmp.ge.f32.partialorder %v6895, 0.0
      %vm6904 = vcmp.ge.f32.partialorder %v6896, 0.0
      %vm6905 = vcmp.ge.f32.partialorder %v6897, 0.0
      %vm6906 = vcmp.ge.f32.partialorder %v6898, 0.0
      %vm6907 = vcmp.ge.f32.partialorder %v6899, 0.0
      %vm6908 = vcmp.ge.f32.partialorder %v6900, 0.0
      %vm6909 = vcmp.ge.f32.partialorder %v6901, 0.0
      %v6910 = vmul.f32 %v6894, 0.01
      %v6911 = vmul.f32 %v6895, 0.01
      %v6912 = vmul.f32 %v6896, 0.01
      %v6913 = vmul.f32 %v6897, 0.01
      %v6914 = vmul.f32 %v6898, 0.01
      %v6915 = vmul.f32 %v6899, 0.01
      %v6916 = vmul.f32 %v6900, 0.01
      %v6917 = vmul.f32 %v6901, 0.01
      %v6918 = vsel %vm6902, %v6894, %v6910
      %v6919 = vsel %vm6903, %v6895, %v6911
      %v6920 = vsel %vm6904, %v6896, %v6912
      %v6921 = vsel %vm6905, %v6897, %v6913
      %v6922 = vsel %vm6906, %v6898, %v6914
      %v6923 = vsel %vm6907, %v6899, %v6915
      %v6924 = vsel %vm6908, %v6900, %v6916
      %v6925 = vsel %vm6909, %v6901, %v6917
      %v6926 = vpack.c.bf16 %v6918, %v6918
      %v6927 = vpack.c.bf16 %v6919, %v6919
      %v6928 = vpack.c.bf16 %v6920, %v6920
      %v6929 = vpack.c.bf16 %v6921, %v6921
      %v6930 = vpack.c.bf16 %v6922, %v6922
      %v6931 = vpack.c.bf16 %v6923, %v6923
      %v6932 = vpack.c.bf16 %v6924, %v6924
      %v6933 = vpack.c.bf16 %v6925, %v6925
      %v6942 = vunpack.c.l.b16 %v6926
      %v6943 = vunpack.c.l.b16 %v6927
      %v6944 = vunpack.c.l.b16 %v6928
      %v6945 = vunpack.c.l.b16 %v6929
      %v6946 = vunpack.c.l.b16 %v6930
      %v6947 = vunpack.c.l.b16 %v6931
      %v6948 = vunpack.c.l.b16 %v6932
      %v6949 = vunpack.c.l.b16 %v6933
      %v6950 = vpack.c.b16 %v6942, %v6942
      %v6951 = vpack.c.b16 %v6943, %v6943
      %v6952 = vpack.c.b16 %v6944, %v6944
      %v6953 = vpack.c.b16 %v6945, %v6945
      %v6954 = vpack.c.b16 %v6946, %v6946
      %v6955 = vpack.c.b16 %v6947, %v6947
      %v6956 = vpack.c.b16 %v6948, %v6948
      %v6957 = vpack.c.b16 %v6949, %v6949
      %v6959 = vshrl.u32 %v6950, 16
      %v6961 = vrot.slane %v6959, 7
      %v6962 = vshll.u32 %v6950, 16
      %v6964 = vor.u32 %v6961, %v6962
      %v6965 = vrot.slane %v6961, 4
      %v6967 = vshrl.u32 %v6951, 16
      %v6969 = vrot.slane %v6967, 7
      %v6970 = vshll.u32 %v6951, 16
      %v6972 = vor.u32 %v6969, %v6970
      %v6973 = vrot.slane %v6969, 4
      %v6975 = vshrl.u32 %v6952, 16
      %v6977 = vrot.slane %v6975, 7
      %v6978 = vshll.u32 %v6952, 16
      %v6980 = vor.u32 %v6977, %v6978
      %v6981 = vrot.slane %v6977, 4
      %v6983 = vshrl.u32 %v6953, 16
      %v6985 = vrot.slane %v6983, 7
      %v6986 = vshll.u32 %v6953, 16
      %v6988 = vor.u32 %v6985, %v6986
      %v6989 = vrot.slane %v6985, 4
      %v6991 = vshrl.u32 %v6954, 16
      %v6993 = vrot.slane %v6991, 7
      %v6994 = vshll.u32 %v6954, 16
      %v6996 = vor.u32 %v6993, %v6994
      %v6997 = vrot.slane %v6993, 4
      %v6999 = vshrl.u32 %v6955, 16
      %v7001 = vrot.slane %v6999, 7
      %v7002 = vshll.u32 %v6955, 16
      %v7004 = vor.u32 %v7001, %v7002
      %v7005 = vrot.slane %v7001, 4
      %v7007 = vshrl.u32 %v6956, 16
      %v7009 = vrot.slane %v7007, 7
      %v7010 = vshll.u32 %v6956, 16
      %v7012 = vor.u32 %v7009, %v7010
      %v7013 = vrot.slane %v7009, 4
      %v7015 = vshrl.u32 %v6957, 16
      %v7017 = vrot.slane %v7015, 7
      %v7018 = vshll.u32 %v6957, 16
      %v7020 = vor.u32 %v7017, %v7018
      %v7021 = vrot.slane %v7017, 4
      %s7038 = scalar_lea.vmem [#allocation2], 8
      %vm7039 = vcmask 519168
      %vm7040 = vsmask.f32 7938
      %vm7041 = vmand %vm7039, %vm7040
      %v7042 = vld [vmem:[%s7038] sm:$0xf]
      %v7043 = vsel %vm7041, %v6964, %v7042
      %7044 = vst [vmem:[%s7038] sm:$0xf] %v7043
      %vm7045 = vcmask 516096
      %vm7046 = vsmask.f32 256
      %vm7047 = vmand %vm7045, %vm7046
      %v7048 = vld [vmem:[%s7038 + $0x4] sm:$0x1]
      %v7049 = vsel %vm7047, %v6965, %v7048
      %7050 = vst [vmem:[%s7038 + $0x4] sm:$0x1] %v7049
      %v7051 = vld [vmem:[%s7038 + $0x8] sm:$0xf]
      %v7052 = vsel %vm7041, %v6972, %v7051
      %7053 = vst [vmem:[%s7038 + $0x8] sm:$0xf] %v7052
      %v7054 = vld [vmem:[%s7038 + $0xc] sm:$0x1]
      %v7055 = vsel %vm7047, %v6973, %v7054
      %7056 = vst [vmem:[%s7038 + $0xc] sm:$0x1] %v7055
      %v7057 = vld [vmem:[%s7038 + $0x10] sm:$0xf]
      %v7058 = vsel %vm7041, %v6980, %v7057
      %7059 = vst [vmem:[%s7038 + $0x10] sm:$0xf] %v7058
      %v7060 = vld [vmem:[%s7038 + $0x14] sm:$0x1]
      %v7061 = vsel %vm7047, %v6981, %v7060
      %7062 = vst [vmem:[%s7038 + $0x14] sm:$0x1] %v7061
      %v7063 = vld [vmem:[%s7038 + $0x18] sm:$0xf]
      %v7064 = vsel %vm7041, %v6988, %v7063
      %7065 = vst [vmem:[%s7038 + $0x18] sm:$0xf] %v7064
      %v7066 = vld [vmem:[%s7038 + $0x1c] sm:$0x1]
      %v7067 = vsel %vm7047, %v6989, %v7066
      %7068 = vst [vmem:[%s7038 + $0x1c] sm:$0x1] %v7067
      %v7069 = vld [vmem:[%s7038 + $0x20] sm:$0xf]
      %v7070 = vsel %vm7041, %v6996, %v7069
      %7071 = vst [vmem:[%s7038 + $0x20] sm:$0xf] %v7070
      %v7072 = vld [vmem:[%s7038 + $0x24] sm:$0x1]
      %v7073 = vsel %vm7047, %v6997, %v7072
      %7074 = vst [vmem:[%s7038 + $0x24] sm:$0x1] %v7073
      %v7075 = vld [vmem:[%s7038 + $0x28] sm:$0xf]
      %v7076 = vsel %vm7041, %v7004, %v7075
      %7077 = vst [vmem:[%s7038 + $0x28] sm:$0xf] %v7076
      %v7078 = vld [vmem:[%s7038 + $0x2c] sm:$0x1]
      %v7079 = vsel %vm7047, %v7005, %v7078
      %7080 = vst [vmem:[%s7038 + $0x2c] sm:$0x1] %v7079
      %v7081 = vld [vmem:[%s7038 + $0x30] sm:$0xf]
      %v7082 = vsel %vm7041, %v7012, %v7081
      %7083 = vst [vmem:[%s7038 + $0x30] sm:$0xf] %v7082
      %v7084 = vld [vmem:[%s7038 + $0x34] sm:$0x1]
      %v7085 = vsel %vm7047, %v7013, %v7084
      %7086 = vst [vmem:[%s7038 + $0x34] sm:$0x1] %v7085
      %v7087 = vld [vmem:[%s7038 + $0x38] sm:$0xf]
      %v7088 = vsel %vm7041, %v7020, %v7087
      %7089 = vst [vmem:[%s7038 + $0x38] sm:$0xf] %v7088
      %v7090 = vld [vmem:[%s7038 + $0x3c] sm:$0x1]
      %v7091 = vsel %vm7047, %v7021, %v7090
      %7092 = vst [vmem:[%s7038 + $0x3c] sm:$0x1] %v7091
      %v7093 = vld [vmem:[#allocation2] sm:$0xf]
      %v7094 = vld [vmem:[#allocation2 + $0x4] sm:$0x1]
      %v7095 = vld [vmem:[#allocation2 + $0x10] sm:$0xf]
      %v7096 = vld [vmem:[#allocation2 + $0x14] sm:$0x1]
      %v7097 = vld [vmem:[#allocation2 + $0x20] sm:$0xf]
      %v7098 = vld [vmem:[#allocation2 + $0x24] sm:$0x1]
      %v7099 = vld [vmem:[#allocation2 + $0x30] sm:$0xf]
      %v7100 = vld [vmem:[#allocation2 + $0x34] sm:$0x1]
      %v7110 = vunpack.c.l.s4 1966171168
      %v7111 = vunpack.c.0.s8 %v7110
      %v7112 = vlaneseq
      %v7113 = vshrl.u32 %v7112, 7
      %v7114 = vsub.s32 %v7111, %v7113
      %v7115 = vrot.slane %v7093, %v7114
      %v7116 = vcombine.high %v7115, %v7115
      %v7118 = vunpack.c.l.s4 1966171168
      %v7119 = vunpack.c.0.s8 %v7118
      %v7120 = vlaneseq
      %v7121 = vshrl.u32 %v7120, 7
      %v7122 = vsub.s32 %v7119, %v7121
      %v7123 = vrot.slane %v7115, %v7122
      %v7125 = vunpack.c.l.s4 1966171168
      %v7126 = vunpack.c.0.s8 %v7125
      %v7127 = vlaneseq
      %v7128 = vshrl.u32 %v7127, 7
      %v7129 = vsub.s32 %v7126, %v7128
      %v7130 = vrot.slane %v7116, %v7129
      %v7131 = vcombine.high %v7123, %v7123
      %v7132 = vcombine.high %v7130, %v7130
      %v7134 = vunpack.c.l.s4 1966171168
      %v7135 = vunpack.c.0.s8 %v7134
      %v7136 = vlaneseq
      %v7137 = vshrl.u32 %v7136, 7
      %v7138 = vsub.s32 %v7135, %v7137
      %v7139 = vrot.slane %v7094, %v7138
      %v7141 = vunpack.c.l.s4 1966171168
      %v7142 = vunpack.c.0.s8 %v7141
      %v7143 = vlaneseq
      %v7144 = vshrl.u32 %v7143, 7
      %v7145 = vsub.s32 %v7142, %v7144
      %v7146 = vrot.slane %v7139, %v7145
      %v7148 = vunpack.c.l.s4 1966171168
      %v7149 = vunpack.c.0.s8 %v7148
      %v7150 = vlaneseq
      %v7151 = vshrl.u32 %v7150, 7
      %v7152 = vsub.s32 %v7149, %v7151
      %v7153 = vrot.slane %v7095, %v7152
      %v7154 = vcombine.high %v7153, %v7153
      %v7156 = vunpack.c.l.s4 1966171168
      %v7157 = vunpack.c.0.s8 %v7156
      %v7158 = vlaneseq
      %v7159 = vshrl.u32 %v7158, 7
      %v7160 = vsub.s32 %v7157, %v7159
      %v7161 = vrot.slane %v7153, %v7160
      %v7163 = vunpack.c.l.s4 1966171168
      %v7164 = vunpack.c.0.s8 %v7163
      %v7165 = vlaneseq
      %v7166 = vshrl.u32 %v7165, 7
      %v7167 = vsub.s32 %v7164, %v7166
      %v7168 = vrot.slane %v7154, %v7167
      %v7169 = vcombine.high %v7161, %v7161
      %v7170 = vcombine.high %v7168, %v7168
      %v7172 = vunpack.c.l.s4 1966171168
      %v7173 = vunpack.c.0.s8 %v7172
      %v7174 = vlaneseq
      %v7175 = vshrl.u32 %v7174, 7
      %v7176 = vsub.s32 %v7173, %v7175
      %v7177 = vrot.slane %v7096, %v7176
      %v7179 = vunpack.c.l.s4 1966171168
      %v7180 = vunpack.c.0.s8 %v7179
      %v7181 = vlaneseq
      %v7182 = vshrl.u32 %v7181, 7
      %v7183 = vsub.s32 %v7180, %v7182
      %v7184 = vrot.slane %v7177, %v7183
      %v7186 = vunpack.c.l.s4 1966171168
      %v7187 = vunpack.c.0.s8 %v7186
      %v7188 = vlaneseq
      %v7189 = vshrl.u32 %v7188, 7
      %v7190 = vsub.s32 %v7187, %v7189
      %v7191 = vrot.slane %v7097, %v7190
      %v7192 = vcombine.high %v7191, %v7191
      %v7194 = vunpack.c.l.s4 1966171168
      %v7195 = vunpack.c.0.s8 %v7194
      %v7196 = vlaneseq
      %v7197 = vshrl.u32 %v7196, 7
      %v7198 = vsub.s32 %v7195, %v7197
      %v7199 = vrot.slane %v7191, %v7198
      %v7201 = vunpack.c.l.s4 1966171168
      %v7202 = vunpack.c.0.s8 %v7201
      %v7203 = vlaneseq
      %v7204 = vshrl.u32 %v7203, 7
      %v7205 = vsub.s32 %v7202, %v7204
      %v7206 = vrot.slane %v7192, %v7205
      %v7207 = vcombine.high %v7199, %v7199
      %v7208 = vcombine.high %v7206, %v7206
      %v7210 = vunpack.c.l.s4 1966171168
      %v7211 = vunpack.c.0.s8 %v7210
      %v7212 = vlaneseq
      %v7213 = vshrl.u32 %v7212, 7
      %v7214 = vsub.s32 %v7211, %v7213
      %v7215 = vrot.slane %v7098, %v7214
      %v7217 = vunpack.c.l.s4 1966171168
      %v7218 = vunpack.c.0.s8 %v7217
      %v7219 = vlaneseq
      %v7220 = vshrl.u32 %v7219, 7
      %v7221 = vsub.s32 %v7218, %v7220
      %v7222 = vrot.slane %v7215, %v7221
      %v7224 = vunpack.c.l.s4 1966171168
      %v7225 = vunpack.c.0.s8 %v7224
      %v7226 = vlaneseq
      %v7227 = vshrl.u32 %v7226, 7
      %v7228 = vsub.s32 %v7225, %v7227
      %v7229 = vrot.slane %v7099, %v7228
      %v7230 = vcombine.high %v7229, %v7229
      %v7232 = vunpack.c.l.s4 1966171168
      %v7233 = vunpack.c.0.s8 %v7232
      %v7234 = vlaneseq
      %v7235 = vshrl.u32 %v7234, 7
      %v7236 = vsub.s32 %v7233, %v7235
      %v7237 = vrot.slane %v7229, %v7236
      %v7239 = vunpack.c.l.s4 1966171168
      %v7240 = vunpack.c.0.s8 %v7239
      %v7241 = vlaneseq
      %v7242 = vshrl.u32 %v7241, 7
      %v7243 = vsub.s32 %v7240, %v7242
      %v7244 = vrot.slane %v7230, %v7243
      %v7245 = vcombine.high %v7237, %v7237
      %v7246 = vcombine.high %v7244, %v7244
      %v7248 = vunpack.c.l.s4 1966171168
      %v7249 = vunpack.c.0.s8 %v7248
      %v7250 = vlaneseq
      %v7251 = vshrl.u32 %v7250, 7
      %v7252 = vsub.s32 %v7249, %v7251
      %v7253 = vrot.slane %v7100, %v7252
      %v7255 = vunpack.c.l.s4 1966171168
      %v7256 = vunpack.c.0.s8 %v7255
      %v7257 = vlaneseq
      %v7258 = vshrl.u32 %v7257, 7
      %v7259 = vsub.s32 %v7256, %v7258
      %v7260 = vrot.slane %v7253, %v7259
      %v7261 = vld [vmem:[%s3] sm:$0xf]
      %v7262 = vld [vmem:[%s3 + $0x4] sm:$0xf]
      %v7263 = vld [vmem:[%s3 + $0x8] sm:$0xf]
      %v7264 = vld [vmem:[%s3 + $0xc] sm:$0xf]
      %v7265 = vld [vmem:[%s3 + $0x10] sm:$0xf]
      %v7266 = vld [vmem:[%s3 + $0x14] sm:$0xf]
      %v7267 = vld [vmem:[%s3 + $0x18] sm:$0xf]
      %v7268 = vld [vmem:[%s3 + $0x1c] sm:$0xf]
      %s7269 = scalar_lea.vmem %s3, 32
      %v7270 = vld [vmem:[%s7269] sm:$0xf]
      %v7271 = vld [vmem:[%s7269 + $0x4] sm:$0xf]
      %v7272 = vld [vmem:[%s7269 + $0x8] sm:$0xf]
      %v7273 = vld [vmem:[%s7269 + $0xc] sm:$0xf]
      %v7274 = vld [vmem:[%s7269 + $0x10] sm:$0xf]
      %v7275 = vld [vmem:[%s7269 + $0x14] sm:$0xf]
      %v7276 = vld [vmem:[%s7269 + $0x18] sm:$0xf]
      %v7277 = vld [vmem:[%s7269 + $0x1c] sm:$0xf]
      %v7279 = vunpack.c.l.s4 1966171168
      %v7280 = vunpack.c.0.s8 %v7279
      %v7281 = vlaneseq
      %v7282 = vshrl.u32 %v7281, 7
      %v7283 = vsub.s32 %v7280, %v7282
      %v7284 = vrot.slane %v7123, %v7283
      %v7286 = vunpack.c.l.s4 1966171168
      %v7287 = vunpack.c.0.s8 %v7286
      %v7288 = vlaneseq
      %v7289 = vshrl.u32 %v7288, 7
      %v7290 = vsub.s32 %v7287, %v7289
      %v7291 = vrot.slane %v7284, %v7290
      %v7293 = vunpack.c.l.s4 1966171168
      %v7294 = vunpack.c.0.s8 %v7293
      %v7295 = vlaneseq
      %v7296 = vshrl.u32 %v7295, 7
      %v7297 = vsub.s32 %v7294, %v7296
      %v7298 = vrot.slane %v7130, %v7297
      %v7300 = vunpack.c.l.s4 1966171168
      %v7301 = vunpack.c.0.s8 %v7300
      %v7302 = vlaneseq
      %v7303 = vshrl.u32 %v7302, 7
      %v7304 = vsub.s32 %v7301, %v7303
      %v7305 = vrot.slane %v7298, %v7304
      %v7307 = vunpack.c.l.s4 1966171168
      %v7308 = vunpack.c.0.s8 %v7307
      %v7309 = vlaneseq
      %v7310 = vshrl.u32 %v7309, 7
      %v7311 = vsub.s32 %v7308, %v7310
      %v7312 = vrot.slane %v7131, %v7311
      %v7314 = vunpack.c.l.s4 1966171168
      %v7315 = vunpack.c.0.s8 %v7314
      %v7316 = vlaneseq
      %v7317 = vshrl.u32 %v7316, 7
      %v7318 = vsub.s32 %v7315, %v7317
      %v7319 = vrot.slane %v7312, %v7318
      %v7321 = vunpack.c.l.s4 1966171168
      %v7322 = vunpack.c.0.s8 %v7321
      %v7323 = vlaneseq
      %v7324 = vshrl.u32 %v7323, 7
      %v7325 = vsub.s32 %v7322, %v7324
      %v7326 = vrot.slane %v7132, %v7325
      %v7328 = vunpack.c.l.s4 1966171168
      %v7329 = vunpack.c.0.s8 %v7328
      %v7330 = vlaneseq
      %v7331 = vshrl.u32 %v7330, 7
      %v7332 = vsub.s32 %v7329, %v7331
      %v7333 = vrot.slane %v7326, %v7332
      %v7335 = vunpack.c.l.s4 1966171168
      %v7336 = vunpack.c.0.s8 %v7335
      %v7337 = vlaneseq
      %v7338 = vshrl.u32 %v7337, 7
      %v7339 = vsub.s32 %v7336, %v7338
      %v7340 = vrot.slane %v7161, %v7339
      %v7342 = vunpack.c.l.s4 1966171168
      %v7343 = vunpack.c.0.s8 %v7342
      %v7344 = vlaneseq
      %v7345 = vshrl.u32 %v7344, 7
      %v7346 = vsub.s32 %v7343, %v7345
      %v7347 = vrot.slane %v7340, %v7346
      %v7349 = vunpack.c.l.s4 1966171168
      %v7350 = vunpack.c.0.s8 %v7349
      %v7351 = vlaneseq
      %v7352 = vshrl.u32 %v7351, 7
      %v7353 = vsub.s32 %v7350, %v7352
      %v7354 = vrot.slane %v7168, %v7353
      %v7356 = vunpack.c.l.s4 1966171168
      %v7357 = vunpack.c.0.s8 %v7356
      %v7358 = vlaneseq
      %v7359 = vshrl.u32 %v7358, 7
      %v7360 = vsub.s32 %v7357, %v7359
      %v7361 = vrot.slane %v7354, %v7360
      %v7363 = vunpack.c.l.s4 1966171168
      %v7364 = vunpack.c.0.s8 %v7363
      %v7365 = vlaneseq
      %v7366 = vshrl.u32 %v7365, 7
      %v7367 = vsub.s32 %v7364, %v7366
      %v7368 = vrot.slane %v7169, %v7367
      %v7370 = vunpack.c.l.s4 1966171168
      %v7371 = vunpack.c.0.s8 %v7370
      %v7372 = vlaneseq
      %v7373 = vshrl.u32 %v7372, 7
      %v7374 = vsub.s32 %v7371, %v7373
      %v7375 = vrot.slane %v7368, %v7374
      %v7377 = vunpack.c.l.s4 1966171168
      %v7378 = vunpack.c.0.s8 %v7377
      %v7379 = vlaneseq
      %v7380 = vshrl.u32 %v7379, 7
      %v7381 = vsub.s32 %v7378, %v7380
      %v7382 = vrot.slane %v7170, %v7381
      %v7384 = vunpack.c.l.s4 1966171168
      %v7385 = vunpack.c.0.s8 %v7384
      %v7386 = vlaneseq
      %v7387 = vshrl.u32 %v7386, 7
      %v7388 = vsub.s32 %v7385, %v7387
      %v7389 = vrot.slane %v7382, %v7388
      %v7391 = vunpack.c.l.s4 1966171168
      %v7392 = vunpack.c.0.s8 %v7391
      %v7393 = vlaneseq
      %v7394 = vshrl.u32 %v7393, 7
      %v7395 = vsub.s32 %v7392, %v7394
      %v7396 = vrot.slane %v7199, %v7395
      %v7398 = vunpack.c.l.s4 1966171168
      %v7399 = vunpack.c.0.s8 %v7398
      %v7400 = vlaneseq
      %v7401 = vshrl.u32 %v7400, 7
      %v7402 = vsub.s32 %v7399, %v7401
      %v7403 = vrot.slane %v7396, %v7402
      %v7405 = vunpack.c.l.s4 1966171168
      %v7406 = vunpack.c.0.s8 %v7405
      %v7407 = vlaneseq
      %v7408 = vshrl.u32 %v7407, 7
      %v7409 = vsub.s32 %v7406, %v7408
      %v7410 = vrot.slane %v7206, %v7409
      %v7412 = vunpack.c.l.s4 1966171168
      %v7413 = vunpack.c.0.s8 %v7412
      %v7414 = vlaneseq
      %v7415 = vshrl.u32 %v7414, 7
      %v7416 = vsub.s32 %v7413, %v7415
      %v7417 = vrot.slane %v7410, %v7416
      %v7419 = vunpack.c.l.s4 1966171168
      %v7420 = vunpack.c.0.s8 %v7419
      %v7421 = vlaneseq
      %v7422 = vshrl.u32 %v7421, 7
      %v7423 = vsub.s32 %v7420, %v7422
      %v7424 = vrot.slane %v7207, %v7423
      %v7426 = vunpack.c.l.s4 1966171168
      %v7427 = vunpack.c.0.s8 %v7426
      %v7428 = vlaneseq
      %v7429 = vshrl.u32 %v7428, 7
      %v7430 = vsub.s32 %v7427, %v7429
      %v7431 = vrot.slane %v7424, %v7430
      %v7433 = vunpack.c.l.s4 1966171168
      %v7434 = vunpack.c.0.s8 %v7433
      %v7435 = vlaneseq
      %v7436 = vshrl.u32 %v7435, 7
      %v7437 = vsub.s32 %v7434, %v7436
      %v7438 = vrot.slane %v7208, %v7437
      %v7440 = vunpack.c.l.s4 1966171168
      %v7441 = vunpack.c.0.s8 %v7440
      %v7442 = vlaneseq
      %v7443 = vshrl.u32 %v7442, 7
      %v7444 = vsub.s32 %v7441, %v7443
      %v7445 = vrot.slane %v7438, %v7444
      %v7447 = vunpack.c.l.s4 1966171168
      %v7448 = vunpack.c.0.s8 %v7447
      %v7449 = vlaneseq
      %v7450 = vshrl.u32 %v7449, 7
      %v7451 = vsub.s32 %v7448, %v7450
      %v7452 = vrot.slane %v7237, %v7451
      %v7454 = vunpack.c.l.s4 1966171168
      %v7455 = vunpack.c.0.s8 %v7454
      %v7456 = vlaneseq
      %v7457 = vshrl.u32 %v7456, 7
      %v7458 = vsub.s32 %v7455, %v7457
      %v7459 = vrot.slane %v7452, %v7458
      %v7461 = vunpack.c.l.s4 1966171168
      %v7462 = vunpack.c.0.s8 %v7461
      %v7463 = vlaneseq
      %v7464 = vshrl.u32 %v7463, 7
      %v7465 = vsub.s32 %v7462, %v7464
      %v7466 = vrot.slane %v7244, %v7465
      %v7468 = vunpack.c.l.s4 1966171168
      %v7469 = vunpack.c.0.s8 %v7468
      %v7470 = vlaneseq
      %v7471 = vshrl.u32 %v7470, 7
      %v7472 = vsub.s32 %v7469, %v7471
      %v7473 = vrot.slane %v7466, %v7472
      %v7475 = vunpack.c.l.s4 1966171168
      %v7476 = vunpack.c.0.s8 %v7475
      %v7477 = vlaneseq
      %v7478 = vshrl.u32 %v7477, 7
      %v7479 = vsub.s32 %v7476, %v7478
      %v7480 = vrot.slane %v7245, %v7479
      %v7482 = vunpack.c.l.s4 1966171168
      %v7483 = vunpack.c.0.s8 %v7482
      %v7484 = vlaneseq
      %v7485 = vshrl.u32 %v7484, 7
      %v7486 = vsub.s32 %v7483, %v7485
      %v7487 = vrot.slane %v7480, %v7486
      %v7489 = vunpack.c.l.s4 1966171168
      %v7490 = vunpack.c.0.s8 %v7489
      %v7491 = vlaneseq
      %v7492 = vshrl.u32 %v7491, 7
      %v7493 = vsub.s32 %v7490, %v7492
      %v7494 = vrot.slane %v7246, %v7493
      %v7496 = vunpack.c.l.s4 1966171168
      %v7497 = vunpack.c.0.s8 %v7496
      %v7498 = vlaneseq
      %v7499 = vshrl.u32 %v7498, 7
      %v7500 = vsub.s32 %v7497, %v7499
      %v7501 = vrot.slane %v7494, %v7500
      %v7502 = vunpack.c.l.b16 %v7291
      %v7503 = vunpack.c.l.b16 %v7305
      %v7504 = vunpack.c.l.b16 %v7319
      %v7505 = vunpack.c.l.b16 %v7333
      %v7506 = vunpack.c.l.b16 %v7347
      %v7507 = vunpack.c.l.b16 %v7361
      %v7508 = vunpack.c.l.b16 %v7375
      %v7509 = vunpack.c.l.b16 %v7389
      %v7510 = vunpack.c.l.b16 %v7403
      %v7511 = vunpack.c.l.b16 %v7417
      %v7512 = vunpack.c.l.b16 %v7431
      %v7513 = vunpack.c.l.b16 %v7445
      %v7514 = vunpack.c.l.b16 %v7459
      %v7515 = vunpack.c.l.b16 %v7473
      %v7516 = vunpack.c.l.b16 %v7487
      %v7517 = vunpack.c.l.b16 %v7501
      %v7518 = vrot.slane %v7502, 1
      %v7519 = vsel %vm1816, %v7503, %v7518
      %v7520 = vrot.slane %v7504, 7
      %v7521 = vsel %vm1819, %v7520, %v7519
      %v7522 = vrot.slane %v7505, 6
      %v7523 = vsel %vm1822, %v7522, %v7521
      %v7524 = vrot.slane %v7506, 5
      %v7525 = vsel %vm1825, %v7524, %v7523
      %v7526 = vrot.slane %v7507, 4
      %v7527 = vsel %vm1828, %v7526, %v7525
      %v7528 = vrot.slane %v7508, 3
      %v7529 = vsel %vm1831, %v7528, %v7527
      %v7530 = vrot.slane %v7509, 2
      %v7531 = vsel %vm1834, %v7530, %v7529
      %v7532 = vrot.slane %v7510, 1
      %v7533 = vsel %vm1816, %v7511, %v7532
      %v7534 = vrot.slane %v7512, 7
      %v7535 = vsel %vm1819, %v7534, %v7533
      %v7536 = vrot.slane %v7513, 6
      %v7537 = vsel %vm1822, %v7536, %v7535
      %v7538 = vrot.slane %v7514, 5
      %v7539 = vsel %vm1825, %v7538, %v7537
      %v7540 = vrot.slane %v7515, 4
      %v7541 = vsel %vm1828, %v7540, %v7539
      %v7542 = vrot.slane %v7516, 3
      %v7543 = vsel %vm1831, %v7542, %v7541
      %v7544 = vrot.slane %v7517, 2
      %v7545 = vsel %vm1834, %v7544, %v7543
      %v7546 = vpack.c.b16 %v7545, %v7531
      %v7555 = vunpack.c.l.b16 %v7270
      %v7556 = vunpack.c.l.b16 %v7271
      %v7557 = vunpack.c.l.b16 %v7272
      %v7558 = vunpack.c.l.b16 %v7273
      %v7559 = vunpack.c.l.b16 %v7274
      %v7560 = vunpack.c.l.b16 %v7275
      %v7561 = vunpack.c.l.b16 %v7276
      %v7562 = vunpack.c.l.b16 %v7277
      %v7563 = vpack.c.b16 %v7556, %v7555
      %v7564 = vpack.c.b16 %v7558, %v7557
      %v7565 = vpack.c.b16 %v7560, %v7559
      %v7566 = vpack.c.b16 %v7562, %v7561
      %vm7571 = vcmask 523264
      %v7573 = vsel %vm7571, %v7546, 0
      %7575 = vmatprep.subr.bf16.mxu0 0
      %7576 = vmatpush1.bf16.msra.mxu0 %v7563
      %7577 = vmatprep.subr.bf16.mxu0 0
      %7578 = vmatpush1.bf16.msra.mxu0 %v7564
      %7579 = vmatprep.subr.bf16.mxu0 0
      %7580 = vmatpush1.bf16.msra.mxu0 %v7565
      %7581 = vmatprep.subr.bf16.mxu0 0
      %7582 = vmatpush1.bf16.msra.mxu0 %v7566
      %7583 = vmatprep.subr.bf16.mxu0 0
      %7584 = vmatpush1.bf16.msra.mxu0 0
      %7585 = vmatprep.subr.bf16.mxu0 0
      %7586 = vmatpush1.bf16.msra.mxu0 0
      %7587 = vmatprep.subr.bf16.mxu0 0
      %7588 = vmatpush1.bf16.msra.mxu0 0
      %7589 = vmatprep.subr.bf16.mxu0 0
      %7590 = vmatpush1.bf16.msra.mxu0 0
      %7591 = vmatprep.subr.bf16.mxu0 0
      %7592 = vmatpush1.bf16.msra.mxu0 0
      %7593 = vmatprep.subr.bf16.mxu0 0
      %7594 = vmatpush1.bf16.msra.mxu0 0
      %7595 = vmatprep.subr.bf16.mxu0 0
      %7596 = vmatpush1.bf16.msra.mxu0 0
      %7597 = vmatprep.subr.bf16.mxu0 0
      %7598 = vmatpush1.bf16.msra.mxu0 0
      %7599 = vmatprep.subr.bf16.mxu0 0
      %7600 = vmatpush1.bf16.msra.mxu0 0
      %7601 = vmatprep.subr.bf16.mxu0 0
      %7602 = vmatpush1.bf16.msra.mxu0 0
      %7603 = vmatprep.subr.bf16.mxu0 0
      %7604 = vmatpush1.bf16.msra.mxu0 0
      %7605 = vmatprep.subr.bf16.mxu0 0
      %7606 = vmatpush1.bf16.msra.mxu0 0
      %7607 = vmatprep.mubr.bf16.mxu0 0
      %7608 = vmatmul.mubr.bf16.gmra.mrb[0].mxu0 %v7573
      %v7609 = vpop.f32.mrb[0].mxu0
      %v7610 = vadd.f32 0.0, %v7609
      %v7611 = vpop.f32.mrb[0].mxu0
      %v7612 = vpop.f32.mrb[0].mxu0
      %v7613 = vadd.f32 0.0, %v7612
      %v7614 = vpop.f32.mrb[0].mxu0
      %7615 = vdwg.mxu0
      %v7616 = vrot.slane %v7503, 7
      %v7617 = vsel %vm1816, %v7616, %v7502
      %v7618 = vrot.slane %v7504, 6
      %v7619 = vsel %vm1819, %v7618, %v7617
      %v7620 = vrot.slane %v7505, 5
      %v7621 = vsel %vm1822, %v7620, %v7619
      %v7622 = vrot.slane %v7506, 4
      %v7623 = vsel %vm1825, %v7622, %v7621
      %v7624 = vrot.slane %v7507, 3
      %v7625 = vsel %vm1828, %v7624, %v7623
      %v7626 = vrot.slane %v7508, 2
      %v7627 = vsel %vm1831, %v7626, %v7625
      %v7628 = vrot.slane %v7509, 1
      %v7629 = vsel %vm1834, %v7628, %v7627
      %v7630 = vrot.slane %v7511, 7
      %v7631 = vsel %vm1816, %v7630, %v7510
      %v7632 = vrot.slane %v7512, 6
      %v7633 = vsel %vm1819, %v7632, %v7631
      %v7634 = vrot.slane %v7513, 5
      %v7635 = vsel %vm1822, %v7634, %v7633
      %v7636 = vrot.slane %v7514, 4
      %v7637 = vsel %vm1825, %v7636, %v7635
      %v7638 = vrot.slane %v7515, 3
      %v7639 = vsel %vm1828, %v7638, %v7637
      %v7640 = vrot.slane %v7516, 2
      %v7641 = vsel %vm1831, %v7640, %v7639
      %v7642 = vrot.slane %v7517, 1
      %v7643 = vsel %vm1834, %v7642, %v7641
      %v7644 = vpack.c.b16 %v7643, %v7629
      %v7653 = vunpack.c.l.b16 %v7261
      %v7654 = vunpack.c.l.b16 %v7262
      %v7655 = vunpack.c.l.b16 %v7263
      %v7656 = vunpack.c.l.b16 %v7264
      %v7657 = vunpack.c.l.b16 %v7265
      %v7658 = vunpack.c.l.b16 %v7266
      %v7659 = vunpack.c.l.b16 %v7267
      %v7660 = vunpack.c.l.b16 %v7268
      %v7661 = vpack.c.b16 %v7654, %v7653
      %v7662 = vpack.c.b16 %v7656, %v7655
      %v7663 = vpack.c.b16 %v7658, %v7657
      %v7664 = vpack.c.b16 %v7660, %v7659
      %v7670 = vsel %vm7571, %v7644, 0
      %7672 = vmatprep.subr.bf16.mxu0 0
      %7673 = vmatpush1.bf16.msra.mxu0 %v7661
      %7674 = vmatprep.subr.bf16.mxu0 0
      %7675 = vmatpush1.bf16.msra.mxu0 %v7662
      %7676 = vmatprep.subr.bf16.mxu0 0
      %7677 = vmatpush1.bf16.msra.mxu0 %v7663
      %7678 = vmatprep.subr.bf16.mxu0 0
      %7679 = vmatpush1.bf16.msra.mxu0 %v7664
      %7680 = vmatprep.subr.bf16.mxu0 0
      %7681 = vmatpush1.bf16.msra.mxu0 0
      %7682 = vmatprep.subr.bf16.mxu0 0
      %7683 = vmatpush1.bf16.msra.mxu0 0
      %7684 = vmatprep.subr.bf16.mxu0 0
      %7685 = vmatpush1.bf16.msra.mxu0 0
      %7686 = vmatprep.subr.bf16.mxu0 0
      %7687 = vmatpush1.bf16.msra.mxu0 0
      %7688 = vmatprep.subr.bf16.mxu0 0
      %7689 = vmatpush1.bf16.msra.mxu0 0
      %7690 = vmatprep.subr.bf16.mxu0 0
      %7691 = vmatpush1.bf16.msra.mxu0 0
      %7692 = vmatprep.subr.bf16.mxu0 0
      %7693 = vmatpush1.bf16.msra.mxu0 0
      %7694 = vmatprep.subr.bf16.mxu0 0
      %7695 = vmatpush1.bf16.msra.mxu0 0
      %7696 = vmatprep.subr.bf16.mxu0 0
      %7697 = vmatpush1.bf16.msra.mxu0 0
      %7698 = vmatprep.subr.bf16.mxu0 0
      %7699 = vmatpush1.bf16.msra.mxu0 0
      %7700 = vmatprep.subr.bf16.mxu0 0
      %7701 = vmatpush1.bf16.msra.mxu0 0
      %7702 = vmatprep.subr.bf16.mxu0 0
      %7703 = vmatpush1.bf16.msra.mxu0 0
      %7704 = vmatprep.mubr.bf16.mxu0 0
      %7705 = vmatmul.mubr.bf16.gmra.mrb[0].mxu0 %v7670
      %v7706 = vpop.f32.mrb[0].mxu0
      %v7707 = vadd.f32 %v7610, %v7706
      %v7708 = vpop.f32.mrb[0].mxu0
      %v7709 = vpop.f32.mrb[0].mxu0
      %v7710 = vadd.f32 %v7613, %v7709
      %v7711 = vpop.f32.mrb[0].mxu0
      %7712 = vdwg.mxu0
      %s7713 = scalar_lea.vmem %s3, 64
      %v7714 = vld [vmem:[%s7713] sm:$0xf]
      %v7715 = vld [vmem:[%s7713 + $0x4] sm:$0xf]
      %v7716 = vld [vmem:[%s7713 + $0x8] sm:$0xf]
      %v7717 = vld [vmem:[%s7713 + $0xc] sm:$0xf]
      %v7718 = vld [vmem:[%s7713 + $0x10] sm:$0xf]
      %v7719 = vld [vmem:[%s7713 + $0x14] sm:$0xf]
      %v7720 = vld [vmem:[%s7713 + $0x18] sm:$0xf]
      %v7721 = vld [vmem:[%s7713 + $0x1c] sm:$0xf]
      %v7723 = vunpack.c.l.s4 1966171168
      %v7724 = vunpack.c.0.s8 %v7723
      %v7725 = vlaneseq
      %v7726 = vshrl.u32 %v7725, 7
      %v7727 = vsub.s32 %v7724, %v7726
      %v7728 = vrot.slane %v7146, %v7727
      %v7730 = vunpack.c.l.s4 1966171168
      %v7731 = vunpack.c.0.s8 %v7730
      %v7732 = vlaneseq
      %v7733 = vshrl.u32 %v7732, 7
      %v7734 = vsub.s32 %v7731, %v7733
      %v7735 = vrot.slane %v7728, %v7734
      %v7737 = vunpack.c.l.s4 1966171168
      %v7738 = vunpack.c.0.s8 %v7737
      %v7739 = vlaneseq
      %v7740 = vshrl.u32 %v7739, 7
      %v7741 = vsub.s32 %v7738, %v7740
      %v7742 = vrot.slane %v7184, %v7741
      %v7744 = vunpack.c.l.s4 1966171168
      %v7745 = vunpack.c.0.s8 %v7744
      %v7746 = vlaneseq
      %v7747 = vshrl.u32 %v7746, 7
      %v7748 = vsub.s32 %v7745, %v7747
      %v7749 = vrot.slane %v7742, %v7748
      %v7751 = vunpack.c.l.s4 1966171168
      %v7752 = vunpack.c.0.s8 %v7751
      %v7753 = vlaneseq
      %v7754 = vshrl.u32 %v7753, 7
      %v7755 = vsub.s32 %v7752, %v7754
      %v7756 = vrot.slane %v7222, %v7755
      %v7758 = vunpack.c.l.s4 1966171168
      %v7759 = vunpack.c.0.s8 %v7758
      %v7760 = vlaneseq
      %v7761 = vshrl.u32 %v7760, 7
      %v7762 = vsub.s32 %v7759, %v7761
      %v7763 = vrot.slane %v7756, %v7762
      %v7765 = vunpack.c.l.s4 1966171168
      %v7766 = vunpack.c.0.s8 %v7765
      %v7767 = vlaneseq
      %v7768 = vshrl.u32 %v7767, 7
      %v7769 = vsub.s32 %v7766, %v7768
      %v7770 = vrot.slane %v7260, %v7769
      %v7772 = vunpack.c.l.s4 1966171168
      %v7773 = vunpack.c.0.s8 %v7772
      %v7774 = vlaneseq
      %v7775 = vshrl.u32 %v7774, 7
      %v7776 = vsub.s32 %v7773, %v7775
      %v7777 = vrot.slane %v7770, %v7776
      %v7778 = vunpack.c.l.b16 %v7735
      %v7779 = vunpack.c.l.b16 %v7749
      %v7780 = vunpack.c.l.b16 %v7763
      %v7781 = vunpack.c.l.b16 %v7777
      %v7782 = vsel %vm1816, %v7520, %v7503
      %v7783 = vsel %vm1819, %v7522, %v7782
      %v7784 = vrot.slane %v7778, 5
      %v7785 = vsel %vm1822, %v7784, %v7783
      %v7786 = vsel %vm1825, %v7526, %v7785
      %v7787 = vsel %vm1828, %v7528, %v7786
      %v7788 = vsel %vm1831, %v7530, %v7787
      %v7789 = vrot.slane %v7779, 1
      %v7790 = vsel %vm1834, %v7789, %v7788
      %v7791 = vsel %vm1816, %v7534, %v7511
      %v7792 = vsel %vm1819, %v7536, %v7791
      %v7793 = vrot.slane %v7780, 5
      %v7794 = vsel %vm1822, %v7793, %v7792
      %v7795 = vsel %vm1825, %v7540, %v7794
      %v7796 = vsel %vm1828, %v7542, %v7795
      %v7797 = vsel %vm1831, %v7544, %v7796
      %v7798 = vrot.slane %v7781, 1
      %v7799 = vsel %vm1834, %v7798, %v7797
      %v7800 = vpack.c.b16 %v7799, %v7790
      %v7809 = vunpack.c.l.b16 %v7714
      %v7810 = vunpack.c.l.b16 %v7715
      %v7811 = vunpack.c.l.b16 %v7716
      %v7812 = vunpack.c.l.b16 %v7717
      %v7813 = vunpack.c.l.b16 %v7718
      %v7814 = vunpack.c.l.b16 %v7719
      %v7815 = vunpack.c.l.b16 %v7720
      %v7816 = vunpack.c.l.b16 %v7721
      %v7817 = vpack.c.b16 %v7810, %v7809
      %v7818 = vpack.c.b16 %v7812, %v7811
      %v7819 = vpack.c.b16 %v7814, %v7813
      %v7820 = vpack.c.b16 %v7816, %v7815
      %v7826 = vsel %vm7571, %v7800, 0
      %7828 = vmatprep.subr.bf16.mxu0 0
      %7829 = vmatpush1.bf16.msra.mxu0 %v7817
      %7830 = vmatprep.subr.bf16.mxu0 0
      %7831 = vmatpush1.bf16.msra.mxu0 %v7818
      %7832 = vmatprep.subr.bf16.mxu0 0
      %7833 = vmatpush1.bf16.msra.mxu0 %v7819
      %7834 = vmatprep.subr.bf16.mxu0 0
      %7835 = vmatpush1.bf16.msra.mxu0 %v7820
      %7836 = vmatprep.subr.bf16.mxu0 0
      %7837 = vmatpush1.bf16.msra.mxu0 0
      %7838 = vmatprep.subr.bf16.mxu0 0
      %7839 = vmatpush1.bf16.msra.mxu0 0
      %7840 = vmatprep.subr.bf16.mxu0 0
      %7841 = vmatpush1.bf16.msra.mxu0 0
      %7842 = vmatprep.subr.bf16.mxu0 0
      %7843 = vmatpush1.bf16.msra.mxu0 0
      %7844 = vmatprep.subr.bf16.mxu0 0
      %7845 = vmatpush1.bf16.msra.mxu0 0
      %7846 = vmatprep.subr.bf16.mxu0 0
      %7847 = vmatpush1.bf16.msra.mxu0 0
      %7848 = vmatprep.subr.bf16.mxu0 0
      %7849 = vmatpush1.bf16.msra.mxu0 0
      %7850 = vmatprep.subr.bf16.mxu0 0
      %7851 = vmatpush1.bf16.msra.mxu0 0
      %7852 = vmatprep.subr.bf16.mxu0 0
      %7853 = vmatpush1.bf16.msra.mxu0 0
      %7854 = vmatprep.subr.bf16.mxu0 0
      %7855 = vmatpush1.bf16.msra.mxu0 0
      %7856 = vmatprep.subr.bf16.mxu0 0
      %7857 = vmatpush1.bf16.msra.mxu0 0
      %7858 = vmatprep.subr.bf16.mxu0 0
      %7859 = vmatpush1.bf16.msra.mxu0 0
      %7860 = vmatprep.mubr.bf16.mxu0 0
      %7861 = vmatmul.mubr.bf16.gmra.mrb[0].mxu0 %v7826
      %v7862 = vpop.f32.mrb[0].mxu0
      %v7863 = vadd.f32 0.0, %v7862
      %v7864 = vpop.f32.mrb[0].mxu0
      %v7865 = vpop.f32.mrb[0].mxu0
      %v7866 = vadd.f32 0.0, %v7865
      %v7867 = vpop.f32.mrb[0].mxu0
      %7868 = vdwg.mxu0
      %v7869 = vadd.f32 %v7707, %v7863
      %v7870 = vadd.f32 %v7710, %v7866
      %v7871 = vld [vmem:[%s7038] sm:$0xf]
      %v7872 = vld [vmem:[%s7038 + $0x4] sm:$0x1]
      %v7873 = vld [vmem:[%s7038 + $0x10] sm:$0xf]
      %v7874 = vld [vmem:[%s7038 + $0x14] sm:$0x1]
      %v7875 = vld [vmem:[%s7038 + $0x20] sm:$0xf]
      %v7876 = vld [vmem:[%s7038 + $0x24] sm:$0x1]
      %v7877 = vld [vmem:[%s7038 + $0x30] sm:$0xf]
      %v7878 = vld [vmem:[%s7038 + $0x34] sm:$0x1]
      %v7888 = vunpack.c.l.s4 1966171168
      %v7889 = vunpack.c.0.s8 %v7888
      %v7890 = vlaneseq
      %v7891 = vshrl.u32 %v7890, 7
      %v7892 = vsub.s32 %v7889, %v7891
      %v7893 = vrot.slane %v7871, %v7892
      %v7894 = vcombine.high %v7893, %v7893
      %v7896 = vunpack.c.l.s4 1966171168
      %v7897 = vunpack.c.0.s8 %v7896
      %v7898 = vlaneseq
      %v7899 = vshrl.u32 %v7898, 7
      %v7900 = vsub.s32 %v7897, %v7899
      %v7901 = vrot.slane %v7893, %v7900
      %v7903 = vunpack.c.l.s4 1966171168
      %v7904 = vunpack.c.0.s8 %v7903
      %v7905 = vlaneseq
      %v7906 = vshrl.u32 %v7905, 7
      %v7907 = vsub.s32 %v7904, %v7906
      %v7908 = vrot.slane %v7894, %v7907
      %v7909 = vcombine.high %v7901, %v7901
      %v7910 = vcombine.high %v7908, %v7908
      %v7912 = vunpack.c.l.s4 1966171168
      %v7913 = vunpack.c.0.s8 %v7912
      %v7914 = vlaneseq
      %v7915 = vshrl.u32 %v7914, 7
      %v7916 = vsub.s32 %v7913, %v7915
      %v7917 = vrot.slane %v7872, %v7916
      %v7919 = vunpack.c.l.s4 1966171168
      %v7920 = vunpack.c.0.s8 %v7919
      %v7921 = vlaneseq
      %v7922 = vshrl.u32 %v7921, 7
      %v7923 = vsub.s32 %v7920, %v7922
      %v7924 = vrot.slane %v7917, %v7923
      %v7926 = vunpack.c.l.s4 1966171168
      %v7927 = vunpack.c.0.s8 %v7926
      %v7928 = vlaneseq
      %v7929 = vshrl.u32 %v7928, 7
      %v7930 = vsub.s32 %v7927, %v7929
      %v7931 = vrot.slane %v7873, %v7930
      %v7932 = vcombine.high %v7931, %v7931
      %v7934 = vunpack.c.l.s4 1966171168
      %v7935 = vunpack.c.0.s8 %v7934
      %v7936 = vlaneseq
      %v7937 = vshrl.u32 %v7936, 7
      %v7938 = vsub.s32 %v7935, %v7937
      %v7939 = vrot.slane %v7931, %v7938
      %v7941 = vunpack.c.l.s4 1966171168
      %v7942 = vunpack.c.0.s8 %v7941
      %v7943 = vlaneseq
      %v7944 = vshrl.u32 %v7943, 7
      %v7945 = vsub.s32 %v7942, %v7944
      %v7946 = vrot.slane %v7932, %v7945
      %v7947 = vcombine.high %v7939, %v7939
      %v7948 = vcombine.high %v7946, %v7946
      %v7950 = vunpack.c.l.s4 1966171168
      %v7951 = vunpack.c.0.s8 %v7950
      %v7952 = vlaneseq
      %v7953 = vshrl.u32 %v7952, 7
      %v7954 = vsub.s32 %v7951, %v7953
      %v7955 = vrot.slane %v7874, %v7954
      %v7957 = vunpack.c.l.s4 1966171168
      %v7958 = vunpack.c.0.s8 %v7957
      %v7959 = vlaneseq
      %v7960 = vshrl.u32 %v7959, 7
      %v7961 = vsub.s32 %v7958, %v7960
      %v7962 = vrot.slane %v7955, %v7961
      %v7964 = vunpack.c.l.s4 1966171168
      %v7965 = vunpack.c.0.s8 %v7964
      %v7966 = vlaneseq
      %v7967 = vshrl.u32 %v7966, 7
      %v7968 = vsub.s32 %v7965, %v7967
      %v7969 = vrot.slane %v7875, %v7968
      %v7970 = vcombine.high %v7969, %v7969
      %v7972 = vunpack.c.l.s4 1966171168
      %v7973 = vunpack.c.0.s8 %v7972
      %v7974 = vlaneseq
      %v7975 = vshrl.u32 %v7974, 7
      %v7976 = vsub.s32 %v7973, %v7975
      %v7977 = vrot.slane %v7969, %v7976
      %v7979 = vunpack.c.l.s4 1966171168
      %v7980 = vunpack.c.0.s8 %v7979
      %v7981 = vlaneseq
      %v7982 = vshrl.u32 %v7981, 7
      %v7983 = vsub.s32 %v7980, %v7982
      %v7984 = vrot.slane %v7970, %v7983
      %v7985 = vcombine.high %v7977, %v7977
      %v7986 = vcombine.high %v7984, %v7984
      %v7988 = vunpack.c.l.s4 1966171168
      %v7989 = vunpack.c.0.s8 %v7988
      %v7990 = vlaneseq
      %v7991 = vshrl.u32 %v7990, 7
      %v7992 = vsub.s32 %v7989, %v7991
      %v7993 = vrot.slane %v7876, %v7992
      %v7995 = vunpack.c.l.s4 1966171168
      %v7996 = vunpack.c.0.s8 %v7995
      %v7997 = vlaneseq
      %v7998 = vshrl.u32 %v7997, 7
      %v7999 = vsub.s32 %v7996, %v7998
      %v8000 = vrot.slane %v7993, %v7999
      %v8002 = vunpack.c.l.s4 1966171168
      %v8003 = vunpack.c.0.s8 %v8002
      %v8004 = vlaneseq
      %v8005 = vshrl.u32 %v8004, 7
      %v8006 = vsub.s32 %v8003, %v8005
      %v8007 = vrot.slane %v7877, %v8006
      %v8008 = vcombine.high %v8007, %v8007
      %v8010 = vunpack.c.l.s4 1966171168
      %v8011 = vunpack.c.0.s8 %v8010
      %v8012 = vlaneseq
      %v8013 = vshrl.u32 %v8012, 7
      %v8014 = vsub.s32 %v8011, %v8013
      %v8015 = vrot.slane %v8007, %v8014
      %v8017 = vunpack.c.l.s4 1966171168
      %v8018 = vunpack.c.0.s8 %v8017
      %v8019 = vlaneseq
      %v8020 = vshrl.u32 %v8019, 7
      %v8021 = vsub.s32 %v8018, %v8020
      %v8022 = vrot.slane %v8008, %v8021
      %v8023 = vcombine.high %v8015, %v8015
      %v8024 = vcombine.high %v8022, %v8022
      %v8026 = vunpack.c.l.s4 1966171168
      %v8027 = vunpack.c.0.s8 %v8026
      %v8028 = vlaneseq
      %v8029 = vshrl.u32 %v8028, 7
      %v8030 = vsub.s32 %v8027, %v8029
      %v8031 = vrot.slane %v7878, %v8030
      %v8033 = vunpack.c.l.s4 1966171168
      %v8034 = vunpack.c.0.s8 %v8033
      %v8035 = vlaneseq
      %v8036 = vshrl.u32 %v8035, 7
      %v8037 = vsub.s32 %v8034, %v8036
      %v8038 = vrot.slane %v8031, %v8037
      %s8039 = scalar_lea.vmem %s3, 96
      %v8040 = vld [vmem:[%s8039] sm:$0xf]
      %v8041 = vld [vmem:[%s8039 + $0x4] sm:$0xf]
      %v8042 = vld [vmem:[%s8039 + $0x8] sm:$0xf]
      %v8043 = vld [vmem:[%s8039 + $0xc] sm:$0xf]
      %v8044 = vld [vmem:[%s8039 + $0x10] sm:$0xf]
      %v8045 = vld [vmem:[%s8039 + $0x14] sm:$0xf]
      %v8046 = vld [vmem:[%s8039 + $0x18] sm:$0xf]
      %v8047 = vld [vmem:[%s8039 + $0x1c] sm:$0xf]
      %v8049 = vunpack.c.l.s4 1966171168
      %v8050 = vunpack.c.0.s8 %v8049
      %v8051 = vlaneseq
      %v8052 = vshrl.u32 %v8051, 7
      %v8053 = vsub.s32 %v8050, %v8052
      %v8054 = vrot.slane %v7901, %v8053
      %v8056 = vunpack.c.l.s4 1966171168
      %v8057 = vunpack.c.0.s8 %v8056
      %v8058 = vlaneseq
      %v8059 = vshrl.u32 %v8058, 7
      %v8060 = vsub.s32 %v8057, %v8059
      %v8061 = vrot.slane %v8054, %v8060
      %v8063 = vunpack.c.l.s4 1966171168
      %v8064 = vunpack.c.0.s8 %v8063
      %v8065 = vlaneseq
      %v8066 = vshrl.u32 %v8065, 7
      %v8067 = vsub.s32 %v8064, %v8066
      %v8068 = vrot.slane %v7908, %v8067
      %v8070 = vunpack.c.l.s4 1966171168
      %v8071 = vunpack.c.0.s8 %v8070
      %v8072 = vlaneseq
      %v8073 = vshrl.u32 %v8072, 7
      %v8074 = vsub.s32 %v8071, %v8073
      %v8075 = vrot.slane %v8068, %v8074
      %v8077 = vunpack.c.l.s4 1966171168
      %v8078 = vunpack.c.0.s8 %v8077
      %v8079 = vlaneseq
      %v8080 = vshrl.u32 %v8079, 7
      %v8081 = vsub.s32 %v8078, %v8080
      %v8082 = vrot.slane %v7909, %v8081
      %v8084 = vunpack.c.l.s4 1966171168
      %v8085 = vunpack.c.0.s8 %v8084
      %v8086 = vlaneseq
      %v8087 = vshrl.u32 %v8086, 7
      %v8088 = vsub.s32 %v8085, %v8087
      %v8089 = vrot.slane %v8082, %v8088
      %v8091 = vunpack.c.l.s4 1966171168
      %v8092 = vunpack.c.0.s8 %v8091
      %v8093 = vlaneseq
      %v8094 = vshrl.u32 %v8093, 7
      %v8095 = vsub.s32 %v8092, %v8094
      %v8096 = vrot.slane %v7910, %v8095
      %v8098 = vunpack.c.l.s4 1966171168
      %v8099 = vunpack.c.0.s8 %v8098
      %v8100 = vlaneseq
      %v8101 = vshrl.u32 %v8100, 7
      %v8102 = vsub.s32 %v8099, %v8101
      %v8103 = vrot.slane %v8096, %v8102
      %v8105 = vunpack.c.l.s4 1966171168
      %v8106 = vunpack.c.0.s8 %v8105
      %v8107 = vlaneseq
      %v8108 = vshrl.u32 %v8107, 7
      %v8109 = vsub.s32 %v8106, %v8108
      %v8110 = vrot.slane %v7939, %v8109
      %v8112 = vunpack.c.l.s4 1966171168
      %v8113 = vunpack.c.0.s8 %v8112
      %v8114 = vlaneseq
      %v8115 = vshrl.u32 %v8114, 7
      %v8116 = vsub.s32 %v8113, %v8115
      %v8117 = vrot.slane %v8110, %v8116
      %v8119 = vunpack.c.l.s4 1966171168
      %v8120 = vunpack.c.0.s8 %v8119
      %v8121 = vlaneseq
      %v8122 = vshrl.u32 %v8121, 7
      %v8123 = vsub.s32 %v8120, %v8122
      %v8124 = vrot.slane %v7946, %v8123
      %v8126 = vunpack.c.l.s4 1966171168
      %v8127 = vunpack.c.0.s8 %v8126
      %v8128 = vlaneseq
      %v8129 = vshrl.u32 %v8128, 7
      %v8130 = vsub.s32 %v8127, %v8129
      %v8131 = vrot.slane %v8124, %v8130
      %v8133 = vunpack.c.l.s4 1966171168
      %v8134 = vunpack.c.0.s8 %v8133
      %v8135 = vlaneseq
      %v8136 = vshrl.u32 %v8135, 7
      %v8137 = vsub.s32 %v8134, %v8136
      %v8138 = vrot.slane %v7947, %v8137
      %v8140 = vunpack.c.l.s4 1966171168
      %v8141 = vunpack.c.0.s8 %v8140
      %v8142 = vlaneseq
      %v8143 = vshrl.u32 %v8142, 7
      %v8144 = vsub.s32 %v8141, %v8143
      %v8145 = vrot.slane %v8138, %v8144
      %v8147 = vunpack.c.l.s4 1966171168
      %v8148 = vunpack.c.0.s8 %v8147
      %v8149 = vlaneseq
      %v8150 = vshrl.u32 %v8149, 7
      %v8151 = vsub.s32 %v8148, %v8150
      %v8152 = vrot.slane %v7948, %v8151
      %v8154 = vunpack.c.l.s4 1966171168
      %v8155 = vunpack.c.0.s8 %v8154
      %v8156 = vlaneseq
      %v8157 = vshrl.u32 %v8156, 7
      %v8158 = vsub.s32 %v8155, %v8157
      %v8159 = vrot.slane %v8152, %v8158
      %v8161 = vunpack.c.l.s4 1966171168
      %v8162 = vunpack.c.0.s8 %v8161
      %v8163 = vlaneseq
      %v8164 = vshrl.u32 %v8163, 7
      %v8165 = vsub.s32 %v8162, %v8164
      %v8166 = vrot.slane %v7977, %v8165
      %v8168 = vunpack.c.l.s4 1966171168
      %v8169 = vunpack.c.0.s8 %v8168
      %v8170 = vlaneseq
      %v8171 = vshrl.u32 %v8170, 7
      %v8172 = vsub.s32 %v8169, %v8171
      %v8173 = vrot.slane %v8166, %v8172
      %v8175 = vunpack.c.l.s4 1966171168
      %v8176 = vunpack.c.0.s8 %v8175
      %v8177 = vlaneseq
      %v8178 = vshrl.u32 %v8177, 7
      %v8179 = vsub.s32 %v8176, %v8178
      %v8180 = vrot.slane %v7984, %v8179
      %v8182 = vunpack.c.l.s4 1966171168
      %v8183 = vunpack.c.0.s8 %v8182
      %v8184 = vlaneseq
      %v8185 = vshrl.u32 %v8184, 7
      %v8186 = vsub.s32 %v8183, %v8185
      %v8187 = vrot.slane %v8180, %v8186
      %v8189 = vunpack.c.l.s4 1966171168
      %v8190 = vunpack.c.0.s8 %v8189
      %v8191 = vlaneseq
      %v8192 = vshrl.u32 %v8191, 7
      %v8193 = vsub.s32 %v8190, %v8192
      %v8194 = vrot.slane %v7985, %v8193
      %v8196 = vunpack.c.l.s4 1966171168
      %v8197 = vunpack.c.0.s8 %v8196
      %v8198 = vlaneseq
      %v8199 = vshrl.u32 %v8198, 7
      %v8200 = vsub.s32 %v8197, %v8199
      %v8201 = vrot.slane %v8194, %v8200
      %v8203 = vunpack.c.l.s4 1966171168
      %v8204 = vunpack.c.0.s8 %v8203
      %v8205 = vlaneseq
      %v8206 = vshrl.u32 %v8205, 7
      %v8207 = vsub.s32 %v8204, %v8206
      %v8208 = vrot.slane %v7986, %v8207
      %v8210 = vunpack.c.l.s4 1966171168
      %v8211 = vunpack.c.0.s8 %v8210
      %v8212 = vlaneseq
      %v8213 = vshrl.u32 %v8212, 7
      %v8214 = vsub.s32 %v8211, %v8213
      %v8215 = vrot.slane %v8208, %v8214
      %v8217 = vunpack.c.l.s4 1966171168
      %v8218 = vunpack.c.0.s8 %v8217
      %v8219 = vlaneseq
      %v8220 = vshrl.u32 %v8219, 7
      %v8221 = vsub.s32 %v8218, %v8220
      %v8222 = vrot.slane %v8015, %v8221
      %v8224 = vunpack.c.l.s4 1966171168
      %v8225 = vunpack.c.0.s8 %v8224
      %v8226 = vlaneseq
      %v8227 = vshrl.u32 %v8226, 7
      %v8228 = vsub.s32 %v8225, %v8227
      %v8229 = vrot.slane %v8222, %v8228
      %v8231 = vunpack.c.l.s4 1966171168
      %v8232 = vunpack.c.0.s8 %v8231
      %v8233 = vlaneseq
      %v8234 = vshrl.u32 %v8233, 7
      %v8235 = vsub.s32 %v8232, %v8234
      %v8236 = vrot.slane %v8022, %v8235
      %v8238 = vunpack.c.l.s4 1966171168
      %v8239 = vunpack.c.0.s8 %v8238
      %v8240 = vlaneseq
      %v8241 = vshrl.u32 %v8240, 7
      %v8242 = vsub.s32 %v8239, %v8241
      %v8243 = vrot.slane %v8236, %v8242
      %v8245 = vunpack.c.l.s4 1966171168
      %v8246 = vunpack.c.0.s8 %v8245
      %v8247 = vlaneseq
      %v8248 = vshrl.u32 %v8247, 7
      %v8249 = vsub.s32 %v8246, %v8248
      %v8250 = vrot.slane %v8023, %v8249
      %v8252 = vunpack.c.l.s4 1966171168
      %v8253 = vunpack.c.0.s8 %v8252
      %v8254 = vlaneseq
      %v8255 = vshrl.u32 %v8254, 7
      %v8256 = vsub.s32 %v8253, %v8255
      %v8257 = vrot.slane %v8250, %v8256
      %v8259 = vunpack.c.l.s4 1966171168
      %v8260 = vunpack.c.0.s8 %v8259
      %v8261 = vlaneseq
      %v8262 = vshrl.u32 %v8261, 7
      %v8263 = vsub.s32 %v8260, %v8262
      %v8264 = vrot.slane %v8024, %v8263
      %v8266 = vunpack.c.l.s4 1966171168
      %v8267 = vunpack.c.0.s8 %v8266
      %v8268 = vlaneseq
      %v8269 = vshrl.u32 %v8268, 7
      %v8270 = vsub.s32 %v8267, %v8269
      %v8271 = vrot.slane %v8264, %v8270
      %v8272 = vunpack.c.l.b16 %v8061
      %v8273 = vunpack.c.l.b16 %v8075
      %v8274 = vunpack.c.l.b16 %v8089
      %v8275 = vunpack.c.l.b16 %v8103
      %v8276 = vunpack.c.l.b16 %v8117
      %v8277 = vunpack.c.l.b16 %v8131
      %v8278 = vunpack.c.l.b16 %v8145
      %v8279 = vunpack.c.l.b16 %v8159
      %v8280 = vunpack.c.l.b16 %v8173
      %v8281 = vunpack.c.l.b16 %v8187
      %v8282 = vunpack.c.l.b16 %v8201
      %v8283 = vunpack.c.l.b16 %v8215
      %v8284 = vunpack.c.l.b16 %v8229
      %v8285 = vunpack.c.l.b16 %v8243
      %v8286 = vunpack.c.l.b16 %v8257
      %v8287 = vunpack.c.l.b16 %v8271
      %v8288 = vrot.slane %v8273, 7
      %v8289 = vsel %vm1816, %v8288, %v8272
      %v8290 = vrot.slane %v8274, 6
      %v8291 = vsel %vm1819, %v8290, %v8289
      %v8292 = vrot.slane %v8275, 5
      %v8293 = vsel %vm1822, %v8292, %v8291
      %v8294 = vrot.slane %v8276, 4
      %v8295 = vsel %vm1825, %v8294, %v8293
      %v8296 = vrot.slane %v8277, 3
      %v8297 = vsel %vm1828, %v8296, %v8295
      %v8298 = vrot.slane %v8278, 2
      %v8299 = vsel %vm1831, %v8298, %v8297
      %v8300 = vrot.slane %v8279, 1
      %v8301 = vsel %vm1834, %v8300, %v8299
      %v8302 = vrot.slane %v8281, 7
      %v8303 = vsel %vm1816, %v8302, %v8280
      %v8304 = vrot.slane %v8282, 6
      %v8305 = vsel %vm1819, %v8304, %v8303
      %v8306 = vrot.slane %v8283, 5
      %v8307 = vsel %vm1822, %v8306, %v8305
      %v8308 = vrot.slane %v8284, 4
      %v8309 = vsel %vm1825, %v8308, %v8307
      %v8310 = vrot.slane %v8285, 3
      %v8311 = vsel %vm1828, %v8310, %v8309
      %v8312 = vrot.slane %v8286, 2
      %v8313 = vsel %vm1831, %v8312, %v8311
      %v8314 = vrot.slane %v8287, 1
      %v8315 = vsel %vm1834, %v8314, %v8313
      %v8316 = vpack.c.b16 %v8315, %v8301
      %v8325 = vunpack.c.l.b16 %v8040
      %v8326 = vunpack.c.l.b16 %v8041
      %v8327 = vunpack.c.l.b16 %v8042
      %v8328 = vunpack.c.l.b16 %v8043
      %v8329 = vunpack.c.l.b16 %v8044
      %v8330 = vunpack.c.l.b16 %v8045
      %v8331 = vunpack.c.l.b16 %v8046
      %v8332 = vunpack.c.l.b16 %v8047
      %v8333 = vpack.c.b16 %v8326, %v8325
      %v8334 = vpack.c.b16 %v8328, %v8327
      %v8335 = vpack.c.b16 %v8330, %v8329
      %v8336 = vpack.c.b16 %v8332, %v8331
      %v8342 = vsel %vm7571, %v8316, 0
      %8344 = vmatprep.subr.bf16.mxu0 0
      %8345 = vmatpush1.bf16.msra.mxu0 %v8333
      %8346 = vmatprep.subr.bf16.mxu0 0
      %8347 = vmatpush1.bf16.msra.mxu0 %v8334
      %8348 = vmatprep.subr.bf16.mxu0 0
      %8349 = vmatpush1.bf16.msra.mxu0 %v8335
      %8350 = vmatprep.subr.bf16.mxu0 0
      %8351 = vmatpush1.bf16.msra.mxu0 %v8336
      %8352 = vmatprep.subr.bf16.mxu0 0
      %8353 = vmatpush1.bf16.msra.mxu0 0
      %8354 = vmatprep.subr.bf16.mxu0 0
      %8355 = vmatpush1.bf16.msra.mxu0 0
      %8356 = vmatprep.subr.bf16.mxu0 0
      %8357 = vmatpush1.bf16.msra.mxu0 0
      %8358 = vmatprep.subr.bf16.mxu0 0
      %8359 = vmatpush1.bf16.msra.mxu0 0
      %8360 = vmatprep.subr.bf16.mxu0 0
      %8361 = vmatpush1.bf16.msra.mxu0 0
      %8362 = vmatprep.subr.bf16.mxu0 0
      %8363 = vmatpush1.bf16.msra.mxu0 0
      %8364 = vmatprep.subr.bf16.mxu0 0
      %8365 = vmatpush1.bf16.msra.mxu0 0
      %8366 = vmatprep.subr.bf16.mxu0 0
      %8367 = vmatpush1.bf16.msra.mxu0 0
      %8368 = vmatprep.subr.bf16.mxu0 0
      %8369 = vmatpush1.bf16.msra.mxu0 0
      %8370 = vmatprep.subr.bf16.mxu0 0
      %8371 = vmatpush1.bf16.msra.mxu0 0
      %8372 = vmatprep.subr.bf16.mxu0 0
      %8373 = vmatpush1.bf16.msra.mxu0 0
      %8374 = vmatprep.subr.bf16.mxu0 0
      %8375 = vmatpush1.bf16.msra.mxu0 0
      %8376 = vmatprep.mubr.bf16.mxu0 0
      %8377 = vmatmul.mubr.bf16.gmra.mrb[0].mxu0 %v8342
      %v8378 = vpop.f32.mrb[0].mxu0
      %v8379 = vadd.f32 0.0, %v8378
      %v8380 = vpop.f32.mrb[0].mxu0
      %v8381 = vpop.f32.mrb[0].mxu0
      %v8382 = vadd.f32 0.0, %v8381
      %v8383 = vpop.f32.mrb[0].mxu0
      %8384 = vdwg.mxu0
      %v8385 = vadd.f32 %v7869, %v8379
      %v8386 = vadd.f32 %v7870, %v8382
      %s8387 = scalar_lea.vmem %s3, 128
      %v8388 = vld [vmem:[%s8387] sm:$0xf]
      %v8389 = vld [vmem:[%s8387 + $0x4] sm:$0xf]
      %v8390 = vld [vmem:[%s8387 + $0x8] sm:$0xf]
      %v8391 = vld [vmem:[%s8387 + $0xc] sm:$0xf]
      %v8392 = vld [vmem:[%s8387 + $0x10] sm:$0xf]
      %v8393 = vld [vmem:[%s8387 + $0x14] sm:$0xf]
      %v8394 = vld [vmem:[%s8387 + $0x18] sm:$0xf]
      %v8395 = vld [vmem:[%s8387 + $0x1c] sm:$0xf]
      %v8396 = vrot.slane %v8272, 1
      %v8397 = vsel %vm1816, %v8273, %v8396
      %v8398 = vrot.slane %v8274, 7
      %v8399 = vsel %vm1819, %v8398, %v8397
      %v8400 = vrot.slane %v8275, 6
      %v8401 = vsel %vm1822, %v8400, %v8399
      %v8402 = vrot.slane %v8276, 5
      %v8403 = vsel %vm1825, %v8402, %v8401
      %v8404 = vrot.slane %v8277, 4
      %v8405 = vsel %vm1828, %v8404, %v8403
      %v8406 = vrot.slane %v8278, 3
      %v8407 = vsel %vm1831, %v8406, %v8405
      %v8408 = vrot.slane %v8279, 2
      %v8409 = vsel %vm1834, %v8408, %v8407
      %v8410 = vrot.slane %v8280, 1
      %v8411 = vsel %vm1816, %v8281, %v8410
      %v8412 = vrot.slane %v8282, 7
      %v8413 = vsel %vm1819, %v8412, %v8411
      %v8414 = vrot.slane %v8283, 6
      %v8415 = vsel %vm1822, %v8414, %v8413
      %v8416 = vrot.slane %v8284, 5
      %v8417 = vsel %vm1825, %v8416, %v8415
      %v8418 = vrot.slane %v8285, 4
      %v8419 = vsel %vm1828, %v8418, %v8417
      %v8420 = vrot.slane %v8286, 3
      %v8421 = vsel %vm1831, %v8420, %v8419
      %v8422 = vrot.slane %v8287, 2
      %v8423 = vsel %vm1834, %v8422, %v8421
      %v8424 = vpack.c.b16 %v8423, %v8409
      %v8433 = vunpack.c.l.b16 %v8388
      %v8434 = vunpack.c.l.b16 %v8389
      %v8435 = vunpack.c.l.b16 %v8390
      %v8436 = vunpack.c.l.b16 %v8391
      %v8437 = vunpack.c.l.b16 %v8392
      %v8438 = vunpack.c.l.b16 %v8393
      %v8439 = vunpack.c.l.b16 %v8394
      %v8440 = vunpack.c.l.b16 %v8395
      %v8441 = vpack.c.b16 %v8434, %v8433
      %v8442 = vpack.c.b16 %v8436, %v8435
      %v8443 = vpack.c.b16 %v8438, %v8437
      %v8444 = vpack.c.b16 %v8440, %v8439
      %v8450 = vsel %vm7571, %v8424, 0
      %8452 = vmatprep.subr.bf16.mxu0 0
      %8453 = vmatpush1.bf16.msra.mxu0 %v8441
      %8454 = vmatprep.subr.bf16.mxu0 0
      %8455 = vmatpush1.bf16.msra.mxu0 %v8442
      %8456 = vmatprep.subr.bf16.mxu0 0
      %8457 = vmatpush1.bf16.msra.mxu0 %v8443
      %8458 = vmatprep.subr.bf16.mxu0 0
      %8459 = vmatpush1.bf16.msra.mxu0 %v8444
      %8460 = vmatprep.subr.bf16.mxu0 0
      %8461 = vmatpush1.bf16.msra.mxu0 0
      %8462 = vmatprep.subr.bf16.mxu0 0
      %8463 = vmatpush1.bf16.msra.mxu0 0
      %8464 = vmatprep.subr.bf16.mxu0 0
      %8465 = vmatpush1.bf16.msra.mxu0 0
      %8466 = vmatprep.subr.bf16.mxu0 0
      %8467 = vmatpush1.bf16.msra.mxu0 0
      %8468 = vmatprep.subr.bf16.mxu0 0
      %8469 = vmatpush1.bf16.msra.mxu0 0
      %8470 = vmatprep.subr.bf16.mxu0 0
      %8471 = vmatpush1.bf16.msra.mxu0 0
      %8472 = vmatprep.subr.bf16.mxu0 0
      %8473 = vmatpush1.bf16.msra.mxu0 0
      %8474 = vmatprep.subr.bf16.mxu0 0
      %8475 = vmatpush1.bf16.msra.mxu0 0
      %8476 = vmatprep.subr.bf16.mxu0 0
      %8477 = vmatpush1.bf16.msra.mxu0 0
      %8478 = vmatprep.subr.bf16.mxu0 0
      %8479 = vmatpush1.bf16.msra.mxu0 0
      %8480 = vmatprep.subr.bf16.mxu0 0
      %8481 = vmatpush1.bf16.msra.mxu0 0
      %8482 = vmatprep.subr.bf16.mxu0 0
      %8483 = vmatpush1.bf16.msra.mxu0 0
      %8484 = vmatprep.mubr.bf16.mxu0 0
      %8485 = vmatmul.mubr.bf16.gmra.mrb[0].mxu0 %v8450
      %v8486 = vpop.f32.mrb[0].mxu0
      %v8487 = vadd.f32 0.0, %v8486
      %v8488 = vpop.f32.mrb[0].mxu0
      %v8489 = vpop.f32.mrb[0].mxu0
      %v8490 = vadd.f32 0.0, %v8489
      %v8491 = vpop.f32.mrb[0].mxu0
      %8492 = vdwg.mxu0
      %v8493 = vadd.f32 %v8385, %v8487
      %v8494 = vadd.f32 %v8386, %v8490
      %s8495 = scalar_lea.vmem %s3, 160
      %v8496 = vld [vmem:[%s8495] sm:$0xf]
      %v8497 = vld [vmem:[%s8495 + $0x4] sm:$0xf]
      %v8498 = vld [vmem:[%s8495 + $0x8] sm:$0xf]
      %v8499 = vld [vmem:[%s8495 + $0xc] sm:$0xf]
      %v8500 = vld [vmem:[%s8495 + $0x10] sm:$0xf]
      %v8501 = vld [vmem:[%s8495 + $0x14] sm:$0xf]
      %v8502 = vld [vmem:[%s8495 + $0x18] sm:$0xf]
      %v8503 = vld [vmem:[%s8495 + $0x1c] sm:$0xf]
      %v8505 = vunpack.c.l.s4 1966171168
      %v8506 = vunpack.c.0.s8 %v8505
      %v8507 = vlaneseq
      %v8508 = vshrl.u32 %v8507, 7
      %v8509 = vsub.s32 %v8506, %v8508
      %v8510 = vrot.slane %v7924, %v8509
      %v8512 = vunpack.c.l.s4 1966171168
      %v8513 = vunpack.c.0.s8 %v8512
      %v8514 = vlaneseq
      %v8515 = vshrl.u32 %v8514, 7
      %v8516 = vsub.s32 %v8513, %v8515
      %v8517 = vrot.slane %v8510, %v8516
      %v8519 = vunpack.c.l.s4 1966171168
      %v8520 = vunpack.c.0.s8 %v8519
      %v8521 = vlaneseq
      %v8522 = vshrl.u32 %v8521, 7
      %v8523 = vsub.s32 %v8520, %v8522
      %v8524 = vrot.slane %v7962, %v8523
      %v8526 = vunpack.c.l.s4 1966171168
      %v8527 = vunpack.c.0.s8 %v8526
      %v8528 = vlaneseq
      %v8529 = vshrl.u32 %v8528, 7
      %v8530 = vsub.s32 %v8527, %v8529
      %v8531 = vrot.slane %v8524, %v8530
      %v8533 = vunpack.c.l.s4 1966171168
      %v8534 = vunpack.c.0.s8 %v8533
      %v8535 = vlaneseq
      %v8536 = vshrl.u32 %v8535, 7
      %v8537 = vsub.s32 %v8534, %v8536
      %v8538 = vrot.slane %v8000, %v8537
      %v8540 = vunpack.c.l.s4 1966171168
      %v8541 = vunpack.c.0.s8 %v8540
      %v8542 = vlaneseq
      %v8543 = vshrl.u32 %v8542, 7
      %v8544 = vsub.s32 %v8541, %v8543
      %v8545 = vrot.slane %v8538, %v8544
      %v8547 = vunpack.c.l.s4 1966171168
      %v8548 = vunpack.c.0.s8 %v8547
      %v8549 = vlaneseq
      %v8550 = vshrl.u32 %v8549, 7
      %v8551 = vsub.s32 %v8548, %v8550
      %v8552 = vrot.slane %v8038, %v8551
      %v8554 = vunpack.c.l.s4 1966171168
      %v8555 = vunpack.c.0.s8 %v8554
      %v8556 = vlaneseq
      %v8557 = vshrl.u32 %v8556, 7
      %v8558 = vsub.s32 %v8555, %v8557
      %v8559 = vrot.slane %v8552, %v8558
      %v8560 = vunpack.c.l.b16 %v8517
      %v8561 = vunpack.c.l.b16 %v8531
      %v8562 = vunpack.c.l.b16 %v8545
      %v8563 = vunpack.c.l.b16 %v8559
      %v8564 = vsel %vm1816, %v8398, %v8273
      %v8565 = vsel %vm1819, %v8400, %v8564
      %v8566 = vrot.slane %v8560, 5
      %v8567 = vsel %vm1822, %v8566, %v8565
      %v8568 = vsel %vm1825, %v8404, %v8567
      %v8569 = vsel %vm1828, %v8406, %v8568
      %v8570 = vsel %vm1831, %v8408, %v8569
      %v8571 = vrot.slane %v8561, 1
      %v8572 = vsel %vm1834, %v8571, %v8570
      %v8573 = vsel %vm1816, %v8412, %v8281
      %v8574 = vsel %vm1819, %v8414, %v8573
      %v8575 = vrot.slane %v8562, 5
      %v8576 = vsel %vm1822, %v8575, %v8574
      %v8577 = vsel %vm1825, %v8418, %v8576
      %v8578 = vsel %vm1828, %v8420, %v8577
      %v8579 = vsel %vm1831, %v8422, %v8578
      %v8580 = vrot.slane %v8563, 1
      %v8581 = vsel %vm1834, %v8580, %v8579
      %v8582 = vpack.c.b16 %v8581, %v8572
      %v8591 = vunpack.c.l.b16 %v8496
      %v8592 = vunpack.c.l.b16 %v8497
      %v8593 = vunpack.c.l.b16 %v8498
      %v8594 = vunpack.c.l.b16 %v8499
      %v8595 = vunpack.c.l.b16 %v8500
      %v8596 = vunpack.c.l.b16 %v8501
      %v8597 = vunpack.c.l.b16 %v8502
      %v8598 = vunpack.c.l.b16 %v8503
      %v8599 = vpack.c.b16 %v8592, %v8591
      %v8600 = vpack.c.b16 %v8594, %v8593
      %v8601 = vpack.c.b16 %v8596, %v8595
      %v8602 = vpack.c.b16 %v8598, %v8597
      %v8608 = vsel %vm7571, %v8582, 0
      %8610 = vmatprep.subr.bf16.mxu0 0
      %8611 = vmatpush1.bf16.msra.mxu0 %v8599
      %8612 = vmatprep.subr.bf16.mxu0 0
      %8613 = vmatpush1.bf16.msra.mxu0 %v8600
      %8614 = vmatprep.subr.bf16.mxu0 0
      %8615 = vmatpush1.bf16.msra.mxu0 %v8601
      %8616 = vmatprep.subr.bf16.mxu0 0
      %8617 = vmatpush1.bf16.msra.mxu0 %v8602
      %8618 = vmatprep.subr.bf16.mxu0 0
      %8619 = vmatpush1.bf16.msra.mxu0 0
      %8620 = vmatprep.subr.bf16.mxu0 0
      %8621 = vmatpush1.bf16.msra.mxu0 0
      %8622 = vmatprep.subr.bf16.mxu0 0
      %8623 = vmatpush1.bf16.msra.mxu0 0
      %8624 = vmatprep.subr.bf16.mxu0 0
      %8625 = vmatpush1.bf16.msra.mxu0 0
      %8626 = vmatprep.subr.bf16.mxu0 0
      %8627 = vmatpush1.bf16.msra.mxu0 0
      %8628 = vmatprep.subr.bf16.mxu0 0
      %8629 = vmatpush1.bf16.msra.mxu0 0
      %8630 = vmatprep.subr.bf16.mxu0 0
      %8631 = vmatpush1.bf16.msra.mxu0 0
      %8632 = vmatprep.subr.bf16.mxu0 0
      %8633 = vmatpush1.bf16.msra.mxu0 0
      %8634 = vmatprep.subr.bf16.mxu0 0
      %8635 = vmatpush1.bf16.msra.mxu0 0
      %8636 = vmatprep.subr.bf16.mxu0 0
      %8637 = vmatpush1.bf16.msra.mxu0 0
      %8638 = vmatprep.subr.bf16.mxu0 0
      %8639 = vmatpush1.bf16.msra.mxu0 0
      %8640 = vmatprep.subr.bf16.mxu0 0
      %8641 = vmatpush1.bf16.msra.mxu0 0
      %8642 = vmatprep.mubr.bf16.mxu0 0
      %8643 = vmatmul.mubr.bf16.gmra.mrb[0].mxu0 %v8608
      %v8644 = vpop.f32.mrb[0].mxu0
      %v8645 = vadd.f32 0.0, %v8644
      %v8646 = vpop.f32.mrb[0].mxu0
      %v8647 = vpop.f32.mrb[0].mxu0
      %v8648 = vadd.f32 0.0, %v8647
      %v8649 = vpop.f32.mrb[0].mxu0
      %8650 = vdwg.mxu0
      %v8651 = vadd.f32 %v8493, %v8645
      %v8652 = vadd.f32 %v8494, %v8648
      %s8653 = scalar_lea.vmem [#allocation2], 16
      %v8654 = vld [vmem:[%s8653] sm:$0xf]
      %v8655 = vld [vmem:[%s8653 + $0x4] sm:$0x1]
      %v8656 = vld [vmem:[%s8653 + $0x10] sm:$0xf]
      %v8657 = vld [vmem:[%s8653 + $0x14] sm:$0x1]
      %v8658 = vld [vmem:[%s8653 + $0x20] sm:$0xf]
      %v8659 = vld [vmem:[%s8653 + $0x24] sm:$0x1]
      %v8660 = vld [vmem:[%s8653 + $0x30] sm:$0xf]
      %v8661 = vld [vmem:[%s8653 + $0x34] sm:$0x1]
      %v8671 = vunpack.c.l.s4 1966171168
      %v8672 = vunpack.c.0.s8 %v8671
      %v8673 = vlaneseq
      %v8674 = vshrl.u32 %v8673, 7
      %v8675 = vsub.s32 %v8672, %v8674
      %v8676 = vrot.slane %v8654, %v8675
      %v8677 = vcombine.high %v8676, %v8676
      %v8679 = vunpack.c.l.s4 1966171168
      %v8680 = vunpack.c.0.s8 %v8679
      %v8681 = vlaneseq
      %v8682 = vshrl.u32 %v8681, 7
      %v8683 = vsub.s32 %v8680, %v8682
      %v8684 = vrot.slane %v8676, %v8683
      %v8686 = vunpack.c.l.s4 1966171168
      %v8687 = vunpack.c.0.s8 %v8686
      %v8688 = vlaneseq
      %v8689 = vshrl.u32 %v8688, 7
      %v8690 = vsub.s32 %v8687, %v8689
      %v8691 = vrot.slane %v8677, %v8690
      %v8692 = vcombine.high %v8684, %v8684
      %v8693 = vcombine.high %v8691, %v8691
      %v8695 = vunpack.c.l.s4 1966171168
      %v8696 = vunpack.c.0.s8 %v8695
      %v8697 = vlaneseq
      %v8698 = vshrl.u32 %v8697, 7
      %v8699 = vsub.s32 %v8696, %v8698
      %v8700 = vrot.slane %v8655, %v8699
      %v8702 = vunpack.c.l.s4 1966171168
      %v8703 = vunpack.c.0.s8 %v8702
      %v8704 = vlaneseq
      %v8705 = vshrl.u32 %v8704, 7
      %v8706 = vsub.s32 %v8703, %v8705
      %v8707 = vrot.slane %v8700, %v8706
      %v8709 = vunpack.c.l.s4 1966171168
      %v8710 = vunpack.c.0.s8 %v8709
      %v8711 = vlaneseq
      %v8712 = vshrl.u32 %v8711, 7
      %v8713 = vsub.s32 %v8710, %v8712
      %v8714 = vrot.slane %v8656, %v8713
      %v8715 = vcombine.high %v8714, %v8714
      %v8717 = vunpack.c.l.s4 1966171168
      %v8718 = vunpack.c.0.s8 %v8717
      %v8719 = vlaneseq
      %v8720 = vshrl.u32 %v8719, 7
      %v8721 = vsub.s32 %v8718, %v8720
      %v8722 = vrot.slane %v8714, %v8721
      %v8724 = vunpack.c.l.s4 1966171168
      %v8725 = vunpack.c.0.s8 %v8724
      %v8726 = vlaneseq
      %v8727 = vshrl.u32 %v8726, 7
      %v8728 = vsub.s32 %v8725, %v8727
      %v8729 = vrot.slane %v8715, %v8728
      %v8730 = vcombine.high %v8722, %v8722
      %v8731 = vcombine.high %v8729, %v8729
      %v8733 = vunpack.c.l.s4 1966171168
      %v8734 = vunpack.c.0.s8 %v8733
      %v8735 = vlaneseq
      %v8736 = vshrl.u32 %v8735, 7
      %v8737 = vsub.s32 %v8734, %v8736
      %v8738 = vrot.slane %v8657, %v8737
      %v8740 = vunpack.c.l.s4 1966171168
      %v8741 = vunpack.c.0.s8 %v8740
      %v8742 = vlaneseq
      %v8743 = vshrl.u32 %v8742, 7
      %v8744 = vsub.s32 %v8741, %v8743
      %v8745 = vrot.slane %v8738, %v8744
      %v8747 = vunpack.c.l.s4 1966171168
      %v8748 = vunpack.c.0.s8 %v8747
      %v8749 = vlaneseq
      %v8750 = vshrl.u32 %v8749, 7
      %v8751 = vsub.s32 %v8748, %v8750
      %v8752 = vrot.slane %v8658, %v8751
      %v8753 = vcombine.high %v8752, %v8752
      %v8755 = vunpack.c.l.s4 1966171168
      %v8756 = vunpack.c.0.s8 %v8755
      %v8757 = vlaneseq
      %v8758 = vshrl.u32 %v8757, 7
      %v8759 = vsub.s32 %v8756, %v8758
      %v8760 = vrot.slane %v8752, %v8759
      %v8762 = vunpack.c.l.s4 1966171168
      %v8763 = vunpack.c.0.s8 %v8762
      %v8764 = vlaneseq
      %v8765 = vshrl.u32 %v8764, 7
      %v8766 = vsub.s32 %v8763, %v8765
      %v8767 = vrot.slane %v8753, %v8766
      %v8768 = vcombine.high %v8760, %v8760
      %v8769 = vcombine.high %v8767, %v8767
      %v8771 = vunpack.c.l.s4 1966171168
      %v8772 = vunpack.c.0.s8 %v8771
      %v8773 = vlaneseq
      %v8774 = vshrl.u32 %v8773, 7
      %v8775 = vsub.s32 %v8772, %v8774
      %v8776 = vrot.slane %v8659, %v8775
      %v8778 = vunpack.c.l.s4 1966171168
      %v8779 = vunpack.c.0.s8 %v8778
      %v8780 = vlaneseq
      %v8781 = vshrl.u32 %v8780, 7
      %v8782 = vsub.s32 %v8779, %v8781
      %v8783 = vrot.slane %v8776, %v8782
      %v8785 = vunpack.c.l.s4 1966171168
      %v8786 = vunpack.c.0.s8 %v8785
      %v8787 = vlaneseq
      %v8788 = vshrl.u32 %v8787, 7
      %v8789 = vsub.s32 %v8786, %v8788
      %v8790 = vrot.slane %v8660, %v8789
      %v8791 = vcombine.high %v8790, %v8790
      %v8793 = vunpack.c.l.s4 1966171168
      %v8794 = vunpack.c.0.s8 %v8793
      %v8795 = vlaneseq
      %v8796 = vshrl.u32 %v8795, 7
      %v8797 = vsub.s32 %v8794, %v8796
      %v8798 = vrot.slane %v8790, %v8797
      %v8800 = vunpack.c.l.s4 1966171168
      %v8801 = vunpack.c.0.s8 %v8800
      %v8802 = vlaneseq
      %v8803 = vshrl.u32 %v8802, 7
      %v8804 = vsub.s32 %v8801, %v8803
      %v8805 = vrot.slane %v8791, %v8804
      %v8806 = vcombine.high %v8798, %v8798
      %v8807 = vcombine.high %v8805, %v8805
      %v8809 = vunpack.c.l.s4 1966171168
      %v8810 = vunpack.c.0.s8 %v8809
      %v8811 = vlaneseq
      %v8812 = vshrl.u32 %v8811, 7
      %v8813 = vsub.s32 %v8810, %v8812
      %v8814 = vrot.slane %v8661, %v8813
      %v8816 = vunpack.c.l.s4 1966171168
      %v8817 = vunpack.c.0.s8 %v8816
      %v8818 = vlaneseq
      %v8819 = vshrl.u32 %v8818, 7
      %v8820 = vsub.s32 %v8817, %v8819
      %v8821 = vrot.slane %v8814, %v8820
      %s8822 = scalar_lea.vmem %s3, 192
      %v8823 = vld [vmem:[%s8822] sm:$0xf]
      %v8824 = vld [vmem:[%s8822 + $0x4] sm:$0xf]
      %v8825 = vld [vmem:[%s8822 + $0x8] sm:$0xf]
      %v8826 = vld [vmem:[%s8822 + $0xc] sm:$0xf]
      %v8827 = vld [vmem:[%s8822 + $0x10] sm:$0xf]
      %v8828 = vld [vmem:[%s8822 + $0x14] sm:$0xf]
      %v8829 = vld [vmem:[%s8822 + $0x18] sm:$0xf]
      %v8830 = vld [vmem:[%s8822 + $0x1c] sm:$0xf]
      %v8832 = vunpack.c.l.s4 1966171168
      %v8833 = vunpack.c.0.s8 %v8832
      %v8834 = vlaneseq
      %v8835 = vshrl.u32 %v8834, 7
      %v8836 = vsub.s32 %v8833, %v8835
      %v8837 = vrot.slane %v8684, %v8836
      %v8839 = vunpack.c.l.s4 1966171168
      %v8840 = vunpack.c.0.s8 %v8839
      %v8841 = vlaneseq
      %v8842 = vshrl.u32 %v8841, 7
      %v8843 = vsub.s32 %v8840, %v8842
      %v8844 = vrot.slane %v8837, %v8843
      %v8846 = vunpack.c.l.s4 1966171168
      %v8847 = vunpack.c.0.s8 %v8846
      %v8848 = vlaneseq
      %v8849 = vshrl.u32 %v8848, 7
      %v8850 = vsub.s32 %v8847, %v8849
      %v8851 = vrot.slane %v8691, %v8850
      %v8853 = vunpack.c.l.s4 1966171168
      %v8854 = vunpack.c.0.s8 %v8853
      %v8855 = vlaneseq
      %v8856 = vshrl.u32 %v8855, 7
      %v8857 = vsub.s32 %v8854, %v8856
      %v8858 = vrot.slane %v8851, %v8857
      %v8860 = vunpack.c.l.s4 1966171168
      %v8861 = vunpack.c.0.s8 %v8860
      %v8862 = vlaneseq
      %v8863 = vshrl.u32 %v8862, 7
      %v8864 = vsub.s32 %v8861, %v8863
      %v8865 = vrot.slane %v8692, %v8864
      %v8867 = vunpack.c.l.s4 1966171168
      %v8868 = vunpack.c.0.s8 %v8867
      %v8869 = vlaneseq
      %v8870 = vshrl.u32 %v8869, 7
      %v8871 = vsub.s32 %v8868, %v8870
      %v8872 = vrot.slane %v8865, %v8871
      %v8874 = vunpack.c.l.s4 1966171168
      %v8875 = vunpack.c.0.s8 %v8874
      %v8876 = vlaneseq
      %v8877 = vshrl.u32 %v8876, 7
      %v8878 = vsub.s32 %v8875, %v8877
      %v8879 = vrot.slane %v8693, %v8878
      %v8881 = vunpack.c.l.s4 1966171168
      %v8882 = vunpack.c.0.s8 %v8881
      %v8883 = vlaneseq
      %v8884 = vshrl.u32 %v8883, 7
      %v8885 = vsub.s32 %v8882, %v8884
      %v8886 = vrot.slane %v8879, %v8885
      %v8888 = vunpack.c.l.s4 1966171168
      %v8889 = vunpack.c.0.s8 %v8888
      %v8890 = vlaneseq
      %v8891 = vshrl.u32 %v8890, 7
      %v8892 = vsub.s32 %v8889, %v8891
      %v8893 = vrot.slane %v8722, %v8892
      %v8895 = vunpack.c.l.s4 1966171168
      %v8896 = vunpack.c.0.s8 %v8895
      %v8897 = vlaneseq
      %v8898 = vshrl.u32 %v8897, 7
      %v8899 = vsub.s32 %v8896, %v8898
      %v8900 = vrot.slane %v8893, %v8899
      %v8902 = vunpack.c.l.s4 1966171168
      %v8903 = vunpack.c.0.s8 %v8902
      %v8904 = vlaneseq
      %v8905 = vshrl.u32 %v8904, 7
      %v8906 = vsub.s32 %v8903, %v8905
      %v8907 = vrot.slane %v8729, %v8906
      %v8909 = vunpack.c.l.s4 1966171168
      %v8910 = vunpack.c.0.s8 %v8909
      %v8911 = vlaneseq
      %v8912 = vshrl.u32 %v8911, 7
      %v8913 = vsub.s32 %v8910, %v8912
      %v8914 = vrot.slane %v8907, %v8913
      %v8916 = vunpack.c.l.s4 1966171168
      %v8917 = vunpack.c.0.s8 %v8916
      %v8918 = vlaneseq
      %v8919 = vshrl.u32 %v8918, 7
      %v8920 = vsub.s32 %v8917, %v8919
      %v8921 = vrot.slane %v8730, %v8920
      %v8923 = vunpack.c.l.s4 1966171168
      %v8924 = vunpack.c.0.s8 %v8923
      %v8925 = vlaneseq
      %v8926 = vshrl.u32 %v8925, 7
      %v8927 = vsub.s32 %v8924, %v8926
      %v8928 = vrot.slane %v8921, %v8927
      %v8930 = vunpack.c.l.s4 1966171168
      %v8931 = vunpack.c.0.s8 %v8930
      %v8932 = vlaneseq
      %v8933 = vshrl.u32 %v8932, 7
      %v8934 = vsub.s32 %v8931, %v8933
      %v8935 = vrot.slane %v8731, %v8934
      %v8937 = vunpack.c.l.s4 1966171168
      %v8938 = vunpack.c.0.s8 %v8937
      %v8939 = vlaneseq
      %v8940 = vshrl.u32 %v8939, 7
      %v8941 = vsub.s32 %v8938, %v8940
      %v8942 = vrot.slane %v8935, %v8941
      %v8944 = vunpack.c.l.s4 1966171168
      %v8945 = vunpack.c.0.s8 %v8944
      %v8946 = vlaneseq
      %v8947 = vshrl.u32 %v8946, 7
      %v8948 = vsub.s32 %v8945, %v8947
      %v8949 = vrot.slane %v8760, %v8948
      %v8951 = vunpack.c.l.s4 1966171168
      %v8952 = vunpack.c.0.s8 %v8951
      %v8953 = vlaneseq
      %v8954 = vshrl.u32 %v8953, 7
      %v8955 = vsub.s32 %v8952, %v8954
      %v8956 = vrot.slane %v8949, %v8955
      %v8958 = vunpack.c.l.s4 1966171168
      %v8959 = vunpack.c.0.s8 %v8958
      %v8960 = vlaneseq
      %v8961 = vshrl.u32 %v8960, 7
      %v8962 = vsub.s32 %v8959, %v8961
      %v8963 = vrot.slane %v8767, %v8962
      %v8965 = vunpack.c.l.s4 1966171168
      %v8966 = vunpack.c.0.s8 %v8965
      %v8967 = vlaneseq
      %v8968 = vshrl.u32 %v8967, 7
      %v8969 = vsub.s32 %v8966, %v8968
      %v8970 = vrot.slane %v8963, %v8969
      %v8972 = vunpack.c.l.s4 1966171168
      %v8973 = vunpack.c.0.s8 %v8972
      %v8974 = vlaneseq
      %v8975 = vshrl.u32 %v8974, 7
      %v8976 = vsub.s32 %v8973, %v8975
      %v8977 = vrot.slane %v8768, %v8976
      %v8979 = vunpack.c.l.s4 1966171168
      %v8980 = vunpack.c.0.s8 %v8979
      %v8981 = vlaneseq
      %v8982 = vshrl.u32 %v8981, 7
      %v8983 = vsub.s32 %v8980, %v8982
      %v8984 = vrot.slane %v8977, %v8983
      %v8986 = vunpack.c.l.s4 1966171168
      %v8987 = vunpack.c.0.s8 %v8986
      %v8988 = vlaneseq
      %v8989 = vshrl.u32 %v8988, 7
      %v8990 = vsub.s32 %v8987, %v8989
      %v8991 = vrot.slane %v8769, %v8990
      %v8993 = vunpack.c.l.s4 1966171168
      %v8994 = vunpack.c.0.s8 %v8993
      %v8995 = vlaneseq
      %v8996 = vshrl.u32 %v8995, 7
      %v8997 = vsub.s32 %v8994, %v8996
      %v8998 = vrot.slane %v8991, %v8997
      %v9000 = vunpack.c.l.s4 1966171168
      %v9001 = vunpack.c.0.s8 %v9000
      %v9002 = vlaneseq
      %v9003 = vshrl.u32 %v9002, 7
      %v9004 = vsub.s32 %v9001, %v9003
      %v9005 = vrot.slane %v8798, %v9004
      %v9007 = vunpack.c.l.s4 1966171168
      %v9008 = vunpack.c.0.s8 %v9007
      %v9009 = vlaneseq
      %v9010 = vshrl.u32 %v9009, 7
      %v9011 = vsub.s32 %v9008, %v9010
      %v9012 = vrot.slane %v9005, %v9011
      %v9014 = vunpack.c.l.s4 1966171168
      %v9015 = vunpack.c.0.s8 %v9014
      %v9016 = vlaneseq
      %v9017 = vshrl.u32 %v9016, 7
      %v9018 = vsub.s32 %v9015, %v9017
      %v9019 = vrot.slane %v8805, %v9018
      %v9021 = vunpack.c.l.s4 1966171168
      %v9022 = vunpack.c.0.s8 %v9021
      %v9023 = vlaneseq
      %v9024 = vshrl.u32 %v9023, 7
      %v9025 = vsub.s32 %v9022, %v9024
      %v9026 = vrot.slane %v9019, %v9025
      %v9028 = vunpack.c.l.s4 1966171168
      %v9029 = vunpack.c.0.s8 %v9028
      %v9030 = vlaneseq
      %v9031 = vshrl.u32 %v9030, 7
      %v9032 = vsub.s32 %v9029, %v9031
      %v9033 = vrot.slane %v8806, %v9032
      %v9035 = vunpack.c.l.s4 1966171168
      %v9036 = vunpack.c.0.s8 %v9035
      %v9037 = vlaneseq
      %v9038 = vshrl.u32 %v9037, 7
      %v9039 = vsub.s32 %v9036, %v9038
      %v9040 = vrot.slane %v9033, %v9039
      %v9042 = vunpack.c.l.s4 1966171168
      %v9043 = vunpack.c.0.s8 %v9042
      %v9044 = vlaneseq
      %v9045 = vshrl.u32 %v9044, 7
      %v9046 = vsub.s32 %v9043, %v9045
      %v9047 = vrot.slane %v8807, %v9046
      %v9049 = vunpack.c.l.s4 1966171168
      %v9050 = vunpack.c.0.s8 %v9049
      %v9051 = vlaneseq
      %v9052 = vshrl.u32 %v9051, 7
      %v9053 = vsub.s32 %v9050, %v9052
      %v9054 = vrot.slane %v9047, %v9053
      %v9055 = vunpack.c.l.b16 %v8844
      %v9056 = vunpack.c.l.b16 %v8858
      %v9057 = vunpack.c.l.b16 %v8872
      %v9058 = vunpack.c.l.b16 %v8886
      %v9059 = vunpack.c.l.b16 %v8900
      %v9060 = vunpack.c.l.b16 %v8914
      %v9061 = vunpack.c.l.b16 %v8928
      %v9062 = vunpack.c.l.b16 %v8942
      %v9063 = vunpack.c.l.b16 %v8956
      %v9064 = vunpack.c.l.b16 %v8970
      %v9065 = vunpack.c.l.b16 %v8984
      %v9066 = vunpack.c.l.b16 %v8998
      %v9067 = vunpack.c.l.b16 %v9012
      %v9068 = vunpack.c.l.b16 %v9026
      %v9069 = vunpack.c.l.b16 %v9040
      %v9070 = vunpack.c.l.b16 %v9054
      %v9071 = vrot.slane %v9056, 7
      %v9072 = vsel %vm1816, %v9071, %v9055
      %v9073 = vrot.slane %v9057, 6
      %v9074 = vsel %vm1819, %v9073, %v9072
      %v9075 = vrot.slane %v9058, 5
      %v9076 = vsel %vm1822, %v9075, %v9074
      %v9077 = vrot.slane %v9059, 4
      %v9078 = vsel %vm1825, %v9077, %v9076
      %v9079 = vrot.slane %v9060, 3
      %v9080 = vsel %vm1828, %v9079, %v9078
      %v9081 = vrot.slane %v9061, 2
      %v9082 = vsel %vm1831, %v9081, %v9080
      %v9083 = vrot.slane %v9062, 1
      %v9084 = vsel %vm1834, %v9083, %v9082
      %v9085 = vrot.slane %v9064, 7
      %v9086 = vsel %vm1816, %v9085, %v9063
      %v9087 = vrot.slane %v9065, 6
      %v9088 = vsel %vm1819, %v9087, %v9086
      %v9089 = vrot.slane %v9066, 5
      %v9090 = vsel %vm1822, %v9089, %v9088
      %v9091 = vrot.slane %v9067, 4
      %v9092 = vsel %vm1825, %v9091, %v9090
      %v9093 = vrot.slane %v9068, 3
      %v9094 = vsel %vm1828, %v9093, %v9092
      %v9095 = vrot.slane %v9069, 2
      %v9096 = vsel %vm1831, %v9095, %v9094
      %v9097 = vrot.slane %v9070, 1
      %v9098 = vsel %vm1834, %v9097, %v9096
      %v9099 = vpack.c.b16 %v9098, %v9084
      %v9108 = vunpack.c.l.b16 %v8823
      %v9109 = vunpack.c.l.b16 %v8824
      %v9110 = vunpack.c.l.b16 %v8825
      %v9111 = vunpack.c.l.b16 %v8826
      %v9112 = vunpack.c.l.b16 %v8827
      %v9113 = vunpack.c.l.b16 %v8828
      %v9114 = vunpack.c.l.b16 %v8829
      %v9115 = vunpack.c.l.b16 %v8830
      %v9116 = vpack.c.b16 %v9109, %v9108
      %v9117 = vpack.c.b16 %v9111, %v9110
      %v9118 = vpack.c.b16 %v9113, %v9112
      %v9119 = vpack.c.b16 %v9115, %v9114
      %v9125 = vsel %vm7571, %v9099, 0
      %9127 = vmatprep.subr.bf16.mxu0 0
      %9128 = vmatpush1.bf16.msra.mxu0 %v9116
      %9129 = vmatprep.subr.bf16.mxu0 0
      %9130 = vmatpush1.bf16.msra.mxu0 %v9117
      %9131 = vmatprep.subr.bf16.mxu0 0
      %9132 = vmatpush1.bf16.msra.mxu0 %v9118
      %9133 = vmatprep.subr.bf16.mxu0 0
      %9134 = vmatpush1.bf16.msra.mxu0 %v9119
      %9135 = vmatprep.subr.bf16.mxu0 0
      %9136 = vmatpush1.bf16.msra.mxu0 0
      %9137 = vmatprep.subr.bf16.mxu0 0
      %9138 = vmatpush1.bf16.msra.mxu0 0
      %9139 = vmatprep.subr.bf16.mxu0 0
      %9140 = vmatpush1.bf16.msra.mxu0 0
      %9141 = vmatprep.subr.bf16.mxu0 0
      %9142 = vmatpush1.bf16.msra.mxu0 0
      %9143 = vmatprep.subr.bf16.mxu0 0
      %9144 = vmatpush1.bf16.msra.mxu0 0
      %9145 = vmatprep.subr.bf16.mxu0 0
      %9146 = vmatpush1.bf16.msra.mxu0 0
      %9147 = vmatprep.subr.bf16.mxu0 0
      %9148 = vmatpush1.bf16.msra.mxu0 0
      %9149 = vmatprep.subr.bf16.mxu0 0
      %9150 = vmatpush1.bf16.msra.mxu0 0
      %9151 = vmatprep.subr.bf16.mxu0 0
      %9152 = vmatpush1.bf16.msra.mxu0 0
      %9153 = vmatprep.subr.bf16.mxu0 0
      %9154 = vmatpush1.bf16.msra.mxu0 0
      %9155 = vmatprep.subr.bf16.mxu0 0
      %9156 = vmatpush1.bf16.msra.mxu0 0
      %9157 = vmatprep.subr.bf16.mxu0 0
      %9158 = vmatpush1.bf16.msra.mxu0 0
      %9159 = vmatprep.mubr.bf16.mxu0 0
      %9160 = vmatmul.mubr.bf16.gmra.mrb[0].mxu0 %v9125
      %v9161 = vpop.f32.mrb[0].mxu0
      %v9162 = vadd.f32 0.0, %v9161
      %v9163 = vpop.f32.mrb[0].mxu0
      %v9164 = vpop.f32.mrb[0].mxu0
      %v9165 = vadd.f32 0.0, %v9164
      %v9166 = vpop.f32.mrb[0].mxu0
      %9167 = vdwg.mxu0
      %v9168 = vadd.f32 %v8651, %v9162
      %v9169 = vadd.f32 %v8652, %v9165
      %s9170 = scalar_lea.vmem %s3, 224
      %v9171 = vld [vmem:[%s9170] sm:$0xf]
      %v9172 = vld [vmem:[%s9170 + $0x4] sm:$0xf]
      %v9173 = vld [vmem:[%s9170 + $0x8] sm:$0xf]
      %v9174 = vld [vmem:[%s9170 + $0xc] sm:$0xf]
      %v9175 = vld [vmem:[%s9170 + $0x10] sm:$0xf]
      %v9176 = vld [vmem:[%s9170 + $0x14] sm:$0xf]
      %v9177 = vld [vmem:[%s9170 + $0x18] sm:$0xf]
      %v9178 = vld [vmem:[%s9170 + $0x1c] sm:$0xf]
      %v9179 = vrot.slane %v9055, 1
      %v9180 = vsel %vm1816, %v9056, %v9179
      %v9181 = vrot.slane %v9057, 7
      %v9182 = vsel %vm1819, %v9181, %v9180
      %v9183 = vrot.slane %v9058, 6
      %v9184 = vsel %vm1822, %v9183, %v9182
      %v9185 = vrot.slane %v9059, 5
      %v9186 = vsel %vm1825, %v9185, %v9184
      %v9187 = vrot.slane %v9060, 4
      %v9188 = vsel %vm1828, %v9187, %v9186
      %v9189 = vrot.slane %v9061, 3
      %v9190 = vsel %vm1831, %v9189, %v9188
      %v9191 = vrot.slane %v9062, 2
      %v9192 = vsel %vm1834, %v9191, %v9190
      %v9193 = vrot.slane %v9063, 1
      %v9194 = vsel %vm1816, %v9064, %v9193
      %v9195 = vrot.slane %v9065, 7
      %v9196 = vsel %vm1819, %v9195, %v9194
      %v9197 = vrot.slane %v9066, 6
      %v9198 = vsel %vm1822, %v9197, %v9196
      %v9199 = vrot.slane %v9067, 5
      %v9200 = vsel %vm1825, %v9199, %v9198
      %v9201 = vrot.slane %v9068, 4
      %v9202 = vsel %vm1828, %v9201, %v9200
      %v9203 = vrot.slane %v9069, 3
      %v9204 = vsel %vm1831, %v9203, %v9202
      %v9205 = vrot.slane %v9070, 2
      %v9206 = vsel %vm1834, %v9205, %v9204
      %v9207 = vpack.c.b16 %v9206, %v9192
      %v9216 = vunpack.c.l.b16 %v9171
      %v9217 = vunpack.c.l.b16 %v9172
      %v9218 = vunpack.c.l.b16 %v9173
      %v9219 = vunpack.c.l.b16 %v9174
      %v9220 = vunpack.c.l.b16 %v9175
      %v9221 = vunpack.c.l.b16 %v9176
      %v9222 = vunpack.c.l.b16 %v9177
      %v9223 = vunpack.c.l.b16 %v9178
      %v9224 = vpack.c.b16 %v9217, %v9216
      %v9225 = vpack.c.b16 %v9219, %v9218
      %v9226 = vpack.c.b16 %v9221, %v9220
      %v9227 = vpack.c.b16 %v9223, %v9222
      %v9233 = vsel %vm7571, %v9207, 0
      %9235 = vmatprep.subr.bf16.mxu0 0
      %9236 = vmatpush1.bf16.msra.mxu0 %v9224
      %9237 = vmatprep.subr.bf16.mxu0 0
      %9238 = vmatpush1.bf16.msra.mxu0 %v9225
      %9239 = vmatprep.subr.bf16.mxu0 0
      %9240 = vmatpush1.bf16.msra.mxu0 %v9226
      %9241 = vmatprep.subr.bf16.mxu0 0
      %9242 = vmatpush1.bf16.msra.mxu0 %v9227
      %9243 = vmatprep.subr.bf16.mxu0 0
      %9244 = vmatpush1.bf16.msra.mxu0 0
      %9245 = vmatprep.subr.bf16.mxu0 0
      %9246 = vmatpush1.bf16.msra.mxu0 0
      %9247 = vmatprep.subr.bf16.mxu0 0
      %9248 = vmatpush1.bf16.msra.mxu0 0
      %9249 = vmatprep.subr.bf16.mxu0 0
      %9250 = vmatpush1.bf16.msra.mxu0 0
      %9251 = vmatprep.subr.bf16.mxu0 0
      %9252 = vmatpush1.bf16.msra.mxu0 0
      %9253 = vmatprep.subr.bf16.mxu0 0
      %9254 = vmatpush1.bf16.msra.mxu0 0
      %9255 = vmatprep.subr.bf16.mxu0 0
      %9256 = vmatpush1.bf16.msra.mxu0 0
      %9257 = vmatprep.subr.bf16.mxu0 0
      %9258 = vmatpush1.bf16.msra.mxu0 0
      %9259 = vmatprep.subr.bf16.mxu0 0
      %9260 = vmatpush1.bf16.msra.mxu0 0
      %9261 = vmatprep.subr.bf16.mxu0 0
      %9262 = vmatpush1.bf16.msra.mxu0 0
      %9263 = vmatprep.subr.bf16.mxu0 0
      %9264 = vmatpush1.bf16.msra.mxu0 0
      %9265 = vmatprep.subr.bf16.mxu0 0
      %9266 = vmatpush1.bf16.msra.mxu0 0
      %9267 = vmatprep.mubr.bf16.mxu0 0
      %9268 = vmatmul.mubr.bf16.gmra.mrb[0].mxu0 %v9233
      %v9269 = vpop.f32.mrb[0].mxu0
      %v9270 = vadd.f32 0.0, %v9269
      %v9271 = vpop.f32.mrb[0].mxu0
      %v9272 = vpop.f32.mrb[0].mxu0
      %v9273 = vadd.f32 0.0, %v9272
      %v9274 = vpop.f32.mrb[0].mxu0
      %9275 = vdwg.mxu0
      %v9276 = vadd.f32 %v9168, %v9270
      %v9277 = vadd.f32 %v9169, %v9273
      %s9278 = scalar_lea.vmem %s3, 256
      %v9279 = vld [vmem:[%s9278] sm:$0xf]
      %v9280 = vld [vmem:[%s9278 + $0x4] sm:$0xf]
      %v9281 = vld [vmem:[%s9278 + $0x8] sm:$0xf]
      %v9282 = vld [vmem:[%s9278 + $0xc] sm:$0xf]
      %v9283 = vld [vmem:[%s9278 + $0x10] sm:$0xf]
      %v9284 = vld [vmem:[%s9278 + $0x14] sm:$0xf]
      %v9285 = vld [vmem:[%s9278 + $0x18] sm:$0xf]
      %v9286 = vld [vmem:[%s9278 + $0x1c] sm:$0xf]
      %v9288 = vunpack.c.l.s4 1966171168
      %v9289 = vunpack.c.0.s8 %v9288
      %v9290 = vlaneseq
      %v9291 = vshrl.u32 %v9290, 7
      %v9292 = vsub.s32 %v9289, %v9291
      %v9293 = vrot.slane %v8707, %v9292
      %v9295 = vunpack.c.l.s4 1966171168
      %v9296 = vunpack.c.0.s8 %v9295
      %v9297 = vlaneseq
      %v9298 = vshrl.u32 %v9297, 7
      %v9299 = vsub.s32 %v9296, %v9298
      %v9300 = vrot.slane %v9293, %v9299
      %v9302 = vunpack.c.l.s4 1966171168
      %v9303 = vunpack.c.0.s8 %v9302
      %v9304 = vlaneseq
      %v9305 = vshrl.u32 %v9304, 7
      %v9306 = vsub.s32 %v9303, %v9305
      %v9307 = vrot.slane %v8745, %v9306
      %v9309 = vunpack.c.l.s4 1966171168
      %v9310 = vunpack.c.0.s8 %v9309
      %v9311 = vlaneseq
      %v9312 = vshrl.u32 %v9311, 7
      %v9313 = vsub.s32 %v9310, %v9312
      %v9314 = vrot.slane %v9307, %v9313
      %v9316 = vunpack.c.l.s4 1966171168
      %v9317 = vunpack.c.0.s8 %v9316
      %v9318 = vlaneseq
      %v9319 = vshrl.u32 %v9318, 7
      %v9320 = vsub.s32 %v9317, %v9319
      %v9321 = vrot.slane %v8783, %v9320
      %v9323 = vunpack.c.l.s4 1966171168
      %v9324 = vunpack.c.0.s8 %v9323
      %v9325 = vlaneseq
      %v9326 = vshrl.u32 %v9325, 7
      %v9327 = vsub.s32 %v9324, %v9326
      %v9328 = vrot.slane %v9321, %v9327
      %v9330 = vunpack.c.l.s4 1966171168
      %v9331 = vunpack.c.0.s8 %v9330
      %v9332 = vlaneseq
      %v9333 = vshrl.u32 %v9332, 7
      %v9334 = vsub.s32 %v9331, %v9333
      %v9335 = vrot.slane %v8821, %v9334
      %v9337 = vunpack.c.l.s4 1966171168
      %v9338 = vunpack.c.0.s8 %v9337
      %v9339 = vlaneseq
      %v9340 = vshrl.u32 %v9339, 7
      %v9341 = vsub.s32 %v9338, %v9340
      %v9342 = vrot.slane %v9335, %v9341
      %v9343 = vunpack.c.l.b16 %v9300
      %v9344 = vunpack.c.l.b16 %v9314
      %v9345 = vunpack.c.l.b16 %v9328
      %v9346 = vunpack.c.l.b16 %v9342
      %v9347 = vsel %vm1816, %v9181, %v9056
      %v9348 = vsel %vm1819, %v9183, %v9347
      %v9349 = vrot.slane %v9343, 5
      %v9350 = vsel %vm1822, %v9349, %v9348
      %v9351 = vsel %vm1825, %v9187, %v9350
      %v9352 = vsel %vm1828, %v9189, %v9351
      %v9353 = vsel %vm1831, %v9191, %v9352
      %v9354 = vrot.slane %v9344, 1
      %v9355 = vsel %vm1834, %v9354, %v9353
      %v9356 = vsel %vm1816, %v9195, %v9064
      %v9357 = vsel %vm1819, %v9197, %v9356
      %v9358 = vrot.slane %v9345, 5
      %v9359 = vsel %vm1822, %v9358, %v9357
      %v9360 = vsel %vm1825, %v9201, %v9359
      %v9361 = vsel %vm1828, %v9203, %v9360
      %v9362 = vsel %vm1831, %v9205, %v9361
      %v9363 = vrot.slane %v9346, 1
      %v9364 = vsel %vm1834, %v9363, %v9362
      %v9365 = vpack.c.b16 %v9364, %v9355
      %v9374 = vunpack.c.l.b16 %v9279
      %v9375 = vunpack.c.l.b16 %v9280
      %v9376 = vunpack.c.l.b16 %v9281
      %v9377 = vunpack.c.l.b16 %v9282
      %v9378 = vunpack.c.l.b16 %v9283
      %v9379 = vunpack.c.l.b16 %v9284
      %v9380 = vunpack.c.l.b16 %v9285
      %v9381 = vunpack.c.l.b16 %v9286
      %v9382 = vpack.c.b16 %v9375, %v9374
      %v9383 = vpack.c.b16 %v9377, %v9376
      %v9384 = vpack.c.b16 %v9379, %v9378
      %v9385 = vpack.c.b16 %v9381, %v9380
      %v9391 = vsel %vm7571, %v9365, 0
      %9393 = vmatprep.subr.bf16.mxu0 0
      %9394 = vmatpush1.bf16.msra.mxu0 %v9382
      %9395 = vmatprep.subr.bf16.mxu0 0
      %9396 = vmatpush1.bf16.msra.mxu0 %v9383
      %9397 = vmatprep.subr.bf16.mxu0 0
      %9398 = vmatpush1.bf16.msra.mxu0 %v9384
      %9399 = vmatprep.subr.bf16.mxu0 0
      %9400 = vmatpush1.bf16.msra.mxu0 %v9385
      %9401 = vmatprep.subr.bf16.mxu0 0
      %9402 = vmatpush1.bf16.msra.mxu0 0
      %9403 = vmatprep.subr.bf16.mxu0 0
      %9404 = vmatpush1.bf16.msra.mxu0 0
      %9405 = vmatprep.subr.bf16.mxu0 0
      %9406 = vmatpush1.bf16.msra.mxu0 0
      %9407 = vmatprep.subr.bf16.mxu0 0
      %9408 = vmatpush1.bf16.msra.mxu0 0
      %9409 = vmatprep.subr.bf16.mxu0 0
      %9410 = vmatpush1.bf16.msra.mxu0 0
      %9411 = vmatprep.subr.bf16.mxu0 0
      %9412 = vmatpush1.bf16.msra.mxu0 0
      %9413 = vmatprep.subr.bf16.mxu0 0
      %9414 = vmatpush1.bf16.msra.mxu0 0
      %9415 = vmatprep.subr.bf16.mxu0 0
      %9416 = vmatpush1.bf16.msra.mxu0 0
      %9417 = vmatprep.subr.bf16.mxu0 0
      %9418 = vmatpush1.bf16.msra.mxu0 0
      %9419 = vmatprep.subr.bf16.mxu0 0
      %9420 = vmatpush1.bf16.msra.mxu0 0
      %9421 = vmatprep.subr.bf16.mxu0 0
      %9422 = vmatpush1.bf16.msra.mxu0 0
      %9423 = vmatprep.subr.bf16.mxu0 0
      %9424 = vmatpush1.bf16.msra.mxu0 0
      %9425 = vmatprep.mubr.bf16.mxu0 0
      %9426 = vmatmul.mubr.bf16.gmra.mrb[0].mxu0 %v9391
      %v9427 = vpop.f32.mrb[0].mxu0
      %v9428 = vadd.f32 0.0, %v9427
      %v9429 = vpop.f32.mrb[0].mxu0
      %v9430 = vpop.f32.mrb[0].mxu0
      %v9431 = vadd.f32 0.0, %v9430
      %v9432 = vpop.f32.mrb[0].mxu0
      %9433 = vdwg.mxu0
      %v9434 = vadd.f32 %v9276, %v9428
      %v9435 = vadd.f32 %v9277, %v9431
      %v9436 = vld [vmem:[%s4] sm:$0x1]
      %v9438 = vlaneseq
      %v9439 = vshrl.u32 %v9438, 7
      %v9440 = vsub.s32 0, %v9439
      %v9441 = vrot.slane %v9436, %v9440
      %v9443 = vadd.f32 %v9434, %v9441
      %v9444 = vadd.f32 %v9435, %v9441
      %vm9445 = vcmp.ge.f32.partialorder %v9443, 0.0
      %vm9446 = vcmp.ge.f32.partialorder %v9444, 0.0
      %v9447 = vmul.f32 %v9443, 0.01
      %v9448 = vmul.f32 %v9444, 0.01
      %v9449 = vsel %vm9445, %v9443, %v9447
      %v9450 = vsel %vm9446, %v9444, %v9448
      %v9453 = vcombine.high %v9449, %v9449
      %v9454 = vcombine.high %v9450, %v9450
      %v9457 = vpack.c.bf16 %v9449, %v9449
      %v9458 = vpack.c.bf16 %v9453, %v9453
      %v9459 = vpack.c.bf16 %v9450, %v9450
      %v9460 = vpack.c.bf16 %v9454, %v9454
      %v9465 = vunpack.c.l.b16 %v9457
      %v9466 = vunpack.c.l.b16 %v9458
      %v9467 = vunpack.c.l.b16 %v9459
      %v9468 = vunpack.c.l.b16 %v9460
      %v9469 = vpack.c.b16 %v9465, %v9465
      %v9470 = vpack.c.b16 %v9466, %v9466
      %v9471 = vpack.c.b16 %v9467, %v9467
      %v9472 = vpack.c.b16 %v9468, %v9468
      %v9474 = vshrl.u32 %v9469, 16
      %v9476 = vrot.slane %v9474, 7
      %v9477 = vshll.u32 %v9469, 16
      %v9479 = vor.u32 %v9476, %v9477
      %v9481 = vshrl.u32 %v9470, 16
      %v9483 = vrot.slane %v9481, 7
      %v9484 = vshll.u32 %v9470, 16
      %v9486 = vor.u32 %v9483, %v9484
      %v9488 = vshrl.u32 %v9471, 16
      %v9490 = vrot.slane %v9488, 7
      %v9491 = vshll.u32 %v9471, 16
      %v9493 = vor.u32 %v9490, %v9491
      %v9495 = vshrl.u32 %v9472, 16
      %v9497 = vrot.slane %v9495, 7
      %v9498 = vshll.u32 %v9472, 16
      %v9500 = vor.u32 %v9497, %v9498
      %s9505 = scalar_lea.vmem [#allocation3], 4
      %vm9506 = vcmask 1042432
      %vm9507 = vsmask.f32 2306
      %vm9508 = vmand %vm9506, %vm9507
      %v9509 = vld [vmem:[%s9505] sm:$0x7]
      %v9510 = vsel %vm9508, %v9479, %v9509
      %9511 = vst [vmem:[%s9505] sm:$0x7] %v9510
      %v9512 = vld [vmem:[%s9505 + $0x4] sm:$0x7]
      %v9513 = vsel %vm9508, %v9486, %v9512
      %9514 = vst [vmem:[%s9505 + $0x4] sm:$0x7] %v9513
      %v9515 = vld [vmem:[%s9505 + $0x8] sm:$0x7]
      %v9516 = vsel %vm9508, %v9493, %v9515
      %9517 = vst [vmem:[%s9505 + $0x8] sm:$0x7] %v9516
      %v9518 = vld [vmem:[%s9505 + $0xc] sm:$0x7]
      %v9519 = vsel %vm9508, %v9500, %v9518
      %9520 = vst [vmem:[%s9505 + $0xc] sm:$0x7] %v9519
      %v9521 = vld [vmem:[#allocation3] sm:$0x7]
      %v9522 = vld [vmem:[#allocation3 + $0x8] sm:$0x7]
      %v9526 = vunpack.c.l.s4 1966171168
      %v9527 = vunpack.c.0.s8 %v9526
      %v9528 = vlaneseq
      %v9529 = vshrl.u32 %v9528, 7
      %v9530 = vsub.s32 %v9527, %v9529
      %v9531 = vrot.slane %v9521, %v9530
      %v9532 = vcombine.high %v9531, %v9531
      %v9534 = vunpack.c.l.s4 1966171168
      %v9535 = vunpack.c.0.s8 %v9534
      %v9536 = vlaneseq
      %v9537 = vshrl.u32 %v9536, 7
      %v9538 = vsub.s32 %v9535, %v9537
      %v9539 = vrot.slane %v9531, %v9538
      %v9541 = vunpack.c.l.s4 1966171168
      %v9542 = vunpack.c.0.s8 %v9541
      %v9543 = vlaneseq
      %v9544 = vshrl.u32 %v9543, 7
      %v9545 = vsub.s32 %v9542, %v9544
      %v9546 = vrot.slane %v9532, %v9545
      %v9547 = vcombine.high %v9539, %v9539
      %v9549 = vunpack.c.l.s4 1966171168
      %v9550 = vunpack.c.0.s8 %v9549
      %v9551 = vlaneseq
      %v9552 = vshrl.u32 %v9551, 7
      %v9553 = vsub.s32 %v9550, %v9552
      %v9554 = vrot.slane %v9522, %v9553
      %v9555 = vcombine.high %v9554, %v9554
      %v9557 = vunpack.c.l.s4 1966171168
      %v9558 = vunpack.c.0.s8 %v9557
      %v9559 = vlaneseq
      %v9560 = vshrl.u32 %v9559, 7
      %v9561 = vsub.s32 %v9558, %v9560
      %v9562 = vrot.slane %v9554, %v9561
      %v9564 = vunpack.c.l.s4 1966171168
      %v9565 = vunpack.c.0.s8 %v9564
      %v9566 = vlaneseq
      %v9567 = vshrl.u32 %v9566, 7
      %v9568 = vsub.s32 %v9565, %v9567
      %v9569 = vrot.slane %v9555, %v9568
      %v9570 = vcombine.high %v9562, %v9562
      %v9571 = vld [vmem:[%s5] sm:$0xff]
      %v9572 = vld [vmem:[%s5 + $0x8] sm:$0xff]
      %v9573 = vld [vmem:[%s5 + $0x10] sm:$0xff]
      %v9574 = vld [vmem:[%s5 + $0x18] sm:$0xff]
      %v9575 = vld [vmem:[%s5 + $0x20] sm:$0xff]
      %v9576 = vld [vmem:[%s5 + $0x28] sm:$0xff]
      %v9577 = vld [vmem:[%s5 + $0x30] sm:$0xff]
      %v9578 = vld [vmem:[%s5 + $0x38] sm:$0xff]
      %v9579 = vld [vmem:[%s5 + $0x40] sm:$0xff]
      %v9580 = vld [vmem:[%s5 + $0x48] sm:$0xff]
      %v9581 = vld [vmem:[%s5 + $0x50] sm:$0xff]
      %v9582 = vld [vmem:[%s5 + $0x58] sm:$0xff]
      %v9583 = vld [vmem:[%s5 + $0x60] sm:$0xff]
      %v9584 = vld [vmem:[%s5 + $0x68] sm:$0xff]
      %v9585 = vld [vmem:[%s5 + $0x70] sm:$0xff]
      %v9586 = vld [vmem:[%s5 + $0x78] sm:$0xff]
      %s9587 = scalar_lea.vmem %s5, 128
      %v9588 = vld [vmem:[%s9587] sm:$0xff]
      %v9589 = vld [vmem:[%s9587 + $0x8] sm:$0xff]
      %v9590 = vld [vmem:[%s9587 + $0x10] sm:$0xff]
      %v9591 = vld [vmem:[%s9587 + $0x18] sm:$0xff]
      %v9592 = vld [vmem:[%s9587 + $0x20] sm:$0xff]
      %v9593 = vld [vmem:[%s9587 + $0x28] sm:$0xff]
      %v9594 = vld [vmem:[%s9587 + $0x30] sm:$0xff]
      %v9595 = vld [vmem:[%s9587 + $0x38] sm:$0xff]
      %v9596 = vld [vmem:[%s9587 + $0x40] sm:$0xff]
      %v9597 = vld [vmem:[%s9587 + $0x48] sm:$0xff]
      %v9598 = vld [vmem:[%s9587 + $0x50] sm:$0xff]
      %v9599 = vld [vmem:[%s9587 + $0x58] sm:$0xff]
      %v9600 = vld [vmem:[%s9587 + $0x60] sm:$0xff]
      %v9601 = vld [vmem:[%s9587 + $0x68] sm:$0xff]
      %v9602 = vld [vmem:[%s9587 + $0x70] sm:$0xff]
      %v9603 = vld [vmem:[%s9587 + $0x78] sm:$0xff]
      %v9605 = vunpack.c.l.s4 1966171168
      %v9606 = vunpack.c.0.s8 %v9605
      %v9607 = vlaneseq
      %v9608 = vshrl.u32 %v9607, 7
      %v9609 = vsub.s32 %v9606, %v9608
      %v9610 = vrot.slane %v9539, %v9609
      %v9612 = vunpack.c.l.s4 1966171168
      %v9613 = vunpack.c.0.s8 %v9612
      %v9614 = vlaneseq
      %v9615 = vshrl.u32 %v9614, 7
      %v9616 = vsub.s32 %v9613, %v9615
      %v9617 = vrot.slane %v9610, %v9616
      %v9619 = vunpack.c.l.s4 1966171168
      %v9620 = vunpack.c.0.s8 %v9619
      %v9621 = vlaneseq
      %v9622 = vshrl.u32 %v9621, 7
      %v9623 = vsub.s32 %v9620, %v9622
      %v9624 = vrot.slane %v9546, %v9623
      %v9626 = vunpack.c.l.s4 1966171168
      %v9627 = vunpack.c.0.s8 %v9626
      %v9628 = vlaneseq
      %v9629 = vshrl.u32 %v9628, 7
      %v9630 = vsub.s32 %v9627, %v9629
      %v9631 = vrot.slane %v9624, %v9630
      %v9633 = vunpack.c.l.s4 1966171168
      %v9634 = vunpack.c.0.s8 %v9633
      %v9635 = vlaneseq
      %v9636 = vshrl.u32 %v9635, 7
      %v9637 = vsub.s32 %v9634, %v9636
      %v9638 = vrot.slane %v9562, %v9637
      %v9640 = vunpack.c.l.s4 1966171168
      %v9641 = vunpack.c.0.s8 %v9640
      %v9642 = vlaneseq
      %v9643 = vshrl.u32 %v9642, 7
      %v9644 = vsub.s32 %v9641, %v9643
      %v9645 = vrot.slane %v9638, %v9644
      %v9647 = vunpack.c.l.s4 1966171168
      %v9648 = vunpack.c.0.s8 %v9647
      %v9649 = vlaneseq
      %v9650 = vshrl.u32 %v9649, 7
      %v9651 = vsub.s32 %v9648, %v9650
      %v9652 = vrot.slane %v9569, %v9651
      %v9654 = vunpack.c.l.s4 1966171168
      %v9655 = vunpack.c.0.s8 %v9654
      %v9656 = vlaneseq
      %v9657 = vshrl.u32 %v9656, 7
      %v9658 = vsub.s32 %v9655, %v9657
      %v9659 = vrot.slane %v9652, %v9658
      %v9660 = vunpack.c.l.b16 %v9617
      %v9661 = vunpack.c.l.b16 %v9631
      %v9662 = vunpack.c.l.b16 %v9645
      %v9663 = vunpack.c.l.b16 %v9659
      %v9664 = vrot.slane %v9660, 1
      %v9665 = vsel %vm1816, %v9661, %v9664
      %v9666 = vrot.slane %v9662, 7
      %v9667 = vsel %vm1819, %v9666, %v9665
      %v9668 = vrot.slane %v9663, 6
      %v9669 = vsel %vm1822, %v9668, %v9667
      %v9670 = vpack.c.b16 %v9669, %v9669
      %v9688 = vunpack.c.l.b16 %v9588
      %v9689 = vunpack.c.h.b16 %v9588
      %v9690 = vunpack.c.l.b16 %v9589
      %v9691 = vunpack.c.h.b16 %v9589
      %v9692 = vunpack.c.l.b16 %v9590
      %v9693 = vunpack.c.h.b16 %v9590
      %v9694 = vunpack.c.l.b16 %v9591
      %v9695 = vunpack.c.h.b16 %v9591
      %v9696 = vunpack.c.l.b16 %v9592
      %v9697 = vunpack.c.h.b16 %v9592
      %v9698 = vunpack.c.l.b16 %v9593
      %v9699 = vunpack.c.h.b16 %v9593
      %v9700 = vunpack.c.l.b16 %v9594
      %v9701 = vunpack.c.h.b16 %v9594
      %v9702 = vunpack.c.l.b16 %v9595
      %v9703 = vunpack.c.h.b16 %v9595
      %v9704 = vunpack.c.l.b16 %v9596
      %v9705 = vunpack.c.h.b16 %v9596
      %v9706 = vunpack.c.l.b16 %v9597
      %v9707 = vunpack.c.h.b16 %v9597
      %v9708 = vunpack.c.l.b16 %v9598
      %v9709 = vunpack.c.h.b16 %v9598
      %v9710 = vunpack.c.l.b16 %v9599
      %v9711 = vunpack.c.h.b16 %v9599
      %v9712 = vunpack.c.l.b16 %v9600
      %v9713 = vunpack.c.h.b16 %v9600
      %v9714 = vunpack.c.l.b16 %v9601
      %v9715 = vunpack.c.h.b16 %v9601
      %v9716 = vunpack.c.l.b16 %v9602
      %v9717 = vunpack.c.h.b16 %v9602
      %v9718 = vunpack.c.l.b16 %v9603
      %v9719 = vunpack.c.h.b16 %v9603
      %v9720 = vpack.c.b16 %v9690, %v9688
      %v9721 = vpack.c.b16 %v9691, %v9689
      %v9722 = vpack.c.b16 %v9694, %v9692
      %v9723 = vpack.c.b16 %v9695, %v9693
      %v9724 = vpack.c.b16 %v9698, %v9696
      %v9725 = vpack.c.b16 %v9699, %v9697
      %v9726 = vpack.c.b16 %v9702, %v9700
      %v9727 = vpack.c.b16 %v9703, %v9701
      %v9728 = vpack.c.b16 %v9706, %v9704
      %v9729 = vpack.c.b16 %v9707, %v9705
      %v9730 = vpack.c.b16 %v9710, %v9708
      %v9731 = vpack.c.b16 %v9711, %v9709
      %v9732 = vpack.c.b16 %v9714, %v9712
      %v9733 = vpack.c.b16 %v9715, %v9713
      %v9734 = vpack.c.b16 %v9718, %v9716
      %v9735 = vpack.c.b16 %v9719, %v9717
      %9752 = vmatprep.subr.bf16.mxu0 %v9721
      %9753 = vmatpush1.bf16.msra.mxu0 %v9720
      %9754 = vmatprep.subr.bf16.mxu0 %v9723
      %9755 = vmatpush1.bf16.msra.mxu0 %v9722
      %9756 = vmatprep.subr.bf16.mxu0 %v9725
      %9757 = vmatpush1.bf16.msra.mxu0 %v9724
      %9758 = vmatprep.subr.bf16.mxu0 %v9727
      %9759 = vmatpush1.bf16.msra.mxu0 %v9726
      %9760 = vmatprep.subr.bf16.mxu0 %v9729
      %9761 = vmatpush1.bf16.msra.mxu0 %v9728
      %9762 = vmatprep.subr.bf16.mxu0 %v9731
      %9763 = vmatpush1.bf16.msra.mxu0 %v9730
      %9764 = vmatprep.subr.bf16.mxu0 %v9733
      %9765 = vmatpush1.bf16.msra.mxu0 %v9732
      %9766 = vmatprep.subr.bf16.mxu0 %v9735
      %9767 = vmatpush1.bf16.msra.mxu0 %v9734
      %9768 = vmatprep.subr.bf16.mxu0 0
      %9769 = vmatpush1.bf16.msra.mxu0 0
      %9770 = vmatprep.subr.bf16.mxu0 0
      %9771 = vmatpush1.bf16.msra.mxu0 0
      %9772 = vmatprep.subr.bf16.mxu0 0
      %9773 = vmatpush1.bf16.msra.mxu0 0
      %9774 = vmatprep.subr.bf16.mxu0 0
      %9775 = vmatpush1.bf16.msra.mxu0 0
      %9776 = vmatprep.subr.bf16.mxu0 0
      %9777 = vmatpush1.bf16.msra.mxu0 0
      %9778 = vmatprep.subr.bf16.mxu0 0
      %9779 = vmatpush1.bf16.msra.mxu0 0
      %9780 = vmatprep.subr.bf16.mxu0 0
      %9781 = vmatpush1.bf16.msra.mxu0 0
      %9782 = vmatprep.subr.bf16.mxu0 0
      %9783 = vmatpush1.bf16.msra.mxu0 0
      %9784 = vmatprep.mubr.bf16.mxu0 0
      %9785 = vmatmul.mubr.bf16.gmra.mrb[0].mxu0 %v9670
      %v9786 = vpop.f32.mrb[0].mxu0
      %v9787 = vadd.f32 0.0, %v9786
      %v9788 = vpop.f32.mrb[0].mxu0
      %v9789 = vadd.f32 0.0, %v9788
      %v9790 = vpop.f32.mrb[0].mxu0
      %v9791 = vpop.f32.mrb[0].mxu0
      %9792 = vdwg.mxu0
      %v9793 = vrot.slane %v9661, 7
      %v9794 = vsel %vm1816, %v9793, %v9660
      %v9795 = vrot.slane %v9662, 6
      %v9796 = vsel %vm1819, %v9795, %v9794
      %v9797 = vrot.slane %v9663, 5
      %v9798 = vsel %vm1822, %v9797, %v9796
      %v9799 = vpack.c.b16 %v9798, %v9798
      %v9817 = vunpack.c.l.b16 %v9571
      %v9818 = vunpack.c.h.b16 %v9571
      %v9819 = vunpack.c.l.b16 %v9572
      %v9820 = vunpack.c.h.b16 %v9572
      %v9821 = vunpack.c.l.b16 %v9573
      %v9822 = vunpack.c.h.b16 %v9573
      %v9823 = vunpack.c.l.b16 %v9574
      %v9824 = vunpack.c.h.b16 %v9574
      %v9825 = vunpack.c.l.b16 %v9575
      %v9826 = vunpack.c.h.b16 %v9575
      %v9827 = vunpack.c.l.b16 %v9576
      %v9828 = vunpack.c.h.b16 %v9576
      %v9829 = vunpack.c.l.b16 %v9577
      %v9830 = vunpack.c.h.b16 %v9577
      %v9831 = vunpack.c.l.b16 %v9578
      %v9832 = vunpack.c.h.b16 %v9578
      %v9833 = vunpack.c.l.b16 %v9579
      %v9834 = vunpack.c.h.b16 %v9579
      %v9835 = vunpack.c.l.b16 %v9580
      %v9836 = vunpack.c.h.b16 %v9580
      %v9837 = vunpack.c.l.b16 %v9581
      %v9838 = vunpack.c.h.b16 %v9581
      %v9839 = vunpack.c.l.b16 %v9582
      %v9840 = vunpack.c.h.b16 %v9582
      %v9841 = vunpack.c.l.b16 %v9583
      %v9842 = vunpack.c.h.b16 %v9583
      %v9843 = vunpack.c.l.b16 %v9584
      %v9844 = vunpack.c.h.b16 %v9584
      %v9845 = vunpack.c.l.b16 %v9585
      %v9846 = vunpack.c.h.b16 %v9585
      %v9847 = vunpack.c.l.b16 %v9586
      %v9848 = vunpack.c.h.b16 %v9586
      %v9849 = vpack.c.b16 %v9819, %v9817
      %v9850 = vpack.c.b16 %v9820, %v9818
      %v9851 = vpack.c.b16 %v9823, %v9821
      %v9852 = vpack.c.b16 %v9824, %v9822
      %v9853 = vpack.c.b16 %v9827, %v9825
      %v9854 = vpack.c.b16 %v9828, %v9826
      %v9855 = vpack.c.b16 %v9831, %v9829
      %v9856 = vpack.c.b16 %v9832, %v9830
      %v9857 = vpack.c.b16 %v9835, %v9833
      %v9858 = vpack.c.b16 %v9836, %v9834
      %v9859 = vpack.c.b16 %v9839, %v9837
      %v9860 = vpack.c.b16 %v9840, %v9838
      %v9861 = vpack.c.b16 %v9843, %v9841
      %v9862 = vpack.c.b16 %v9844, %v9842
      %v9863 = vpack.c.b16 %v9847, %v9845
      %v9864 = vpack.c.b16 %v9848, %v9846
      %9881 = vmatprep.subr.bf16.mxu0 %v9850
      %9882 = vmatpush1.bf16.msra.mxu0 %v9849
      %9883 = vmatprep.subr.bf16.mxu0 %v9852
      %9884 = vmatpush1.bf16.msra.mxu0 %v9851
      %9885 = vmatprep.subr.bf16.mxu0 %v9854
      %9886 = vmatpush1.bf16.msra.mxu0 %v9853
      %9887 = vmatprep.subr.bf16.mxu0 %v9856
      %9888 = vmatpush1.bf16.msra.mxu0 %v9855
      %9889 = vmatprep.subr.bf16.mxu0 %v9858
      %9890 = vmatpush1.bf16.msra.mxu0 %v9857
      %9891 = vmatprep.subr.bf16.mxu0 %v9860
      %9892 = vmatpush1.bf16.msra.mxu0 %v9859
      %9893 = vmatprep.subr.bf16.mxu0 %v9862
      %9894 = vmatpush1.bf16.msra.mxu0 %v9861
      %9895 = vmatprep.subr.bf16.mxu0 %v9864
      %9896 = vmatpush1.bf16.msra.mxu0 %v9863
      %9897 = vmatprep.subr.bf16.mxu0 0
      %9898 = vmatpush1.bf16.msra.mxu0 0
      %9899 = vmatprep.subr.bf16.mxu0 0
      %9900 = vmatpush1.bf16.msra.mxu0 0
      %9901 = vmatprep.subr.bf16.mxu0 0
      %9902 = vmatpush1.bf16.msra.mxu0 0
      %9903 = vmatprep.subr.bf16.mxu0 0
      %9904 = vmatpush1.bf16.msra.mxu0 0
      %9905 = vmatprep.subr.bf16.mxu0 0
      %9906 = vmatpush1.bf16.msra.mxu0 0
      %9907 = vmatprep.subr.bf16.mxu0 0
      %9908 = vmatpush1.bf16.msra.mxu0 0
      %9909 = vmatprep.subr.bf16.mxu0 0
      %9910 = vmatpush1.bf16.msra.mxu0 0
      %9911 = vmatprep.subr.bf16.mxu0 0
      %9912 = vmatpush1.bf16.msra.mxu0 0
      %9913 = vmatprep.mubr.bf16.mxu0 0
      %9914 = vmatmul.mubr.bf16.gmra.mrb[0].mxu0 %v9799
      %v9915 = vpop.f32.mrb[0].mxu0
      %v9916 = vadd.f32 %v9787, %v9915
      %v9917 = vpop.f32.mrb[0].mxu0
      %v9918 = vadd.f32 %v9789, %v9917
      %v9919 = vpop.f32.mrb[0].mxu0
      %v9920 = vpop.f32.mrb[0].mxu0
      %9921 = vdwg.mxu0
      %s9922 = scalar_lea.vmem %s5, 256
      %v9923 = vld [vmem:[%s9922] sm:$0xff]
      %v9924 = vld [vmem:[%s9922 + $0x8] sm:$0xff]
      %v9925 = vld [vmem:[%s9922 + $0x10] sm:$0xff]
      %v9926 = vld [vmem:[%s9922 + $0x18] sm:$0xff]
      %v9927 = vld [vmem:[%s9922 + $0x20] sm:$0xff]
      %v9928 = vld [vmem:[%s9922 + $0x28] sm:$0xff]
      %v9929 = vld [vmem:[%s9922 + $0x30] sm:$0xff]
      %v9930 = vld [vmem:[%s9922 + $0x38] sm:$0xff]
      %v9931 = vld [vmem:[%s9922 + $0x40] sm:$0xff]
      %v9932 = vld [vmem:[%s9922 + $0x48] sm:$0xff]
      %v9933 = vld [vmem:[%s9922 + $0x50] sm:$0xff]
      %v9934 = vld [vmem:[%s9922 + $0x58] sm:$0xff]
      %v9935 = vld [vmem:[%s9922 + $0x60] sm:$0xff]
      %v9936 = vld [vmem:[%s9922 + $0x68] sm:$0xff]
      %v9937 = vld [vmem:[%s9922 + $0x70] sm:$0xff]
      %v9938 = vld [vmem:[%s9922 + $0x78] sm:$0xff]
      %v9940 = vunpack.c.l.s4 1966171168
      %v9941 = vunpack.c.0.s8 %v9940
      %v9942 = vlaneseq
      %v9943 = vshrl.u32 %v9942, 7
      %v9944 = vsub.s32 %v9941, %v9943
      %v9945 = vrot.slane %v9547, %v9944
      %v9947 = vunpack.c.l.s4 1966171168
      %v9948 = vunpack.c.0.s8 %v9947
      %v9949 = vlaneseq
      %v9950 = vshrl.u32 %v9949, 7
      %v9951 = vsub.s32 %v9948, %v9950
      %v9952 = vrot.slane %v9945, %v9951
      %v9954 = vunpack.c.l.s4 1966171168
      %v9955 = vunpack.c.0.s8 %v9954
      %v9956 = vlaneseq
      %v9957 = vshrl.u32 %v9956, 7
      %v9958 = vsub.s32 %v9955, %v9957
      %v9959 = vrot.slane %v9570, %v9958
      %v9961 = vunpack.c.l.s4 1966171168
      %v9962 = vunpack.c.0.s8 %v9961
      %v9963 = vlaneseq
      %v9964 = vshrl.u32 %v9963, 7
      %v9965 = vsub.s32 %v9962, %v9964
      %v9966 = vrot.slane %v9959, %v9965
      %v9967 = vunpack.c.l.b16 %v9952
      %v9968 = vunpack.c.l.b16 %v9966
      %v9969 = vrot.slane %v9967, 7
      %v9970 = vsel %vm1816, %v9969, %v9661
      %v9971 = vsel %vm1819, %v9668, %v9970
      %v9972 = vrot.slane %v9968, 5
      %v9973 = vsel %vm1822, %v9972, %v9971
      %v9974 = vpack.c.b16 %v9973, %v9973
      %v9992 = vunpack.c.l.b16 %v9923
      %v9993 = vunpack.c.h.b16 %v9923
      %v9994 = vunpack.c.l.b16 %v9924
      %v9995 = vunpack.c.h.b16 %v9924
      %v9996 = vunpack.c.l.b16 %v9925
      %v9997 = vunpack.c.h.b16 %v9925
      %v9998 = vunpack.c.l.b16 %v9926
      %v9999 = vunpack.c.h.b16 %v9926
      %v10000 = vunpack.c.l.b16 %v9927
      %v10001 = vunpack.c.h.b16 %v9927
      %v10002 = vunpack.c.l.b16 %v9928
      %v10003 = vunpack.c.h.b16 %v9928
      %v10004 = vunpack.c.l.b16 %v9929
      %v10005 = vunpack.c.h.b16 %v9929
      %v10006 = vunpack.c.l.b16 %v9930
      %v10007 = vunpack.c.h.b16 %v9930
      %v10008 = vunpack.c.l.b16 %v9931
      %v10009 = vunpack.c.h.b16 %v9931
      %v10010 = vunpack.c.l.b16 %v9932
      %v10011 = vunpack.c.h.b16 %v9932
      %v10012 = vunpack.c.l.b16 %v9933
      %v10013 = vunpack.c.h.b16 %v9933
      %v10014 = vunpack.c.l.b16 %v9934
      %v10015 = vunpack.c.h.b16 %v9934
      %v10016 = vunpack.c.l.b16 %v9935
      %v10017 = vunpack.c.h.b16 %v9935
      %v10018 = vunpack.c.l.b16 %v9936
      %v10019 = vunpack.c.h.b16 %v9936
      %v10020 = vunpack.c.l.b16 %v9937
      %v10021 = vunpack.c.h.b16 %v9937
      %v10022 = vunpack.c.l.b16 %v9938
      %v10023 = vunpack.c.h.b16 %v9938
      %v10024 = vpack.c.b16 %v9994, %v9992
      %v10025 = vpack.c.b16 %v9995, %v9993
      %v10026 = vpack.c.b16 %v9998, %v9996
      %v10027 = vpack.c.b16 %v9999, %v9997
      %v10028 = vpack.c.b16 %v10002, %v10000
      %v10029 = vpack.c.b16 %v10003, %v10001
      %v10030 = vpack.c.b16 %v10006, %v10004
      %v10031 = vpack.c.b16 %v10007, %v10005
      %v10032 = vpack.c.b16 %v10010, %v10008
      %v10033 = vpack.c.b16 %v10011, %v10009
      %v10034 = vpack.c.b16 %v10014, %v10012
      %v10035 = vpack.c.b16 %v10015, %v10013
      %v10036 = vpack.c.b16 %v10018, %v10016
      %v10037 = vpack.c.b16 %v10019, %v10017
      %v10038 = vpack.c.b16 %v10022, %v10020
      %v10039 = vpack.c.b16 %v10023, %v10021
      %10056 = vmatprep.subr.bf16.mxu0 %v10025
      %10057 = vmatpush1.bf16.msra.mxu0 %v10024
      %10058 = vmatprep.subr.bf16.mxu0 %v10027
      %10059 = vmatpush1.bf16.msra.mxu0 %v10026
      %10060 = vmatprep.subr.bf16.mxu0 %v10029
      %10061 = vmatpush1.bf16.msra.mxu0 %v10028
      %10062 = vmatprep.subr.bf16.mxu0 %v10031
      %10063 = vmatpush1.bf16.msra.mxu0 %v10030
      %10064 = vmatprep.subr.bf16.mxu0 %v10033
      %10065 = vmatpush1.bf16.msra.mxu0 %v10032
      %10066 = vmatprep.subr.bf16.mxu0 %v10035
      %10067 = vmatpush1.bf16.msra.mxu0 %v10034
      %10068 = vmatprep.subr.bf16.mxu0 %v10037
      %10069 = vmatpush1.bf16.msra.mxu0 %v10036
      %10070 = vmatprep.subr.bf16.mxu0 %v10039
      %10071 = vmatpush1.bf16.msra.mxu0 %v10038
      %10072 = vmatprep.subr.bf16.mxu0 0
      %10073 = vmatpush1.bf16.msra.mxu0 0
      %10074 = vmatprep.subr.bf16.mxu0 0
      %10075 = vmatpush1.bf16.msra.mxu0 0
      %10076 = vmatprep.subr.bf16.mxu0 0
      %10077 = vmatpush1.bf16.msra.mxu0 0
      %10078 = vmatprep.subr.bf16.mxu0 0
      %10079 = vmatpush1.bf16.msra.mxu0 0
      %10080 = vmatprep.subr.bf16.mxu0 0
      %10081 = vmatpush1.bf16.msra.mxu0 0
      %10082 = vmatprep.subr.bf16.mxu0 0
      %10083 = vmatpush1.bf16.msra.mxu0 0
      %10084 = vmatprep.subr.bf16.mxu0 0
      %10085 = vmatpush1.bf16.msra.mxu0 0
      %10086 = vmatprep.subr.bf16.mxu0 0
      %10087 = vmatpush1.bf16.msra.mxu0 0
      %10088 = vmatprep.mubr.bf16.mxu0 0
      %10089 = vmatmul.mubr.bf16.gmra.mrb[0].mxu0 %v9974
      %v10090 = vpop.f32.mrb[0].mxu0
      %v10091 = vadd.f32 0.0, %v10090
      %v10092 = vpop.f32.mrb[0].mxu0
      %v10093 = vadd.f32 0.0, %v10092
      %v10094 = vpop.f32.mrb[0].mxu0
      %v10095 = vpop.f32.mrb[0].mxu0
      %10096 = vdwg.mxu0
      %v10097 = vadd.f32 %v9916, %v10091
      %v10098 = vadd.f32 %v9918, %v10093
      %v10099 = vld [vmem:[%s9505] sm:$0x7]
      %v10100 = vld [vmem:[%s9505 + $0x8] sm:$0x7]
      %v10104 = vunpack.c.l.s4 1966171168
      %v10105 = vunpack.c.0.s8 %v10104
      %v10106 = vlaneseq
      %v10107 = vshrl.u32 %v10106, 7
      %v10108 = vsub.s32 %v10105, %v10107
      %v10109 = vrot.slane %v10099, %v10108
      %v10110 = vcombine.high %v10109, %v10109
      %v10112 = vunpack.c.l.s4 1966171168
      %v10113 = vunpack.c.0.s8 %v10112
      %v10114 = vlaneseq
      %v10115 = vshrl.u32 %v10114, 7
      %v10116 = vsub.s32 %v10113, %v10115
      %v10117 = vrot.slane %v10109, %v10116
      %v10119 = vunpack.c.l.s4 1966171168
      %v10120 = vunpack.c.0.s8 %v10119
      %v10121 = vlaneseq
      %v10122 = vshrl.u32 %v10121, 7
      %v10123 = vsub.s32 %v10120, %v10122
      %v10124 = vrot.slane %v10110, %v10123
      %v10125 = vcombine.high %v10117, %v10117
      %v10127 = vunpack.c.l.s4 1966171168
      %v10128 = vunpack.c.0.s8 %v10127
      %v10129 = vlaneseq
      %v10130 = vshrl.u32 %v10129, 7
      %v10131 = vsub.s32 %v10128, %v10130
      %v10132 = vrot.slane %v10100, %v10131
      %v10133 = vcombine.high %v10132, %v10132
      %v10135 = vunpack.c.l.s4 1966171168
      %v10136 = vunpack.c.0.s8 %v10135
      %v10137 = vlaneseq
      %v10138 = vshrl.u32 %v10137, 7
      %v10139 = vsub.s32 %v10136, %v10138
      %v10140 = vrot.slane %v10132, %v10139
      %v10142 = vunpack.c.l.s4 1966171168
      %v10143 = vunpack.c.0.s8 %v10142
      %v10144 = vlaneseq
      %v10145 = vshrl.u32 %v10144, 7
      %v10146 = vsub.s32 %v10143, %v10145
      %v10147 = vrot.slane %v10133, %v10146
      %v10148 = vcombine.high %v10140, %v10140
      %s10149 = scalar_lea.vmem %s5, 384
      %v10150 = vld [vmem:[%s10149] sm:$0xff]
      %v10151 = vld [vmem:[%s10149 + $0x8] sm:$0xff]
      %v10152 = vld [vmem:[%s10149 + $0x10] sm:$0xff]
      %v10153 = vld [vmem:[%s10149 + $0x18] sm:$0xff]
      %v10154 = vld [vmem:[%s10149 + $0x20] sm:$0xff]
      %v10155 = vld [vmem:[%s10149 + $0x28] sm:$0xff]
      %v10156 = vld [vmem:[%s10149 + $0x30] sm:$0xff]
      %v10157 = vld [vmem:[%s10149 + $0x38] sm:$0xff]
      %v10158 = vld [vmem:[%s10149 + $0x40] sm:$0xff]
      %v10159 = vld [vmem:[%s10149 + $0x48] sm:$0xff]
      %v10160 = vld [vmem:[%s10149 + $0x50] sm:$0xff]
      %v10161 = vld [vmem:[%s10149 + $0x58] sm:$0xff]
      %v10162 = vld [vmem:[%s10149 + $0x60] sm:$0xff]
      %v10163 = vld [vmem:[%s10149 + $0x68] sm:$0xff]
      %v10164 = vld [vmem:[%s10149 + $0x70] sm:$0xff]
      %v10165 = vld [vmem:[%s10149 + $0x78] sm:$0xff]
      %v10167 = vunpack.c.l.s4 1966171168
      %v10168 = vunpack.c.0.s8 %v10167
      %v10169 = vlaneseq
      %v10170 = vshrl.u32 %v10169, 7
      %v10171 = vsub.s32 %v10168, %v10170
      %v10172 = vrot.slane %v10117, %v10171
      %v10174 = vunpack.c.l.s4 1966171168
      %v10175 = vunpack.c.0.s8 %v10174
      %v10176 = vlaneseq
      %v10177 = vshrl.u32 %v10176, 7
      %v10178 = vsub.s32 %v10175, %v10177
      %v10179 = vrot.slane %v10172, %v10178
      %v10181 = vunpack.c.l.s4 1966171168
      %v10182 = vunpack.c.0.s8 %v10181
      %v10183 = vlaneseq
      %v10184 = vshrl.u32 %v10183, 7
      %v10185 = vsub.s32 %v10182, %v10184
      %v10186 = vrot.slane %v10124, %v10185
      %v10188 = vunpack.c.l.s4 1966171168
      %v10189 = vunpack.c.0.s8 %v10188
      %v10190 = vlaneseq
      %v10191 = vshrl.u32 %v10190, 7
      %v10192 = vsub.s32 %v10189, %v10191
      %v10193 = vrot.slane %v10186, %v10192
      %v10195 = vunpack.c.l.s4 1966171168
      %v10196 = vunpack.c.0.s8 %v10195
      %v10197 = vlaneseq
      %v10198 = vshrl.u32 %v10197, 7
      %v10199 = vsub.s32 %v10196, %v10198
      %v10200 = vrot.slane %v10140, %v10199
      %v10202 = vunpack.c.l.s4 1966171168
      %v10203 = vunpack.c.0.s8 %v10202
      %v10204 = vlaneseq
      %v10205 = vshrl.u32 %v10204, 7
      %v10206 = vsub.s32 %v10203, %v10205
      %v10207 = vrot.slane %v10200, %v10206
      %v10209 = vunpack.c.l.s4 1966171168
      %v10210 = vunpack.c.0.s8 %v10209
      %v10211 = vlaneseq
      %v10212 = vshrl.u32 %v10211, 7
      %v10213 = vsub.s32 %v10210, %v10212
      %v10214 = vrot.slane %v10147, %v10213
      %v10216 = vunpack.c.l.s4 1966171168
      %v10217 = vunpack.c.0.s8 %v10216
      %v10218 = vlaneseq
      %v10219 = vshrl.u32 %v10218, 7
      %v10220 = vsub.s32 %v10217, %v10219
      %v10221 = vrot.slane %v10214, %v10220
      %v10222 = vunpack.c.l.b16 %v10179
      %v10223 = vunpack.c.l.b16 %v10193
      %v10224 = vunpack.c.l.b16 %v10207
      %v10225 = vunpack.c.l.b16 %v10221
      %v10226 = vrot.slane %v10223, 7
      %v10227 = vsel %vm1816, %v10226, %v10222
      %v10228 = vrot.slane %v10224, 6
      %v10229 = vsel %vm1819, %v10228, %v10227
      %v10230 = vrot.slane %v10225, 5
      %v10231 = vsel %vm1822, %v10230, %v10229
      %v10232 = vpack.c.b16 %v10231, %v10231
      %v10250 = vunpack.c.l.b16 %v10150
      %v10251 = vunpack.c.h.b16 %v10150
      %v10252 = vunpack.c.l.b16 %v10151
      %v10253 = vunpack.c.h.b16 %v10151
      %v10254 = vunpack.c.l.b16 %v10152
      %v10255 = vunpack.c.h.b16 %v10152
      %v10256 = vunpack.c.l.b16 %v10153
      %v10257 = vunpack.c.h.b16 %v10153
      %v10258 = vunpack.c.l.b16 %v10154
      %v10259 = vunpack.c.h.b16 %v10154
      %v10260 = vunpack.c.l.b16 %v10155
      %v10261 = vunpack.c.h.b16 %v10155
      %v10262 = vunpack.c.l.b16 %v10156
      %v10263 = vunpack.c.h.b16 %v10156
      %v10264 = vunpack.c.l.b16 %v10157
      %v10265 = vunpack.c.h.b16 %v10157
      %v10266 = vunpack.c.l.b16 %v10158
      %v10267 = vunpack.c.h.b16 %v10158
      %v10268 = vunpack.c.l.b16 %v10159
      %v10269 = vunpack.c.h.b16 %v10159
      %v10270 = vunpack.c.l.b16 %v10160
      %v10271 = vunpack.c.h.b16 %v10160
      %v10272 = vunpack.c.l.b16 %v10161
      %v10273 = vunpack.c.h.b16 %v10161
      %v10274 = vunpack.c.l.b16 %v10162
      %v10275 = vunpack.c.h.b16 %v10162
      %v10276 = vunpack.c.l.b16 %v10163
      %v10277 = vunpack.c.h.b16 %v10163
      %v10278 = vunpack.c.l.b16 %v10164
      %v10279 = vunpack.c.h.b16 %v10164
      %v10280 = vunpack.c.l.b16 %v10165
      %v10281 = vunpack.c.h.b16 %v10165
      %v10282 = vpack.c.b16 %v10252, %v10250
      %v10283 = vpack.c.b16 %v10253, %v10251
      %v10284 = vpack.c.b16 %v10256, %v10254
      %v10285 = vpack.c.b16 %v10257, %v10255
      %v10286 = vpack.c.b16 %v10260, %v10258
      %v10287 = vpack.c.b16 %v10261, %v10259
      %v10288 = vpack.c.b16 %v10264, %v10262
      %v10289 = vpack.c.b16 %v10265, %v10263
      %v10290 = vpack.c.b16 %v10268, %v10266
      %v10291 = vpack.c.b16 %v10269, %v10267
      %v10292 = vpack.c.b16 %v10272, %v10270
      %v10293 = vpack.c.b16 %v10273, %v10271
      %v10294 = vpack.c.b16 %v10276, %v10274
      %v10295 = vpack.c.b16 %v10277, %v10275
      %v10296 = vpack.c.b16 %v10280, %v10278
      %v10297 = vpack.c.b16 %v10281, %v10279
      %10314 = vmatprep.subr.bf16.mxu0 %v10283
      %10315 = vmatpush1.bf16.msra.mxu0 %v10282
      %10316 = vmatprep.subr.bf16.mxu0 %v10285
      %10317 = vmatpush1.bf16.msra.mxu0 %v10284
      %10318 = vmatprep.subr.bf16.mxu0 %v10287
      %10319 = vmatpush1.bf16.msra.mxu0 %v10286
      %10320 = vmatprep.subr.bf16.mxu0 %v10289
      %10321 = vmatpush1.bf16.msra.mxu0 %v10288
      %10322 = vmatprep.subr.bf16.mxu0 %v10291
      %10323 = vmatpush1.bf16.msra.mxu0 %v10290
      %10324 = vmatprep.subr.bf16.mxu0 %v10293
      %10325 = vmatpush1.bf16.msra.mxu0 %v10292
      %10326 = vmatprep.subr.bf16.mxu0 %v10295
      %10327 = vmatpush1.bf16.msra.mxu0 %v10294
      %10328 = vmatprep.subr.bf16.mxu0 %v10297
      %10329 = vmatpush1.bf16.msra.mxu0 %v10296
      %10330 = vmatprep.subr.bf16.mxu0 0
      %10331 = vmatpush1.bf16.msra.mxu0 0
      %10332 = vmatprep.subr.bf16.mxu0 0
      %10333 = vmatpush1.bf16.msra.mxu0 0
      %10334 = vmatprep.subr.bf16.mxu0 0
      %10335 = vmatpush1.bf16.msra.mxu0 0
      %10336 = vmatprep.subr.bf16.mxu0 0
      %10337 = vmatpush1.bf16.msra.mxu0 0
      %10338 = vmatprep.subr.bf16.mxu0 0
      %10339 = vmatpush1.bf16.msra.mxu0 0
      %10340 = vmatprep.subr.bf16.mxu0 0
      %10341 = vmatpush1.bf16.msra.mxu0 0
      %10342 = vmatprep.subr.bf16.mxu0 0
      %10343 = vmatpush1.bf16.msra.mxu0 0
      %10344 = vmatprep.subr.bf16.mxu0 0
      %10345 = vmatpush1.bf16.msra.mxu0 0
      %10346 = vmatprep.mubr.bf16.mxu0 0
      %10347 = vmatmul.mubr.bf16.gmra.mrb[0].mxu0 %v10232
      %v10348 = vpop.f32.mrb[0].mxu0
      %v10349 = vadd.f32 0.0, %v10348
      %v10350 = vpop.f32.mrb[0].mxu0
      %v10351 = vadd.f32 0.0, %v10350
      %v10352 = vpop.f32.mrb[0].mxu0
      %v10353 = vpop.f32.mrb[0].mxu0
      %10354 = vdwg.mxu0
      %v10355 = vadd.f32 %v10097, %v10349
      %v10356 = vadd.f32 %v10098, %v10351
      %s10357 = scalar_lea.vmem %s5, 512
      %v10358 = vld [vmem:[%s10357] sm:$0xff]
      %v10359 = vld [vmem:[%s10357 + $0x8] sm:$0xff]
      %v10360 = vld [vmem:[%s10357 + $0x10] sm:$0xff]
      %v10361 = vld [vmem:[%s10357 + $0x18] sm:$0xff]
      %v10362 = vld [vmem:[%s10357 + $0x20] sm:$0xff]
      %v10363 = vld [vmem:[%s10357 + $0x28] sm:$0xff]
      %v10364 = vld [vmem:[%s10357 + $0x30] sm:$0xff]
      %v10365 = vld [vmem:[%s10357 + $0x38] sm:$0xff]
      %v10366 = vld [vmem:[%s10357 + $0x40] sm:$0xff]
      %v10367 = vld [vmem:[%s10357 + $0x48] sm:$0xff]
      %v10368 = vld [vmem:[%s10357 + $0x50] sm:$0xff]
      %v10369 = vld [vmem:[%s10357 + $0x58] sm:$0xff]
      %v10370 = vld [vmem:[%s10357 + $0x60] sm:$0xff]
      %v10371 = vld [vmem:[%s10357 + $0x68] sm:$0xff]
      %v10372 = vld [vmem:[%s10357 + $0x70] sm:$0xff]
      %v10373 = vld [vmem:[%s10357 + $0x78] sm:$0xff]
      %v10374 = vrot.slane %v10222, 1
      %v10375 = vsel %vm1816, %v10223, %v10374
      %v10376 = vrot.slane %v10224, 7
      %v10377 = vsel %vm1819, %v10376, %v10375
      %v10378 = vrot.slane %v10225, 6
      %v10379 = vsel %vm1822, %v10378, %v10377
      %v10380 = vpack.c.b16 %v10379, %v10379
      %v10398 = vunpack.c.l.b16 %v10358
      %v10399 = vunpack.c.h.b16 %v10358
      %v10400 = vunpack.c.l.b16 %v10359
      %v10401 = vunpack.c.h.b16 %v10359
      %v10402 = vunpack.c.l.b16 %v10360
      %v10403 = vunpack.c.h.b16 %v10360
      %v10404 = vunpack.c.l.b16 %v10361
      %v10405 = vunpack.c.h.b16 %v10361
      %v10406 = vunpack.c.l.b16 %v10362
      %v10407 = vunpack.c.h.b16 %v10362
      %v10408 = vunpack.c.l.b16 %v10363
      %v10409 = vunpack.c.h.b16 %v10363
      %v10410 = vunpack.c.l.b16 %v10364
      %v10411 = vunpack.c.h.b16 %v10364
      %v10412 = vunpack.c.l.b16 %v10365
      %v10413 = vunpack.c.h.b16 %v10365
      %v10414 = vunpack.c.l.b16 %v10366
      %v10415 = vunpack.c.h.b16 %v10366
      %v10416 = vunpack.c.l.b16 %v10367
      %v10417 = vunpack.c.h.b16 %v10367
      %v10418 = vunpack.c.l.b16 %v10368
      %v10419 = vunpack.c.h.b16 %v10368
      %v10420 = vunpack.c.l.b16 %v10369
      %v10421 = vunpack.c.h.b16 %v10369
      %v10422 = vunpack.c.l.b16 %v10370
      %v10423 = vunpack.c.h.b16 %v10370
      %v10424 = vunpack.c.l.b16 %v10371
      %v10425 = vunpack.c.h.b16 %v10371
      %v10426 = vunpack.c.l.b16 %v10372
      %v10427 = vunpack.c.h.b16 %v10372
      %v10428 = vunpack.c.l.b16 %v10373
      %v10429 = vunpack.c.h.b16 %v10373
      %v10430 = vpack.c.b16 %v10400, %v10398
      %v10431 = vpack.c.b16 %v10401, %v10399
      %v10432 = vpack.c.b16 %v10404, %v10402
      %v10433 = vpack.c.b16 %v10405, %v10403
      %v10434 = vpack.c.b16 %v10408, %v10406
      %v10435 = vpack.c.b16 %v10409, %v10407
      %v10436 = vpack.c.b16 %v10412, %v10410
      %v10437 = vpack.c.b16 %v10413, %v10411
      %v10438 = vpack.c.b16 %v10416, %v10414
      %v10439 = vpack.c.b16 %v10417, %v10415
      %v10440 = vpack.c.b16 %v10420, %v10418
      %v10441 = vpack.c.b16 %v10421, %v10419
      %v10442 = vpack.c.b16 %v10424, %v10422
      %v10443 = vpack.c.b16 %v10425, %v10423
      %v10444 = vpack.c.b16 %v10428, %v10426
      %v10445 = vpack.c.b16 %v10429, %v10427
      %10462 = vmatprep.subr.bf16.mxu0 %v10431
      %10463 = vmatpush1.bf16.msra.mxu0 %v10430
      %10464 = vmatprep.subr.bf16.mxu0 %v10433
      %10465 = vmatpush1.bf16.msra.mxu0 %v10432
      %10466 = vmatprep.subr.bf16.mxu0 %v10435
      %10467 = vmatpush1.bf16.msra.mxu0 %v10434
      %10468 = vmatprep.subr.bf16.mxu0 %v10437
      %10469 = vmatpush1.bf16.msra.mxu0 %v10436
      %10470 = vmatprep.subr.bf16.mxu0 %v10439
      %10471 = vmatpush1.bf16.msra.mxu0 %v10438
      %10472 = vmatprep.subr.bf16.mxu0 %v10441
      %10473 = vmatpush1.bf16.msra.mxu0 %v10440
      %10474 = vmatprep.subr.bf16.mxu0 %v10443
      %10475 = vmatpush1.bf16.msra.mxu0 %v10442
      %10476 = vmatprep.subr.bf16.mxu0 %v10445
      %10477 = vmatpush1.bf16.msra.mxu0 %v10444
      %10478 = vmatprep.subr.bf16.mxu0 0
      %10479 = vmatpush1.bf16.msra.mxu0 0
      %10480 = vmatprep.subr.bf16.mxu0 0
      %10481 = vmatpush1.bf16.msra.mxu0 0
      %10482 = vmatprep.subr.bf16.mxu0 0
      %10483 = vmatpush1.bf16.msra.mxu0 0
      %10484 = vmatprep.subr.bf16.mxu0 0
      %10485 = vmatpush1.bf16.msra.mxu0 0
      %10486 = vmatprep.subr.bf16.mxu0 0
      %10487 = vmatpush1.bf16.msra.mxu0 0
      %10488 = vmatprep.subr.bf16.mxu0 0
      %10489 = vmatpush1.bf16.msra.mxu0 0
      %10490 = vmatprep.subr.bf16.mxu0 0
      %10491 = vmatpush1.bf16.msra.mxu0 0
      %10492 = vmatprep.subr.bf16.mxu0 0
      %10493 = vmatpush1.bf16.msra.mxu0 0
      %10494 = vmatprep.mubr.bf16.mxu0 0
      %10495 = vmatmul.mubr.bf16.gmra.mrb[0].mxu0 %v10380
      %v10496 = vpop.f32.mrb[0].mxu0
      %v10497 = vadd.f32 0.0, %v10496
      %v10498 = vpop.f32.mrb[0].mxu0
      %v10499 = vadd.f32 0.0, %v10498
      %v10500 = vpop.f32.mrb[0].mxu0
      %v10501 = vpop.f32.mrb[0].mxu0
      %10502 = vdwg.mxu0
      %v10503 = vadd.f32 %v10355, %v10497
      %v10504 = vadd.f32 %v10356, %v10499
      %s10505 = scalar_lea.vmem %s5, 640
      %v10506 = vld [vmem:[%s10505] sm:$0xff]
      %v10507 = vld [vmem:[%s10505 + $0x8] sm:$0xff]
      %v10508 = vld [vmem:[%s10505 + $0x10] sm:$0xff]
      %v10509 = vld [vmem:[%s10505 + $0x18] sm:$0xff]
      %v10510 = vld [vmem:[%s10505 + $0x20] sm:$0xff]
      %v10511 = vld [vmem:[%s10505 + $0x28] sm:$0xff]
      %v10512 = vld [vmem:[%s10505 + $0x30] sm:$0xff]
      %v10513 = vld [vmem:[%s10505 + $0x38] sm:$0xff]
      %v10514 = vld [vmem:[%s10505 + $0x40] sm:$0xff]
      %v10515 = vld [vmem:[%s10505 + $0x48] sm:$0xff]
      %v10516 = vld [vmem:[%s10505 + $0x50] sm:$0xff]
      %v10517 = vld [vmem:[%s10505 + $0x58] sm:$0xff]
      %v10518 = vld [vmem:[%s10505 + $0x60] sm:$0xff]
      %v10519 = vld [vmem:[%s10505 + $0x68] sm:$0xff]
      %v10520 = vld [vmem:[%s10505 + $0x70] sm:$0xff]
      %v10521 = vld [vmem:[%s10505 + $0x78] sm:$0xff]
      %v10523 = vunpack.c.l.s4 1966171168
      %v10524 = vunpack.c.0.s8 %v10523
      %v10525 = vlaneseq
      %v10526 = vshrl.u32 %v10525, 7
      %v10527 = vsub.s32 %v10524, %v10526
      %v10528 = vrot.slane %v10125, %v10527
      %v10530 = vunpack.c.l.s4 1966171168
      %v10531 = vunpack.c.0.s8 %v10530
      %v10532 = vlaneseq
      %v10533 = vshrl.u32 %v10532, 7
      %v10534 = vsub.s32 %v10531, %v10533
      %v10535 = vrot.slane %v10528, %v10534
      %v10537 = vunpack.c.l.s4 1966171168
      %v10538 = vunpack.c.0.s8 %v10537
      %v10539 = vlaneseq
      %v10540 = vshrl.u32 %v10539, 7
      %v10541 = vsub.s32 %v10538, %v10540
      %v10542 = vrot.slane %v10148, %v10541
      %v10544 = vunpack.c.l.s4 1966171168
      %v10545 = vunpack.c.0.s8 %v10544
      %v10546 = vlaneseq
      %v10547 = vshrl.u32 %v10546, 7
      %v10548 = vsub.s32 %v10545, %v10547
      %v10549 = vrot.slane %v10542, %v10548
      %v10550 = vunpack.c.l.b16 %v10535
      %v10551 = vunpack.c.l.b16 %v10549
      %v10552 = vrot.slane %v10550, 7
      %v10553 = vsel %vm1816, %v10552, %v10223
      %v10554 = vsel %vm1819, %v10378, %v10553
      %v10555 = vrot.slane %v10551, 5
      %v10556 = vsel %vm1822, %v10555, %v10554
      %v10557 = vpack.c.b16 %v10556, %v10556
      %v10575 = vunpack.c.l.b16 %v10506
      %v10576 = vunpack.c.h.b16 %v10506
      %v10577 = vunpack.c.l.b16 %v10507
      %v10578 = vunpack.c.h.b16 %v10507
      %v10579 = vunpack.c.l.b16 %v10508
      %v10580 = vunpack.c.h.b16 %v10508
      %v10581 = vunpack.c.l.b16 %v10509
      %v10582 = vunpack.c.h.b16 %v10509
      %v10583 = vunpack.c.l.b16 %v10510
      %v10584 = vunpack.c.h.b16 %v10510
      %v10585 = vunpack.c.l.b16 %v10511
      %v10586 = vunpack.c.h.b16 %v10511
      %v10587 = vunpack.c.l.b16 %v10512
      %v10588 = vunpack.c.h.b16 %v10512
      %v10589 = vunpack.c.l.b16 %v10513
      %v10590 = vunpack.c.h.b16 %v10513
      %v10591 = vunpack.c.l.b16 %v10514
      %v10592 = vunpack.c.h.b16 %v10514
      %v10593 = vunpack.c.l.b16 %v10515
      %v10594 = vunpack.c.h.b16 %v10515
      %v10595 = vunpack.c.l.b16 %v10516
      %v10596 = vunpack.c.h.b16 %v10516
      %v10597 = vunpack.c.l.b16 %v10517
      %v10598 = vunpack.c.h.b16 %v10517
      %v10599 = vunpack.c.l.b16 %v10518
      %v10600 = vunpack.c.h.b16 %v10518
      %v10601 = vunpack.c.l.b16 %v10519
      %v10602 = vunpack.c.h.b16 %v10519
      %v10603 = vunpack.c.l.b16 %v10520
      %v10604 = vunpack.c.h.b16 %v10520
      %v10605 = vunpack.c.l.b16 %v10521
      %v10606 = vunpack.c.h.b16 %v10521
      %v10607 = vpack.c.b16 %v10577, %v10575
      %v10608 = vpack.c.b16 %v10578, %v10576
      %v10609 = vpack.c.b16 %v10581, %v10579
      %v10610 = vpack.c.b16 %v10582, %v10580
      %v10611 = vpack.c.b16 %v10585, %v10583
      %v10612 = vpack.c.b16 %v10586, %v10584
      %v10613 = vpack.c.b16 %v10589, %v10587
      %v10614 = vpack.c.b16 %v10590, %v10588
      %v10615 = vpack.c.b16 %v10593, %v10591
      %v10616 = vpack.c.b16 %v10594, %v10592
      %v10617 = vpack.c.b16 %v10597, %v10595
      %v10618 = vpack.c.b16 %v10598, %v10596
      %v10619 = vpack.c.b16 %v10601, %v10599
      %v10620 = vpack.c.b16 %v10602, %v10600
      %v10621 = vpack.c.b16 %v10605, %v10603
      %v10622 = vpack.c.b16 %v10606, %v10604
      %10639 = vmatprep.subr.bf16.mxu0 %v10608
      %10640 = vmatpush1.bf16.msra.mxu0 %v10607
      %10641 = vmatprep.subr.bf16.mxu0 %v10610
      %10642 = vmatpush1.bf16.msra.mxu0 %v10609
      %10643 = vmatprep.subr.bf16.mxu0 %v10612
      %10644 = vmatpush1.bf16.msra.mxu0 %v10611
      %10645 = vmatprep.subr.bf16.mxu0 %v10614
      %10646 = vmatpush1.bf16.msra.mxu0 %v10613
      %10647 = vmatprep.subr.bf16.mxu0 %v10616
      %10648 = vmatpush1.bf16.msra.mxu0 %v10615
      %10649 = vmatprep.subr.bf16.mxu0 %v10618
      %10650 = vmatpush1.bf16.msra.mxu0 %v10617
      %10651 = vmatprep.subr.bf16.mxu0 %v10620
      %10652 = vmatpush1.bf16.msra.mxu0 %v10619
      %10653 = vmatprep.subr.bf16.mxu0 %v10622
      %10654 = vmatpush1.bf16.msra.mxu0 %v10621
      %10655 = vmatprep.subr.bf16.mxu0 0
      %10656 = vmatpush1.bf16.msra.mxu0 0
      %10657 = vmatprep.subr.bf16.mxu0 0
      %10658 = vmatpush1.bf16.msra.mxu0 0
      %10659 = vmatprep.subr.bf16.mxu0 0
      %10660 = vmatpush1.bf16.msra.mxu0 0
      %10661 = vmatprep.subr.bf16.mxu0 0
      %10662 = vmatpush1.bf16.msra.mxu0 0
      %10663 = vmatprep.subr.bf16.mxu0 0
      %10664 = vmatpush1.bf16.msra.mxu0 0
      %10665 = vmatprep.subr.bf16.mxu0 0
      %10666 = vmatpush1.bf16.msra.mxu0 0
      %10667 = vmatprep.subr.bf16.mxu0 0
      %10668 = vmatpush1.bf16.msra.mxu0 0
      %10669 = vmatprep.subr.bf16.mxu0 0
      %10670 = vmatpush1.bf16.msra.mxu0 0
      %10671 = vmatprep.mubr.bf16.mxu0 0
      %10672 = vmatmul.mubr.bf16.gmra.mrb[0].mxu0 %v10557
      %v10673 = vpop.f32.mrb[0].mxu0
      %v10674 = vadd.f32 0.0, %v10673
      %v10675 = vpop.f32.mrb[0].mxu0
      %v10676 = vadd.f32 0.0, %v10675
      %v10677 = vpop.f32.mrb[0].mxu0
      %v10678 = vpop.f32.mrb[0].mxu0
      %10679 = vdwg.mxu0
      %v10680 = vadd.f32 %v10503, %v10674
      %v10681 = vadd.f32 %v10504, %v10676
      %s10682 = scalar_lea.vmem [#allocation3], 8
      %v10683 = vld [vmem:[%s10682] sm:$0x7]
      %v10684 = vld [vmem:[%s10682 + $0x8] sm:$0x7]
      %v10688 = vunpack.c.l.s4 1966171168
      %v10689 = vunpack.c.0.s8 %v10688
      %v10690 = vlaneseq
      %v10691 = vshrl.u32 %v10690, 7
      %v10692 = vsub.s32 %v10689, %v10691
      %v10693 = vrot.slane %v10683, %v10692
      %v10694 = vcombine.high %v10693, %v10693
      %v10696 = vunpack.c.l.s4 1966171168
      %v10697 = vunpack.c.0.s8 %v10696
      %v10698 = vlaneseq
      %v10699 = vshrl.u32 %v10698, 7
      %v10700 = vsub.s32 %v10697, %v10699
      %v10701 = vrot.slane %v10693, %v10700
      %v10703 = vunpack.c.l.s4 1966171168
      %v10704 = vunpack.c.0.s8 %v10703
      %v10705 = vlaneseq
      %v10706 = vshrl.u32 %v10705, 7
      %v10707 = vsub.s32 %v10704, %v10706
      %v10708 = vrot.slane %v10694, %v10707
      %v10709 = vcombine.high %v10701, %v10701
      %v10711 = vunpack.c.l.s4 1966171168
      %v10712 = vunpack.c.0.s8 %v10711
      %v10713 = vlaneseq
      %v10714 = vshrl.u32 %v10713, 7
      %v10715 = vsub.s32 %v10712, %v10714
      %v10716 = vrot.slane %v10684, %v10715
      %v10717 = vcombine.high %v10716, %v10716
      %v10719 = vunpack.c.l.s4 1966171168
      %v10720 = vunpack.c.0.s8 %v10719
      %v10721 = vlaneseq
      %v10722 = vshrl.u32 %v10721, 7
      %v10723 = vsub.s32 %v10720, %v10722
      %v10724 = vrot.slane %v10716, %v10723
      %v10726 = vunpack.c.l.s4 1966171168
      %v10727 = vunpack.c.0.s8 %v10726
      %v10728 = vlaneseq
      %v10729 = vshrl.u32 %v10728, 7
      %v10730 = vsub.s32 %v10727, %v10729
      %v10731 = vrot.slane %v10717, %v10730
      %v10732 = vcombine.high %v10724, %v10724
      %s10733 = scalar_lea.vmem %s5, 768
      %v10734 = vld [vmem:[%s10733] sm:$0xff]
      %v10735 = vld [vmem:[%s10733 + $0x8] sm:$0xff]
      %v10736 = vld [vmem:[%s10733 + $0x10] sm:$0xff]
      %v10737 = vld [vmem:[%s10733 + $0x18] sm:$0xff]
      %v10738 = vld [vmem:[%s10733 + $0x20] sm:$0xff]
      %v10739 = vld [vmem:[%s10733 + $0x28] sm:$0xff]
      %v10740 = vld [vmem:[%s10733 + $0x30] sm:$0xff]
      %v10741 = vld [vmem:[%s10733 + $0x38] sm:$0xff]
      %v10742 = vld [vmem:[%s10733 + $0x40] sm:$0xff]
      %v10743 = vld [vmem:[%s10733 + $0x48] sm:$0xff]
      %v10744 = vld [vmem:[%s10733 + $0x50] sm:$0xff]
      %v10745 = vld [vmem:[%s10733 + $0x58] sm:$0xff]
      %v10746 = vld [vmem:[%s10733 + $0x60] sm:$0xff]
      %v10747 = vld [vmem:[%s10733 + $0x68] sm:$0xff]
      %v10748 = vld [vmem:[%s10733 + $0x70] sm:$0xff]
      %v10749 = vld [vmem:[%s10733 + $0x78] sm:$0xff]
      %v10751 = vunpack.c.l.s4 1966171168
      %v10752 = vunpack.c.0.s8 %v10751
      %v10753 = vlaneseq
      %v10754 = vshrl.u32 %v10753, 7
      %v10755 = vsub.s32 %v10752, %v10754
      %v10756 = vrot.slane %v10701, %v10755
      %v10758 = vunpack.c.l.s4 1966171168
      %v10759 = vunpack.c.0.s8 %v10758
      %v10760 = vlaneseq
      %v10761 = vshrl.u32 %v10760, 7
      %v10762 = vsub.s32 %v10759, %v10761
      %v10763 = vrot.slane %v10756, %v10762
      %v10765 = vunpack.c.l.s4 1966171168
      %v10766 = vunpack.c.0.s8 %v10765
      %v10767 = vlaneseq
      %v10768 = vshrl.u32 %v10767, 7
      %v10769 = vsub.s32 %v10766, %v10768
      %v10770 = vrot.slane %v10708, %v10769
      %v10772 = vunpack.c.l.s4 1966171168
      %v10773 = vunpack.c.0.s8 %v10772
      %v10774 = vlaneseq
      %v10775 = vshrl.u32 %v10774, 7
      %v10776 = vsub.s32 %v10773, %v10775
      %v10777 = vrot.slane %v10770, %v10776
      %v10779 = vunpack.c.l.s4 1966171168
      %v10780 = vunpack.c.0.s8 %v10779
      %v10781 = vlaneseq
      %v10782 = vshrl.u32 %v10781, 7
      %v10783 = vsub.s32 %v10780, %v10782
      %v10784 = vrot.slane %v10724, %v10783
      %v10786 = vunpack.c.l.s4 1966171168
      %v10787 = vunpack.c.0.s8 %v10786
      %v10788 = vlaneseq
      %v10789 = vshrl.u32 %v10788, 7
      %v10790 = vsub.s32 %v10787, %v10789
      %v10791 = vrot.slane %v10784, %v10790
      %v10793 = vunpack.c.l.s4 1966171168
      %v10794 = vunpack.c.0.s8 %v10793
      %v10795 = vlaneseq
      %v10796 = vshrl.u32 %v10795, 7
      %v10797 = vsub.s32 %v10794, %v10796
      %v10798 = vrot.slane %v10731, %v10797
      %v10800 = vunpack.c.l.s4 1966171168
      %v10801 = vunpack.c.0.s8 %v10800
      %v10802 = vlaneseq
      %v10803 = vshrl.u32 %v10802, 7
      %v10804 = vsub.s32 %v10801, %v10803
      %v10805 = vrot.slane %v10798, %v10804
      %v10806 = vunpack.c.l.b16 %v10763
      %v10807 = vunpack.c.l.b16 %v10777
      %v10808 = vunpack.c.l.b16 %v10791
      %v10809 = vunpack.c.l.b16 %v10805
      %v10810 = vrot.slane %v10807, 7
      %v10811 = vsel %vm1816, %v10810, %v10806
      %v10812 = vrot.slane %v10808, 6
      %v10813 = vsel %vm1819, %v10812, %v10811
      %v10814 = vrot.slane %v10809, 5
      %v10815 = vsel %vm1822, %v10814, %v10813
      %v10816 = vpack.c.b16 %v10815, %v10815
      %v10834 = vunpack.c.l.b16 %v10734
      %v10835 = vunpack.c.h.b16 %v10734
      %v10836 = vunpack.c.l.b16 %v10735
      %v10837 = vunpack.c.h.b16 %v10735
      %v10838 = vunpack.c.l.b16 %v10736
      %v10839 = vunpack.c.h.b16 %v10736
      %v10840 = vunpack.c.l.b16 %v10737
      %v10841 = vunpack.c.h.b16 %v10737
      %v10842 = vunpack.c.l.b16 %v10738
      %v10843 = vunpack.c.h.b16 %v10738
      %v10844 = vunpack.c.l.b16 %v10739
      %v10845 = vunpack.c.h.b16 %v10739
      %v10846 = vunpack.c.l.b16 %v10740
      %v10847 = vunpack.c.h.b16 %v10740
      %v10848 = vunpack.c.l.b16 %v10741
      %v10849 = vunpack.c.h.b16 %v10741
      %v10850 = vunpack.c.l.b16 %v10742
      %v10851 = vunpack.c.h.b16 %v10742
      %v10852 = vunpack.c.l.b16 %v10743
      %v10853 = vunpack.c.h.b16 %v10743
      %v10854 = vunpack.c.l.b16 %v10744
      %v10855 = vunpack.c.h.b16 %v10744
      %v10856 = vunpack.c.l.b16 %v10745
      %v10857 = vunpack.c.h.b16 %v10745
      %v10858 = vunpack.c.l.b16 %v10746
      %v10859 = vunpack.c.h.b16 %v10746
      %v10860 = vunpack.c.l.b16 %v10747
      %v10861 = vunpack.c.h.b16 %v10747
      %v10862 = vunpack.c.l.b16 %v10748
      %v10863 = vunpack.c.h.b16 %v10748
      %v10864 = vunpack.c.l.b16 %v10749
      %v10865 = vunpack.c.h.b16 %v10749
      %v10866 = vpack.c.b16 %v10836, %v10834
      %v10867 = vpack.c.b16 %v10837, %v10835
      %v10868 = vpack.c.b16 %v10840, %v10838
      %v10869 = vpack.c.b16 %v10841, %v10839
      %v10870 = vpack.c.b16 %v10844, %v10842
      %v10871 = vpack.c.b16 %v10845, %v10843
      %v10872 = vpack.c.b16 %v10848, %v10846
      %v10873 = vpack.c.b16 %v10849, %v10847
      %v10874 = vpack.c.b16 %v10852, %v10850
      %v10875 = vpack.c.b16 %v10853, %v10851
      %v10876 = vpack.c.b16 %v10856, %v10854
      %v10877 = vpack.c.b16 %v10857, %v10855
      %v10878 = vpack.c.b16 %v10860, %v10858
      %v10879 = vpack.c.b16 %v10861, %v10859
      %v10880 = vpack.c.b16 %v10864, %v10862
      %v10881 = vpack.c.b16 %v10865, %v10863
      %10898 = vmatprep.subr.bf16.mxu0 %v10867
      %10899 = vmatpush1.bf16.msra.mxu0 %v10866
      %10900 = vmatprep.subr.bf16.mxu0 %v10869
      %10901 = vmatpush1.bf16.msra.mxu0 %v10868
      %10902 = vmatprep.subr.bf16.mxu0 %v10871
      %10903 = vmatpush1.bf16.msra.mxu0 %v10870
      %10904 = vmatprep.subr.bf16.mxu0 %v10873
      %10905 = vmatpush1.bf16.msra.mxu0 %v10872
      %10906 = vmatprep.subr.bf16.mxu0 %v10875
      %10907 = vmatpush1.bf16.msra.mxu0 %v10874
      %10908 = vmatprep.subr.bf16.mxu0 %v10877
      %10909 = vmatpush1.bf16.msra.mxu0 %v10876
      %10910 = vmatprep.subr.bf16.mxu0 %v10879
      %10911 = vmatpush1.bf16.msra.mxu0 %v10878
      %10912 = vmatprep.subr.bf16.mxu0 %v10881
      %10913 = vmatpush1.bf16.msra.mxu0 %v10880
      %10914 = vmatprep.subr.bf16.mxu0 0
      %10915 = vmatpush1.bf16.msra.mxu0 0
      %10916 = vmatprep.subr.bf16.mxu0 0
      %10917 = vmatpush1.bf16.msra.mxu0 0
      %10918 = vmatprep.subr.bf16.mxu0 0
      %10919 = vmatpush1.bf16.msra.mxu0 0
      %10920 = vmatprep.subr.bf16.mxu0 0
      %10921 = vmatpush1.bf16.msra.mxu0 0
      %10922 = vmatprep.subr.bf16.mxu0 0
      %10923 = vmatpush1.bf16.msra.mxu0 0
      %10924 = vmatprep.subr.bf16.mxu0 0
      %10925 = vmatpush1.bf16.msra.mxu0 0
      %10926 = vmatprep.subr.bf16.mxu0 0
      %10927 = vmatpush1.bf16.msra.mxu0 0
      %10928 = vmatprep.subr.bf16.mxu0 0
      %10929 = vmatpush1.bf16.msra.mxu0 0
      %10930 = vmatprep.mubr.bf16.mxu0 0
      %10931 = vmatmul.mubr.bf16.gmra.mrb[0].mxu0 %v10816
      %v10932 = vpop.f32.mrb[0].mxu0
      %v10933 = vadd.f32 0.0, %v10932
      %v10934 = vpop.f32.mrb[0].mxu0
      %v10935 = vadd.f32 0.0, %v10934
      %v10936 = vpop.f32.mrb[0].mxu0
      %v10937 = vpop.f32.mrb[0].mxu0
      %10938 = vdwg.mxu0
      %v10939 = vadd.f32 %v10680, %v10933
      %v10940 = vadd.f32 %v10681, %v10935
      %s10941 = scalar_lea.vmem %s5, 896
      %v10942 = vld [vmem:[%s10941] sm:$0xff]
      %v10943 = vld [vmem:[%s10941 + $0x8] sm:$0xff]
      %v10944 = vld [vmem:[%s10941 + $0x10] sm:$0xff]
      %v10945 = vld [vmem:[%s10941 + $0x18] sm:$0xff]
      %v10946 = vld [vmem:[%s10941 + $0x20] sm:$0xff]
      %v10947 = vld [vmem:[%s10941 + $0x28] sm:$0xff]
      %v10948 = vld [vmem:[%s10941 + $0x30] sm:$0xff]
      %v10949 = vld [vmem:[%s10941 + $0x38] sm:$0xff]
      %v10950 = vld [vmem:[%s10941 + $0x40] sm:$0xff]
      %v10951 = vld [vmem:[%s10941 + $0x48] sm:$0xff]
      %v10952 = vld [vmem:[%s10941 + $0x50] sm:$0xff]
      %v10953 = vld [vmem:[%s10941 + $0x58] sm:$0xff]
      %v10954 = vld [vmem:[%s10941 + $0x60] sm:$0xff]
      %v10955 = vld [vmem:[%s10941 + $0x68] sm:$0xff]
      %v10956 = vld [vmem:[%s10941 + $0x70] sm:$0xff]
      %v10957 = vld [vmem:[%s10941 + $0x78] sm:$0xff]
      %v10958 = vrot.slane %v10806, 1
      %v10959 = vsel %vm1816, %v10807, %v10958
      %v10960 = vrot.slane %v10808, 7
      %v10961 = vsel %vm1819, %v10960, %v10959
      %v10962 = vrot.slane %v10809, 6
      %v10963 = vsel %vm1822, %v10962, %v10961
      %v10964 = vpack.c.b16 %v10963, %v10963
      %v10982 = vunpack.c.l.b16 %v10942
      %v10983 = vunpack.c.h.b16 %v10942
      %v10984 = vunpack.c.l.b16 %v10943
      %v10985 = vunpack.c.h.b16 %v10943
      %v10986 = vunpack.c.l.b16 %v10944
      %v10987 = vunpack.c.h.b16 %v10944
      %v10988 = vunpack.c.l.b16 %v10945
      %v10989 = vunpack.c.h.b16 %v10945
      %v10990 = vunpack.c.l.b16 %v10946
      %v10991 = vunpack.c.h.b16 %v10946
      %v10992 = vunpack.c.l.b16 %v10947
      %v10993 = vunpack.c.h.b16 %v10947
      %v10994 = vunpack.c.l.b16 %v10948
      %v10995 = vunpack.c.h.b16 %v10948
      %v10996 = vunpack.c.l.b16 %v10949
      %v10997 = vunpack.c.h.b16 %v10949
      %v10998 = vunpack.c.l.b16 %v10950
      %v10999 = vunpack.c.h.b16 %v10950
      %v11000 = vunpack.c.l.b16 %v10951
      %v11001 = vunpack.c.h.b16 %v10951
      %v11002 = vunpack.c.l.b16 %v10952
      %v11003 = vunpack.c.h.b16 %v10952
      %v11004 = vunpack.c.l.b16 %v10953
      %v11005 = vunpack.c.h.b16 %v10953
      %v11006 = vunpack.c.l.b16 %v10954
      %v11007 = vunpack.c.h.b16 %v10954
      %v11008 = vunpack.c.l.b16 %v10955
      %v11009 = vunpack.c.h.b16 %v10955
      %v11010 = vunpack.c.l.b16 %v10956
      %v11011 = vunpack.c.h.b16 %v10956
      %v11012 = vunpack.c.l.b16 %v10957
      %v11013 = vunpack.c.h.b16 %v10957
      %v11014 = vpack.c.b16 %v10984, %v10982
      %v11015 = vpack.c.b16 %v10985, %v10983
      %v11016 = vpack.c.b16 %v10988, %v10986
      %v11017 = vpack.c.b16 %v10989, %v10987
      %v11018 = vpack.c.b16 %v10992, %v10990
      %v11019 = vpack.c.b16 %v10993, %v10991
      %v11020 = vpack.c.b16 %v10996, %v10994
      %v11021 = vpack.c.b16 %v10997, %v10995
      %v11022 = vpack.c.b16 %v11000, %v10998
      %v11023 = vpack.c.b16 %v11001, %v10999
      %v11024 = vpack.c.b16 %v11004, %v11002
      %v11025 = vpack.c.b16 %v11005, %v11003
      %v11026 = vpack.c.b16 %v11008, %v11006
      %v11027 = vpack.c.b16 %v11009, %v11007
      %v11028 = vpack.c.b16 %v11012, %v11010
      %v11029 = vpack.c.b16 %v11013, %v11011
      %11046 = vmatprep.subr.bf16.mxu0 %v11015
      %11047 = vmatpush1.bf16.msra.mxu0 %v11014
      %11048 = vmatprep.subr.bf16.mxu0 %v11017
      %11049 = vmatpush1.bf16.msra.mxu0 %v11016
      %11050 = vmatprep.subr.bf16.mxu0 %v11019
      %11051 = vmatpush1.bf16.msra.mxu0 %v11018
      %11052 = vmatprep.subr.bf16.mxu0 %v11021
      %11053 = vmatpush1.bf16.msra.mxu0 %v11020
      %11054 = vmatprep.subr.bf16.mxu0 %v11023
      %11055 = vmatpush1.bf16.msra.mxu0 %v11022
      %11056 = vmatprep.subr.bf16.mxu0 %v11025
      %11057 = vmatpush1.bf16.msra.mxu0 %v11024
      %11058 = vmatprep.subr.bf16.mxu0 %v11027
      %11059 = vmatpush1.bf16.msra.mxu0 %v11026
      %11060 = vmatprep.subr.bf16.mxu0 %v11029
      %11061 = vmatpush1.bf16.msra.mxu0 %v11028
      %11062 = vmatprep.subr.bf16.mxu0 0
      %11063 = vmatpush1.bf16.msra.mxu0 0
      %11064 = vmatprep.subr.bf16.mxu0 0
      %11065 = vmatpush1.bf16.msra.mxu0 0
      %11066 = vmatprep.subr.bf16.mxu0 0
      %11067 = vmatpush1.bf16.msra.mxu0 0
      %11068 = vmatprep.subr.bf16.mxu0 0
      %11069 = vmatpush1.bf16.msra.mxu0 0
      %11070 = vmatprep.subr.bf16.mxu0 0
      %11071 = vmatpush1.bf16.msra.mxu0 0
      %11072 = vmatprep.subr.bf16.mxu0 0
      %11073 = vmatpush1.bf16.msra.mxu0 0
      %11074 = vmatprep.subr.bf16.mxu0 0
      %11075 = vmatpush1.bf16.msra.mxu0 0
      %11076 = vmatprep.subr.bf16.mxu0 0
      %11077 = vmatpush1.bf16.msra.mxu0 0
      %11078 = vmatprep.mubr.bf16.mxu0 0
      %11079 = vmatmul.mubr.bf16.gmra.mrb[0].mxu0 %v10964
      %v11080 = vpop.f32.mrb[0].mxu0
      %v11081 = vadd.f32 0.0, %v11080
      %v11082 = vpop.f32.mrb[0].mxu0
      %v11083 = vadd.f32 0.0, %v11082
      %v11084 = vpop.f32.mrb[0].mxu0
      %v11085 = vpop.f32.mrb[0].mxu0
      %11086 = vdwg.mxu0
      %v11087 = vadd.f32 %v10939, %v11081
      %v11088 = vadd.f32 %v10940, %v11083
      %s11089 = scalar_lea.vmem %s5, 1024
      %v11090 = vld [vmem:[%s11089] sm:$0xff]
      %v11091 = vld [vmem:[%s11089 + $0x8] sm:$0xff]
      %v11092 = vld [vmem:[%s11089 + $0x10] sm:$0xff]
      %v11093 = vld [vmem:[%s11089 + $0x18] sm:$0xff]
      %v11094 = vld [vmem:[%s11089 + $0x20] sm:$0xff]
      %v11095 = vld [vmem:[%s11089 + $0x28] sm:$0xff]
      %v11096 = vld [vmem:[%s11089 + $0x30] sm:$0xff]
      %v11097 = vld [vmem:[%s11089 + $0x38] sm:$0xff]
      %v11098 = vld [vmem:[%s11089 + $0x40] sm:$0xff]
      %v11099 = vld [vmem:[%s11089 + $0x48] sm:$0xff]
      %v11100 = vld [vmem:[%s11089 + $0x50] sm:$0xff]
      %v11101 = vld [vmem:[%s11089 + $0x58] sm:$0xff]
      %v11102 = vld [vmem:[%s11089 + $0x60] sm:$0xff]
      %v11103 = vld [vmem:[%s11089 + $0x68] sm:$0xff]
      %v11104 = vld [vmem:[%s11089 + $0x70] sm:$0xff]
      %v11105 = vld [vmem:[%s11089 + $0x78] sm:$0xff]
      %v11107 = vunpack.c.l.s4 1966171168
      %v11108 = vunpack.c.0.s8 %v11107
      %v11109 = vlaneseq
      %v11110 = vshrl.u32 %v11109, 7
      %v11111 = vsub.s32 %v11108, %v11110
      %v11112 = vrot.slane %v10709, %v11111
      %v11114 = vunpack.c.l.s4 1966171168
      %v11115 = vunpack.c.0.s8 %v11114
      %v11116 = vlaneseq
      %v11117 = vshrl.u32 %v11116, 7
      %v11118 = vsub.s32 %v11115, %v11117
      %v11119 = vrot.slane %v11112, %v11118
      %v11121 = vunpack.c.l.s4 1966171168
      %v11122 = vunpack.c.0.s8 %v11121
      %v11123 = vlaneseq
      %v11124 = vshrl.u32 %v11123, 7
      %v11125 = vsub.s32 %v11122, %v11124
      %v11126 = vrot.slane %v10732, %v11125
      %v11128 = vunpack.c.l.s4 1966171168
      %v11129 = vunpack.c.0.s8 %v11128
      %v11130 = vlaneseq
      %v11131 = vshrl.u32 %v11130, 7
      %v11132 = vsub.s32 %v11129, %v11131
      %v11133 = vrot.slane %v11126, %v11132
      %v11134 = vunpack.c.l.b16 %v11119
      %v11135 = vunpack.c.l.b16 %v11133
      %v11136 = vrot.slane %v11134, 7
      %v11137 = vsel %vm1816, %v11136, %v10807
      %v11138 = vsel %vm1819, %v10962, %v11137
      %v11139 = vrot.slane %v11135, 5
      %v11140 = vsel %vm1822, %v11139, %v11138
      %v11141 = vpack.c.b16 %v11140, %v11140
      %v11159 = vunpack.c.l.b16 %v11090
      %v11160 = vunpack.c.h.b16 %v11090
      %v11161 = vunpack.c.l.b16 %v11091
      %v11162 = vunpack.c.h.b16 %v11091
      %v11163 = vunpack.c.l.b16 %v11092
      %v11164 = vunpack.c.h.b16 %v11092
      %v11165 = vunpack.c.l.b16 %v11093
      %v11166 = vunpack.c.h.b16 %v11093
      %v11167 = vunpack.c.l.b16 %v11094
      %v11168 = vunpack.c.h.b16 %v11094
      %v11169 = vunpack.c.l.b16 %v11095
      %v11170 = vunpack.c.h.b16 %v11095
      %v11171 = vunpack.c.l.b16 %v11096
      %v11172 = vunpack.c.h.b16 %v11096
      %v11173 = vunpack.c.l.b16 %v11097
      %v11174 = vunpack.c.h.b16 %v11097
      %v11175 = vunpack.c.l.b16 %v11098
      %v11176 = vunpack.c.h.b16 %v11098
      %v11177 = vunpack.c.l.b16 %v11099
      %v11178 = vunpack.c.h.b16 %v11099
      %v11179 = vunpack.c.l.b16 %v11100
      %v11180 = vunpack.c.h.b16 %v11100
      %v11181 = vunpack.c.l.b16 %v11101
      %v11182 = vunpack.c.h.b16 %v11101
      %v11183 = vunpack.c.l.b16 %v11102
      %v11184 = vunpack.c.h.b16 %v11102
      %v11185 = vunpack.c.l.b16 %v11103
      %v11186 = vunpack.c.h.b16 %v11103
      %v11187 = vunpack.c.l.b16 %v11104
      %v11188 = vunpack.c.h.b16 %v11104
      %v11189 = vunpack.c.l.b16 %v11105
      %v11190 = vunpack.c.h.b16 %v11105
      %v11191 = vpack.c.b16 %v11161, %v11159
      %v11192 = vpack.c.b16 %v11162, %v11160
      %v11193 = vpack.c.b16 %v11165, %v11163
      %v11194 = vpack.c.b16 %v11166, %v11164
      %v11195 = vpack.c.b16 %v11169, %v11167
      %v11196 = vpack.c.b16 %v11170, %v11168
      %v11197 = vpack.c.b16 %v11173, %v11171
      %v11198 = vpack.c.b16 %v11174, %v11172
      %v11199 = vpack.c.b16 %v11177, %v11175
      %v11200 = vpack.c.b16 %v11178, %v11176
      %v11201 = vpack.c.b16 %v11181, %v11179
      %v11202 = vpack.c.b16 %v11182, %v11180
      %v11203 = vpack.c.b16 %v11185, %v11183
      %v11204 = vpack.c.b16 %v11186, %v11184
      %v11205 = vpack.c.b16 %v11189, %v11187
      %v11206 = vpack.c.b16 %v11190, %v11188
      %11223 = vmatprep.subr.bf16.mxu0 %v11192
      %11224 = vmatpush1.bf16.msra.mxu0 %v11191
      %11225 = vmatprep.subr.bf16.mxu0 %v11194
      %11226 = vmatpush1.bf16.msra.mxu0 %v11193
      %11227 = vmatprep.subr.bf16.mxu0 %v11196
      %11228 = vmatpush1.bf16.msra.mxu0 %v11195
      %11229 = vmatprep.subr.bf16.mxu0 %v11198
      %11230 = vmatpush1.bf16.msra.mxu0 %v11197
      %11231 = vmatprep.subr.bf16.mxu0 %v11200
      %11232 = vmatpush1.bf16.msra.mxu0 %v11199
      %11233 = vmatprep.subr.bf16.mxu0 %v11202
      %11234 = vmatpush1.bf16.msra.mxu0 %v11201
      %11235 = vmatprep.subr.bf16.mxu0 %v11204
      %11236 = vmatpush1.bf16.msra.mxu0 %v11203
      %11237 = vmatprep.subr.bf16.mxu0 %v11206
      %11238 = vmatpush1.bf16.msra.mxu0 %v11205
      %11239 = vmatprep.subr.bf16.mxu0 0
      %11240 = vmatpush1.bf16.msra.mxu0 0
      %11241 = vmatprep.subr.bf16.mxu0 0
      %11242 = vmatpush1.bf16.msra.mxu0 0
      %11243 = vmatprep.subr.bf16.mxu0 0
      %11244 = vmatpush1.bf16.msra.mxu0 0
      %11245 = vmatprep.subr.bf16.mxu0 0
      %11246 = vmatpush1.bf16.msra.mxu0 0
      %11247 = vmatprep.subr.bf16.mxu0 0
      %11248 = vmatpush1.bf16.msra.mxu0 0
      %11249 = vmatprep.subr.bf16.mxu0 0
      %11250 = vmatpush1.bf16.msra.mxu0 0
      %11251 = vmatprep.subr.bf16.mxu0 0
      %11252 = vmatpush1.bf16.msra.mxu0 0
      %11253 = vmatprep.subr.bf16.mxu0 0
      %11254 = vmatpush1.bf16.msra.mxu0 0
      %11255 = vmatprep.mubr.bf16.mxu0 0
      %11256 = vmatmul.mubr.bf16.gmra.mrb[0].mxu0 %v11141
      %v11257 = vpop.f32.mrb[0].mxu0
      %v11258 = vadd.f32 0.0, %v11257
      %v11259 = vpop.f32.mrb[0].mxu0
      %v11260 = vadd.f32 0.0, %v11259
      %v11261 = vpop.f32.mrb[0].mxu0
      %v11262 = vpop.f32.mrb[0].mxu0
      %11263 = vdwg.mxu0
      %v11264 = vadd.f32 %v11087, %v11258
      %v11265 = vadd.f32 %v11088, %v11260
      %v11266 = vld [vmem:[%s6] sm:$0x3]
      %v11268 = vlaneseq
      %v11269 = vshrl.u32 %v11268, 7
      %v11270 = vsub.s32 0, %v11269
      %v11271 = vrot.slane %v11266, %v11270
      %v11272 = vlaneseq
      %v11273 = vshrl.u32 %v11272, 7
      %v11274 = vsub.s32 1, %v11273
      %v11275 = vrot.slane %v11266, %v11274
      %v11278 = vadd.f32 %v11264, %v11271
      %v11279 = vadd.f32 %v11265, %v11275
      %v11282 = vcombine.low %v11278, %v11279
      %11284 = vst [vmem:[%s278] sm:$0xff] %v11282
      %p11285 = scmp.lt.s32.totalorder %s18, 1
      %s11286 = scalar_select %p11285, %s18, 1
      %s11287 = smul.addr %s11286, 2
      %s11288 = smul.addr %s11287, 4
      %s11289 = scalar_lea.vmem %s7, %s11288
      // Predicated region
      $region49: #{conv_tower_forward.1} parent=47 // pred_check
        %p11290 = pneg %p188
      $region50: #{conv_tower_forward.1} parent=47 // pred_check_branch
        %11292 = sbr.rel (%p11290) target = $region52
      $region51: #{conv_tower_forward.1} parent=47 // pred_region
        _
      $region52: #{conv_tower_forward.1} parent=47 // pred_fallthru
        _
    $region48: #{conv_tower_forward.1} parent=5 // pred_fallthru
      _
    %p11293 = scmp.le.s32.totalorder 2, %s13
    // Predicated region
    $region53: #{conv_tower_forward.1} parent=5 // pred_check
      %p11294 = pneg %p11293
    $region54: #{conv_tower_forward.1} parent=5 // pred_check_branch
      %11296 = sbr.rel (%p11294) target = $region56
    $region55: #{conv_tower_forward.1} parent=5 // pred_region
      %s11297 = ssub.s32 %s13, 2
      // Predicated region
      $region57: #{conv_tower_forward.1} parent=55 // pred_check
        %p11298 = pneg %p194
      $region58: #{conv_tower_forward.1} parent=55 // pred_check_branch
        %11300 = sbr.rel (%p11298) target = $region60
      $region59: #{conv_tower_forward.1} parent=55 // pred_region
        %p11301 = scmp.lt.s32.totalorder %s19, 1
        %s11302 = scalar_select %p11301, %s19, 1
        %s11303 = smul.addr %s11302, 2
        %s11304 = smul.addr %s11303, 4
        %s11305 = scalar_lea.vmem %s7, %s11304
      $region60: #{conv_tower_forward.1} parent=55 // pred_fallthru
        _
    $region56: #{conv_tower_forward.1} parent=5 // pred_fallthru
      _
  $region6: #{conv_tower_forward.1} parent=0 // loop_footer
    %s17 = sadd.s32 1, %s13
  $region7: #{conv_tower_forward.1} parent=0 // loop_footer_branch
    %12 = sbr.rel target = $region3
  $region8: #{conv_tower_forward.1} parent=0 // loop_exit
    _

</llo_original>
